<compile_context>
chip_gen: v7x
topology: tpu7x:2x2x1
jax: 0.10.0
libtpu: 0.0.40
codegen_flags: <defaults>
</compile_context>

<pallas_src>
import numpy as np

import jax
import jax.numpy as jnp
from jax.experimental import pallas as pl
from jax.experimental.pallas import tpu as pltpu

NUM_CLASSES = 3
IN_FEATURES = 1536  # EfficientNet-b3 _fc.in_features
HIDDEN = 256

C_STEM = 16
C_BLK = 32
KSTEM = 3 * 3 * 3          # 27
KSTEM_PAD = 32             # zero-padded contraction dim (nicer bf16 layout)


# ----------------------------------------------------------------------------
# Fused Pallas kernel
# ----------------------------------------------------------------------------
def _silu(x):
    # exp and the (approx) reciprocal both land on the EUP slot.
    return x * pl.reciprocal(1.0 + jnp.exp(-x), approx=True)


def _fused_forward_kernel(
    patches_ref,   # [P, 32]       bf16  stem im2col patches (raw input only, K padded)
    shift_ref,     # [9, P, P]     bf16  0/1 shift+mask matrices for the 3x3 s1 p1 conv
    pool_ref,      # [B, P]        f32   global-average-pool matrix (1/(Ho*Wo) entries)
    w_stem_ref,    # [32, 16]      bf16
    b_stem_ref,    # [1, 16]       f32
    w_blk_ref,     # [9, 16, 32]   bf16
    b_blk_ref,     # [1, 32]       f32
    w_head_ref,    # [32, 1536]    bf16
    b_head_ref,    # [1, 1536]     f32
    w1_ref,        # [1536, 512]   bf16  merged (cls | reg) first head layer
    b1_ref,        # [1, 512]      f32
    w2_ref,        # [512, 4]      bf16  block-diagonal merged second head layer
    b2_ref,        # [1, 4]        f32
    out_ref,       # [B, 4]        f32
):
    f32 = jnp.float32
    bf16 = jnp.bfloat16
    P = patches_ref.shape[0]

    # --- stem conv: 3x3 stride-2 pad-1, 3 -> 16, SiLU (patch matmul) ---
    h = jnp.dot(patches_ref[...], w_stem_ref[...], preferred_element_type=f32)
    h = _silu(h + b_stem_ref[...]).astype(bf16)                                 # [P, 16]

    # --- block conv: 3x3 stride-1 pad-1, 16 -> 32, SiLU ---
    # 9-tap accumulation entirely in VMEM; each tap's shift + edge mask is a 0/1
    # selection matmul (exact), so no im2col is ever materialized in HBM.
    acc = jnp.zeros((P, w_blk_ref.shape[2]), f32)
    for t in range(9):
        tap = jnp.dot(shift_ref[t], h, preferred_element_type=f32).astype(bf16)  # [P, 16]
        acc = acc + jnp.dot(tap, w_blk_ref[t], preferred_element_type=f32)        # [P, 32]
    h2 = _silu(acc + b_blk_ref[...]).astype(bf16)                                 # [P, 32]

    # --- 1x1 head conv (32 -> 1536) + SiLU + global average pool, fused ---
    h3 = jnp.dot(h2, w_head_ref[...], preferred_element_type=f32)                 # [P, 1536]
    h3 = _silu(h3 + b_head_ref[...])
    pooled = jnp.dot(pool_ref[...], h3, preferred_element_type=f32)               # [B, 1536]

    # --- merged heads: Linear(1536, 256+256) + ReLU, block-diag Linear(512, 3+1) ---
    hid = jnp.dot(pooled.astype(bf16), w1_ref[...], preferred_element_type=f32)
    hid = jnp.maximum(hid + b1_ref[...], 0.0)
    # Dropout(0.5): identity (eval-mode semantics).
    out = jnp.dot(hid.astype(bf16), w2_ref[...], preferred_element_type=f32)
    out_ref[...] = (out + b2_ref[...]).astype(out_ref.dtype)


def _full_spec(shape):
    n = len(shape)
    return pl.BlockSpec(shape, lambda i: (0,) * n)


# ----------------------------------------------------------------------------
# Wrapper-side constant builders (built once, outside the hot path)
# ----------------------------------------------------------------------------
def _conv_shift_masks(B, H, W):
    """0/1 matrices realizing the 9 spatial shifts (+ zero padding) of a 3x3 stride-1
    pad-1 conv on a row-major flattened [B*H*W] pixel axis."""
    P = B * H * W
    S = np.zeros((9, P, P), np.float32)
    for t in range(9):
        di, dj = t // 3 - 1, t % 3 - 1
        for n in range(B):
            for oh in range(H):
                hi = oh + di
                if not (0 <= hi < H):
                    continue
                for ow in range(W):
                    wi = ow + dj
                    if 0 <= wi < W:
                        S[t, n * H * W + oh * W + ow, n * H * W + hi * W + wi] = 1.0
    return S


def _gap_matrix(B, HW):
    Pm = np.zeros((B, B * HW), np.float32)
    for n in range(B):
        Pm[n, n * HW:(n + 1) * HW] = 1.0 / HW
    return Pm


def _im2col(x, kh, kw, stride, pad):
    """x: [N, H, W, C] -> patches [N, Ho, Wo, kh*kw*C] (flatten order: kh, kw, C)."""
    N, H, W, C = x.shape
    xp = jnp.pad(x, ((0, 0), (pad, pad), (pad, pad), (0, 0)))
    Ho = (H + 2 * pad - kh) // stride + 1
    Wo = (W + 2 * pad - kw) // stride + 1
    cols = []
    for i in range(kh):
        for j in range(kw):
            cols.append(xp[:, i:i + stride * Ho:stride, j:j + stride * Wo:stride, :])
    return jnp.concatenate(cols, axis=-1)


# ----------------------------------------------------------------------------
# Parameters (deterministic init) and fused-parameter preparation
# ----------------------------------------------------------------------------
def init_params(key):
    ks = jax.random.split(key, 8)

    def w(k, shape, fan_in):
        return jax.random.normal(k, shape, jnp.float32) * (1.0 / jnp.sqrt(float(fan_in)))

    return {
        # simplified EfficientNet-style backbone (BN folded into conv bias)
        "stem_w": w(ks[0], (3, 3, 3, C_STEM), 3 * 3 * 3),
        "stem_b": jnp.zeros((C_STEM,), jnp.float32),
        "blk_w": w(ks[1], (3, 3, C_STEM, C_BLK), 3 * 3 * C_STEM),
        "blk_b": jnp.zeros((C_BLK,), jnp.float32),
        "headconv_w": w(ks[2], (C_BLK, IN_FEATURES), C_BLK),   # 1x1 conv == linear
        "headconv_b": jnp.zeros((IN_FEATURES,), jnp.float32),
        # classifier: Linear(1536,256) -> ReLU -> Dropout -> Linear(256,3)
        "cls_w1": w(ks[3], (IN_FEATURES, HIDDEN), IN_FEATURES),
        "cls_b1": jnp.zeros((HIDDEN,), jnp.float32),
        "cls_w2": w(ks[4], (HIDDEN, NUM_CLASSES), HIDDEN),
        "cls_b2": jnp.zeros((NUM_CLASSES,), jnp.float32),
        # regressor: Linear(1536,256) -> ReLU -> Dropout -> Linear(256,1)
        "reg_w1": w(ks[5], (IN_FEATURES, HIDDEN), IN_FEATURES),
        "reg_b1": jnp.zeros((HIDDEN,), jnp.float32),
        "reg_w2": w(ks[6], (HIDDEN, 1), HIDDEN),
        "reg_b2": jnp.zeros((1,), jnp.float32),
    }


def prepare_fused_params(params, batch, in_h, in_w):
    """One-time prep: cast MXU operands to bf16, reshape biases to [1,N] f32, merge the
    two heads, and build the constant shift/pooling matrices for the given input size."""
    bf16 = jnp.bfloat16
    f32 = jnp.float32

    # spatial size after the stride-2 stem conv
    Ho = (in_h + 2 - 3) // 2 + 1
    Wo = (in_w + 2 - 3) // 2 + 1

    # merged heads: [cls | reg] first layer; block-diagonal second layer -> 4 outputs
    w1 = jnp.concatenate([params["cls_w1"], params["reg_w1"]], axis=1)   # [1536, 512]
    b1 = jnp.concatenate([params["cls_b1"], params["reg_b1"]], axis=0)   # [512]
    w2 = jnp.zeros((2 * HIDDEN, NUM_CLASSES + 1), jnp.float32)
    w2 = w2.at[:HIDDEN, :NUM_CLASSES].set(params["cls_w2"])
    w2 = w2.at[HIDDEN:, NUM_CLASSES:].set(params["reg_w2"])
    b2 = jnp.concatenate([params["cls_b2"], params["reg_b2"]], axis=0)   # [4]

    w_stem = params["stem_w"].reshape(KSTEM, C_STEM)
    w_stem = jnp.pad(w_stem, ((0, KSTEM_PAD - KSTEM), (0, 0)))           # zero-pad K

    return {
        "shift": jnp.asarray(_conv_shift_masks(batch, Ho, Wo), bf16),    # [9, P, P]
        "pool": jnp.asarray(_gap_matrix(batch, Ho * Wo), f32),           # [B, P]
        "w_stem": w_stem.astype(bf16),                                   # [32, 16]
        "b_stem": params["stem_b"].reshape(1, -1).astype(f32),
        "w_blk": params["blk_w"].reshape(9, C_STEM, C_BLK).astype(bf16),  # [9, 16, 32]
        "b_blk": params["blk_b"].reshape(1, -1).astype(f32),
        "w_head": params["headconv_w"].astype(bf16),                     # [32, 1536]
        "b_head": params["headconv_b"].reshape(1, -1).astype(f32),
        "w1": w1.astype(bf16),                                           # [1536, 512]
        "b1": b1.reshape(1, -1).astype(f32),
        "w2": w2.astype(bf16),                                           # [512, 4]
        "b2": b2.reshape(1, -1).astype(f32),
    }


# ----------------------------------------------------------------------------
# Forward pass: one fused pallas_call
# ----------------------------------------------------------------------------
@jax.jit
def multitask_efficientnet_forward(fused, x_nchw):
    """x_nchw: [B, 3, H, W] float32 -> (fruit_output [B,3], freshness_output [B,1])."""
    x = jnp.transpose(x_nchw, (0, 2, 3, 1))                  # NCHW -> NHWC
    # Patch-extract only the tiny raw input (XLA-fused glue); every later intermediate
    # stays inside the single Pallas kernel in VMEM.
    patches = _im2col(x, 3, 3, stride=2, pad=1)              # [B, Ho, Wo, 27]
    B, Ho, Wo, K = patches.shape
    a = patches.reshape(B * Ho * Wo, K)
    a = jnp.pad(a, ((0, 0), (0, KSTEM_PAD - K))).astype(jnp.bfloat16)   # [P, 32]

    args = (
        a, fused["shift"], fused["pool"],
        fused["w_stem"], fused["b_stem"],
        fused["w_blk"], fused["b_blk"],
        fused["w_head"], fused["b_head"],
        fused["w1"], fused["b1"],
        fused["w2"], fused["b2"],
    )

    out4 = pl.pallas_call(
        _fused_forward_kernel,
        out_shape=jax.ShapeDtypeStruct((B, NUM_CLASSES + 1), jnp.float32),
        grid=(1,),
        in_specs=[_full_spec(v.shape) for v in args],
        out_specs=_full_spec((B, NUM_CLASSES + 1)),
        compiler_params=pltpu.CompilerParams(dimension_semantics=("arbitrary",)),
    )(*args)
    # TODO(synk): at real EfficientNet-b3 resolutions, tile the pixel axis over a
    # "parallel" grid dimension (uses v7x's second TensorCore and respects its 64 MiB
    # VMEM) instead of the single grid step used at this toy size.

    return out4[:, :NUM_CLASSES], out4[:, NUM_CLASSES:]


if __name__ == "__main__":
    key = jax.random.PRNGKey(0)
    pkey, xkey = jax.random.split(key)
    params = init_params(pkey)

    # Small deterministic input image batch: [B, 3, 16, 16], NCHW like PyTorch.
    B, H, W = 2, 16, 16
    fused = prepare_fused_params(params, B, H, W)
    x = jax.random.normal(xkey, (B, 3, H, W), jnp.float32)

    fruit_out, fresh_out = multitask_efficientnet_forward(fused, x)
    fruit_out = jax.block_until_ready(fruit_out)
    fresh_out = jax.block_until_ready(fresh_out)

    assert fruit_out.shape == (B, NUM_CLASSES), fruit_out.shape
    assert fresh_out.shape == (B, 1), fresh_out.shape
    assert fruit_out.dtype == jnp.float32 and fresh_out.dtype == jnp.float32
    assert bool(jnp.all(jnp.isfinite(fruit_out))) and bool(jnp.all(jnp.isfinite(fresh_out)))

    print("KERNEL_OK")
</pallas_src>

<mosaic_0001>
module attributes {stable_mosaic.version = 11 : i64} {
  func.func @_fused_forward_kernel(%arg0: i32, %arg1: memref<128x32xbf16, #tpu.memory_space<vmem>>, %arg2: memref<9x128x128xbf16, #tpu.memory_space<vmem>>, %arg3: memref<2x128xf32, #tpu.memory_space<vmem>>, %arg4: memref<32x16xbf16, #tpu.memory_space<vmem>>, %arg5: memref<1x16xf32, #tpu.memory_space<vmem>>, %arg6: memref<9x16x32xbf16, #tpu.memory_space<vmem>>, %arg7: memref<1x32xf32, #tpu.memory_space<vmem>>, %arg8: memref<32x1536xbf16, #tpu.memory_space<vmem>>, %arg9: memref<1x1536xf32, #tpu.memory_space<vmem>>, %arg10: memref<1536x512xbf16, #tpu.memory_space<vmem>>, %arg11: memref<1x512xf32, #tpu.memory_space<vmem>>, %arg12: memref<512x4xbf16, #tpu.memory_space<vmem>>, %arg13: memref<1x4xf32, #tpu.memory_space<vmem>>, %arg14: memref<2x4xf32, #tpu.memory_space<vmem>>) attributes {dimension_semantics = [#tpu.dimension_semantics<arbitrary>], iteration_bounds = array<i64: 1>, scalar_prefetch = 0 : i64, scratch_operands = 0 : i64, tpu.core_type = #tpu.core_type<tc>, window_params = [{pipeline_mode = #tpu.pipeline_mode<synchronous>, transform_indices = @transform_0, window_bounds = array<i64: 128, 32>}, {pipeline_mode = #tpu.pipeline_mode<synchronous>, transform_indices = @transform_1, window_bounds = array<i64: 9, 128, 128>}, {pipeline_mode = #tpu.pipeline_mode<synchronous>, transform_indices = @transform_2, window_bounds = array<i64: 2, 128>}, {pipeline_mode = #tpu.pipeline_mode<synchronous>, transform_indices = @transform_3, window_bounds = array<i64: 32, 16>}, {pipeline_mode = #tpu.pipeline_mode<synchronous>, transform_indices = @transform_4, window_bounds = array<i64: 1, 16>}, {pipeline_mode = #tpu.pipeline_mode<synchronous>, transform_indices = @transform_5, window_bounds = array<i64: 9, 16, 32>}, {pipeline_mode = #tpu.pipeline_mode<synchronous>, transform_indices = @transform_6, window_bounds = array<i64: 1, 32>}, {pipeline_mode = #tpu.pipeline_mode<synchronous>, transform_indices = @transform_7, window_bounds = array<i64: 32, 1536>}, {pipeline_mode = #tpu.pipeline_mode<synchronous>, transform_indices = @transform_8, window_bounds = array<i64: 1, 1536>}, {pipeline_mode = #tpu.pipeline_mode<synchronous>, transform_indices = @transform_9, window_bounds = array<i64: 1536, 512>}, {pipeline_mode = #tpu.pipeline_mode<synchronous>, transform_indices = @transform_10, window_bounds = array<i64: 1, 512>}, {pipeline_mode = #tpu.pipeline_mode<synchronous>, transform_indices = @transform_11, window_bounds = array<i64: 512, 4>}, {pipeline_mode = #tpu.pipeline_mode<synchronous>, transform_indices = @transform_12, window_bounds = array<i64: 1, 4>}, {pipeline_mode = #tpu.pipeline_mode<synchronous>, transform_indices = @transform_13, window_bounds = array<i64: 2, 4>}]} {
    %c0 = arith.constant 0 : index
    %c0_0 = arith.constant 0 : index
    %0 = vector.load %arg1[%c0, %c0_0] : memref<128x32xbf16, #tpu.memory_space<vmem>>, vector<128x32xbf16>
    %c0_1 = arith.constant 0 : index
    %c0_2 = arith.constant 0 : index
    %1 = vector.load %arg4[%c0_1, %c0_2] : memref<32x16xbf16, #tpu.memory_space<vmem>>, vector<32x16xbf16>
    %cst = arith.constant dense<0.000000e+00> : vector<128x16xf32>
    %2 = tpu.matmul %0, %1, %cst {dimension_numbers = #tpu.dot_dimension_numbers<[1], [0], [0], [1], [0, 0, 1, 1], [], []>} : vector<128x32xbf16>, vector<32x16xbf16>, vector<128x16xf32> -> vector<128x16xf32>
    %c0_3 = arith.constant 0 : index
    %c0_4 = arith.constant 0 : index
    %3 = vector.load %arg5[%c0_3, %c0_4] : memref<1x16xf32, #tpu.memory_space<vmem>>, vector<1x16xf32>
    %4 = vector.broadcast %3 : vector<1x16xf32> to vector<128x16xf32>
    %5 = arith.addf %2, %4 : vector<128x16xf32>
    %cst_5 = arith.constant 0.000000e+00 : f32
    %6 = vector.broadcast %cst_5 : f32 to vector<128x16xf32>
    %7 = arith.subf %6, %5 : vector<128x16xf32>
    %8 = math.exp %7 : vector<128x16xf32>
    %cst_6 = arith.constant 1.000000e+00 : f32
    %9 = vector.broadcast %cst_6 : f32 to vector<128x16xf32>
    %10 = arith.addf %9, %8 : vector<128x16xf32>
    %11 = tpu.reciprocal %10 {approx = true} : vector<128x16xf32> -> vector<128x16xf32>
    %12 = arith.mulf %5, %11 : vector<128x16xf32>
    %13 = arith.truncf %12 : vector<128x16xf32> to vector<128x16xbf16>
    %cst_7 = arith.constant 0.000000e+00 : f32
    %14 = vector.broadcast %cst_7 : f32 to vector<128x32xf32>
    %c0_8 = arith.constant 0 : index
    %c0_9 = arith.constant 0 : index
    %c0_10 = arith.constant 0 : index
    %15 = vector.load %arg2[%c0_8, %c0_9, %c0_10] : memref<9x128x128xbf16, #tpu.memory_space<vmem>>, vector<1x128x128xbf16>
    %16 = vector.shape_cast %15 : vector<1x128x128xbf16> to vector<128x128xbf16>
    %cst_11 = arith.constant dense<0.000000e+00> : vector<128x16xf32>
    %17 = tpu.matmul %16, %13, %cst_11 {dimension_numbers = #tpu.dot_dimension_numbers<[1], [0], [0], [1], [0, 0, 1, 1], [], []>} : vector<128x128xbf16>, vector<128x16xbf16>, vector<128x16xf32> -> vector<128x16xf32>
    %18 = arith.truncf %17 : vector<128x16xf32> to vector<128x16xbf16>
    %c0_12 = arith.constant 0 : index
    %c0_13 = arith.constant 0 : index
    %c0_14 = arith.constant 0 : index
    %19 = vector.load %arg6[%c0_12, %c0_13, %c0_14] : memref<9x16x32xbf16, #tpu.memory_space<vmem>>, vector<1x16x32xbf16>
    %20 = vector.shape_cast %19 : vector<1x16x32xbf16> to vector<16x32xbf16>
    %cst_15 = arith.constant dense<0.000000e+00> : vector<128x32xf32>
    %21 = tpu.matmul %18, %20, %cst_15 {dimension_numbers = #tpu.dot_dimension_numbers<[1], [0], [0], [1], [0, 0, 1, 1], [], []>} : vector<128x16xbf16>, vector<16x32xbf16>, vector<128x32xf32> -> vector<128x32xf32>
    %22 = arith.addf %14, %21 : vector<128x32xf32>
    %c1 = arith.constant 1 : index
    %c0_16 = arith.constant 0 : index
    %c0_17 = arith.constant 0 : index
    %23 = vector.load %arg2[%c1, %c0_16, %c0_17] : memref<9x128x128xbf16, #tpu.memory_space<vmem>>, vector<1x128x128xbf16>
    %24 = vector.shape_cast %23 : vector<1x128x128xbf16> to vector<128x128xbf16>
    %cst_18 = arith.constant dense<0.000000e+00> : vector<128x16xf32>
    %25 = tpu.matmul %24, %13, %cst_18 {dimension_numbers = #tpu.dot_dimension_numbers<[1], [0], [0], [1], [0, 0, 1, 1], [], []>} : vector<128x128xbf16>, vector<128x16xbf16>, vector<128x16xf32> -> vector<128x16xf32>
    %26 = arith.truncf %25 : vector<128x16xf32> to vector<128x16xbf16>
    %c1_19 = arith.constant 1 : index
    %c0_20 = arith.constant 0 : index
    %c0_21 = arith.constant 0 : index
    %27 = vector.load %arg6[%c1_19, %c0_20, %c0_21] : memref<9x16x32xbf16, #tpu.memory_space<vmem>>, vector<1x16x32xbf16>
    %28 = vector.shape_cast %27 : vector<1x16x32xbf16> to vector<16x32xbf16>
    %cst_22 = arith.constant dense<0.000000e+00> : vector<128x32xf32>
    %29 = tpu.matmul %26, %28, %cst_22 {dimension_numbers = #tpu.dot_dimension_numbers<[1], [0], [0], [1], [0, 0, 1, 1], [], []>} : vector<128x16xbf16>, vector<16x32xbf16>, vector<128x32xf32> -> vector<128x32xf32>
    %30 = arith.addf %22, %29 : vector<128x32xf32>
    %c2 = arith.constant 2 : index
    %c0_23 = arith.constant 0 : index
    %c0_24 = arith.constant 0 : index
    %31 = vector.load %arg2[%c2, %c0_23, %c0_24] : memref<9x128x128xbf16, #tpu.memory_space<vmem>>, vector<1x128x128xbf16>
    %32 = vector.shape_cast %31 : vector<1x128x128xbf16> to vector<128x128xbf16>
    %cst_25 = arith.constant dense<0.000000e+00> : vector<128x16xf32>
    %33 = tpu.matmul %32, %13, %cst_25 {dimension_numbers = #tpu.dot_dimension_numbers<[1], [0], [0], [1], [0, 0, 1, 1], [], []>} : vector<128x128xbf16>, vector<128x16xbf16>, vector<128x16xf32> -> vector<128x16xf32>
    %34 = arith.truncf %33 : vector<128x16xf32> to vector<128x16xbf16>
    %c2_26 = arith.constant 2 : index
    %c0_27 = arith.constant 0 : index
    %c0_28 = arith.constant 0 : index
    %35 = vector.load %arg6[%c2_26, %c0_27, %c0_28] : memref<9x16x32xbf16, #tpu.memory_space<vmem>>, vector<1x16x32xbf16>
    %36 = vector.shape_cast %35 : vector<1x16x32xbf16> to vector<16x32xbf16>
    %cst_29 = arith.constant dense<0.000000e+00> : vector<128x32xf32>
    %37 = tpu.matmul %34, %36, %cst_29 {dimension_numbers = #tpu.dot_dimension_numbers<[1], [0], [0], [1], [0, 0, 1, 1], [], []>} : vector<128x16xbf16>, vector<16x32xbf16>, vector<128x32xf32> -> vector<128x32xf32>
    %38 = arith.addf %30, %37 : vector<128x32xf32>
    %c3 = arith.constant 3 : index
    %c0_30 = arith.constant 0 : index
    %c0_31 = arith.constant 0 : index
    %39 = vector.load %arg2[%c3, %c0_30, %c0_31] : memref<9x128x128xbf16, #tpu.memory_space<vmem>>, vector<1x128x128xbf16>
    %40 = vector.shape_cast %39 : vector<1x128x128xbf16> to vector<128x128xbf16>
    %cst_32 = arith.constant dense<0.000000e+00> : vector<128x16xf32>
    %41 = tpu.matmul %40, %13, %cst_32 {dimension_numbers = #tpu.dot_dimension_numbers<[1], [0], [0], [1], [0, 0, 1, 1], [], []>} : vector<128x128xbf16>, vector<128x16xbf16>, vector<128x16xf32> -> vector<128x16xf32>
    %42 = arith.truncf %41 : vector<128x16xf32> to vector<128x16xbf16>
    %c3_33 = arith.constant 3 : index
    %c0_34 = arith.constant 0 : index
    %c0_35 = arith.constant 0 : index
    %43 = vector.load %arg6[%c3_33, %c0_34, %c0_35] : memref<9x16x32xbf16, #tpu.memory_space<vmem>>, vector<1x16x32xbf16>
    %44 = vector.shape_cast %43 : vector<1x16x32xbf16> to vector<16x32xbf16>
    %cst_36 = arith.constant dense<0.000000e+00> : vector<128x32xf32>
    %45 = tpu.matmul %42, %44, %cst_36 {dimension_numbers = #tpu.dot_dimension_numbers<[1], [0], [0], [1], [0, 0, 1, 1], [], []>} : vector<128x16xbf16>, vector<16x32xbf16>, vector<128x32xf32> -> vector<128x32xf32>
    %46 = arith.addf %38, %45 : vector<128x32xf32>
    %c4 = arith.constant 4 : index
    %c0_37 = arith.constant 0 : index
    %c0_38 = arith.constant 0 : index
    %47 = vector.load %arg2[%c4, %c0_37, %c0_38] : memref<9x128x128xbf16, #tpu.memory_space<vmem>>, vector<1x128x128xbf16>
    %48 = vector.shape_cast %47 : vector<1x128x128xbf16> to vector<128x128xbf16>
    %cst_39 = arith.constant dense<0.000000e+00> : vector<128x16xf32>
    %49 = tpu.matmul %48, %13, %cst_39 {dimension_numbers = #tpu.dot_dimension_numbers<[1], [0], [0], [1], [0, 0, 1, 1], [], []>} : vector<128x128xbf16>, vector<128x16xbf16>, vector<128x16xf32> -> vector<128x16xf32>
    %50 = arith.truncf %49 : vector<128x16xf32> to vector<128x16xbf16>
    %c4_40 = arith.constant 4 : index
    %c0_41 = arith.constant 0 : index
    %c0_42 = arith.constant 0 : index
    %51 = vector.load %arg6[%c4_40, %c0_41, %c0_42] : memref<9x16x32xbf16, #tpu.memory_space<vmem>>, vector<1x16x32xbf16>
    %52 = vector.shape_cast %51 : vector<1x16x32xbf16> to vector<16x32xbf16>
    %cst_43 = arith.constant dense<0.000000e+00> : vector<128x32xf32>
    %53 = tpu.matmul %50, %52, %cst_43 {dimension_numbers = #tpu.dot_dimension_numbers<[1], [0], [0], [1], [0, 0, 1, 1], [], []>} : vector<128x16xbf16>, vector<16x32xbf16>, vector<128x32xf32> -> vector<128x32xf32>
    %54 = arith.addf %46, %53 : vector<128x32xf32>
    %c5 = arith.constant 5 : index
    %c0_44 = arith.constant 0 : index
    %c0_45 = arith.constant 0 : index
    %55 = vector.load %arg2[%c5, %c0_44, %c0_45] : memref<9x128x128xbf16, #tpu.memory_space<vmem>>, vector<1x128x128xbf16>
    %56 = vector.shape_cast %55 : vector<1x128x128xbf16> to vector<128x128xbf16>
    %cst_46 = arith.constant dense<0.000000e+00> : vector<128x16xf32>
    %57 = tpu.matmul %56, %13, %cst_46 {dimension_numbers = #tpu.dot_dimension_numbers<[1], [0], [0], [1], [0, 0, 1, 1], [], []>} : vector<128x128xbf16>, vector<128x16xbf16>, vector<128x16xf32> -> vector<128x16xf32>
    %58 = arith.truncf %57 : vector<128x16xf32> to vector<128x16xbf16>
    %c5_47 = arith.constant 5 : index
    %c0_48 = arith.constant 0 : index
    %c0_49 = arith.constant 0 : index
    %59 = vector.load %arg6[%c5_47, %c0_48, %c0_49] : memref<9x16x32xbf16, #tpu.memory_space<vmem>>, vector<1x16x32xbf16>
    %60 = vector.shape_cast %59 : vector<1x16x32xbf16> to vector<16x32xbf16>
    %cst_50 = arith.constant dense<0.000000e+00> : vector<128x32xf32>
    %61 = tpu.matmul %58, %60, %cst_50 {dimension_numbers = #tpu.dot_dimension_numbers<[1], [0], [0], [1], [0, 0, 1, 1], [], []>} : vector<128x16xbf16>, vector<16x32xbf16>, vector<128x32xf32> -> vector<128x32xf32>
    %62 = arith.addf %54, %61 : vector<128x32xf32>
    %c6 = arith.constant 6 : index
    %c0_51 = arith.constant 0 : index
    %c0_52 = arith.constant 0 : index
    %63 = vector.load %arg2[%c6, %c0_51, %c0_52] : memref<9x128x128xbf16, #tpu.memory_space<vmem>>, vector<1x128x128xbf16>
    %64 = vector.shape_cast %63 : vector<1x128x128xbf16> to vector<128x128xbf16>
    %cst_53 = arith.constant dense<0.000000e+00> : vector<128x16xf32>
    %65 = tpu.matmul %64, %13, %cst_53 {dimension_numbers = #tpu.dot_dimension_numbers<[1], [0], [0], [1], [0, 0, 1, 1], [], []>} : vector<128x128xbf16>, vector<128x16xbf16>, vector<128x16xf32> -> vector<128x16xf32>
    %66 = arith.truncf %65 : vector<128x16xf32> to vector<128x16xbf16>
    %c6_54 = arith.constant 6 : index
    %c0_55 = arith.constant 0 : index
    %c0_56 = arith.constant 0 : index
    %67 = vector.load %arg6[%c6_54, %c0_55, %c0_56] : memref<9x16x32xbf16, #tpu.memory_space<vmem>>, vector<1x16x32xbf16>
    %68 = vector.shape_cast %67 : vector<1x16x32xbf16> to vector<16x32xbf16>
    %cst_57 = arith.constant dense<0.000000e+00> : vector<128x32xf32>
    %69 = tpu.matmul %66, %68, %cst_57 {dimension_numbers = #tpu.dot_dimension_numbers<[1], [0], [0], [1], [0, 0, 1, 1], [], []>} : vector<128x16xbf16>, vector<16x32xbf16>, vector<128x32xf32> -> vector<128x32xf32>
    %70 = arith.addf %62, %69 : vector<128x32xf32>
    %c7 = arith.constant 7 : index
    %c0_58 = arith.constant 0 : index
    %c0_59 = arith.constant 0 : index
    %71 = vector.load %arg2[%c7, %c0_58, %c0_59] : memref<9x128x128xbf16, #tpu.memory_space<vmem>>, vector<1x128x128xbf16>
    %72 = vector.shape_cast %71 : vector<1x128x128xbf16> to vector<128x128xbf16>
    %cst_60 = arith.constant dense<0.000000e+00> : vector<128x16xf32>
    %73 = tpu.matmul %72, %13, %cst_60 {dimension_numbers = #tpu.dot_dimension_numbers<[1], [0], [0], [1], [0, 0, 1, 1], [], []>} : vector<128x128xbf16>, vector<128x16xbf16>, vector<128x16xf32> -> vector<128x16xf32>
    %74 = arith.truncf %73 : vector<128x16xf32> to vector<128x16xbf16>
    %c7_61 = arith.constant 7 : index
    %c0_62 = arith.constant 0 : index
    %c0_63 = arith.constant 0 : index
    %75 = vector.load %arg6[%c7_61, %c0_62, %c0_63] : memref<9x16x32xbf16, #tpu.memory_space<vmem>>, vector<1x16x32xbf16>
    %76 = vector.shape_cast %75 : vector<1x16x32xbf16> to vector<16x32xbf16>
    %cst_64 = arith.constant dense<0.000000e+00> : vector<128x32xf32>
    %77 = tpu.matmul %74, %76, %cst_64 {dimension_numbers = #tpu.dot_dimension_numbers<[1], [0], [0], [1], [0, 0, 1, 1], [], []>} : vector<128x16xbf16>, vector<16x32xbf16>, vector<128x32xf32> -> vector<128x32xf32>
    %78 = arith.addf %70, %77 : vector<128x32xf32>
    %c8 = arith.constant 8 : index
    %c0_65 = arith.constant 0 : index
    %c0_66 = arith.constant 0 : index
    %79 = vector.load %arg2[%c8, %c0_65, %c0_66] : memref<9x128x128xbf16, #tpu.memory_space<vmem>>, vector<1x128x128xbf16>
    %80 = vector.shape_cast %79 : vector<1x128x128xbf16> to vector<128x128xbf16>
    %cst_67 = arith.constant dense<0.000000e+00> : vector<128x16xf32>
    %81 = tpu.matmul %80, %13, %cst_67 {dimension_numbers = #tpu.dot_dimension_numbers<[1], [0], [0], [1], [0, 0, 1, 1], [], []>} : vector<128x128xbf16>, vector<128x16xbf16>, vector<128x16xf32> -> vector<128x16xf32>
    %82 = arith.truncf %81 : vector<128x16xf32> to vector<128x16xbf16>
    %c8_68 = arith.constant 8 : index
    %c0_69 = arith.constant 0 : index
    %c0_70 = arith.constant 0 : index
    %83 = vector.load %arg6[%c8_68, %c0_69, %c0_70] : memref<9x16x32xbf16, #tpu.memory_space<vmem>>, vector<1x16x32xbf16>
    %84 = vector.shape_cast %83 : vector<1x16x32xbf16> to vector<16x32xbf16>
    %cst_71 = arith.constant dense<0.000000e+00> : vector<128x32xf32>
    %85 = tpu.matmul %82, %84, %cst_71 {dimension_numbers = #tpu.dot_dimension_numbers<[1], [0], [0], [1], [0, 0, 1, 1], [], []>} : vector<128x16xbf16>, vector<16x32xbf16>, vector<128x32xf32> -> vector<128x32xf32>
    %86 = arith.addf %78, %85 : vector<128x32xf32>
    %c0_72 = arith.constant 0 : index
    %c0_73 = arith.constant 0 : index
    %87 = vector.load %arg7[%c0_72, %c0_73] : memref<1x32xf32, #tpu.memory_space<vmem>>, vector<1x32xf32>
    %88 = vector.broadcast %87 : vector<1x32xf32> to vector<128x32xf32>
    %89 = arith.addf %86, %88 : vector<128x32xf32>
    %cst_74 = arith.constant 0.000000e+00 : f32
    %90 = vector.broadcast %cst_74 : f32 to vector<128x32xf32>
    %91 = arith.subf %90, %89 : vector<128x32xf32>
    %92 = math.exp %91 : vector<128x32xf32>
    %cst_75 = arith.constant 1.000000e+00 : f32
    %93 = vector.broadcast %cst_75 : f32 to vector<128x32xf32>
    %94 = arith.addf %93, %92 : vector<128x32xf32>
    %95 = tpu.reciprocal %94 {approx = true} : vector<128x32xf32> -> vector<128x32xf32>
    %96 = arith.mulf %89, %95 : vector<128x32xf32>
    %97 = arith.truncf %96 : vector<128x32xf32> to vector<128x32xbf16>
    %c0_76 = arith.constant 0 : index
    %c0_77 = arith.constant 0 : index
    %98 = vector.load %arg8[%c0_76, %c0_77] : memref<32x1536xbf16, #tpu.memory_space<vmem>>, vector<32x1536xbf16>
    %cst_78 = arith.constant dense<0.000000e+00> : vector<128x1536xf32>
    %99 = tpu.matmul %97, %98, %cst_78 {dimension_numbers = #tpu.dot_dimension_numbers<[1], [0], [0], [1], [0, 0, 1, 1], [], []>} : vector<128x32xbf16>, vector<32x1536xbf16>, vector<128x1536xf32> -> vector<128x1536xf32>
    %c0_79 = arith.constant 0 : index
    %c0_80 = arith.constant 0 : index
    %100 = vector.load %arg9[%c0_79, %c0_80] : memref<1x1536xf32, #tpu.memory_space<vmem>>, vector<1x1536xf32>
    %101 = vector.broadcast %100 : vector<1x1536xf32> to vector<128x1536xf32>
    %102 = arith.addf %99, %101 : vector<128x1536xf32>
    %cst_81 = arith.constant 0.000000e+00 : f32
    %103 = vector.broadcast %cst_81 : f32 to vector<128x1536xf32>
    %104 = arith.subf %103, %102 : vector<128x1536xf32>
    %105 = math.exp %104 : vector<128x1536xf32>
    %cst_82 = arith.constant 1.000000e+00 : f32
    %106 = vector.broadcast %cst_82 : f32 to vector<128x1536xf32>
    %107 = arith.addf %106, %105 : vector<128x1536xf32>
    %108 = tpu.reciprocal %107 {approx = true} : vector<128x1536xf32> -> vector<128x1536xf32>
    %109 = arith.mulf %102, %108 : vector<128x1536xf32>
    %c0_83 = arith.constant 0 : index
    %c0_84 = arith.constant 0 : index
    %110 = vector.load %arg3[%c0_83, %c0_84] : memref<2x128xf32, #tpu.memory_space<vmem>>, vector<2x128xf32>
    %cst_85 = arith.constant dense<0.000000e+00> : vector<2x1536xf32>
    %111 = tpu.matmul %110, %109, %cst_85 {dimension_numbers = #tpu.dot_dimension_numbers<[1], [0], [0], [1], [0, 0, 1, 1], [], []>} : vector<2x128xf32>, vector<128x1536xf32>, vector<2x1536xf32> -> vector<2x1536xf32>
    %112 = arith.truncf %111 : vector<2x1536xf32> to vector<2x1536xbf16>
    %c0_86 = arith.constant 0 : index
    %c0_87 = arith.constant 0 : index
    %113 = vector.load %arg10[%c0_86, %c0_87] : memref<1536x512xbf16, #tpu.memory_space<vmem>>, vector<1536x512xbf16>
    %cst_88 = arith.constant dense<0.000000e+00> : vector<2x512xf32>
    %114 = tpu.matmul %112, %113, %cst_88 {dimension_numbers = #tpu.dot_dimension_numbers<[1], [0], [0], [1], [0, 0, 1, 1], [], []>} : vector<2x1536xbf16>, vector<1536x512xbf16>, vector<2x512xf32> -> vector<2x512xf32>
    %c0_89 = arith.constant 0 : index
    %c0_90 = arith.constant 0 : index
    %115 = vector.load %arg11[%c0_89, %c0_90] : memref<1x512xf32, #tpu.memory_space<vmem>>, vector<1x512xf32>
    %116 = vector.broadcast %115 : vector<1x512xf32> to vector<2x512xf32>
    %117 = arith.addf %114, %116 : vector<2x512xf32>
    %cst_91 = arith.constant 0.000000e+00 : f32
    %118 = vector.broadcast %cst_91 : f32 to vector<2x512xf32>
    %119 = arith.maximumf %117, %118 : vector<2x512xf32>
    %120 = arith.truncf %119 : vector<2x512xf32> to vector<2x512xbf16>
    %c0_92 = arith.constant 0 : index
    %c0_93 = arith.constant 0 : index
    %121 = vector.load %arg12[%c0_92, %c0_93] : memref<512x4xbf16, #tpu.memory_space<vmem>>, vector<512x4xbf16>
    %cst_94 = arith.constant dense<0.000000e+00> : vector<2x4xf32>
    %122 = tpu.matmul %120, %121, %cst_94 {dimension_numbers = #tpu.dot_dimension_numbers<[1], [0], [0], [1], [0, 0, 1, 1], [], []>} : vector<2x512xbf16>, vector<512x4xbf16>, vector<2x4xf32> -> vector<2x4xf32>
    %c0_95 = arith.constant 0 : index
    %c0_96 = arith.constant 0 : index
    %123 = vector.load %arg13[%c0_95, %c0_96] : memref<1x4xf32, #tpu.memory_space<vmem>>, vector<1x4xf32>
    %124 = vector.broadcast %123 : vector<1x4xf32> to vector<2x4xf32>
    %125 = arith.addf %122, %124 : vector<2x4xf32>
    %c0_97 = arith.constant 0 : index
    %c0_98 = arith.constant 0 : index
    %126 = vector.load %arg14[%c0_97, %c0_98] : memref<2x4xf32, #tpu.memory_space<vmem>>, vector<2x4xf32>
    tpu.vector_store %arg14[%c0_97, %c0_98], %125 {strides = array<i32>} : memref<2x4xf32, #tpu.memory_space<vmem>>, vector<2x4xf32>,
    return
  }
  func.func @transform_0(%arg0: i32) -> (i32, i32) {
    %c0_i32 = arith.constant 0 : i32
    %c0_i32_0 = arith.constant 0 : i32
    %c0_i32_1 = arith.constant 0 : i32
    return %c0_i32, %c0_i32_0 : i32, i32
  }
  func.func @transform_1(%arg0: i32) -> (i32, i32, i32) {
    %c0_i32 = arith.constant 0 : i32
    %c0_i32_0 = arith.constant 0 : i32
    %c0_i32_1 = arith.constant 0 : i32
    %c0_i32_2 = arith.constant 0 : i32
    return %c0_i32, %c0_i32_0, %c0_i32_1 : i32, i32, i32
  }
  func.func @transform_2(%arg0: i32) -> (i32, i32) {
    %c0_i32 = arith.constant 0 : i32
    %c0_i32_0 = arith.constant 0 : i32
    %c0_i32_1 = arith.constant 0 : i32
    return %c0_i32, %c0_i32_0 : i32, i32
  }
  func.func @transform_3(%arg0: i32) -> (i32, i32) {
    %c0_i32 = arith.constant 0 : i32
    %c0_i32_0 = arith.constant 0 : i32
    %c0_i32_1 = arith.constant 0 : i32
    return %c0_i32, %c0_i32_0 : i32, i32
  }
  func.func @transform_4(%arg0: i32) -> (i32, i32) {
    %c0_i32 = arith.constant 0 : i32
    %c0_i32_0 = arith.constant 0 : i32
    %c0_i32_1 = arith.constant 0 : i32
    return %c0_i32, %c0_i32_0 : i32, i32
  }
  func.func @transform_5(%arg0: i32) -> (i32, i32, i32) {
    %c0_i32 = arith.constant 0 : i32
    %c0_i32_0 = arith.constant 0 : i32
    %c0_i32_1 = arith.constant 0 : i32
    %c0_i32_2 = arith.constant 0 : i32
    return %c0_i32, %c0_i32_0, %c0_i32_1 : i32, i32, i32
  }
  func.func @transform_6(%arg0: i32) -> (i32, i32) {
    %c0_i32 = arith.constant 0 : i32
    %c0_i32_0 = arith.constant 0 : i32
    %c0_i32_1 = arith.constant 0 : i32
    return %c0_i32, %c0_i32_0 : i32, i32
  }
  func.func @transform_7(%arg0: i32) -> (i32, i32) {
    %c0_i32 = arith.constant 0 : i32
    %c0_i32_0 = arith.constant 0 : i32
    %c0_i32_1 = arith.constant 0 : i32
    return %c0_i32, %c0_i32_0 : i32, i32
  }
  func.func @transform_8(%arg0: i32) -> (i32, i32) {
    %c0_i32 = arith.constant 0 : i32
    %c0_i32_0 = arith.constant 0 : i32
    %c0_i32_1 = arith.constant 0 : i32
    return %c0_i32, %c0_i32_0 : i32, i32
  }
  func.func @transform_9(%arg0: i32) -> (i32, i32) {
    %c0_i32 = arith.constant 0 : i32
    %c0_i32_0 = arith.constant 0 : i32
    %c0_i32_1 = arith.constant 0 : i32
    return %c0_i32, %c0_i32_0 : i32, i32
  }
  func.func @transform_10(%arg0: i32) -> (i32, i32) {
    %c0_i32 = arith.constant 0 : i32
    %c0_i32_0 = arith.constant 0 : i32
    %c0_i32_1 = arith.constant 0 : i32
    return %c0_i32, %c0_i32_0 : i32, i32
  }
  func.func @transform_11(%arg0: i32) -> (i32, i32) {
    %c0_i32 = arith.constant 0 : i32
    %c0_i32_0 = arith.constant 0 : i32
    %c0_i32_1 = arith.constant 0 : i32
    return %c0_i32, %c0_i32_0 : i32, i32
  }
  func.func @transform_12(%arg0: i32) -> (i32, i32) {
    %c0_i32 = arith.constant 0 : i32
    %c0_i32_0 = arith.constant 0 : i32
    %c0_i32_1 = arith.constant 0 : i32
    return %c0_i32, %c0_i32_0 : i32, i32
  }
  func.func @transform_13(%arg0: i32) -> (i32, i32) {
    %c0_i32 = arith.constant 0 : i32
    %c0_i32_0 = arith.constant 0 : i32
    %c0_i32_1 = arith.constant 0 : i32
    return %c0_i32, %c0_i32_0 : i32, i32
  }
}

</mosaic_0001>

<llo_original>
// kernel: multitask_efficientnet_forward.1
$region0: #{multitask_efficientnet_forward.1}
  #allocation0 [shape = 'u32[]', space=smem, size = 0x4, offset = 0x4, fixed_abs, tag = 'smem constant byte address 0x4 - core index']
  #allocation1 [shape = 'u32[144,128]{1,0:T(1,128)}', space=vmem, size = 0x12000, scoped, tag = 'internal scratch']
  %s0 = inlined_call_operand.vmem [shape: bf16[128,32], index: 0, kind: input, shape index: {}]
  %s1 = inlined_call_operand.hbm [shape: bf16[9,128,128], index: 1, kind: input, shape index: {}]
  %s2 = inlined_call_operand.vmem [shape: f32[2,128], index: 2, kind: input, shape index: {}]
  %s3 = inlined_call_operand.vmem [shape: bf16[32,16], index: 3, kind: input, shape index: {}]
  %s4 = inlined_call_operand.vmem [shape: f32[1,16], index: 4, kind: input, shape index: {}]
  %s5 = inlined_call_operand.hbm [shape: bf16[9,16,32], index: 5, kind: input, shape index: {}]
  %s6 = inlined_call_operand.vmem [shape: f32[1,32], index: 6, kind: input, shape index: {}]
  %s7 = inlined_call_operand.vmem [shape: bf16[32,1536], index: 7, kind: input, shape index: {}]
  %s8 = inlined_call_operand.vmem [shape: f32[1,1536], index: 8, kind: input, shape index: {}]
  %s9 = inlined_call_operand.vmem [shape: bf16[1536,512], index: 9, kind: input, shape index: {}]
  %s10 = inlined_call_operand.vmem [shape: f32[1,512], index: 10, kind: input, shape index: {}]
  %s11 = inlined_call_operand.vmem [shape: bf16[512,4], index: 11, kind: input, shape index: {}]
  %s12 = inlined_call_operand.vmem [shape: f32[1,4], index: 12, kind: input, shape index: {}]
  %s13 = inlined_call_operand.vmem [shape: f32[2,4], index: 13, kind: output, shape index: {}]
  %s14 = sld [smem:[#allocation0]]
  $region70: #{multitask_efficientnet_forward.1} parent=0
    _
  %s16 = ssub.s32 1, %s14
  %s17 = scalar_select 0, %s16, %s14
  $region1: #{multitask_efficientnet_forward.1} parent=0
    #allocation2 [shape = 'u8[294912]{0}', space=vmem, size = 0x48000, scoped, tag = 'input window, operand 1, single buffered']
    #allocation3 [shape = 's32[1]{0}', space=sflag, size = 0x4, scoped, tag = 'scoped memory for multitask_efficientnet_forward.1']
    #allocation4 [shape = 'u8[36864]{0}', space=vmem, size = 0x9000, scoped, tag = 'input window, operand 5, single buffered']
    #allocation5 [shape = 's32[1]{0}', space=sflag, size = 0x4, scoped, tag = 'scoped memory for multitask_efficientnet_forward.1']
    %18 = vsyncpa [#allocation3], 0
    %19 = vsyncpa [#allocation5], 0
    // Predicated region
    $region2: #{multitask_efficientnet_forward.1} parent=1 // pred_check
      _
    $region3: #{multitask_efficientnet_forward.1} parent=1 // pred_check_branch
      %21 = sbr.rel (0) target = $region5
    $region4: #{multitask_efficientnet_forward.1} parent=1 // pred_region
      _
    $region5: #{multitask_efficientnet_forward.1} parent=1 // pred_fallthru
      _
    // Predicated region
    $region6: #{multitask_efficientnet_forward.1} parent=1 // pred_check
      _
    $region7: #{multitask_efficientnet_forward.1} parent=1 // pred_check_branch
      %23 = sbr.rel (0) target = $region9
    $region8: #{multitask_efficientnet_forward.1} parent=1 // pred_region
      %s25 = ssub.s32 9216, 9216
      %26 = vsyncadd [#allocation3], %s25
      %s27 = sshll.u32 [#allocation2], 4
      %s28 = int_to_ptr.vmem [resolvable:$true] %s27
      %33 = dma.hbm_to_vmem [thread:$0]  %s1, 9216, %s28, [#allocation3], 64, 64, 4
    $region9: #{multitask_efficientnet_forward.1} parent=1 // pred_fallthru
      _
    // Predicated region
    $region10: #{multitask_efficientnet_forward.1} parent=1 // pred_check
      _
    $region11: #{multitask_efficientnet_forward.1} parent=1 // pred_check_branch
      %35 = sbr.rel (0) target = $region13
    $region12: #{multitask_efficientnet_forward.1} parent=1 // pred_region
      _
    $region13: #{multitask_efficientnet_forward.1} parent=1 // pred_fallthru
      _
    // Predicated region
    $region14: #{multitask_efficientnet_forward.1} parent=1 // pred_check
      _
    $region15: #{multitask_efficientnet_forward.1} parent=1 // pred_check_branch
      %37 = sbr.rel (0) target = $region17
    $region16: #{multitask_efficientnet_forward.1} parent=1 // pred_region
      _
    $region17: #{multitask_efficientnet_forward.1} parent=1 // pred_fallthru
      _
    // Predicated region
    $region18: #{multitask_efficientnet_forward.1} parent=1 // pred_check
      _
    $region19: #{multitask_efficientnet_forward.1} parent=1 // pred_check_branch
      %39 = sbr.rel (0) target = $region21
    $region20: #{multitask_efficientnet_forward.1} parent=1 // pred_region
      _
    $region21: #{multitask_efficientnet_forward.1} parent=1 // pred_fallthru
      _
    // Predicated region
    $region22: #{multitask_efficientnet_forward.1} parent=1 // pred_check
      _
    $region23: #{multitask_efficientnet_forward.1} parent=1 // pred_check_branch
      %41 = sbr.rel (0) target = $region25
    $region24: #{multitask_efficientnet_forward.1} parent=1 // pred_region
      %s43 = ssub.s32 1152, 1152
      %44 = vsyncadd [#allocation5], %s43
      %s45 = sshll.u32 [#allocation4], 4
      %s46 = int_to_ptr.vmem [resolvable:$true] %s45
      %51 = dma.hbm_to_vmem [thread:$0]  %s5, 1152, %s46, [#allocation5], 64, 64, 4
    $region25: #{multitask_efficientnet_forward.1} parent=1 // pred_fallthru
      _
    // Predicated region
    $region26: #{multitask_efficientnet_forward.1} parent=1 // pred_check
      _
    $region27: #{multitask_efficientnet_forward.1} parent=1 // pred_check_branch
      %53 = sbr.rel (0) target = $region29
    $region28: #{multitask_efficientnet_forward.1} parent=1 // pred_region
      _
    $region29: #{multitask_efficientnet_forward.1} parent=1 // pred_fallthru
      _
    // Predicated region
    $region30: #{multitask_efficientnet_forward.1} parent=1 // pred_check
      _
    $region31: #{multitask_efficientnet_forward.1} parent=1 // pred_check_branch
      %55 = sbr.rel (0) target = $region33
    $region32: #{multitask_efficientnet_forward.1} parent=1 // pred_region
      _
    $region33: #{multitask_efficientnet_forward.1} parent=1 // pred_fallthru
      _
    // Predicated region
    $region34: #{multitask_efficientnet_forward.1} parent=1 // pred_check
      _
    $region35: #{multitask_efficientnet_forward.1} parent=1 // pred_check_branch
      %57 = sbr.rel (0) target = $region37
    $region36: #{multitask_efficientnet_forward.1} parent=1 // pred_region
      _
    $region37: #{multitask_efficientnet_forward.1} parent=1 // pred_fallthru
      _
    // Predicated region
    $region38: #{multitask_efficientnet_forward.1} parent=1 // pred_check
      _
    $region39: #{multitask_efficientnet_forward.1} parent=1 // pred_check_branch
      %59 = sbr.rel (0) target = $region41
    $region40: #{multitask_efficientnet_forward.1} parent=1 // pred_region
      _
    $region41: #{multitask_efficientnet_forward.1} parent=1 // pred_fallthru
      _
    // Predicated region
    $region42: #{multitask_efficientnet_forward.1} parent=1 // pred_check
      _
    $region43: #{multitask_efficientnet_forward.1} parent=1 // pred_check_branch
      %61 = sbr.rel (0) target = $region45
    $region44: #{multitask_efficientnet_forward.1} parent=1 // pred_region
      _
    $region45: #{multitask_efficientnet_forward.1} parent=1 // pred_fallthru
      _
    // Predicated region
    $region46: #{multitask_efficientnet_forward.1} parent=1 // pred_check
      _
    $region47: #{multitask_efficientnet_forward.1} parent=1 // pred_check_branch
      %63 = sbr.rel (0) target = $region49
    $region48: #{multitask_efficientnet_forward.1} parent=1 // pred_region
      _
    $region49: #{multitask_efficientnet_forward.1} parent=1 // pred_fallthru
      _
    // Predicated region
    $region50: #{multitask_efficientnet_forward.1} parent=1 // pred_check
      _
    $region51: #{multitask_efficientnet_forward.1} parent=1 // pred_check_branch
      %65 = sbr.rel (0) target = $region53
    $region52: #{multitask_efficientnet_forward.1} parent=1 // pred_region
      _
    $region53: #{multitask_efficientnet_forward.1} parent=1 // pred_fallthru
      _
    // Predicated region
    $region54: #{multitask_efficientnet_forward.1} parent=1 // pred_check
      _
    $region55: #{multitask_efficientnet_forward.1} parent=1 // pred_check_branch
      %67 = sbr.rel (0) target = $region57
    $region56: #{multitask_efficientnet_forward.1} parent=1 // pred_region
      %68 = dma.done [#allocation3], 9216
    $region57: #{multitask_efficientnet_forward.1} parent=1 // pred_fallthru
      _
    // Predicated region
    $region58: #{multitask_efficientnet_forward.1} parent=1 // pred_check
      _
    $region59: #{multitask_efficientnet_forward.1} parent=1 // pred_check_branch
      %70 = sbr.rel (0) target = $region61
    $region60: #{multitask_efficientnet_forward.1} parent=1 // pred_region
      %71 = dma.done [#allocation5], 1152
    $region61: #{multitask_efficientnet_forward.1} parent=1 // pred_fallthru
      _
    %v73 = vld [vmem:[%s0] sm:$0xf]
    %v74 = vld [vmem:[%s0 + $0x4] sm:$0xf]
    %v75 = vld [vmem:[%s0 + $0x8] sm:$0xf]
    %v76 = vld [vmem:[%s0 + $0xc] sm:$0xf]
    %v77 = vld [vmem:[%s0 + $0x10] sm:$0xf]
    %v78 = vld [vmem:[%s0 + $0x14] sm:$0xf]
    %v79 = vld [vmem:[%s0 + $0x18] sm:$0xf]
    %v80 = vld [vmem:[%s0 + $0x1c] sm:$0xf]
    %v81 = vld [vmem:[%s0 + $0x20] sm:$0xf]
    %v82 = vld [vmem:[%s0 + $0x24] sm:$0xf]
    %v83 = vld [vmem:[%s0 + $0x28] sm:$0xf]
    %v84 = vld [vmem:[%s0 + $0x2c] sm:$0xf]
    %v85 = vld [vmem:[%s0 + $0x30] sm:$0xf]
    %v86 = vld [vmem:[%s0 + $0x34] sm:$0xf]
    %v87 = vld [vmem:[%s0 + $0x38] sm:$0xf]
    %v88 = vld [vmem:[%s0 + $0x3c] sm:$0xf]
    %v89 = vld [vmem:[%s3] sm:$0xf]
    %v90 = vld [vmem:[%s3 + $0x4] sm:$0xf]
    %v91 = vld [vmem:[%s3 + $0x8] sm:$0xf]
    %v92 = vld [vmem:[%s3 + $0xc] sm:$0xf]
    %v93 = vld [vmem:[%s4] sm:$0x1]
    %v95 = vlaneseq
    %v96 = vshrl.u32 %v95, 7
    %v97 = vsub.s32 0, %v96
    %v98 = vrot.slane %v93, %v97
    %v116 = vunpack.c.l.b16 %v73
    %v117 = vunpack.c.l.b16 %v74
    %v118 = vunpack.c.l.b16 %v75
    %v119 = vunpack.c.l.b16 %v76
    %v120 = vunpack.c.l.b16 %v77
    %v121 = vunpack.c.l.b16 %v78
    %v122 = vunpack.c.l.b16 %v79
    %v123 = vunpack.c.l.b16 %v80
    %v124 = vunpack.c.l.b16 %v81
    %v125 = vunpack.c.l.b16 %v82
    %v126 = vunpack.c.l.b16 %v83
    %v127 = vunpack.c.l.b16 %v84
    %v128 = vunpack.c.l.b16 %v85
    %v129 = vunpack.c.l.b16 %v86
    %v130 = vunpack.c.l.b16 %v87
    %v131 = vunpack.c.l.b16 %v88
    %v132 = vpack.c.b16 %v117, %v116
    %v133 = vpack.c.b16 %v119, %v118
    %v134 = vpack.c.b16 %v121, %v120
    %v135 = vpack.c.b16 %v123, %v122
    %v136 = vpack.c.b16 %v125, %v124
    %v137 = vpack.c.b16 %v127, %v126
    %v138 = vpack.c.b16 %v129, %v128
    %v139 = vpack.c.b16 %v131, %v130
    %v144 = vunpack.c.l.b16 %v89
    %v145 = vunpack.c.l.b16 %v90
    %v146 = vunpack.c.l.b16 %v91
    %v147 = vunpack.c.l.b16 %v92
    %v148 = vpack.c.b16 %v145, %v144
    %v149 = vpack.c.b16 %v147, %v146
    %vm152 = vcmask 261120
    %v154 = vsel %vm152, %v132, 0
    %v157 = vsel %vm152, %v133, 0
    %v160 = vsel %vm152, %v134, 0
    %v163 = vsel %vm152, %v135, 0
    %v166 = vsel %vm152, %v136, 0
    %v169 = vsel %vm152, %v137, 0
    %v172 = vsel %vm152, %v138, 0
    %v175 = vsel %vm152, %v139, 0
    %177 = vmatprep.subr.bf16.mxu0 0
    %178 = vmatpush1.bf16.msra.mxu0 %v148
    %179 = vmatprep.subr.bf16.mxu0 0
    %180 = vmatpush1.bf16.msra.mxu0 %v149
    %181 = vmatprep.subr.bf16.mxu0 0
    %182 = vmatpush1.bf16.msra.mxu0 0
    %183 = vmatprep.subr.bf16.mxu0 0
    %184 = vmatpush1.bf16.msra.mxu0 0
    %185 = vmatprep.subr.bf16.mxu0 0
    %186 = vmatpush1.bf16.msra.mxu0 0
    %187 = vmatprep.subr.bf16.mxu0 0
    %188 = vmatpush1.bf16.msra.mxu0 0
    %189 = vmatprep.subr.bf16.mxu0 0
    %190 = vmatpush1.bf16.msra.mxu0 0
    %191 = vmatprep.subr.bf16.mxu0 0
    %192 = vmatpush1.bf16.msra.mxu0 0
    %193 = vmatprep.subr.bf16.mxu0 0
    %194 = vmatpush1.bf16.msra.mxu0 0
    %195 = vmatprep.subr.bf16.mxu0 0
    %196 = vmatpush1.bf16.msra.mxu0 0
    %197 = vmatprep.subr.bf16.mxu0 0
    %198 = vmatpush1.bf16.msra.mxu0 0
    %199 = vmatprep.subr.bf16.mxu0 0
    %200 = vmatpush1.bf16.msra.mxu0 0
    %201 = vmatprep.subr.bf16.mxu0 0
    %202 = vmatpush1.bf16.msra.mxu0 0
    %203 = vmatprep.subr.bf16.mxu0 0
    %204 = vmatpush1.bf16.msra.mxu0 0
    %205 = vmatprep.subr.bf16.mxu0 0
    %206 = vmatpush1.bf16.msra.mxu0 0
    %207 = vmatprep.subr.bf16.mxu0 0
    %208 = vmatpush1.bf16.msra.mxu0 0
    %209 = vmatprep.mubr.bf16.mxu0 0
    %210 = vmatmul.mubr.bf16.gmra.mrb[0].mxu0 %v154
    %v211 = vpop.f32.mrb[0].mxu0
    %v212 = vadd.f32 %v98, %v211
    %v213 = vpop.f32.mrb[0].mxu0
    %v214 = vpop.f32.mrb[0].mxu0
    %v215 = vadd.f32 %v98, %v214
    %v216 = vpop.f32.mrb[0].mxu0
    %217 = vmatprep.mubr.bf16.mxu0 0
    %218 = vmatmul.mubr.bf16.gmra.mrb[0].mxu0 %v157
    %v219 = vpop.f32.mrb[0].mxu0
    %v220 = vadd.f32 %v98, %v219
    %v221 = vpop.f32.mrb[0].mxu0
    %v222 = vpop.f32.mrb[0].mxu0
    %v223 = vadd.f32 %v98, %v222
    %v224 = vpop.f32.mrb[0].mxu0
    %225 = vmatprep.mubr.bf16.mxu0 0
    %226 = vmatmul.mubr.bf16.gmra.mrb[0].mxu0 %v160
    %v227 = vpop.f32.mrb[0].mxu0
    %v228 = vadd.f32 %v98, %v227
    %v229 = vpop.f32.mrb[0].mxu0
    %v230 = vpop.f32.mrb[0].mxu0
    %v231 = vadd.f32 %v98, %v230
    %v232 = vpop.f32.mrb[0].mxu0
    %233 = vmatprep.mubr.bf16.mxu0 0
    %234 = vmatmul.mubr.bf16.gmra.mrb[0].mxu0 %v163
    %v235 = vpop.f32.mrb[0].mxu0
    %v236 = vadd.f32 %v98, %v235
    %v237 = vpop.f32.mrb[0].mxu0
    %v238 = vpop.f32.mrb[0].mxu0
    %v239 = vadd.f32 %v98, %v238
    %v240 = vpop.f32.mrb[0].mxu0
    %241 = vmatprep.mubr.bf16.mxu0 0
    %242 = vmatmul.mubr.bf16.gmra.mrb[0].mxu0 %v166
    %v243 = vpop.f32.mrb[0].mxu0
    %v244 = vadd.f32 %v98, %v243
    %v245 = vpop.f32.mrb[0].mxu0
    %v246 = vpop.f32.mrb[0].mxu0
    %v247 = vadd.f32 %v98, %v246
    %v248 = vpop.f32.mrb[0].mxu0
    %249 = vmatprep.mubr.bf16.mxu0 0
    %250 = vmatmul.mubr.bf16.gmra.mrb[0].mxu0 %v169
    %v251 = vpop.f32.mrb[0].mxu0
    %v252 = vadd.f32 %v98, %v251
    %v253 = vpop.f32.mrb[0].mxu0
    %v254 = vpop.f32.mrb[0].mxu0
    %v255 = vadd.f32 %v98, %v254
    %v256 = vpop.f32.mrb[0].mxu0
    %257 = vmatprep.mubr.bf16.mxu0 0
    %258 = vmatmul.mubr.bf16.gmra.mrb[0].mxu0 %v172
    %v259 = vpop.f32.mrb[0].mxu0
    %v260 = vadd.f32 %v98, %v259
    %v261 = vpop.f32.mrb[0].mxu0
    %v262 = vpop.f32.mrb[0].mxu0
    %v263 = vadd.f32 %v98, %v262
    %v264 = vpop.f32.mrb[0].mxu0
    %265 = vmatprep.mubr.bf16.mxu0 0
    %266 = vmatmul.mubr.bf16.gmra.mrb[0].mxu0 %v175
    %v267 = vpop.f32.mrb[0].mxu0
    %v268 = vadd.f32 %v98, %v267
    %v269 = vpop.f32.mrb[0].mxu0
    %v270 = vpop.f32.mrb[0].mxu0
    %v271 = vadd.f32 %v98, %v270
    %v272 = vpop.f32.mrb[0].mxu0
    %273 = vdwg.mxu0
    %v274 = vsub.f32 0.0, %v212
    %v275 = vsub.f32 0.0, %v215
    %v276 = vsub.f32 0.0, %v220
    %v277 = vsub.f32 0.0, %v223
    %v278 = vsub.f32 0.0, %v228
    %v279 = vsub.f32 0.0, %v231
    %v280 = vsub.f32 0.0, %v236
    %v281 = vsub.f32 0.0, %v239
    %v282 = vsub.f32 0.0, %v244
    %v283 = vsub.f32 0.0, %v247
    %v284 = vsub.f32 0.0, %v252
    %v285 = vsub.f32 0.0, %v255
    %v286 = vsub.f32 0.0, %v260
    %v287 = vsub.f32 0.0, %v263
    %v288 = vsub.f32 0.0, %v268
    %v289 = vsub.f32 0.0, %v271
    %v290 = vmul.f32 %v274, 1.442695
    %v291 = vpow.pop %v290
    %v292 = vmul.f32 %v275, 1.442695
    %v293 = vpow.pop %v292
    %v294 = vmul.f32 %v276, 1.442695
    %v295 = vpow.pop %v294
    %v296 = vmul.f32 %v277, 1.442695
    %v297 = vpow.pop %v296
    %v298 = vmul.f32 %v278, 1.442695
    %v299 = vpow.pop %v298
    %v300 = vmul.f32 %v279, 1.442695
    %v301 = vpow.pop %v300
    %v302 = vmul.f32 %v280, 1.442695
    %v303 = vpow.pop %v302
    %v304 = vmul.f32 %v281, 1.442695
    %v305 = vpow.pop %v304
    %v306 = vmul.f32 %v282, 1.442695
    %v307 = vpow.pop %v306
    %v308 = vmul.f32 %v283, 1.442695
    %v309 = vpow.pop %v308
    %v310 = vmul.f32 %v284, 1.442695
    %v311 = vpow.pop %v310
    %v312 = vmul.f32 %v285, 1.442695
    %v313 = vpow.pop %v312
    %v314 = vmul.f32 %v286, 1.442695
    %v315 = vpow.pop %v314
    %v316 = vmul.f32 %v287, 1.442695
    %v317 = vpow.pop %v316
    %v318 = vmul.f32 %v288, 1.442695
    %v319 = vpow.pop %v318
    %v320 = vmul.f32 %v289, 1.442695
    %v321 = vpow.pop %v320
    %v322 = vadd.f32 %v291, 1.0
    %v323 = vadd.f32 %v293, 1.0
    %v324 = vadd.f32 %v295, 1.0
    %v325 = vadd.f32 %v297, 1.0
    %v326 = vadd.f32 %v299, 1.0
    %v327 = vadd.f32 %v301, 1.0
    %v328 = vadd.f32 %v303, 1.0
    %v329 = vadd.f32 %v305, 1.0
    %v330 = vadd.f32 %v307, 1.0
    %v331 = vadd.f32 %v309, 1.0
    %v332 = vadd.f32 %v311, 1.0
    %v333 = vadd.f32 %v313, 1.0
    %v334 = vadd.f32 %v315, 1.0
    %v335 = vadd.f32 %v317, 1.0
    %v336 = vadd.f32 %v319, 1.0
    %v337 = vadd.f32 %v321, 1.0
    %v338 = vrcp.pop %v322
    %v339 = vrcp.pop %v323
    %v340 = vrcp.pop %v324
    %v341 = vrcp.pop %v325
    %v342 = vrcp.pop %v326
    %v343 = vrcp.pop %v327
    %v344 = vrcp.pop %v328
    %v345 = vrcp.pop %v329
    %v346 = vrcp.pop %v330
    %v347 = vrcp.pop %v331
    %v348 = vrcp.pop %v332
    %v349 = vrcp.pop %v333
    %v350 = vrcp.pop %v334
    %v351 = vrcp.pop %v335
    %v352 = vrcp.pop %v336
    %v353 = vrcp.pop %v337
    %v354 = vmul.f32 %v212, %v338
    %v355 = vmul.f32 %v215, %v339
    %v356 = vmul.f32 %v220, %v340
    %v357 = vmul.f32 %v223, %v341
    %v358 = vmul.f32 %v228, %v342
    %v359 = vmul.f32 %v231, %v343
    %v360 = vmul.f32 %v236, %v344
    %v361 = vmul.f32 %v239, %v345
    %v362 = vmul.f32 %v244, %v346
    %v363 = vmul.f32 %v247, %v347
    %v364 = vmul.f32 %v252, %v348
    %v365 = vmul.f32 %v255, %v349
    %v366 = vmul.f32 %v260, %v350
    %v367 = vmul.f32 %v263, %v351
    %v368 = vmul.f32 %v268, %v352
    %v369 = vmul.f32 %v271, %v353
    %v370 = vpack.c.bf16 %v355, %v354
    %v371 = vpack.c.bf16 %v357, %v356
    %v372 = vpack.c.bf16 %v359, %v358
    %v373 = vpack.c.bf16 %v361, %v360
    %v374 = vpack.c.bf16 %v363, %v362
    %v375 = vpack.c.bf16 %v365, %v364
    %v376 = vpack.c.bf16 %v367, %v366
    %v377 = vpack.c.bf16 %v369, %v368
    %v378 = vld [vmem:[#allocation2] sm:$0xf]
    %v379 = vld [vmem:[#allocation2 + $0x4] sm:$0xf]
    %v380 = vld [vmem:[#allocation2 + $0x8] sm:$0xf]
    %v381 = vld [vmem:[#allocation2 + $0xc] sm:$0xf]
    %v382 = vld [vmem:[#allocation2 + $0x10] sm:$0xf]
    %v383 = vld [vmem:[#allocation2 + $0x14] sm:$0xf]
    %v384 = vld [vmem:[#allocation2 + $0x18] sm:$0xf]
    %v385 = vld [vmem:[#allocation2 + $0x1c] sm:$0xf]
    %v386 = vld [vmem:[#allocation2 + $0x20] sm:$0xf]
    %v387 = vld [vmem:[#allocation2 + $0x24] sm:$0xf]
    %v388 = vld [vmem:[#allocation2 + $0x28] sm:$0xf]
    %v389 = vld [vmem:[#allocation2 + $0x2c] sm:$0xf]
    %v390 = vld [vmem:[#allocation2 + $0x30] sm:$0xf]
    %v391 = vld [vmem:[#allocation2 + $0x34] sm:$0xf]
    %v392 = vld [vmem:[#allocation2 + $0x38] sm:$0xf]
    %v393 = vld [vmem:[#allocation2 + $0x3c] sm:$0xf]
    %v410 = vunpack.c.l.b16 %v378
    %v411 = vunpack.c.l.b16 %v379
    %v412 = vunpack.c.l.b16 %v380
    %v413 = vunpack.c.l.b16 %v381
    %v414 = vunpack.c.l.b16 %v382
    %v415 = vunpack.c.l.b16 %v383
    %v416 = vunpack.c.l.b16 %v384
    %v417 = vunpack.c.l.b16 %v385
    %v418 = vunpack.c.l.b16 %v386
    %v419 = vunpack.c.l.b16 %v387
    %v420 = vunpack.c.l.b16 %v388
    %v421 = vunpack.c.l.b16 %v389
    %v422 = vunpack.c.l.b16 %v390
    %v423 = vunpack.c.l.b16 %v391
    %v424 = vunpack.c.l.b16 %v392
    %v425 = vunpack.c.l.b16 %v393
    %v426 = vpack.c.b16 %v411, %v410
    %v427 = vpack.c.b16 %v413, %v412
    %v428 = vpack.c.b16 %v415, %v414
    %v429 = vpack.c.b16 %v417, %v416
    %v430 = vpack.c.b16 %v419, %v418
    %v431 = vpack.c.b16 %v421, %v420
    %v432 = vpack.c.b16 %v423, %v422
    %v433 = vpack.c.b16 %v425, %v424
    %442 = vmatprep.subr.bf16.mxu0 0
    %443 = vmatpush1.bf16.msra.mxu0 %v370
    %444 = vmatprep.subr.bf16.mxu0 0
    %445 = vmatpush1.bf16.msra.mxu0 %v371
    %446 = vmatprep.subr.bf16.mxu0 0
    %447 = vmatpush1.bf16.msra.mxu0 %v372
    %448 = vmatprep.subr.bf16.mxu0 0
    %449 = vmatpush1.bf16.msra.mxu0 %v373
    %450 = vmatprep.subr.bf16.mxu0 0
    %451 = vmatpush1.bf16.msra.mxu0 %v374
    %452 = vmatprep.subr.bf16.mxu0 0
    %453 = vmatpush1.bf16.msra.mxu0 %v375
    %454 = vmatprep.subr.bf16.mxu0 0
    %455 = vmatpush1.bf16.msra.mxu0 %v376
    %456 = vmatprep.subr.bf16.mxu0 0
    %457 = vmatpush1.bf16.msra.mxu0 %v377
    %458 = vmatprep.subr.bf16.mxu0 0
    %459 = vmatpush1.bf16.msra.mxu0 0
    %460 = vmatprep.subr.bf16.mxu0 0
    %461 = vmatpush1.bf16.msra.mxu0 0
    %462 = vmatprep.subr.bf16.mxu0 0
    %463 = vmatpush1.bf16.msra.mxu0 0
    %464 = vmatprep.subr.bf16.mxu0 0
    %465 = vmatpush1.bf16.msra.mxu0 0
    %466 = vmatprep.subr.bf16.mxu0 0
    %467 = vmatpush1.bf16.msra.mxu0 0
    %468 = vmatprep.subr.bf16.mxu0 0
    %469 = vmatpush1.bf16.msra.mxu0 0
    %470 = vmatprep.subr.bf16.mxu0 0
    %471 = vmatpush1.bf16.msra.mxu0 0
    %472 = vmatprep.subr.bf16.mxu0 0
    %473 = vmatpush1.bf16.msra.mxu0 0
    %474 = vmatprep.mubr.bf16.mxu0 0
    %475 = vmatmul.mubr.bf16.gmra.mrb[0].mxu0 %v426
    %v476 = vpop.f32.mrb[0].mxu0
    %v477 = vadd.f32 0.0, %v476
    %v478 = vpop.f32.mrb[0].mxu0
    %v479 = vpop.f32.mrb[0].mxu0
    %v480 = vadd.f32 0.0, %v479
    %v481 = vpop.f32.mrb[0].mxu0
    %482 = vmatprep.mubr.bf16.mxu0 0
    %483 = vmatmul.mubr.bf16.gmra.mrb[0].mxu0 %v427
    %v484 = vpop.f32.mrb[0].mxu0
    %v485 = vadd.f32 0.0, %v484
    %v486 = vpop.f32.mrb[0].mxu0
    %v487 = vpop.f32.mrb[0].mxu0
    %v488 = vadd.f32 0.0, %v487
    %v489 = vpop.f32.mrb[0].mxu0
    %490 = vmatprep.mubr.bf16.mxu0 0
    %491 = vmatmul.mubr.bf16.gmra.mrb[0].mxu0 %v428
    %v492 = vpop.f32.mrb[0].mxu0
    %v493 = vadd.f32 0.0, %v492
    %v494 = vpop.f32.mrb[0].mxu0
    %v495 = vpop.f32.mrb[0].mxu0
    %v496 = vadd.f32 0.0, %v495
    %v497 = vpop.f32.mrb[0].mxu0
    %498 = vmatprep.mubr.bf16.mxu0 0
    %499 = vmatmul.mubr.bf16.gmra.mrb[0].mxu0 %v429
    %v500 = vpop.f32.mrb[0].mxu0
    %v501 = vadd.f32 0.0, %v500
    %v502 = vpop.f32.mrb[0].mxu0
    %v503 = vpop.f32.mrb[0].mxu0
    %v504 = vadd.f32 0.0, %v503
    %v505 = vpop.f32.mrb[0].mxu0
    %506 = vmatprep.mubr.bf16.mxu0 0
    %507 = vmatmul.mubr.bf16.gmra.mrb[0].mxu0 %v430
    %v508 = vpop.f32.mrb[0].mxu0
    %v509 = vadd.f32 0.0, %v508
    %v510 = vpop.f32.mrb[0].mxu0
    %v511 = vpop.f32.mrb[0].mxu0
    %v512 = vadd.f32 0.0, %v511
    %v513 = vpop.f32.mrb[0].mxu0
    %514 = vmatprep.mubr.bf16.mxu0 0
    %515 = vmatmul.mubr.bf16.gmra.mrb[0].mxu0 %v431
    %v516 = vpop.f32.mrb[0].mxu0
    %v517 = vadd.f32 0.0, %v516
    %v518 = vpop.f32.mrb[0].mxu0
    %v519 = vpop.f32.mrb[0].mxu0
    %v520 = vadd.f32 0.0, %v519
    %v521 = vpop.f32.mrb[0].mxu0
    %522 = vmatprep.mubr.bf16.mxu0 0
    %523 = vmatmul.mubr.bf16.gmra.mrb[0].mxu0 %v432
    %v524 = vpop.f32.mrb[0].mxu0
    %v525 = vadd.f32 0.0, %v524
    %v526 = vpop.f32.mrb[0].mxu0
    %v527 = vpop.f32.mrb[0].mxu0
    %v528 = vadd.f32 0.0, %v527
    %v529 = vpop.f32.mrb[0].mxu0
    %530 = vmatprep.mubr.bf16.mxu0 0
    %531 = vmatmul.mubr.bf16.gmra.mrb[0].mxu0 %v433
    %v532 = vpop.f32.mrb[0].mxu0
    %v533 = vadd.f32 0.0, %v532
    %v534 = vpop.f32.mrb[0].mxu0
    %v535 = vpop.f32.mrb[0].mxu0
    %v536 = vadd.f32 0.0, %v535
    %v537 = vpop.f32.mrb[0].mxu0
    %538 = vdwg.mxu0
    %v539 = vpack.c.bf16 %v480, %v477
    %v540 = vpack.c.bf16 %v488, %v485
    %v541 = vpack.c.bf16 %v496, %v493
    %v542 = vpack.c.bf16 %v504, %v501
    %v543 = vpack.c.bf16 %v512, %v509
    %v544 = vpack.c.bf16 %v520, %v517
    %v545 = vpack.c.bf16 %v528, %v525
    %v546 = vpack.c.bf16 %v536, %v533
    %v547 = vld [vmem:[#allocation4] sm:$0xf]
    %v548 = vld [vmem:[#allocation4 + $0x4] sm:$0xf]
    %s549 = scalar_lea.vmem [#allocation2], 64
    %v550 = vld [vmem:[%s549] sm:$0xf]
    %v551 = vld [vmem:[%s549 + $0x4] sm:$0xf]
    %v552 = vld [vmem:[%s549 + $0x8] sm:$0xf]
    %v553 = vld [vmem:[%s549 + $0xc] sm:$0xf]
    %v554 = vld [vmem:[%s549 + $0x10] sm:$0xf]
    %v555 = vld [vmem:[%s549 + $0x14] sm:$0xf]
    %v556 = vld [vmem:[%s549 + $0x18] sm:$0xf]
    %v557 = vld [vmem:[%s549 + $0x1c] sm:$0xf]
    %v558 = vld [vmem:[%s549 + $0x20] sm:$0xf]
    %v559 = vld [vmem:[%s549 + $0x24] sm:$0xf]
    %v560 = vld [vmem:[%s549 + $0x28] sm:$0xf]
    %v561 = vld [vmem:[%s549 + $0x2c] sm:$0xf]
    %v562 = vld [vmem:[%s549 + $0x30] sm:$0xf]
    %v563 = vld [vmem:[%s549 + $0x34] sm:$0xf]
    %v564 = vld [vmem:[%s549 + $0x38] sm:$0xf]
    %v565 = vld [vmem:[%s549 + $0x3c] sm:$0xf]
    %v582 = vunpack.c.l.b16 %v550
    %v583 = vunpack.c.l.b16 %v551
    %v584 = vunpack.c.l.b16 %v552
    %v585 = vunpack.c.l.b16 %v553
    %v586 = vunpack.c.l.b16 %v554
    %v587 = vunpack.c.l.b16 %v555
    %v588 = vunpack.c.l.b16 %v556
    %v589 = vunpack.c.l.b16 %v557
    %v590 = vunpack.c.l.b16 %v558
    %v591 = vunpack.c.l.b16 %v559
    %v592 = vunpack.c.l.b16 %v560
    %v593 = vunpack.c.l.b16 %v561
    %v594 = vunpack.c.l.b16 %v562
    %v595 = vunpack.c.l.b16 %v563
    %v596 = vunpack.c.l.b16 %v564
    %v597 = vunpack.c.l.b16 %v565
    %v598 = vpack.c.b16 %v583, %v582
    %v599 = vpack.c.b16 %v585, %v584
    %v600 = vpack.c.b16 %v587, %v586
    %v601 = vpack.c.b16 %v589, %v588
    %v602 = vpack.c.b16 %v591, %v590
    %v603 = vpack.c.b16 %v593, %v592
    %v604 = vpack.c.b16 %v595, %v594
    %v605 = vpack.c.b16 %v597, %v596
    %614 = vmatprep.subr.bf16.mxu0 0
    %615 = vmatpush1.bf16.msra.mxu0 %v370
    %616 = vmatprep.subr.bf16.mxu0 0
    %617 = vmatpush1.bf16.msra.mxu0 %v371
    %618 = vmatprep.subr.bf16.mxu0 0
    %619 = vmatpush1.bf16.msra.mxu0 %v372
    %620 = vmatprep.subr.bf16.mxu0 0
    %621 = vmatpush1.bf16.msra.mxu0 %v373
    %622 = vmatprep.subr.bf16.mxu0 0
    %623 = vmatpush1.bf16.msra.mxu0 %v374
    %624 = vmatprep.subr.bf16.mxu0 0
    %625 = vmatpush1.bf16.msra.mxu0 %v375
    %626 = vmatprep.subr.bf16.mxu0 0
    %627 = vmatpush1.bf16.msra.mxu0 %v376
    %628 = vmatprep.subr.bf16.mxu0 0
    %629 = vmatpush1.bf16.msra.mxu0 %v377
    %630 = vmatprep.subr.bf16.mxu0 0
    %631 = vmatpush1.bf16.msra.mxu0 0
    %632 = vmatprep.subr.bf16.mxu0 0
    %633 = vmatpush1.bf16.msra.mxu0 0
    %634 = vmatprep.subr.bf16.mxu0 0
    %635 = vmatpush1.bf16.msra.mxu0 0
    %636 = vmatprep.subr.bf16.mxu0 0
    %637 = vmatpush1.bf16.msra.mxu0 0
    %638 = vmatprep.subr.bf16.mxu0 0
    %639 = vmatpush1.bf16.msra.mxu0 0
    %640 = vmatprep.subr.bf16.mxu0 0
    %641 = vmatpush1.bf16.msra.mxu0 0
    %642 = vmatprep.subr.bf16.mxu0 0
    %643 = vmatpush1.bf16.msra.mxu0 0
    %644 = vmatprep.subr.bf16.mxu0 0
    %645 = vmatpush1.bf16.msra.mxu0 0
    %646 = vmatprep.mubr.bf16.mxu0 0
    %647 = vmatmul.mubr.bf16.gmra.mrb[0].mxu0 %v598
    %v648 = vpop.f32.mrb[0].mxu0
    %v649 = vadd.f32 0.0, %v648
    %v650 = vpop.f32.mrb[0].mxu0
    %v651 = vpop.f32.mrb[0].mxu0
    %v652 = vadd.f32 0.0, %v651
    %v653 = vpop.f32.mrb[0].mxu0
    %654 = vmatprep.mubr.bf16.mxu0 0
    %655 = vmatmul.mubr.bf16.gmra.mrb[0].mxu0 %v599
    %v656 = vpop.f32.mrb[0].mxu0
    %v657 = vadd.f32 0.0, %v656
    %v658 = vpop.f32.mrb[0].mxu0
    %v659 = vpop.f32.mrb[0].mxu0
    %v660 = vadd.f32 0.0, %v659
    %v661 = vpop.f32.mrb[0].mxu0
    %662 = vmatprep.mubr.bf16.mxu0 0
    %663 = vmatmul.mubr.bf16.gmra.mrb[0].mxu0 %v600
    %v664 = vpop.f32.mrb[0].mxu0
    %v665 = vadd.f32 0.0, %v664
    %v666 = vpop.f32.mrb[0].mxu0
    %v667 = vpop.f32.mrb[0].mxu0
    %v668 = vadd.f32 0.0, %v667
    %v669 = vpop.f32.mrb[0].mxu0
    %670 = vmatprep.mubr.bf16.mxu0 0
    %671 = vmatmul.mubr.bf16.gmra.mrb[0].mxu0 %v601
    %v672 = vpop.f32.mrb[0].mxu0
    %v673 = vadd.f32 0.0, %v672
    %v674 = vpop.f32.mrb[0].mxu0
    %v675 = vpop.f32.mrb[0].mxu0
    %v676 = vadd.f32 0.0, %v675
    %v677 = vpop.f32.mrb[0].mxu0
    %678 = vmatprep.mubr.bf16.mxu0 0
    %679 = vmatmul.mubr.bf16.gmra.mrb[0].mxu0 %v602
    %v680 = vpop.f32.mrb[0].mxu0
    %v681 = vadd.f32 0.0, %v680
    %v682 = vpop.f32.mrb[0].mxu0
    %v683 = vpop.f32.mrb[0].mxu0
    %v684 = vadd.f32 0.0, %v683
    %v685 = vpop.f32.mrb[0].mxu0
    %686 = vmatprep.mubr.bf16.mxu0 0
    %687 = vmatmul.mubr.bf16.gmra.mrb[0].mxu0 %v603
    %v688 = vpop.f32.mrb[0].mxu0
    %v689 = vadd.f32 0.0, %v688
    %v690 = vpop.f32.mrb[0].mxu0
    %v691 = vpop.f32.mrb[0].mxu0
    %v692 = vadd.f32 0.0, %v691
    %v693 = vpop.f32.mrb[0].mxu0
    %694 = vmatprep.mubr.bf16.mxu0 0
    %695 = vmatmul.mubr.bf16.gmra.mrb[0].mxu0 %v604
    %v696 = vpop.f32.mrb[0].mxu0
    %v697 = vadd.f32 0.0, %v696
    %v698 = vpop.f32.mrb[0].mxu0
    %v699 = vpop.f32.mrb[0].mxu0
    %v700 = vadd.f32 0.0, %v699
    %v701 = vpop.f32.mrb[0].mxu0
    %702 = vmatprep.mubr.bf16.mxu0 0
    %703 = vmatmul.mubr.bf16.gmra.mrb[0].mxu0 %v605
    %v704 = vpop.f32.mrb[0].mxu0
    %v705 = vadd.f32 0.0, %v704
    %v706 = vpop.f32.mrb[0].mxu0
    %v707 = vpop.f32.mrb[0].mxu0
    %v708 = vadd.f32 0.0, %v707
    %v709 = vpop.f32.mrb[0].mxu0
    %710 = vdwg.mxu0
    %v711 = vpack.c.bf16 %v652, %v649
    %v712 = vpack.c.bf16 %v660, %v657
    %v713 = vpack.c.bf16 %v668, %v665
    %v714 = vpack.c.bf16 %v676, %v673
    %v715 = vpack.c.bf16 %v684, %v681
    %v716 = vpack.c.bf16 %v692, %v689
    %v717 = vpack.c.bf16 %v700, %v697
    %v718 = vpack.c.bf16 %v708, %v705
    %s719 = scalar_lea.vmem [#allocation4], 8
    %v720 = vld [vmem:[%s719] sm:$0xf]
    %v721 = vld [vmem:[%s719 + $0x4] sm:$0xf]
    %v724 = vunpack.c.l.b16 %v720
    %v725 = vunpack.c.l.b16 %v721
    %v726 = vpack.c.b16 %v725, %v724
    %vm728 = vcmask 130048
    %v730 = vsel %vm728, %v711, 0
    %v733 = vsel %vm728, %v712, 0
    %v736 = vsel %vm728, %v713, 0
    %v739 = vsel %vm728, %v714, 0
    %v742 = vsel %vm728, %v715, 0
    %v745 = vsel %vm728, %v716, 0
    %v748 = vsel %vm728, %v717, 0
    %v751 = vsel %vm728, %v718, 0
    %753 = vmatprep.subr.bf16.mxu0 0
    %754 = vmatpush1.bf16.msra.mxu0 %v726
    %755 = vmatprep.subr.bf16.mxu0 0
    %756 = vmatpush1.bf16.msra.mxu0 0
    %757 = vmatprep.subr.bf16.mxu0 0
    %758 = vmatpush1.bf16.msra.mxu0 0
    %759 = vmatprep.subr.bf16.mxu0 0
    %760 = vmatpush1.bf16.msra.mxu0 0
    %761 = vmatprep.subr.bf16.mxu0 0
    %762 = vmatpush1.bf16.msra.mxu0 0
    %763 = vmatprep.subr.bf16.mxu0 0
    %764 = vmatpush1.bf16.msra.mxu0 0
    %765 = vmatprep.subr.bf16.mxu0 0
    %766 = vmatpush1.bf16.msra.mxu0 0
    %767 = vmatprep.subr.bf16.mxu0 0
    %768 = vmatpush1.bf16.msra.mxu0 0
    %769 = vmatprep.subr.bf16.mxu0 0
    %770 = vmatpush1.bf16.msra.mxu0 0
    %771 = vmatprep.subr.bf16.mxu0 0
    %772 = vmatpush1.bf16.msra.mxu0 0
    %773 = vmatprep.subr.bf16.mxu0 0
    %774 = vmatpush1.bf16.msra.mxu0 0
    %775 = vmatprep.subr.bf16.mxu0 0
    %776 = vmatpush1.bf16.msra.mxu0 0
    %777 = vmatprep.subr.bf16.mxu0 0
    %778 = vmatpush1.bf16.msra.mxu0 0
    %779 = vmatprep.subr.bf16.mxu0 0
    %780 = vmatpush1.bf16.msra.mxu0 0
    %781 = vmatprep.subr.bf16.mxu0 0
    %782 = vmatpush1.bf16.msra.mxu0 0
    %783 = vmatprep.subr.bf16.mxu0 0
    %784 = vmatpush1.bf16.msra.mxu0 0
    %785 = vmatprep.mubr.bf16.mxu0 0
    %786 = vmatmul.mubr.bf16.gmra.mrb[0].mxu0 %v730
    %v787 = vpop.f32.mrb[0].mxu0
    %v788 = vadd.f32 0.0, %v787
    %v789 = vpop.f32.mrb[0].mxu0
    %v790 = vpop.f32.mrb[0].mxu0
    %v791 = vadd.f32 0.0, %v790
    %v792 = vpop.f32.mrb[0].mxu0
    %793 = vmatprep.mubr.bf16.mxu0 0
    %794 = vmatmul.mubr.bf16.gmra.mrb[0].mxu0 %v733
    %v795 = vpop.f32.mrb[0].mxu0
    %v796 = vadd.f32 0.0, %v795
    %v797 = vpop.f32.mrb[0].mxu0
    %v798 = vpop.f32.mrb[0].mxu0
    %v799 = vadd.f32 0.0, %v798
    %v800 = vpop.f32.mrb[0].mxu0
    %801 = vmatprep.mubr.bf16.mxu0 0
    %802 = vmatmul.mubr.bf16.gmra.mrb[0].mxu0 %v736
    %v803 = vpop.f32.mrb[0].mxu0
    %v804 = vadd.f32 0.0, %v803
    %v805 = vpop.f32.mrb[0].mxu0
    %v806 = vpop.f32.mrb[0].mxu0
    %v807 = vadd.f32 0.0, %v806
    %v808 = vpop.f32.mrb[0].mxu0
    %809 = vmatprep.mubr.bf16.mxu0 0
    %810 = vmatmul.mubr.bf16.gmra.mrb[0].mxu0 %v739
    %v811 = vpop.f32.mrb[0].mxu0
    %v812 = vadd.f32 0.0, %v811
    %v813 = vpop.f32.mrb[0].mxu0
    %v814 = vpop.f32.mrb[0].mxu0
    %v815 = vadd.f32 0.0, %v814
    %v816 = vpop.f32.mrb[0].mxu0
    %817 = vmatprep.mubr.bf16.mxu0 0
    %818 = vmatmul.mubr.bf16.gmra.mrb[0].mxu0 %v742
    %v819 = vpop.f32.mrb[0].mxu0
    %v820 = vadd.f32 0.0, %v819
    %v821 = vpop.f32.mrb[0].mxu0
    %v822 = vpop.f32.mrb[0].mxu0
    %v823 = vadd.f32 0.0, %v822
    %v824 = vpop.f32.mrb[0].mxu0
    %825 = vmatprep.mubr.bf16.mxu0 0
    %826 = vmatmul.mubr.bf16.gmra.mrb[0].mxu0 %v745
    %v827 = vpop.f32.mrb[0].mxu0
    %v828 = vadd.f32 0.0, %v827
    %v829 = vpop.f32.mrb[0].mxu0
    %v830 = vpop.f32.mrb[0].mxu0
    %v831 = vadd.f32 0.0, %v830
    %v832 = vpop.f32.mrb[0].mxu0
    %833 = vmatprep.mubr.bf16.mxu0 0
    %834 = vmatmul.mubr.bf16.gmra.mrb[0].mxu0 %v748
    %v835 = vpop.f32.mrb[0].mxu0
    %v836 = vadd.f32 0.0, %v835
    %v837 = vpop.f32.mrb[0].mxu0
    %v838 = vpop.f32.mrb[0].mxu0
    %v839 = vadd.f32 0.0, %v838
    %v840 = vpop.f32.mrb[0].mxu0
    %841 = vmatprep.mubr.bf16.mxu0 0
    %842 = vmatmul.mubr.bf16.gmra.mrb[0].mxu0 %v751
    %v843 = vpop.f32.mrb[0].mxu0
    %v844 = vadd.f32 0.0, %v843
    %v845 = vpop.f32.mrb[0].mxu0
    %v846 = vpop.f32.mrb[0].mxu0
    %v847 = vadd.f32 0.0, %v846
    %v848 = vpop.f32.mrb[0].mxu0
    %849 = vdwg.mxu0
    %v852 = vunpack.c.l.b16 %v547
    %v853 = vunpack.c.l.b16 %v548
    %v854 = vpack.c.b16 %v853, %v852
    %v857 = vsel %vm728, %v539, 0
    %v860 = vsel %vm728, %v540, 0
    %v863 = vsel %vm728, %v541, 0
    %v866 = vsel %vm728, %v542, 0
    %v869 = vsel %vm728, %v543, 0
    %v872 = vsel %vm728, %v544, 0
    %v875 = vsel %vm728, %v545, 0
    %v878 = vsel %vm728, %v546, 0
    %880 = vmatprep.subr.bf16.mxu0 0
    %881 = vmatpush1.bf16.msra.mxu0 %v854
    %882 = vmatprep.subr.bf16.mxu0 0
    %883 = vmatpush1.bf16.msra.mxu0 0
    %884 = vmatprep.subr.bf16.mxu0 0
    %885 = vmatpush1.bf16.msra.mxu0 0
    %886 = vmatprep.subr.bf16.mxu0 0
    %887 = vmatpush1.bf16.msra.mxu0 0
    %888 = vmatprep.subr.bf16.mxu0 0
    %889 = vmatpush1.bf16.msra.mxu0 0
    %890 = vmatprep.subr.bf16.mxu0 0
    %891 = vmatpush1.bf16.msra.mxu0 0
    %892 = vmatprep.subr.bf16.mxu0 0
    %893 = vmatpush1.bf16.msra.mxu0 0
    %894 = vmatprep.subr.bf16.mxu0 0
    %895 = vmatpush1.bf16.msra.mxu0 0
    %896 = vmatprep.subr.bf16.mxu0 0
    %897 = vmatpush1.bf16.msra.mxu0 0
    %898 = vmatprep.subr.bf16.mxu0 0
    %899 = vmatpush1.bf16.msra.mxu0 0
    %900 = vmatprep.subr.bf16.mxu0 0
    %901 = vmatpush1.bf16.msra.mxu0 0
    %902 = vmatprep.subr.bf16.mxu0 0
    %903 = vmatpush1.bf16.msra.mxu0 0
    %904 = vmatprep.subr.bf16.mxu0 0
    %905 = vmatpush1.bf16.msra.mxu0 0
    %906 = vmatprep.subr.bf16.mxu0 0
    %907 = vmatpush1.bf16.msra.mxu0 0
    %908 = vmatprep.subr.bf16.mxu0 0
    %909 = vmatpush1.bf16.msra.mxu0 0
    %910 = vmatprep.subr.bf16.mxu0 0
    %911 = vmatpush1.bf16.msra.mxu0 0
    %912 = vmatprep.mubr.bf16.mxu0 0
    %913 = vmatmul.mubr.bf16.gmra.mrb[0].mxu0 %v857
    %v914 = vpop.f32.mrb[0].mxu0
    %v915 = vadd.f32 %v788, %v914
    %v916 = vpop.f32.mrb[0].mxu0
    %v917 = vpop.f32.mrb[0].mxu0
    %v918 = vadd.f32 %v791, %v917
    %v919 = vpop.f32.mrb[0].mxu0
    %920 = vmatprep.mubr.bf16.mxu0 0
    %921 = vmatmul.mubr.bf16.gmra.mrb[0].mxu0 %v860
    %v922 = vpop.f32.mrb[0].mxu0
    %v923 = vadd.f32 %v796, %v922
    %v924 = vpop.f32.mrb[0].mxu0
    %v925 = vpop.f32.mrb[0].mxu0
    %v926 = vadd.f32 %v799, %v925
    %v927 = vpop.f32.mrb[0].mxu0
    %928 = vmatprep.mubr.bf16.mxu0 0
    %929 = vmatmul.mubr.bf16.gmra.mrb[0].mxu0 %v863
    %v930 = vpop.f32.mrb[0].mxu0
    %v931 = vadd.f32 %v804, %v930
    %v932 = vpop.f32.mrb[0].mxu0
    %v933 = vpop.f32.mrb[0].mxu0
    %v934 = vadd.f32 %v807, %v933
    %v935 = vpop.f32.mrb[0].mxu0
    %936 = vmatprep.mubr.bf16.mxu0 0
    %937 = vmatmul.mubr.bf16.gmra.mrb[0].mxu0 %v866
    %v938 = vpop.f32.mrb[0].mxu0
    %v939 = vadd.f32 %v812, %v938
    %v940 = vpop.f32.mrb[0].mxu0
    %v941 = vpop.f32.mrb[0].mxu0
    %v942 = vadd.f32 %v815, %v941
    %v943 = vpop.f32.mrb[0].mxu0
    %944 = vmatprep.mubr.bf16.mxu0 0
    %945 = vmatmul.mubr.bf16.gmra.mrb[0].mxu0 %v869
    %v946 = vpop.f32.mrb[0].mxu0
    %v947 = vadd.f32 %v820, %v946
    %v948 = vpop.f32.mrb[0].mxu0
    %v949 = vpop.f32.mrb[0].mxu0
    %v950 = vadd.f32 %v823, %v949
    %v951 = vpop.f32.mrb[0].mxu0
    %952 = vmatprep.mubr.bf16.mxu0 0
    %953 = vmatmul.mubr.bf16.gmra.mrb[0].mxu0 %v872
    %v954 = vpop.f32.mrb[0].mxu0
    %v955 = vadd.f32 %v828, %v954
    %v956 = vpop.f32.mrb[0].mxu0
    %v957 = vpop.f32.mrb[0].mxu0
    %v958 = vadd.f32 %v831, %v957
    %v959 = vpop.f32.mrb[0].mxu0
    %960 = vmatprep.mubr.bf16.mxu0 0
    %961 = vmatmul.mubr.bf16.gmra.mrb[0].mxu0 %v875
    %v962 = vpop.f32.mrb[0].mxu0
    %v963 = vadd.f32 %v836, %v962
    %v964 = vpop.f32.mrb[0].mxu0
    %v965 = vpop.f32.mrb[0].mxu0
    %v966 = vadd.f32 %v839, %v965
    %v967 = vpop.f32.mrb[0].mxu0
    %968 = vmatprep.mubr.bf16.mxu0 0
    %969 = vmatmul.mubr.bf16.gmra.mrb[0].mxu0 %v878
    %v970 = vpop.f32.mrb[0].mxu0
    %v971 = vadd.f32 %v844, %v970
    %v972 = vpop.f32.mrb[0].mxu0
    %v973 = vpop.f32.mrb[0].mxu0
    %v974 = vadd.f32 %v847, %v973
    %v975 = vpop.f32.mrb[0].mxu0
    %976 = vdwg.mxu0
    %s977 = scalar_lea.vmem [#allocation2], 128
    %v978 = vld [vmem:[%s977] sm:$0xf]
    %v979 = vld [vmem:[%s977 + $0x4] sm:$0xf]
    %v980 = vld [vmem:[%s977 + $0x8] sm:$0xf]
    %v981 = vld [vmem:[%s977 + $0xc] sm:$0xf]
    %v982 = vld [vmem:[%s977 + $0x10] sm:$0xf]
    %v983 = vld [vmem:[%s977 + $0x14] sm:$0xf]
    %v984 = vld [vmem:[%s977 + $0x18] sm:$0xf]
    %v985 = vld [vmem:[%s977 + $0x1c] sm:$0xf]
    %v986 = vld [vmem:[%s977 + $0x20] sm:$0xf]
    %v987 = vld [vmem:[%s977 + $0x24] sm:$0xf]
    %v988 = vld [vmem:[%s977 + $0x28] sm:$0xf]
    %v989 = vld [vmem:[%s977 + $0x2c] sm:$0xf]
    %v990 = vld [vmem:[%s977 + $0x30] sm:$0xf]
    %v991 = vld [vmem:[%s977 + $0x34] sm:$0xf]
    %v992 = vld [vmem:[%s977 + $0x38] sm:$0xf]
    %v993 = vld [vmem:[%s977 + $0x3c] sm:$0xf]
    %v1010 = vunpack.c.l.b16 %v978
    %v1011 = vunpack.c.l.b16 %v979
    %v1012 = vunpack.c.l.b16 %v980
    %v1013 = vunpack.c.l.b16 %v981
    %v1014 = vunpack.c.l.b16 %v982
    %v1015 = vunpack.c.l.b16 %v983
    %v1016 = vunpack.c.l.b16 %v984
    %v1017 = vunpack.c.l.b16 %v985
    %v1018 = vunpack.c.l.b16 %v986
    %v1019 = vunpack.c.l.b16 %v987
    %v1020 = vunpack.c.l.b16 %v988
    %v1021 = vunpack.c.l.b16 %v989
    %v1022 = vunpack.c.l.b16 %v990
    %v1023 = vunpack.c.l.b16 %v991
    %v1024 = vunpack.c.l.b16 %v992
    %v1025 = vunpack.c.l.b16 %v993
    %v1026 = vpack.c.b16 %v1011, %v1010
    %v1027 = vpack.c.b16 %v1013, %v1012
    %v1028 = vpack.c.b16 %v1015, %v1014
    %v1029 = vpack.c.b16 %v1017, %v1016
    %v1030 = vpack.c.b16 %v1019, %v1018
    %v1031 = vpack.c.b16 %v1021, %v1020
    %v1032 = vpack.c.b16 %v1023, %v1022
    %v1033 = vpack.c.b16 %v1025, %v1024
    %1042 = vmatprep.subr.bf16.mxu0 0
    %1043 = vmatpush1.bf16.msra.mxu0 %v370
    %1044 = vmatprep.subr.bf16.mxu0 0
    %1045 = vmatpush1.bf16.msra.mxu0 %v371
    %1046 = vmatprep.subr.bf16.mxu0 0
    %1047 = vmatpush1.bf16.msra.mxu0 %v372
    %1048 = vmatprep.subr.bf16.mxu0 0
    %1049 = vmatpush1.bf16.msra.mxu0 %v373
    %1050 = vmatprep.subr.bf16.mxu0 0
    %1051 = vmatpush1.bf16.msra.mxu0 %v374
    %1052 = vmatprep.subr.bf16.mxu0 0
    %1053 = vmatpush1.bf16.msra.mxu0 %v375
    %1054 = vmatprep.subr.bf16.mxu0 0
    %1055 = vmatpush1.bf16.msra.mxu0 %v376
    %1056 = vmatprep.subr.bf16.mxu0 0
    %1057 = vmatpush1.bf16.msra.mxu0 %v377
    %1058 = vmatprep.subr.bf16.mxu0 0
    %1059 = vmatpush1.bf16.msra.mxu0 0
    %1060 = vmatprep.subr.bf16.mxu0 0
    %1061 = vmatpush1.bf16.msra.mxu0 0
    %1062 = vmatprep.subr.bf16.mxu0 0
    %1063 = vmatpush1.bf16.msra.mxu0 0
    %1064 = vmatprep.subr.bf16.mxu0 0
    %1065 = vmatpush1.bf16.msra.mxu0 0
    %1066 = vmatprep.subr.bf16.mxu0 0
    %1067 = vmatpush1.bf16.msra.mxu0 0
    %1068 = vmatprep.subr.bf16.mxu0 0
    %1069 = vmatpush1.bf16.msra.mxu0 0
    %1070 = vmatprep.subr.bf16.mxu0 0
    %1071 = vmatpush1.bf16.msra.mxu0 0
    %1072 = vmatprep.subr.bf16.mxu0 0
    %1073 = vmatpush1.bf16.msra.mxu0 0
    %1074 = vmatprep.mubr.bf16.mxu0 0
    %1075 = vmatmul.mubr.bf16.gmra.mrb[0].mxu0 %v1026
    %v1076 = vpop.f32.mrb[0].mxu0
    %v1077 = vadd.f32 0.0, %v1076
    %v1078 = vpop.f32.mrb[0].mxu0
    %v1079 = vpop.f32.mrb[0].mxu0
    %v1080 = vadd.f32 0.0, %v1079
    %v1081 = vpop.f32.mrb[0].mxu0
    %1082 = vmatprep.mubr.bf16.mxu0 0
    %1083 = vmatmul.mubr.bf16.gmra.mrb[0].mxu0 %v1027
    %v1084 = vpop.f32.mrb[0].mxu0
    %v1085 = vadd.f32 0.0, %v1084
    %v1086 = vpop.f32.mrb[0].mxu0
    %v1087 = vpop.f32.mrb[0].mxu0
    %v1088 = vadd.f32 0.0, %v1087
    %v1089 = vpop.f32.mrb[0].mxu0
    %1090 = vmatprep.mubr.bf16.mxu0 0
    %1091 = vmatmul.mubr.bf16.gmra.mrb[0].mxu0 %v1028
    %v1092 = vpop.f32.mrb[0].mxu0
    %v1093 = vadd.f32 0.0, %v1092
    %v1094 = vpop.f32.mrb[0].mxu0
    %v1095 = vpop.f32.mrb[0].mxu0
    %v1096 = vadd.f32 0.0, %v1095
    %v1097 = vpop.f32.mrb[0].mxu0
    %1098 = vmatprep.mubr.bf16.mxu0 0
    %1099 = vmatmul.mubr.bf16.gmra.mrb[0].mxu0 %v1029
    %v1100 = vpop.f32.mrb[0].mxu0
    %v1101 = vadd.f32 0.0, %v1100
    %v1102 = vpop.f32.mrb[0].mxu0
    %v1103 = vpop.f32.mrb[0].mxu0
    %v1104 = vadd.f32 0.0, %v1103
    %v1105 = vpop.f32.mrb[0].mxu0
    %1106 = vmatprep.mubr.bf16.mxu0 0
    %1107 = vmatmul.mubr.bf16.gmra.mrb[0].mxu0 %v1030
    %v1108 = vpop.f32.mrb[0].mxu0
    %v1109 = vadd.f32 0.0, %v1108
    %v1110 = vpop.f32.mrb[0].mxu0
    %v1111 = vpop.f32.mrb[0].mxu0
    %v1112 = vadd.f32 0.0, %v1111
    %v1113 = vpop.f32.mrb[0].mxu0
    %1114 = vmatprep.mubr.bf16.mxu0 0
    %1115 = vmatmul.mubr.bf16.gmra.mrb[0].mxu0 %v1031
    %v1116 = vpop.f32.mrb[0].mxu0
    %v1117 = vadd.f32 0.0, %v1116
    %v1118 = vpop.f32.mrb[0].mxu0
    %v1119 = vpop.f32.mrb[0].mxu0
    %v1120 = vadd.f32 0.0, %v1119
    %v1121 = vpop.f32.mrb[0].mxu0
    %1122 = vmatprep.mubr.bf16.mxu0 0
    %1123 = vmatmul.mubr.bf16.gmra.mrb[0].mxu0 %v1032
    %v1124 = vpop.f32.mrb[0].mxu0
    %v1125 = vadd.f32 0.0, %v1124
    %v1126 = vpop.f32.mrb[0].mxu0
    %v1127 = vpop.f32.mrb[0].mxu0
    %v1128 = vadd.f32 0.0, %v1127
    %v1129 = vpop.f32.mrb[0].mxu0
    %1130 = vmatprep.mubr.bf16.mxu0 0
    %1131 = vmatmul.mubr.bf16.gmra.mrb[0].mxu0 %v1033
    %v1132 = vpop.f32.mrb[0].mxu0
    %v1133 = vadd.f32 0.0, %v1132
    %v1134 = vpop.f32.mrb[0].mxu0
    %v1135 = vpop.f32.mrb[0].mxu0
    %v1136 = vadd.f32 0.0, %v1135
    %v1137 = vpop.f32.mrb[0].mxu0
    %1138 = vdwg.mxu0
    %v1139 = vpack.c.bf16 %v1080, %v1077
    %v1140 = vpack.c.bf16 %v1088, %v1085
    %v1141 = vpack.c.bf16 %v1096, %v1093
    %v1142 = vpack.c.bf16 %v1104, %v1101
    %v1143 = vpack.c.bf16 %v1112, %v1109
    %v1144 = vpack.c.bf16 %v1120, %v1117
    %v1145 = vpack.c.bf16 %v1128, %v1125
    %v1146 = vpack.c.bf16 %v1136, %v1133
    %s1147 = scalar_lea.vmem [#allocation4], 16
    %v1148 = vld [vmem:[%s1147] sm:$0xf]
    %v1149 = vld [vmem:[%s1147 + $0x4] sm:$0xf]
    %v1152 = vunpack.c.l.b16 %v1148
    %v1153 = vunpack.c.l.b16 %v1149
    %v1154 = vpack.c.b16 %v1153, %v1152
    %v1157 = vsel %vm728, %v1139, 0
    %v1160 = vsel %vm728, %v1140, 0
    %v1163 = vsel %vm728, %v1141, 0
    %v1166 = vsel %vm728, %v1142, 0
    %v1169 = vsel %vm728, %v1143, 0
    %v1172 = vsel %vm728, %v1144, 0
    %v1175 = vsel %vm728, %v1145, 0
    %v1178 = vsel %vm728, %v1146, 0
    %1180 = vmatprep.subr.bf16.mxu0 0
    %1181 = vmatpush1.bf16.msra.mxu0 %v1154
    %1182 = vmatprep.subr.bf16.mxu0 0
    %1183 = vmatpush1.bf16.msra.mxu0 0
    %1184 = vmatprep.subr.bf16.mxu0 0
    %1185 = vmatpush1.bf16.msra.mxu0 0
    %1186 = vmatprep.subr.bf16.mxu0 0
    %1187 = vmatpush1.bf16.msra.mxu0 0
    %1188 = vmatprep.subr.bf16.mxu0 0
    %1189 = vmatpush1.bf16.msra.mxu0 0
    %1190 = vmatprep.subr.bf16.mxu0 0
    %1191 = vmatpush1.bf16.msra.mxu0 0
    %1192 = vmatprep.subr.bf16.mxu0 0
    %1193 = vmatpush1.bf16.msra.mxu0 0
    %1194 = vmatprep.subr.bf16.mxu0 0
    %1195 = vmatpush1.bf16.msra.mxu0 0
    %1196 = vmatprep.subr.bf16.mxu0 0
    %1197 = vmatpush1.bf16.msra.mxu0 0
    %1198 = vmatprep.subr.bf16.mxu0 0
    %1199 = vmatpush1.bf16.msra.mxu0 0
    %1200 = vmatprep.subr.bf16.mxu0 0
    %1201 = vmatpush1.bf16.msra.mxu0 0
    %1202 = vmatprep.subr.bf16.mxu0 0
    %1203 = vmatpush1.bf16.msra.mxu0 0
    %1204 = vmatprep.subr.bf16.mxu0 0
    %1205 = vmatpush1.bf16.msra.mxu0 0
    %1206 = vmatprep.subr.bf16.mxu0 0
    %1207 = vmatpush1.bf16.msra.mxu0 0
    %1208 = vmatprep.subr.bf16.mxu0 0
    %1209 = vmatpush1.bf16.msra.mxu0 0
    %1210 = vmatprep.subr.bf16.mxu0 0
    %1211 = vmatpush1.bf16.msra.mxu0 0
    %1212 = vmatprep.mubr.bf16.mxu0 0
    %1213 = vmatmul.mubr.bf16.gmra.mrb[0].mxu0 %v1157
    %v1214 = vpop.f32.mrb[0].mxu0
    %v1215 = vadd.f32 0.0, %v1214
    %v1216 = vpop.f32.mrb[0].mxu0
    %v1217 = vpop.f32.mrb[0].mxu0
    %v1218 = vadd.f32 0.0, %v1217
    %v1219 = vpop.f32.mrb[0].mxu0
    %1220 = vmatprep.mubr.bf16.mxu0 0
    %1221 = vmatmul.mubr.bf16.gmra.mrb[0].mxu0 %v1160
    %v1222 = vpop.f32.mrb[0].mxu0
    %v1223 = vadd.f32 0.0, %v1222
    %v1224 = vpop.f32.mrb[0].mxu0
    %v1225 = vpop.f32.mrb[0].mxu0
    %v1226 = vadd.f32 0.0, %v1225
    %v1227 = vpop.f32.mrb[0].mxu0
    %1228 = vmatprep.mubr.bf16.mxu0 0
    %1229 = vmatmul.mubr.bf16.gmra.mrb[0].mxu0 %v1163
    %v1230 = vpop.f32.mrb[0].mxu0
    %v1231 = vadd.f32 0.0, %v1230
    %v1232 = vpop.f32.mrb[0].mxu0
    %v1233 = vpop.f32.mrb[0].mxu0
    %v1234 = vadd.f32 0.0, %v1233
    %v1235 = vpop.f32.mrb[0].mxu0
    %1236 = vmatprep.mubr.bf16.mxu0 0
    %1237 = vmatmul.mubr.bf16.gmra.mrb[0].mxu0 %v1166
    %v1238 = vpop.f32.mrb[0].mxu0
    %v1239 = vadd.f32 0.0, %v1238
    %v1240 = vpop.f32.mrb[0].mxu0
    %v1241 = vpop.f32.mrb[0].mxu0
    %v1242 = vadd.f32 0.0, %v1241
    %v1243 = vpop.f32.mrb[0].mxu0
    %1244 = vmatprep.mubr.bf16.mxu0 0
    %1245 = vmatmul.mubr.bf16.gmra.mrb[0].mxu0 %v1169
    %v1246 = vpop.f32.mrb[0].mxu0
    %v1247 = vadd.f32 0.0, %v1246
    %v1248 = vpop.f32.mrb[0].mxu0
    %v1249 = vpop.f32.mrb[0].mxu0
    %v1250 = vadd.f32 0.0, %v1249
    %v1251 = vpop.f32.mrb[0].mxu0
    %1252 = vmatprep.mubr.bf16.mxu0 0
    %1253 = vmatmul.mubr.bf16.gmra.mrb[0].mxu0 %v1172
    %v1254 = vpop.f32.mrb[0].mxu0
    %v1255 = vadd.f32 0.0, %v1254
    %v1256 = vpop.f32.mrb[0].mxu0
    %v1257 = vpop.f32.mrb[0].mxu0
    %v1258 = vadd.f32 0.0, %v1257
    %v1259 = vpop.f32.mrb[0].mxu0
    %1260 = vmatprep.mubr.bf16.mxu0 0
    %1261 = vmatmul.mubr.bf16.gmra.mrb[0].mxu0 %v1175
    %v1262 = vpop.f32.mrb[0].mxu0
    %v1263 = vadd.f32 0.0, %v1262
    %v1264 = vpop.f32.mrb[0].mxu0
    %v1265 = vpop.f32.mrb[0].mxu0
    %v1266 = vadd.f32 0.0, %v1265
    %v1267 = vpop.f32.mrb[0].mxu0
    %1268 = vmatprep.mubr.bf16.mxu0 0
    %1269 = vmatmul.mubr.bf16.gmra.mrb[0].mxu0 %v1178
    %v1270 = vpop.f32.mrb[0].mxu0
    %v1271 = vadd.f32 0.0, %v1270
    %v1272 = vpop.f32.mrb[0].mxu0
    %v1273 = vpop.f32.mrb[0].mxu0
    %v1274 = vadd.f32 0.0, %v1273
    %v1275 = vpop.f32.mrb[0].mxu0
    %1276 = vdwg.mxu0
    %v1277 = vadd.f32 %v915, %v1215
    %v1278 = vadd.f32 %v918, %v1218
    %v1279 = vadd.f32 %v923, %v1223
    %v1280 = vadd.f32 %v926, %v1226
    %v1281 = vadd.f32 %v931, %v1231
    %v1282 = vadd.f32 %v934, %v1234
    %v1283 = vadd.f32 %v939, %v1239
    %v1284 = vadd.f32 %v942, %v1242
    %v1285 = vadd.f32 %v947, %v1247
    %v1286 = vadd.f32 %v950, %v1250
    %v1287 = vadd.f32 %v955, %v1255
    %v1288 = vadd.f32 %v958, %v1258
    %v1289 = vadd.f32 %v963, %v1263
    %v1290 = vadd.f32 %v966, %v1266
    %v1291 = vadd.f32 %v971, %v1271
    %v1292 = vadd.f32 %v974, %v1274
    %s1293 = scalar_lea.vmem [#allocation2], 192
    %v1294 = vld [vmem:[%s1293] sm:$0xf]
    %v1295 = vld [vmem:[%s1293 + $0x4] sm:$0xf]
    %v1296 = vld [vmem:[%s1293 + $0x8] sm:$0xf]
    %v1297 = vld [vmem:[%s1293 + $0xc] sm:$0xf]
    %v1298 = vld [vmem:[%s1293 + $0x10] sm:$0xf]
    %v1299 = vld [vmem:[%s1293 + $0x14] sm:$0xf]
    %v1300 = vld [vmem:[%s1293 + $0x18] sm:$0xf]
    %v1301 = vld [vmem:[%s1293 + $0x1c] sm:$0xf]
    %v1302 = vld [vmem:[%s1293 + $0x20] sm:$0xf]
    %v1303 = vld [vmem:[%s1293 + $0x24] sm:$0xf]
    %v1304 = vld [vmem:[%s1293 + $0x28] sm:$0xf]
    %v1305 = vld [vmem:[%s1293 + $0x2c] sm:$0xf]
    %v1306 = vld [vmem:[%s1293 + $0x30] sm:$0xf]
    %v1307 = vld [vmem:[%s1293 + $0x34] sm:$0xf]
    %v1308 = vld [vmem:[%s1293 + $0x38] sm:$0xf]
    %v1309 = vld [vmem:[%s1293 + $0x3c] sm:$0xf]
    %v1326 = vunpack.c.l.b16 %v1294
    %v1327 = vunpack.c.l.b16 %v1295
    %v1328 = vunpack.c.l.b16 %v1296
    %v1329 = vunpack.c.l.b16 %v1297
    %v1330 = vunpack.c.l.b16 %v1298
    %v1331 = vunpack.c.l.b16 %v1299
    %v1332 = vunpack.c.l.b16 %v1300
    %v1333 = vunpack.c.l.b16 %v1301
    %v1334 = vunpack.c.l.b16 %v1302
    %v1335 = vunpack.c.l.b16 %v1303
    %v1336 = vunpack.c.l.b16 %v1304
    %v1337 = vunpack.c.l.b16 %v1305
    %v1338 = vunpack.c.l.b16 %v1306
    %v1339 = vunpack.c.l.b16 %v1307
    %v1340 = vunpack.c.l.b16 %v1308
    %v1341 = vunpack.c.l.b16 %v1309
    %v1342 = vpack.c.b16 %v1327, %v1326
    %v1343 = vpack.c.b16 %v1329, %v1328
    %v1344 = vpack.c.b16 %v1331, %v1330
    %v1345 = vpack.c.b16 %v1333, %v1332
    %v1346 = vpack.c.b16 %v1335, %v1334
    %v1347 = vpack.c.b16 %v1337, %v1336
    %v1348 = vpack.c.b16 %v1339, %v1338
    %v1349 = vpack.c.b16 %v1341, %v1340
    %1358 = vmatprep.subr.bf16.mxu0 0
    %1359 = vmatpush1.bf16.msra.mxu0 %v370
    %1360 = vmatprep.subr.bf16.mxu0 0
    %1361 = vmatpush1.bf16.msra.mxu0 %v371
    %1362 = vmatprep.subr.bf16.mxu0 0
    %1363 = vmatpush1.bf16.msra.mxu0 %v372
    %1364 = vmatprep.subr.bf16.mxu0 0
    %1365 = vmatpush1.bf16.msra.mxu0 %v373
    %1366 = vmatprep.subr.bf16.mxu0 0
    %1367 = vmatpush1.bf16.msra.mxu0 %v374
    %1368 = vmatprep.subr.bf16.mxu0 0
    %1369 = vmatpush1.bf16.msra.mxu0 %v375
    %1370 = vmatprep.subr.bf16.mxu0 0
    %1371 = vmatpush1.bf16.msra.mxu0 %v376
    %1372 = vmatprep.subr.bf16.mxu0 0
    %1373 = vmatpush1.bf16.msra.mxu0 %v377
    %1374 = vmatprep.subr.bf16.mxu0 0
    %1375 = vmatpush1.bf16.msra.mxu0 0
    %1376 = vmatprep.subr.bf16.mxu0 0
    %1377 = vmatpush1.bf16.msra.mxu0 0
    %1378 = vmatprep.subr.bf16.mxu0 0
    %1379 = vmatpush1.bf16.msra.mxu0 0
    %1380 = vmatprep.subr.bf16.mxu0 0
    %1381 = vmatpush1.bf16.msra.mxu0 0
    %1382 = vmatprep.subr.bf16.mxu0 0
    %1383 = vmatpush1.bf16.msra.mxu0 0
    %1384 = vmatprep.subr.bf16.mxu0 0
    %1385 = vmatpush1.bf16.msra.mxu0 0
    %1386 = vmatprep.subr.bf16.mxu0 0
    %1387 = vmatpush1.bf16.msra.mxu0 0
    %1388 = vmatprep.subr.bf16.mxu0 0
    %1389 = vmatpush1.bf16.msra.mxu0 0
    %1390 = vmatprep.mubr.bf16.mxu0 0
    %1391 = vmatmul.mubr.bf16.gmra.mrb[0].mxu0 %v1342
    %v1392 = vpop.f32.mrb[0].mxu0
    %v1393 = vadd.f32 0.0, %v1392
    %v1394 = vpop.f32.mrb[0].mxu0
    %v1395 = vpop.f32.mrb[0].mxu0
    %v1396 = vadd.f32 0.0, %v1395
    %v1397 = vpop.f32.mrb[0].mxu0
    %1398 = vmatprep.mubr.bf16.mxu0 0
    %1399 = vmatmul.mubr.bf16.gmra.mrb[0].mxu0 %v1343
    %v1400 = vpop.f32.mrb[0].mxu0
    %v1401 = vadd.f32 0.0, %v1400
    %v1402 = vpop.f32.mrb[0].mxu0
    %v1403 = vpop.f32.mrb[0].mxu0
    %v1404 = vadd.f32 0.0, %v1403
    %v1405 = vpop.f32.mrb[0].mxu0
    %1406 = vmatprep.mubr.bf16.mxu0 0
    %1407 = vmatmul.mubr.bf16.gmra.mrb[0].mxu0 %v1344
    %v1408 = vpop.f32.mrb[0].mxu0
    %v1409 = vadd.f32 0.0, %v1408
    %v1410 = vpop.f32.mrb[0].mxu0
    %v1411 = vpop.f32.mrb[0].mxu0
    %v1412 = vadd.f32 0.0, %v1411
    %v1413 = vpop.f32.mrb[0].mxu0
    %1414 = vmatprep.mubr.bf16.mxu0 0
    %1415 = vmatmul.mubr.bf16.gmra.mrb[0].mxu0 %v1345
    %v1416 = vpop.f32.mrb[0].mxu0
    %v1417 = vadd.f32 0.0, %v1416
    %v1418 = vpop.f32.mrb[0].mxu0
    %v1419 = vpop.f32.mrb[0].mxu0
    %v1420 = vadd.f32 0.0, %v1419
    %v1421 = vpop.f32.mrb[0].mxu0
    %1422 = vmatprep.mubr.bf16.mxu0 0
    %1423 = vmatmul.mubr.bf16.gmra.mrb[0].mxu0 %v1346
    %v1424 = vpop.f32.mrb[0].mxu0
    %v1425 = vadd.f32 0.0, %v1424
    %v1426 = vpop.f32.mrb[0].mxu0
    %v1427 = vpop.f32.mrb[0].mxu0
    %v1428 = vadd.f32 0.0, %v1427
    %v1429 = vpop.f32.mrb[0].mxu0
    %1430 = vmatprep.mubr.bf16.mxu0 0
    %1431 = vmatmul.mubr.bf16.gmra.mrb[0].mxu0 %v1347
    %v1432 = vpop.f32.mrb[0].mxu0
    %v1433 = vadd.f32 0.0, %v1432
    %v1434 = vpop.f32.mrb[0].mxu0
    %v1435 = vpop.f32.mrb[0].mxu0
    %v1436 = vadd.f32 0.0, %v1435
    %v1437 = vpop.f32.mrb[0].mxu0
    %1438 = vmatprep.mubr.bf16.mxu0 0
    %1439 = vmatmul.mubr.bf16.gmra.mrb[0].mxu0 %v1348
    %v1440 = vpop.f32.mrb[0].mxu0
    %v1441 = vadd.f32 0.0, %v1440
    %v1442 = vpop.f32.mrb[0].mxu0
    %v1443 = vpop.f32.mrb[0].mxu0
    %v1444 = vadd.f32 0.0, %v1443
    %v1445 = vpop.f32.mrb[0].mxu0
    %1446 = vmatprep.mubr.bf16.mxu0 0
    %1447 = vmatmul.mubr.bf16.gmra.mrb[0].mxu0 %v1349
    %v1448 = vpop.f32.mrb[0].mxu0
    %v1449 = vadd.f32 0.0, %v1448
    %v1450 = vpop.f32.mrb[0].mxu0
    %v1451 = vpop.f32.mrb[0].mxu0
    %v1452 = vadd.f32 0.0, %v1451
    %v1453 = vpop.f32.mrb[0].mxu0
    %1454 = vdwg.mxu0
    %v1455 = vpack.c.bf16 %v1396, %v1393
    %v1456 = vpack.c.bf16 %v1404, %v1401
    %v1457 = vpack.c.bf16 %v1412, %v1409
    %v1458 = vpack.c.bf16 %v1420, %v1417
    %v1459 = vpack.c.bf16 %v1428, %v1425
    %v1460 = vpack.c.bf16 %v1436, %v1433
    %v1461 = vpack.c.bf16 %v1444, %v1441
    %v1462 = vpack.c.bf16 %v1452, %v1449
    %s1463 = scalar_lea.vmem [#allocation4], 24
    %v1464 = vld [vmem:[%s1463] sm:$0xf]
    %v1465 = vld [vmem:[%s1463 + $0x4] sm:$0xf]
    %v1468 = vunpack.c.l.b16 %v1464
    %v1469 = vunpack.c.l.b16 %v1465
    %v1470 = vpack.c.b16 %v1469, %v1468
    %v1473 = vsel %vm728, %v1455, 0
    %v1476 = vsel %vm728, %v1456, 0
    %v1479 = vsel %vm728, %v1457, 0
    %v1482 = vsel %vm728, %v1458, 0
    %v1485 = vsel %vm728, %v1459, 0
    %v1488 = vsel %vm728, %v1460, 0
    %v1491 = vsel %vm728, %v1461, 0
    %v1494 = vsel %vm728, %v1462, 0
    %1496 = vmatprep.subr.bf16.mxu0 0
    %1497 = vmatpush1.bf16.msra.mxu0 %v1470
    %1498 = vmatprep.subr.bf16.mxu0 0
    %1499 = vmatpush1.bf16.msra.mxu0 0
    %1500 = vmatprep.subr.bf16.mxu0 0
    %1501 = vmatpush1.bf16.msra.mxu0 0
    %1502 = vmatprep.subr.bf16.mxu0 0
    %1503 = vmatpush1.bf16.msra.mxu0 0
    %1504 = vmatprep.subr.bf16.mxu0 0
    %1505 = vmatpush1.bf16.msra.mxu0 0
    %1506 = vmatprep.subr.bf16.mxu0 0
    %1507 = vmatpush1.bf16.msra.mxu0 0
    %1508 = vmatprep.subr.bf16.mxu0 0
    %1509 = vmatpush1.bf16.msra.mxu0 0
    %1510 = vmatprep.subr.bf16.mxu0 0
    %1511 = vmatpush1.bf16.msra.mxu0 0
    %1512 = vmatprep.subr.bf16.mxu0 0
    %1513 = vmatpush1.bf16.msra.mxu0 0
    %1514 = vmatprep.subr.bf16.mxu0 0
    %1515 = vmatpush1.bf16.msra.mxu0 0
    %1516 = vmatprep.subr.bf16.mxu0 0
    %1517 = vmatpush1.bf16.msra.mxu0 0
    %1518 = vmatprep.subr.bf16.mxu0 0
    %1519 = vmatpush1.bf16.msra.mxu0 0
    %1520 = vmatprep.subr.bf16.mxu0 0
    %1521 = vmatpush1.bf16.msra.mxu0 0
    %1522 = vmatprep.subr.bf16.mxu0 0
    %1523 = vmatpush1.bf16.msra.mxu0 0
    %1524 = vmatprep.subr.bf16.mxu0 0
    %1525 = vmatpush1.bf16.msra.mxu0 0
    %1526 = vmatprep.subr.bf16.mxu0 0
    %1527 = vmatpush1.bf16.msra.mxu0 0
    %1528 = vmatprep.mubr.bf16.mxu0 0
    %1529 = vmatmul.mubr.bf16.gmra.mrb[0].mxu0 %v1473
    %v1530 = vpop.f32.mrb[0].mxu0
    %v1531 = vadd.f32 0.0, %v1530
    %v1532 = vpop.f32.mrb[0].mxu0
    %v1533 = vpop.f32.mrb[0].mxu0
    %v1534 = vadd.f32 0.0, %v1533
    %v1535 = vpop.f32.mrb[0].mxu0
    %1536 = vmatprep.mubr.bf16.mxu0 0
    %1537 = vmatmul.mubr.bf16.gmra.mrb[0].mxu0 %v1476
    %v1538 = vpop.f32.mrb[0].mxu0
    %v1539 = vadd.f32 0.0, %v1538
    %v1540 = vpop.f32.mrb[0].mxu0
    %v1541 = vpop.f32.mrb[0].mxu0
    %v1542 = vadd.f32 0.0, %v1541
    %v1543 = vpop.f32.mrb[0].mxu0
    %1544 = vmatprep.mubr.bf16.mxu0 0
    %1545 = vmatmul.mubr.bf16.gmra.mrb[0].mxu0 %v1479
    %v1546 = vpop.f32.mrb[0].mxu0
    %v1547 = vadd.f32 0.0, %v1546
    %v1548 = vpop.f32.mrb[0].mxu0
    %v1549 = vpop.f32.mrb[0].mxu0
    %v1550 = vadd.f32 0.0, %v1549
    %v1551 = vpop.f32.mrb[0].mxu0
    %1552 = vmatprep.mubr.bf16.mxu0 0
    %1553 = vmatmul.mubr.bf16.gmra.mrb[0].mxu0 %v1482
    %v1554 = vpop.f32.mrb[0].mxu0
    %v1555 = vadd.f32 0.0, %v1554
    %v1556 = vpop.f32.mrb[0].mxu0
    %v1557 = vpop.f32.mrb[0].mxu0
    %v1558 = vadd.f32 0.0, %v1557
    %v1559 = vpop.f32.mrb[0].mxu0
    %1560 = vmatprep.mubr.bf16.mxu0 0
    %1561 = vmatmul.mubr.bf16.gmra.mrb[0].mxu0 %v1485
    %v1562 = vpop.f32.mrb[0].mxu0
    %v1563 = vadd.f32 0.0, %v1562
    %v1564 = vpop.f32.mrb[0].mxu0
    %v1565 = vpop.f32.mrb[0].mxu0
    %v1566 = vadd.f32 0.0, %v1565
    %v1567 = vpop.f32.mrb[0].mxu0
    %1568 = vmatprep.mubr.bf16.mxu0 0
    %1569 = vmatmul.mubr.bf16.gmra.mrb[0].mxu0 %v1488
    %v1570 = vpop.f32.mrb[0].mxu0
    %v1571 = vadd.f32 0.0, %v1570
    %v1572 = vpop.f32.mrb[0].mxu0
    %v1573 = vpop.f32.mrb[0].mxu0
    %v1574 = vadd.f32 0.0, %v1573
    %v1575 = vpop.f32.mrb[0].mxu0
    %1576 = vmatprep.mubr.bf16.mxu0 0
    %1577 = vmatmul.mubr.bf16.gmra.mrb[0].mxu0 %v1491
    %v1578 = vpop.f32.mrb[0].mxu0
    %v1579 = vadd.f32 0.0, %v1578
    %v1580 = vpop.f32.mrb[0].mxu0
    %v1581 = vpop.f32.mrb[0].mxu0
    %v1582 = vadd.f32 0.0, %v1581
    %v1583 = vpop.f32.mrb[0].mxu0
    %1584 = vmatprep.mubr.bf16.mxu0 0
    %1585 = vmatmul.mubr.bf16.gmra.mrb[0].mxu0 %v1494
    %v1586 = vpop.f32.mrb[0].mxu0
    %v1587 = vadd.f32 0.0, %v1586
    %v1588 = vpop.f32.mrb[0].mxu0
    %v1589 = vpop.f32.mrb[0].mxu0
    %v1590 = vadd.f32 0.0, %v1589
    %v1591 = vpop.f32.mrb[0].mxu0
    %1592 = vdwg.mxu0
    %v1593 = vadd.f32 %v1277, %v1531
    %v1594 = vadd.f32 %v1278, %v1534
    %v1595 = vadd.f32 %v1279, %v1539
    %v1596 = vadd.f32 %v1280, %v1542
    %v1597 = vadd.f32 %v1281, %v1547
    %v1598 = vadd.f32 %v1282, %v1550
    %v1599 = vadd.f32 %v1283, %v1555
    %v1600 = vadd.f32 %v1284, %v1558
    %v1601 = vadd.f32 %v1285, %v1563
    %v1602 = vadd.f32 %v1286, %v1566
    %v1603 = vadd.f32 %v1287, %v1571
    %v1604 = vadd.f32 %v1288, %v1574
    %v1605 = vadd.f32 %v1289, %v1579
    %v1606 = vadd.f32 %v1290, %v1582
    %v1607 = vadd.f32 %v1291, %v1587
    %v1608 = vadd.f32 %v1292, %v1590
    %s1609 = scalar_lea.vmem [#allocation2], 256
    %v1610 = vld [vmem:[%s1609] sm:$0xf]
    %v1611 = vld [vmem:[%s1609 + $0x4] sm:$0xf]
    %v1612 = vld [vmem:[%s1609 + $0x8] sm:$0xf]
    %v1613 = vld [vmem:[%s1609 + $0xc] sm:$0xf]
    %v1614 = vld [vmem:[%s1609 + $0x10] sm:$0xf]
    %v1615 = vld [vmem:[%s1609 + $0x14] sm:$0xf]
    %v1616 = vld [vmem:[%s1609 + $0x18] sm:$0xf]
    %v1617 = vld [vmem:[%s1609 + $0x1c] sm:$0xf]
    %v1618 = vld [vmem:[%s1609 + $0x20] sm:$0xf]
    %v1619 = vld [vmem:[%s1609 + $0x24] sm:$0xf]
    %v1620 = vld [vmem:[%s1609 + $0x28] sm:$0xf]
    %v1621 = vld [vmem:[%s1609 + $0x2c] sm:$0xf]
    %v1622 = vld [vmem:[%s1609 + $0x30] sm:$0xf]
    %v1623 = vld [vmem:[%s1609 + $0x34] sm:$0xf]
    %v1624 = vld [vmem:[%s1609 + $0x38] sm:$0xf]
    %v1625 = vld [vmem:[%s1609 + $0x3c] sm:$0xf]
    %v1642 = vunpack.c.l.b16 %v1610
    %v1643 = vunpack.c.l.b16 %v1611
    %v1644 = vunpack.c.l.b16 %v1612
    %v1645 = vunpack.c.l.b16 %v1613
    %v1646 = vunpack.c.l.b16 %v1614
    %v1647 = vunpack.c.l.b16 %v1615
    %v1648 = vunpack.c.l.b16 %v1616
    %v1649 = vunpack.c.l.b16 %v1617
    %v1650 = vunpack.c.l.b16 %v1618
    %v1651 = vunpack.c.l.b16 %v1619
    %v1652 = vunpack.c.l.b16 %v1620
    %v1653 = vunpack.c.l.b16 %v1621
    %v1654 = vunpack.c.l.b16 %v1622
    %v1655 = vunpack.c.l.b16 %v1623
    %v1656 = vunpack.c.l.b16 %v1624
    %v1657 = vunpack.c.l.b16 %v1625
    %v1658 = vpack.c.b16 %v1643, %v1642
    %v1659 = vpack.c.b16 %v1645, %v1644
    %v1660 = vpack.c.b16 %v1647, %v1646
    %v1661 = vpack.c.b16 %v1649, %v1648
    %v1662 = vpack.c.b16 %v1651, %v1650
    %v1663 = vpack.c.b16 %v1653, %v1652
    %v1664 = vpack.c.b16 %v1655, %v1654
    %v1665 = vpack.c.b16 %v1657, %v1656
    %1674 = vmatprep.subr.bf16.mxu0 0
    %1675 = vmatpush1.bf16.msra.mxu0 %v370
    %1676 = vmatprep.subr.bf16.mxu0 0
    %1677 = vmatpush1.bf16.msra.mxu0 %v371
    %1678 = vmatprep.subr.bf16.mxu0 0
    %1679 = vmatpush1.bf16.msra.mxu0 %v372
    %1680 = vmatprep.subr.bf16.mxu0 0
    %1681 = vmatpush1.bf16.msra.mxu0 %v373
    %1682 = vmatprep.subr.bf16.mxu0 0
    %1683 = vmatpush1.bf16.msra.mxu0 %v374
    %1684 = vmatprep.subr.bf16.mxu0 0
    %1685 = vmatpush1.bf16.msra.mxu0 %v375
    %1686 = vmatprep.subr.bf16.mxu0 0
    %1687 = vmatpush1.bf16.msra.mxu0 %v376
    %1688 = vmatprep.subr.bf16.mxu0 0
    %1689 = vmatpush1.bf16.msra.mxu0 %v377
    %1690 = vmatprep.subr.bf16.mxu0 0
    %1691 = vmatpush1.bf16.msra.mxu0 0
    %1692 = vmatprep.subr.bf16.mxu0 0
    %1693 = vmatpush1.bf16.msra.mxu0 0
    %1694 = vmatprep.subr.bf16.mxu0 0
    %1695 = vmatpush1.bf16.msra.mxu0 0
    %1696 = vmatprep.subr.bf16.mxu0 0
    %1697 = vmatpush1.bf16.msra.mxu0 0
    %1698 = vmatprep.subr.bf16.mxu0 0
    %1699 = vmatpush1.bf16.msra.mxu0 0
    %1700 = vmatprep.subr.bf16.mxu0 0
    %1701 = vmatpush1.bf16.msra.mxu0 0
    %1702 = vmatprep.subr.bf16.mxu0 0
    %1703 = vmatpush1.bf16.msra.mxu0 0
    %1704 = vmatprep.subr.bf16.mxu0 0
    %1705 = vmatpush1.bf16.msra.mxu0 0
    %1706 = vmatprep.mubr.bf16.mxu0 0
    %1707 = vmatmul.mubr.bf16.gmra.mrb[0].mxu0 %v1658
    %v1708 = vpop.f32.mrb[0].mxu0
    %v1709 = vadd.f32 0.0, %v1708
    %v1710 = vpop.f32.mrb[0].mxu0
    %v1711 = vpop.f32.mrb[0].mxu0
    %v1712 = vadd.f32 0.0, %v1711
    %v1713 = vpop.f32.mrb[0].mxu0
    %1714 = vmatprep.mubr.bf16.mxu0 0
    %1715 = vmatmul.mubr.bf16.gmra.mrb[0].mxu0 %v1659
    %v1716 = vpop.f32.mrb[0].mxu0
    %v1717 = vadd.f32 0.0, %v1716
    %v1718 = vpop.f32.mrb[0].mxu0
    %v1719 = vpop.f32.mrb[0].mxu0
    %v1720 = vadd.f32 0.0, %v1719
    %v1721 = vpop.f32.mrb[0].mxu0
    %1722 = vmatprep.mubr.bf16.mxu0 0
    %1723 = vmatmul.mubr.bf16.gmra.mrb[0].mxu0 %v1660
    %v1724 = vpop.f32.mrb[0].mxu0
    %v1725 = vadd.f32 0.0, %v1724
    %v1726 = vpop.f32.mrb[0].mxu0
    %v1727 = vpop.f32.mrb[0].mxu0
    %v1728 = vadd.f32 0.0, %v1727
    %v1729 = vpop.f32.mrb[0].mxu0
    %1730 = vmatprep.mubr.bf16.mxu0 0
    %1731 = vmatmul.mubr.bf16.gmra.mrb[0].mxu0 %v1661
    %v1732 = vpop.f32.mrb[0].mxu0
    %v1733 = vadd.f32 0.0, %v1732
    %v1734 = vpop.f32.mrb[0].mxu0
    %v1735 = vpop.f32.mrb[0].mxu0
    %v1736 = vadd.f32 0.0, %v1735
    %v1737 = vpop.f32.mrb[0].mxu0
    %1738 = vmatprep.mubr.bf16.mxu0 0
    %1739 = vmatmul.mubr.bf16.gmra.mrb[0].mxu0 %v1662
    %v1740 = vpop.f32.mrb[0].mxu0
    %v1741 = vadd.f32 0.0, %v1740
    %v1742 = vpop.f32.mrb[0].mxu0
    %v1743 = vpop.f32.mrb[0].mxu0
    %v1744 = vadd.f32 0.0, %v1743
    %v1745 = vpop.f32.mrb[0].mxu0
    %1746 = vmatprep.mubr.bf16.mxu0 0
    %1747 = vmatmul.mubr.bf16.gmra.mrb[0].mxu0 %v1663
    %v1748 = vpop.f32.mrb[0].mxu0
    %v1749 = vadd.f32 0.0, %v1748
    %v1750 = vpop.f32.mrb[0].mxu0
    %v1751 = vpop.f32.mrb[0].mxu0
    %v1752 = vadd.f32 0.0, %v1751
    %v1753 = vpop.f32.mrb[0].mxu0
    %1754 = vmatprep.mubr.bf16.mxu0 0
    %1755 = vmatmul.mubr.bf16.gmra.mrb[0].mxu0 %v1664
    %v1756 = vpop.f32.mrb[0].mxu0
    %v1757 = vadd.f32 0.0, %v1756
    %v1758 = vpop.f32.mrb[0].mxu0
    %v1759 = vpop.f32.mrb[0].mxu0
    %v1760 = vadd.f32 0.0, %v1759
    %v1761 = vpop.f32.mrb[0].mxu0
    %1762 = vmatprep.mubr.bf16.mxu0 0
    %1763 = vmatmul.mubr.bf16.gmra.mrb[0].mxu0 %v1665
    %v1764 = vpop.f32.mrb[0].mxu0
    %v1765 = vadd.f32 0.0, %v1764
    %v1766 = vpop.f32.mrb[0].mxu0
    %v1767 = vpop.f32.mrb[0].mxu0
    %v1768 = vadd.f32 0.0, %v1767
    %v1769 = vpop.f32.mrb[0].mxu0
    %1770 = vdwg.mxu0
    %v1771 = vpack.c.bf16 %v1712, %v1709
    %v1772 = vpack.c.bf16 %v1720, %v1717
    %v1773 = vpack.c.bf16 %v1728, %v1725
    %v1774 = vpack.c.bf16 %v1736, %v1733
    %v1775 = vpack.c.bf16 %v1744, %v1741
    %v1776 = vpack.c.bf16 %v1752, %v1749
    %v1777 = vpack.c.bf16 %v1760, %v1757
    %v1778 = vpack.c.bf16 %v1768, %v1765
    %s1779 = scalar_lea.vmem [#allocation4], 32
    %v1780 = vld [vmem:[%s1779] sm:$0xf]
    %v1781 = vld [vmem:[%s1779 + $0x4] sm:$0xf]
    %v1784 = vunpack.c.l.b16 %v1780
    %v1785 = vunpack.c.l.b16 %v1781
    %v1786 = vpack.c.b16 %v1785, %v1784
    %v1789 = vsel %vm728, %v1771, 0
    %v1792 = vsel %vm728, %v1772, 0
    %v1795 = vsel %vm728, %v1773, 0
    %v1798 = vsel %vm728, %v1774, 0
    %v1801 = vsel %vm728, %v1775, 0
    %v1804 = vsel %vm728, %v1776, 0
    %v1807 = vsel %vm728, %v1777, 0
    %v1810 = vsel %vm728, %v1778, 0
    %1812 = vmatprep.subr.bf16.mxu0 0
    %1813 = vmatpush1.bf16.msra.mxu0 %v1786
    %1814 = vmatprep.subr.bf16.mxu0 0
    %1815 = vmatpush1.bf16.msra.mxu0 0
    %1816 = vmatprep.subr.bf16.mxu0 0
    %1817 = vmatpush1.bf16.msra.mxu0 0
    %1818 = vmatprep.subr.bf16.mxu0 0
    %1819 = vmatpush1.bf16.msra.mxu0 0
    %1820 = vmatprep.subr.bf16.mxu0 0
    %1821 = vmatpush1.bf16.msra.mxu0 0
    %1822 = vmatprep.subr.bf16.mxu0 0
    %1823 = vmatpush1.bf16.msra.mxu0 0
    %1824 = vmatprep.subr.bf16.mxu0 0
    %1825 = vmatpush1.bf16.msra.mxu0 0
    %1826 = vmatprep.subr.bf16.mxu0 0
    %1827 = vmatpush1.bf16.msra.mxu0 0
    %1828 = vmatprep.subr.bf16.mxu0 0
    %1829 = vmatpush1.bf16.msra.mxu0 0
    %1830 = vmatprep.subr.bf16.mxu0 0
    %1831 = vmatpush1.bf16.msra.mxu0 0
    %1832 = vmatprep.subr.bf16.mxu0 0
    %1833 = vmatpush1.bf16.msra.mxu0 0
    %1834 = vmatprep.subr.bf16.mxu0 0
    %1835 = vmatpush1.bf16.msra.mxu0 0
    %1836 = vmatprep.subr.bf16.mxu0 0
    %1837 = vmatpush1.bf16.msra.mxu0 0
    %1838 = vmatprep.subr.bf16.mxu0 0
    %1839 = vmatpush1.bf16.msra.mxu0 0
    %1840 = vmatprep.subr.bf16.mxu0 0
    %1841 = vmatpush1.bf16.msra.mxu0 0
    %1842 = vmatprep.subr.bf16.mxu0 0
    %1843 = vmatpush1.bf16.msra.mxu0 0
    %1844 = vmatprep.mubr.bf16.mxu0 0
    %1845 = vmatmul.mubr.bf16.gmra.mrb[0].mxu0 %v1789
    %v1846 = vpop.f32.mrb[0].mxu0
    %v1847 = vadd.f32 0.0, %v1846
    %v1848 = vpop.f32.mrb[0].mxu0
    %v1849 = vpop.f32.mrb[0].mxu0
    %v1850 = vadd.f32 0.0, %v1849
    %v1851 = vpop.f32.mrb[0].mxu0
    %1852 = vmatprep.mubr.bf16.mxu0 0
    %1853 = vmatmul.mubr.bf16.gmra.mrb[0].mxu0 %v1792
    %v1854 = vpop.f32.mrb[0].mxu0
    %v1855 = vadd.f32 0.0, %v1854
    %v1856 = vpop.f32.mrb[0].mxu0
    %v1857 = vpop.f32.mrb[0].mxu0
    %v1858 = vadd.f32 0.0, %v1857
    %v1859 = vpop.f32.mrb[0].mxu0
    %1860 = vmatprep.mubr.bf16.mxu0 0
    %1861 = vmatmul.mubr.bf16.gmra.mrb[0].mxu0 %v1795
    %v1862 = vpop.f32.mrb[0].mxu0
    %v1863 = vadd.f32 0.0, %v1862
    %v1864 = vpop.f32.mrb[0].mxu0
    %v1865 = vpop.f32.mrb[0].mxu0
    %v1866 = vadd.f32 0.0, %v1865
    %v1867 = vpop.f32.mrb[0].mxu0
    %1868 = vmatprep.mubr.bf16.mxu0 0
    %1869 = vmatmul.mubr.bf16.gmra.mrb[0].mxu0 %v1798
    %v1870 = vpop.f32.mrb[0].mxu0
    %v1871 = vadd.f32 0.0, %v1870
    %v1872 = vpop.f32.mrb[0].mxu0
    %v1873 = vpop.f32.mrb[0].mxu0
    %v1874 = vadd.f32 0.0, %v1873
    %v1875 = vpop.f32.mrb[0].mxu0
    %1876 = vmatprep.mubr.bf16.mxu0 0
    %1877 = vmatmul.mubr.bf16.gmra.mrb[0].mxu0 %v1801
    %v1878 = vpop.f32.mrb[0].mxu0
    %v1879 = vadd.f32 0.0, %v1878
    %v1880 = vpop.f32.mrb[0].mxu0
    %v1881 = vpop.f32.mrb[0].mxu0
    %v1882 = vadd.f32 0.0, %v1881
    %v1883 = vpop.f32.mrb[0].mxu0
    %1884 = vmatprep.mubr.bf16.mxu0 0
    %1885 = vmatmul.mubr.bf16.gmra.mrb[0].mxu0 %v1804
    %v1886 = vpop.f32.mrb[0].mxu0
    %v1887 = vadd.f32 0.0, %v1886
    %v1888 = vpop.f32.mrb[0].mxu0
    %v1889 = vpop.f32.mrb[0].mxu0
    %v1890 = vadd.f32 0.0, %v1889
    %v1891 = vpop.f32.mrb[0].mxu0
    %1892 = vmatprep.mubr.bf16.mxu0 0
    %1893 = vmatmul.mubr.bf16.gmra.mrb[0].mxu0 %v1807
    %v1894 = vpop.f32.mrb[0].mxu0
    %v1895 = vadd.f32 0.0, %v1894
    %v1896 = vpop.f32.mrb[0].mxu0
    %v1897 = vpop.f32.mrb[0].mxu0
    %v1898 = vadd.f32 0.0, %v1897
    %v1899 = vpop.f32.mrb[0].mxu0
    %1900 = vmatprep.mubr.bf16.mxu0 0
    %1901 = vmatmul.mubr.bf16.gmra.mrb[0].mxu0 %v1810
    %v1902 = vpop.f32.mrb[0].mxu0
    %v1903 = vadd.f32 0.0, %v1902
    %v1904 = vpop.f32.mrb[0].mxu0
    %v1905 = vpop.f32.mrb[0].mxu0
    %v1906 = vadd.f32 0.0, %v1905
    %v1907 = vpop.f32.mrb[0].mxu0
    %1908 = vdwg.mxu0
    %v1909 = vadd.f32 %v1593, %v1847
    %v1910 = vadd.f32 %v1594, %v1850
    %v1911 = vadd.f32 %v1595, %v1855
    %v1912 = vadd.f32 %v1596, %v1858
    %v1913 = vadd.f32 %v1597, %v1863
    %v1914 = vadd.f32 %v1598, %v1866
    %v1915 = vadd.f32 %v1599, %v1871
    %v1916 = vadd.f32 %v1600, %v1874
    %v1917 = vadd.f32 %v1601, %v1879
    %v1918 = vadd.f32 %v1602, %v1882
    %v1919 = vadd.f32 %v1603, %v1887
    %v1920 = vadd.f32 %v1604, %v1890
    %v1921 = vadd.f32 %v1605, %v1895
    %v1922 = vadd.f32 %v1606, %v1898
    %v1923 = vadd.f32 %v1607, %v1903
    %v1924 = vadd.f32 %v1608, %v1906
    %s1925 = scalar_lea.vmem [#allocation2], 320
    %v1926 = vld [vmem:[%s1925] sm:$0xf]
    %v1927 = vld [vmem:[%s1925 + $0x4] sm:$0xf]
    %v1928 = vld [vmem:[%s1925 + $0x8] sm:$0xf]
    %v1929 = vld [vmem:[%s1925 + $0xc] sm:$0xf]
    %v1930 = vld [vmem:[%s1925 + $0x10] sm:$0xf]
    %v1931 = vld [vmem:[%s1925 + $0x14] sm:$0xf]
    %v1932 = vld [vmem:[%s1925 + $0x18] sm:$0xf]
    %v1933 = vld [vmem:[%s1925 + $0x1c] sm:$0xf]
    %v1934 = vld [vmem:[%s1925 + $0x20] sm:$0xf]
    %v1935 = vld [vmem:[%s1925 + $0x24] sm:$0xf]
    %v1936 = vld [vmem:[%s1925 + $0x28] sm:$0xf]
    %v1937 = vld [vmem:[%s1925 + $0x2c] sm:$0xf]
    %v1938 = vld [vmem:[%s1925 + $0x30] sm:$0xf]
    %v1939 = vld [vmem:[%s1925 + $0x34] sm:$0xf]
    %v1940 = vld [vmem:[%s1925 + $0x38] sm:$0xf]
    %v1941 = vld [vmem:[%s1925 + $0x3c] sm:$0xf]
    %v1958 = vunpack.c.l.b16 %v1926
    %v1959 = vunpack.c.l.b16 %v1927
    %v1960 = vunpack.c.l.b16 %v1928
    %v1961 = vunpack.c.l.b16 %v1929
    %v1962 = vunpack.c.l.b16 %v1930
    %v1963 = vunpack.c.l.b16 %v1931
    %v1964 = vunpack.c.l.b16 %v1932
    %v1965 = vunpack.c.l.b16 %v1933
    %v1966 = vunpack.c.l.b16 %v1934
    %v1967 = vunpack.c.l.b16 %v1935
    %v1968 = vunpack.c.l.b16 %v1936
    %v1969 = vunpack.c.l.b16 %v1937
    %v1970 = vunpack.c.l.b16 %v1938
    %v1971 = vunpack.c.l.b16 %v1939
    %v1972 = vunpack.c.l.b16 %v1940
    %v1973 = vunpack.c.l.b16 %v1941
    %v1974 = vpack.c.b16 %v1959, %v1958
    %v1975 = vpack.c.b16 %v1961, %v1960
    %v1976 = vpack.c.b16 %v1963, %v1962
    %v1977 = vpack.c.b16 %v1965, %v1964
    %v1978 = vpack.c.b16 %v1967, %v1966
    %v1979 = vpack.c.b16 %v1969, %v1968
    %v1980 = vpack.c.b16 %v1971, %v1970
    %v1981 = vpack.c.b16 %v1973, %v1972
    %1990 = vmatprep.subr.bf16.mxu0 0
    %1991 = vmatpush1.bf16.msra.mxu0 %v370
    %1992 = vmatprep.subr.bf16.mxu0 0
    %1993 = vmatpush1.bf16.msra.mxu0 %v371
    %1994 = vmatprep.subr.bf16.mxu0 0
    %1995 = vmatpush1.bf16.msra.mxu0 %v372
    %1996 = vmatprep.subr.bf16.mxu0 0
    %1997 = vmatpush1.bf16.msra.mxu0 %v373
    %1998 = vmatprep.subr.bf16.mxu0 0
    %1999 = vmatpush1.bf16.msra.mxu0 %v374
    %2000 = vmatprep.subr.bf16.mxu0 0
    %2001 = vmatpush1.bf16.msra.mxu0 %v375
    %2002 = vmatprep.subr.bf16.mxu0 0
    %2003 = vmatpush1.bf16.msra.mxu0 %v376
    %2004 = vmatprep.subr.bf16.mxu0 0
    %2005 = vmatpush1.bf16.msra.mxu0 %v377
    %2006 = vmatprep.subr.bf16.mxu0 0
    %2007 = vmatpush1.bf16.msra.mxu0 0
    %2008 = vmatprep.subr.bf16.mxu0 0
    %2009 = vmatpush1.bf16.msra.mxu0 0
    %2010 = vmatprep.subr.bf16.mxu0 0
    %2011 = vmatpush1.bf16.msra.mxu0 0
    %2012 = vmatprep.subr.bf16.mxu0 0
    %2013 = vmatpush1.bf16.msra.mxu0 0
    %2014 = vmatprep.subr.bf16.mxu0 0
    %2015 = vmatpush1.bf16.msra.mxu0 0
    %2016 = vmatprep.subr.bf16.mxu0 0
    %2017 = vmatpush1.bf16.msra.mxu0 0
    %2018 = vmatprep.subr.bf16.mxu0 0
    %2019 = vmatpush1.bf16.msra.mxu0 0
    %2020 = vmatprep.subr.bf16.mxu0 0
    %2021 = vmatpush1.bf16.msra.mxu0 0
    %2022 = vmatprep.mubr.bf16.mxu0 0
    %2023 = vmatmul.mubr.bf16.gmra.mrb[0].mxu0 %v1974
    %v2024 = vpop.f32.mrb[0].mxu0
    %v2025 = vadd.f32 0.0, %v2024
    %v2026 = vpop.f32.mrb[0].mxu0
    %v2027 = vpop.f32.mrb[0].mxu0
    %v2028 = vadd.f32 0.0, %v2027
    %v2029 = vpop.f32.mrb[0].mxu0
    %2030 = vmatprep.mubr.bf16.mxu0 0
    %2031 = vmatmul.mubr.bf16.gmra.mrb[0].mxu0 %v1975
    %v2032 = vpop.f32.mrb[0].mxu0
    %v2033 = vadd.f32 0.0, %v2032
    %v2034 = vpop.f32.mrb[0].mxu0
    %v2035 = vpop.f32.mrb[0].mxu0
    %v2036 = vadd.f32 0.0, %v2035
    %v2037 = vpop.f32.mrb[0].mxu0
    %2038 = vmatprep.mubr.bf16.mxu0 0
    %2039 = vmatmul.mubr.bf16.gmra.mrb[0].mxu0 %v1976
    %v2040 = vpop.f32.mrb[0].mxu0
    %v2041 = vadd.f32 0.0, %v2040
    %v2042 = vpop.f32.mrb[0].mxu0
    %v2043 = vpop.f32.mrb[0].mxu0
    %v2044 = vadd.f32 0.0, %v2043
    %v2045 = vpop.f32.mrb[0].mxu0
    %2046 = vmatprep.mubr.bf16.mxu0 0
    %2047 = vmatmul.mubr.bf16.gmra.mrb[0].mxu0 %v1977
    %v2048 = vpop.f32.mrb[0].mxu0
    %v2049 = vadd.f32 0.0, %v2048
    %v2050 = vpop.f32.mrb[0].mxu0
    %v2051 = vpop.f32.mrb[0].mxu0
    %v2052 = vadd.f32 0.0, %v2051
    %v2053 = vpop.f32.mrb[0].mxu0
    %2054 = vmatprep.mubr.bf16.mxu0 0
    %2055 = vmatmul.mubr.bf16.gmra.mrb[0].mxu0 %v1978
    %v2056 = vpop.f32.mrb[0].mxu0
    %v2057 = vadd.f32 0.0, %v2056
    %v2058 = vpop.f32.mrb[0].mxu0
    %v2059 = vpop.f32.mrb[0].mxu0
    %v2060 = vadd.f32 0.0, %v2059
    %v2061 = vpop.f32.mrb[0].mxu0
    %2062 = vmatprep.mubr.bf16.mxu0 0
    %2063 = vmatmul.mubr.bf16.gmra.mrb[0].mxu0 %v1979
    %v2064 = vpop.f32.mrb[0].mxu0
    %v2065 = vadd.f32 0.0, %v2064
    %v2066 = vpop.f32.mrb[0].mxu0
    %v2067 = vpop.f32.mrb[0].mxu0
    %v2068 = vadd.f32 0.0, %v2067
    %v2069 = vpop.f32.mrb[0].mxu0
    %2070 = vmatprep.mubr.bf16.mxu0 0
    %2071 = vmatmul.mubr.bf16.gmra.mrb[0].mxu0 %v1980
    %v2072 = vpop.f32.mrb[0].mxu0
    %v2073 = vadd.f32 0.0, %v2072
    %v2074 = vpop.f32.mrb[0].mxu0
    %v2075 = vpop.f32.mrb[0].mxu0
    %v2076 = vadd.f32 0.0, %v2075
    %v2077 = vpop.f32.mrb[0].mxu0
    %2078 = vmatprep.mubr.bf16.mxu0 0
    %2079 = vmatmul.mubr.bf16.gmra.mrb[0].mxu0 %v1981
    %v2080 = vpop.f32.mrb[0].mxu0
    %v2081 = vadd.f32 0.0, %v2080
    %v2082 = vpop.f32.mrb[0].mxu0
    %v2083 = vpop.f32.mrb[0].mxu0
    %v2084 = vadd.f32 0.0, %v2083
    %v2085 = vpop.f32.mrb[0].mxu0
    %2086 = vdwg.mxu0
    %v2087 = vpack.c.bf16 %v2028, %v2025
    %v2088 = vpack.c.bf16 %v2036, %v2033
    %v2089 = vpack.c.bf16 %v2044, %v2041
    %v2090 = vpack.c.bf16 %v2052, %v2049
    %v2091 = vpack.c.bf16 %v2060, %v2057
    %v2092 = vpack.c.bf16 %v2068, %v2065
    %v2093 = vpack.c.bf16 %v2076, %v2073
    %v2094 = vpack.c.bf16 %v2084, %v2081
    %s2095 = scalar_lea.vmem [#allocation4], 40
    %v2096 = vld [vmem:[%s2095] sm:$0xf]
    %v2097 = vld [vmem:[%s2095 + $0x4] sm:$0xf]
    %v2100 = vunpack.c.l.b16 %v2096
    %v2101 = vunpack.c.l.b16 %v2097
    %v2102 = vpack.c.b16 %v2101, %v2100
    %v2105 = vsel %vm728, %v2087, 0
    %v2108 = vsel %vm728, %v2088, 0
    %v2111 = vsel %vm728, %v2089, 0
    %v2114 = vsel %vm728, %v2090, 0
    %v2117 = vsel %vm728, %v2091, 0
    %v2120 = vsel %vm728, %v2092, 0
    %v2123 = vsel %vm728, %v2093, 0
    %v2126 = vsel %vm728, %v2094, 0
    %2128 = vmatprep.subr.bf16.mxu0 0
    %2129 = vmatpush1.bf16.msra.mxu0 %v2102
    %2130 = vmatprep.subr.bf16.mxu0 0
    %2131 = vmatpush1.bf16.msra.mxu0 0
    %2132 = vmatprep.subr.bf16.mxu0 0
    %2133 = vmatpush1.bf16.msra.mxu0 0
    %2134 = vmatprep.subr.bf16.mxu0 0
    %2135 = vmatpush1.bf16.msra.mxu0 0
    %2136 = vmatprep.subr.bf16.mxu0 0
    %2137 = vmatpush1.bf16.msra.mxu0 0
    %2138 = vmatprep.subr.bf16.mxu0 0
    %2139 = vmatpush1.bf16.msra.mxu0 0
    %2140 = vmatprep.subr.bf16.mxu0 0
    %2141 = vmatpush1.bf16.msra.mxu0 0
    %2142 = vmatprep.subr.bf16.mxu0 0
    %2143 = vmatpush1.bf16.msra.mxu0 0
    %2144 = vmatprep.subr.bf16.mxu0 0
    %2145 = vmatpush1.bf16.msra.mxu0 0
    %2146 = vmatprep.subr.bf16.mxu0 0
    %2147 = vmatpush1.bf16.msra.mxu0 0
    %2148 = vmatprep.subr.bf16.mxu0 0
    %2149 = vmatpush1.bf16.msra.mxu0 0
    %2150 = vmatprep.subr.bf16.mxu0 0
    %2151 = vmatpush1.bf16.msra.mxu0 0
    %2152 = vmatprep.subr.bf16.mxu0 0
    %2153 = vmatpush1.bf16.msra.mxu0 0
    %2154 = vmatprep.subr.bf16.mxu0 0
    %2155 = vmatpush1.bf16.msra.mxu0 0
    %2156 = vmatprep.subr.bf16.mxu0 0
    %2157 = vmatpush1.bf16.msra.mxu0 0
    %2158 = vmatprep.subr.bf16.mxu0 0
    %2159 = vmatpush1.bf16.msra.mxu0 0
    %2160 = vmatprep.mubr.bf16.mxu0 0
    %2161 = vmatmul.mubr.bf16.gmra.mrb[0].mxu0 %v2105
    %v2162 = vpop.f32.mrb[0].mxu0
    %v2163 = vadd.f32 0.0, %v2162
    %v2164 = vpop.f32.mrb[0].mxu0
    %v2165 = vpop.f32.mrb[0].mxu0
    %v2166 = vadd.f32 0.0, %v2165
    %v2167 = vpop.f32.mrb[0].mxu0
    %2168 = vmatprep.mubr.bf16.mxu0 0
    %2169 = vmatmul.mubr.bf16.gmra.mrb[0].mxu0 %v2108
    %v2170 = vpop.f32.mrb[0].mxu0
    %v2171 = vadd.f32 0.0, %v2170
    %v2172 = vpop.f32.mrb[0].mxu0
    %v2173 = vpop.f32.mrb[0].mxu0
    %v2174 = vadd.f32 0.0, %v2173
    %v2175 = vpop.f32.mrb[0].mxu0
    %2176 = vmatprep.mubr.bf16.mxu0 0
    %2177 = vmatmul.mubr.bf16.gmra.mrb[0].mxu0 %v2111
    %v2178 = vpop.f32.mrb[0].mxu0
    %v2179 = vadd.f32 0.0, %v2178
    %v2180 = vpop.f32.mrb[0].mxu0
    %v2181 = vpop.f32.mrb[0].mxu0
    %v2182 = vadd.f32 0.0, %v2181
    %v2183 = vpop.f32.mrb[0].mxu0
    %2184 = vmatprep.mubr.bf16.mxu0 0
    %2185 = vmatmul.mubr.bf16.gmra.mrb[0].mxu0 %v2114
    %v2186 = vpop.f32.mrb[0].mxu0
    %v2187 = vadd.f32 0.0, %v2186
    %v2188 = vpop.f32.mrb[0].mxu0
    %v2189 = vpop.f32.mrb[0].mxu0
    %v2190 = vadd.f32 0.0, %v2189
    %v2191 = vpop.f32.mrb[0].mxu0
    %2192 = vmatprep.mubr.bf16.mxu0 0
    %2193 = vmatmul.mubr.bf16.gmra.mrb[0].mxu0 %v2117
    %v2194 = vpop.f32.mrb[0].mxu0
    %v2195 = vadd.f32 0.0, %v2194
    %v2196 = vpop.f32.mrb[0].mxu0
    %v2197 = vpop.f32.mrb[0].mxu0
    %v2198 = vadd.f32 0.0, %v2197
    %v2199 = vpop.f32.mrb[0].mxu0
    %2200 = vmatprep.mubr.bf16.mxu0 0
    %2201 = vmatmul.mubr.bf16.gmra.mrb[0].mxu0 %v2120
    %v2202 = vpop.f32.mrb[0].mxu0
    %v2203 = vadd.f32 0.0, %v2202
    %v2204 = vpop.f32.mrb[0].mxu0
    %v2205 = vpop.f32.mrb[0].mxu0
    %v2206 = vadd.f32 0.0, %v2205
    %v2207 = vpop.f32.mrb[0].mxu0
    %2208 = vmatprep.mubr.bf16.mxu0 0
    %2209 = vmatmul.mubr.bf16.gmra.mrb[0].mxu0 %v2123
    %v2210 = vpop.f32.mrb[0].mxu0
    %v2211 = vadd.f32 0.0, %v2210
    %v2212 = vpop.f32.mrb[0].mxu0
    %v2213 = vpop.f32.mrb[0].mxu0
    %v2214 = vadd.f32 0.0, %v2213
    %v2215 = vpop.f32.mrb[0].mxu0
    %2216 = vmatprep.mubr.bf16.mxu0 0
    %2217 = vmatmul.mubr.bf16.gmra.mrb[0].mxu0 %v2126
    %v2218 = vpop.f32.mrb[0].mxu0
    %v2219 = vadd.f32 0.0, %v2218
    %v2220 = vpop.f32.mrb[0].mxu0
    %v2221 = vpop.f32.mrb[0].mxu0
    %v2222 = vadd.f32 0.0, %v2221
    %v2223 = vpop.f32.mrb[0].mxu0
    %2224 = vdwg.mxu0
    %v2225 = vadd.f32 %v1909, %v2163
    %v2226 = vadd.f32 %v1910, %v2166
    %v2227 = vadd.f32 %v1911, %v2171
    %v2228 = vadd.f32 %v1912, %v2174
    %v2229 = vadd.f32 %v1913, %v2179
    %v2230 = vadd.f32 %v1914, %v2182
    %v2231 = vadd.f32 %v1915, %v2187
    %v2232 = vadd.f32 %v1916, %v2190
    %v2233 = vadd.f32 %v1917, %v2195
    %v2234 = vadd.f32 %v1918, %v2198
    %v2235 = vadd.f32 %v1919, %v2203
    %v2236 = vadd.f32 %v1920, %v2206
    %v2237 = vadd.f32 %v1921, %v2211
    %v2238 = vadd.f32 %v1922, %v2214
    %v2239 = vadd.f32 %v1923, %v2219
    %v2240 = vadd.f32 %v1924, %v2222
    %s2241 = scalar_lea.vmem [#allocation2], 384
    %v2242 = vld [vmem:[%s2241] sm:$0xf]
    %v2243 = vld [vmem:[%s2241 + $0x4] sm:$0xf]
    %v2244 = vld [vmem:[%s2241 + $0x8] sm:$0xf]
    %v2245 = vld [vmem:[%s2241 + $0xc] sm:$0xf]
    %v2246 = vld [vmem:[%s2241 + $0x10] sm:$0xf]
    %v2247 = vld [vmem:[%s2241 + $0x14] sm:$0xf]
    %v2248 = vld [vmem:[%s2241 + $0x18] sm:$0xf]
    %v2249 = vld [vmem:[%s2241 + $0x1c] sm:$0xf]
    %v2250 = vld [vmem:[%s2241 + $0x20] sm:$0xf]
    %v2251 = vld [vmem:[%s2241 + $0x24] sm:$0xf]
    %v2252 = vld [vmem:[%s2241 + $0x28] sm:$0xf]
    %v2253 = vld [vmem:[%s2241 + $0x2c] sm:$0xf]
    %v2254 = vld [vmem:[%s2241 + $0x30] sm:$0xf]
    %v2255 = vld [vmem:[%s2241 + $0x34] sm:$0xf]
    %v2256 = vld [vmem:[%s2241 + $0x38] sm:$0xf]
    %v2257 = vld [vmem:[%s2241 + $0x3c] sm:$0xf]
    %v2274 = vunpack.c.l.b16 %v2242
    %v2275 = vunpack.c.l.b16 %v2243
    %v2276 = vunpack.c.l.b16 %v2244
    %v2277 = vunpack.c.l.b16 %v2245
    %v2278 = vunpack.c.l.b16 %v2246
    %v2279 = vunpack.c.l.b16 %v2247
    %v2280 = vunpack.c.l.b16 %v2248
    %v2281 = vunpack.c.l.b16 %v2249
    %v2282 = vunpack.c.l.b16 %v2250
    %v2283 = vunpack.c.l.b16 %v2251
    %v2284 = vunpack.c.l.b16 %v2252
    %v2285 = vunpack.c.l.b16 %v2253
    %v2286 = vunpack.c.l.b16 %v2254
    %v2287 = vunpack.c.l.b16 %v2255
    %v2288 = vunpack.c.l.b16 %v2256
    %v2289 = vunpack.c.l.b16 %v2257
    %v2290 = vpack.c.b16 %v2275, %v2274
    %v2291 = vpack.c.b16 %v2277, %v2276
    %v2292 = vpack.c.b16 %v2279, %v2278
    %v2293 = vpack.c.b16 %v2281, %v2280
    %v2294 = vpack.c.b16 %v2283, %v2282
    %v2295 = vpack.c.b16 %v2285, %v2284
    %v2296 = vpack.c.b16 %v2287, %v2286
    %v2297 = vpack.c.b16 %v2289, %v2288
    %2306 = vmatprep.subr.bf16.mxu0 0
    %2307 = vmatpush1.bf16.msra.mxu0 %v370
    %2308 = vmatprep.subr.bf16.mxu0 0
    %2309 = vmatpush1.bf16.msra.mxu0 %v371
    %2310 = vmatprep.subr.bf16.mxu0 0
    %2311 = vmatpush1.bf16.msra.mxu0 %v372
    %2312 = vmatprep.subr.bf16.mxu0 0
    %2313 = vmatpush1.bf16.msra.mxu0 %v373
    %2314 = vmatprep.subr.bf16.mxu0 0
    %2315 = vmatpush1.bf16.msra.mxu0 %v374
    %2316 = vmatprep.subr.bf16.mxu0 0
    %2317 = vmatpush1.bf16.msra.mxu0 %v375
    %2318 = vmatprep.subr.bf16.mxu0 0
    %2319 = vmatpush1.bf16.msra.mxu0 %v376
    %2320 = vmatprep.subr.bf16.mxu0 0
    %2321 = vmatpush1.bf16.msra.mxu0 %v377
    %2322 = vmatprep.subr.bf16.mxu0 0
    %2323 = vmatpush1.bf16.msra.mxu0 0
    %2324 = vmatprep.subr.bf16.mxu0 0
    %2325 = vmatpush1.bf16.msra.mxu0 0
    %2326 = vmatprep.subr.bf16.mxu0 0
    %2327 = vmatpush1.bf16.msra.mxu0 0
    %2328 = vmatprep.subr.bf16.mxu0 0
    %2329 = vmatpush1.bf16.msra.mxu0 0
    %2330 = vmatprep.subr.bf16.mxu0 0
    %2331 = vmatpush1.bf16.msra.mxu0 0
    %2332 = vmatprep.subr.bf16.mxu0 0
    %2333 = vmatpush1.bf16.msra.mxu0 0
    %2334 = vmatprep.subr.bf16.mxu0 0
    %2335 = vmatpush1.bf16.msra.mxu0 0
    %2336 = vmatprep.subr.bf16.mxu0 0
    %2337 = vmatpush1.bf16.msra.mxu0 0
    %2338 = vmatprep.mubr.bf16.mxu0 0
    %2339 = vmatmul.mubr.bf16.gmra.mrb[0].mxu0 %v2290
    %v2340 = vpop.f32.mrb[0].mxu0
    %v2341 = vadd.f32 0.0, %v2340
    %v2342 = vpop.f32.mrb[0].mxu0
    %v2343 = vpop.f32.mrb[0].mxu0
    %v2344 = vadd.f32 0.0, %v2343
    %v2345 = vpop.f32.mrb[0].mxu0
    %2346 = vmatprep.mubr.bf16.mxu0 0
    %2347 = vmatmul.mubr.bf16.gmra.mrb[0].mxu0 %v2291
    %v2348 = vpop.f32.mrb[0].mxu0
    %v2349 = vadd.f32 0.0, %v2348
    %v2350 = vpop.f32.mrb[0].mxu0
    %v2351 = vpop.f32.mrb[0].mxu0
    %v2352 = vadd.f32 0.0, %v2351
    %v2353 = vpop.f32.mrb[0].mxu0
    %2354 = vmatprep.mubr.bf16.mxu0 0
    %2355 = vmatmul.mubr.bf16.gmra.mrb[0].mxu0 %v2292
    %v2356 = vpop.f32.mrb[0].mxu0
    %v2357 = vadd.f32 0.0, %v2356
    %v2358 = vpop.f32.mrb[0].mxu0
    %v2359 = vpop.f32.mrb[0].mxu0
    %v2360 = vadd.f32 0.0, %v2359
    %v2361 = vpop.f32.mrb[0].mxu0
    %2362 = vmatprep.mubr.bf16.mxu0 0
    %2363 = vmatmul.mubr.bf16.gmra.mrb[0].mxu0 %v2293
    %v2364 = vpop.f32.mrb[0].mxu0
    %v2365 = vadd.f32 0.0, %v2364
    %v2366 = vpop.f32.mrb[0].mxu0
    %v2367 = vpop.f32.mrb[0].mxu0
    %v2368 = vadd.f32 0.0, %v2367
    %v2369 = vpop.f32.mrb[0].mxu0
    %2370 = vmatprep.mubr.bf16.mxu0 0
    %2371 = vmatmul.mubr.bf16.gmra.mrb[0].mxu0 %v2294
    %v2372 = vpop.f32.mrb[0].mxu0
    %v2373 = vadd.f32 0.0, %v2372
    %v2374 = vpop.f32.mrb[0].mxu0
    %v2375 = vpop.f32.mrb[0].mxu0
    %v2376 = vadd.f32 0.0, %v2375
    %v2377 = vpop.f32.mrb[0].mxu0
    %2378 = vmatprep.mubr.bf16.mxu0 0
    %2379 = vmatmul.mubr.bf16.gmra.mrb[0].mxu0 %v2295
    %v2380 = vpop.f32.mrb[0].mxu0
    %v2381 = vadd.f32 0.0, %v2380
    %v2382 = vpop.f32.mrb[0].mxu0
    %v2383 = vpop.f32.mrb[0].mxu0
    %v2384 = vadd.f32 0.0, %v2383
    %v2385 = vpop.f32.mrb[0].mxu0
    %2386 = vmatprep.mubr.bf16.mxu0 0
    %2387 = vmatmul.mubr.bf16.gmra.mrb[0].mxu0 %v2296
    %v2388 = vpop.f32.mrb[0].mxu0
    %v2389 = vadd.f32 0.0, %v2388
    %v2390 = vpop.f32.mrb[0].mxu0
    %v2391 = vpop.f32.mrb[0].mxu0
    %v2392 = vadd.f32 0.0, %v2391
    %v2393 = vpop.f32.mrb[0].mxu0
    %2394 = vmatprep.mubr.bf16.mxu0 0
    %2395 = vmatmul.mubr.bf16.gmra.mrb[0].mxu0 %v2297
    %v2396 = vpop.f32.mrb[0].mxu0
    %v2397 = vadd.f32 0.0, %v2396
    %v2398 = vpop.f32.mrb[0].mxu0
    %v2399 = vpop.f32.mrb[0].mxu0
    %v2400 = vadd.f32 0.0, %v2399
    %v2401 = vpop.f32.mrb[0].mxu0
    %2402 = vdwg.mxu0
    %v2403 = vpack.c.bf16 %v2344, %v2341
    %v2404 = vpack.c.bf16 %v2352, %v2349
    %v2405 = vpack.c.bf16 %v2360, %v2357
    %v2406 = vpack.c.bf16 %v2368, %v2365
    %v2407 = vpack.c.bf16 %v2376, %v2373
    %v2408 = vpack.c.bf16 %v2384, %v2381
    %v2409 = vpack.c.bf16 %v2392, %v2389
    %v2410 = vpack.c.bf16 %v2400, %v2397
    %s2411 = scalar_lea.vmem [#allocation4], 48
    %v2412 = vld [vmem:[%s2411] sm:$0xf]
    %v2413 = vld [vmem:[%s2411 + $0x4] sm:$0xf]
    %v2416 = vunpack.c.l.b16 %v2412
    %v2417 = vunpack.c.l.b16 %v2413
    %v2418 = vpack.c.b16 %v2417, %v2416
    %v2421 = vsel %vm728, %v2403, 0
    %v2424 = vsel %vm728, %v2404, 0
    %v2427 = vsel %vm728, %v2405, 0
    %v2430 = vsel %vm728, %v2406, 0
    %v2433 = vsel %vm728, %v2407, 0
    %v2436 = vsel %vm728, %v2408, 0
    %v2439 = vsel %vm728, %v2409, 0
    %v2442 = vsel %vm728, %v2410, 0
    %2444 = vmatprep.subr.bf16.mxu0 0
    %2445 = vmatpush1.bf16.msra.mxu0 %v2418
    %2446 = vmatprep.subr.bf16.mxu0 0
    %2447 = vmatpush1.bf16.msra.mxu0 0
    %2448 = vmatprep.subr.bf16.mxu0 0
    %2449 = vmatpush1.bf16.msra.mxu0 0
    %2450 = vmatprep.subr.bf16.mxu0 0
    %2451 = vmatpush1.bf16.msra.mxu0 0
    %2452 = vmatprep.subr.bf16.mxu0 0
    %2453 = vmatpush1.bf16.msra.mxu0 0
    %2454 = vmatprep.subr.bf16.mxu0 0
    %2455 = vmatpush1.bf16.msra.mxu0 0
    %2456 = vmatprep.subr.bf16.mxu0 0
    %2457 = vmatpush1.bf16.msra.mxu0 0
    %2458 = vmatprep.subr.bf16.mxu0 0
    %2459 = vmatpush1.bf16.msra.mxu0 0
    %2460 = vmatprep.subr.bf16.mxu0 0
    %2461 = vmatpush1.bf16.msra.mxu0 0
    %2462 = vmatprep.subr.bf16.mxu0 0
    %2463 = vmatpush1.bf16.msra.mxu0 0
    %2464 = vmatprep.subr.bf16.mxu0 0
    %2465 = vmatpush1.bf16.msra.mxu0 0
    %2466 = vmatprep.subr.bf16.mxu0 0
    %2467 = vmatpush1.bf16.msra.mxu0 0
    %2468 = vmatprep.subr.bf16.mxu0 0
    %2469 = vmatpush1.bf16.msra.mxu0 0
    %2470 = vmatprep.subr.bf16.mxu0 0
    %2471 = vmatpush1.bf16.msra.mxu0 0
    %2472 = vmatprep.subr.bf16.mxu0 0
    %2473 = vmatpush1.bf16.msra.mxu0 0
    %2474 = vmatprep.subr.bf16.mxu0 0
    %2475 = vmatpush1.bf16.msra.mxu0 0
    %2476 = vmatprep.mubr.bf16.mxu0 0
    %2477 = vmatmul.mubr.bf16.gmra.mrb[0].mxu0 %v2421
    %v2478 = vpop.f32.mrb[0].mxu0
    %v2479 = vadd.f32 0.0, %v2478
    %v2480 = vpop.f32.mrb[0].mxu0
    %v2481 = vpop.f32.mrb[0].mxu0
    %v2482 = vadd.f32 0.0, %v2481
    %v2483 = vpop.f32.mrb[0].mxu0
    %2484 = vmatprep.mubr.bf16.mxu0 0
    %2485 = vmatmul.mubr.bf16.gmra.mrb[0].mxu0 %v2424
    %v2486 = vpop.f32.mrb[0].mxu0
    %v2487 = vadd.f32 0.0, %v2486
    %v2488 = vpop.f32.mrb[0].mxu0
    %v2489 = vpop.f32.mrb[0].mxu0
    %v2490 = vadd.f32 0.0, %v2489
    %v2491 = vpop.f32.mrb[0].mxu0
    %2492 = vmatprep.mubr.bf16.mxu0 0
    %2493 = vmatmul.mubr.bf16.gmra.mrb[0].mxu0 %v2427
    %v2494 = vpop.f32.mrb[0].mxu0
    %v2495 = vadd.f32 0.0, %v2494
    %v2496 = vpop.f32.mrb[0].mxu0
    %v2497 = vpop.f32.mrb[0].mxu0
    %v2498 = vadd.f32 0.0, %v2497
    %v2499 = vpop.f32.mrb[0].mxu0
    %2500 = vmatprep.mubr.bf16.mxu0 0
    %2501 = vmatmul.mubr.bf16.gmra.mrb[0].mxu0 %v2430
    %v2502 = vpop.f32.mrb[0].mxu0
    %v2503 = vadd.f32 0.0, %v2502
    %v2504 = vpop.f32.mrb[0].mxu0
    %v2505 = vpop.f32.mrb[0].mxu0
    %v2506 = vadd.f32 0.0, %v2505
    %v2507 = vpop.f32.mrb[0].mxu0
    %2508 = vmatprep.mubr.bf16.mxu0 0
    %2509 = vmatmul.mubr.bf16.gmra.mrb[0].mxu0 %v2433
    %v2510 = vpop.f32.mrb[0].mxu0
    %v2511 = vadd.f32 0.0, %v2510
    %v2512 = vpop.f32.mrb[0].mxu0
    %v2513 = vpop.f32.mrb[0].mxu0
    %v2514 = vadd.f32 0.0, %v2513
    %v2515 = vpop.f32.mrb[0].mxu0
    %2516 = vmatprep.mubr.bf16.mxu0 0
    %2517 = vmatmul.mubr.bf16.gmra.mrb[0].mxu0 %v2436
    %v2518 = vpop.f32.mrb[0].mxu0
    %v2519 = vadd.f32 0.0, %v2518
    %v2520 = vpop.f32.mrb[0].mxu0
    %v2521 = vpop.f32.mrb[0].mxu0
    %v2522 = vadd.f32 0.0, %v2521
    %v2523 = vpop.f32.mrb[0].mxu0
    %2524 = vmatprep.mubr.bf16.mxu0 0
    %2525 = vmatmul.mubr.bf16.gmra.mrb[0].mxu0 %v2439
    %v2526 = vpop.f32.mrb[0].mxu0
    %v2527 = vadd.f32 0.0, %v2526
    %v2528 = vpop.f32.mrb[0].mxu0
    %v2529 = vpop.f32.mrb[0].mxu0
    %v2530 = vadd.f32 0.0, %v2529
    %v2531 = vpop.f32.mrb[0].mxu0
    %2532 = vmatprep.mubr.bf16.mxu0 0
    %2533 = vmatmul.mubr.bf16.gmra.mrb[0].mxu0 %v2442
    %v2534 = vpop.f32.mrb[0].mxu0
    %v2535 = vadd.f32 0.0, %v2534
    %v2536 = vpop.f32.mrb[0].mxu0
    %v2537 = vpop.f32.mrb[0].mxu0
    %v2538 = vadd.f32 0.0, %v2537
    %v2539 = vpop.f32.mrb[0].mxu0
    %2540 = vdwg.mxu0
    %v2541 = vadd.f32 %v2225, %v2479
    %v2542 = vadd.f32 %v2226, %v2482
    %v2543 = vadd.f32 %v2227, %v2487
    %v2544 = vadd.f32 %v2228, %v2490
    %v2545 = vadd.f32 %v2229, %v2495
    %v2546 = vadd.f32 %v2230, %v2498
    %v2547 = vadd.f32 %v2231, %v2503
    %v2548 = vadd.f32 %v2232, %v2506
    %v2549 = vadd.f32 %v2233, %v2511
    %v2550 = vadd.f32 %v2234, %v2514
    %v2551 = vadd.f32 %v2235, %v2519
    %v2552 = vadd.f32 %v2236, %v2522
    %v2553 = vadd.f32 %v2237, %v2527
    %v2554 = vadd.f32 %v2238, %v2530
    %v2555 = vadd.f32 %v2239, %v2535
    %v2556 = vadd.f32 %v2240, %v2538
    %s2557 = scalar_lea.vmem [#allocation2], 448
    %v2558 = vld [vmem:[%s2557] sm:$0xf]
    %v2559 = vld [vmem:[%s2557 + $0x4] sm:$0xf]
    %v2560 = vld [vmem:[%s2557 + $0x8] sm:$0xf]
    %v2561 = vld [vmem:[%s2557 + $0xc] sm:$0xf]
    %v2562 = vld [vmem:[%s2557 + $0x10] sm:$0xf]
    %v2563 = vld [vmem:[%s2557 + $0x14] sm:$0xf]
    %v2564 = vld [vmem:[%s2557 + $0x18] sm:$0xf]
    %v2565 = vld [vmem:[%s2557 + $0x1c] sm:$0xf]
    %v2566 = vld [vmem:[%s2557 + $0x20] sm:$0xf]
    %v2567 = vld [vmem:[%s2557 + $0x24] sm:$0xf]
    %v2568 = vld [vmem:[%s2557 + $0x28] sm:$0xf]
    %v2569 = vld [vmem:[%s2557 + $0x2c] sm:$0xf]
    %v2570 = vld [vmem:[%s2557 + $0x30] sm:$0xf]
    %v2571 = vld [vmem:[%s2557 + $0x34] sm:$0xf]
    %v2572 = vld [vmem:[%s2557 + $0x38] sm:$0xf]
    %v2573 = vld [vmem:[%s2557 + $0x3c] sm:$0xf]
    %v2590 = vunpack.c.l.b16 %v2558
    %v2591 = vunpack.c.l.b16 %v2559
    %v2592 = vunpack.c.l.b16 %v2560
    %v2593 = vunpack.c.l.b16 %v2561
    %v2594 = vunpack.c.l.b16 %v2562
    %v2595 = vunpack.c.l.b16 %v2563
    %v2596 = vunpack.c.l.b16 %v2564
    %v2597 = vunpack.c.l.b16 %v2565
    %v2598 = vunpack.c.l.b16 %v2566
    %v2599 = vunpack.c.l.b16 %v2567
    %v2600 = vunpack.c.l.b16 %v2568
    %v2601 = vunpack.c.l.b16 %v2569
    %v2602 = vunpack.c.l.b16 %v2570
    %v2603 = vunpack.c.l.b16 %v2571
    %v2604 = vunpack.c.l.b16 %v2572
    %v2605 = vunpack.c.l.b16 %v2573
    %v2606 = vpack.c.b16 %v2591, %v2590
    %v2607 = vpack.c.b16 %v2593, %v2592
    %v2608 = vpack.c.b16 %v2595, %v2594
    %v2609 = vpack.c.b16 %v2597, %v2596
    %v2610 = vpack.c.b16 %v2599, %v2598
    %v2611 = vpack.c.b16 %v2601, %v2600
    %v2612 = vpack.c.b16 %v2603, %v2602
    %v2613 = vpack.c.b16 %v2605, %v2604
    %2622 = vmatprep.subr.bf16.mxu0 0
    %2623 = vmatpush1.bf16.msra.mxu0 %v370
    %2624 = vmatprep.subr.bf16.mxu0 0
    %2625 = vmatpush1.bf16.msra.mxu0 %v371
    %2626 = vmatprep.subr.bf16.mxu0 0
    %2627 = vmatpush1.bf16.msra.mxu0 %v372
    %2628 = vmatprep.subr.bf16.mxu0 0
    %2629 = vmatpush1.bf16.msra.mxu0 %v373
    %2630 = vmatprep.subr.bf16.mxu0 0
    %2631 = vmatpush1.bf16.msra.mxu0 %v374
    %2632 = vmatprep.subr.bf16.mxu0 0
    %2633 = vmatpush1.bf16.msra.mxu0 %v375
    %2634 = vmatprep.subr.bf16.mxu0 0
    %2635 = vmatpush1.bf16.msra.mxu0 %v376
    %2636 = vmatprep.subr.bf16.mxu0 0
    %2637 = vmatpush1.bf16.msra.mxu0 %v377
    %2638 = vmatprep.subr.bf16.mxu0 0
    %2639 = vmatpush1.bf16.msra.mxu0 0
    %2640 = vmatprep.subr.bf16.mxu0 0
    %2641 = vmatpush1.bf16.msra.mxu0 0
    %2642 = vmatprep.subr.bf16.mxu0 0
    %2643 = vmatpush1.bf16.msra.mxu0 0
    %2644 = vmatprep.subr.bf16.mxu0 0
    %2645 = vmatpush1.bf16.msra.mxu0 0
    %2646 = vmatprep.subr.bf16.mxu0 0
    %2647 = vmatpush1.bf16.msra.mxu0 0
    %2648 = vmatprep.subr.bf16.mxu0 0
    %2649 = vmatpush1.bf16.msra.mxu0 0
    %2650 = vmatprep.subr.bf16.mxu0 0
    %2651 = vmatpush1.bf16.msra.mxu0 0
    %2652 = vmatprep.subr.bf16.mxu0 0
    %2653 = vmatpush1.bf16.msra.mxu0 0
    %2654 = vmatprep.mubr.bf16.mxu0 0
    %2655 = vmatmul.mubr.bf16.gmra.mrb[0].mxu0 %v2606
    %v2656 = vpop.f32.mrb[0].mxu0
    %v2657 = vadd.f32 0.0, %v2656
    %v2658 = vpop.f32.mrb[0].mxu0
    %v2659 = vpop.f32.mrb[0].mxu0
    %v2660 = vadd.f32 0.0, %v2659
    %v2661 = vpop.f32.mrb[0].mxu0
    %2662 = vmatprep.mubr.bf16.mxu0 0
    %2663 = vmatmul.mubr.bf16.gmra.mrb[0].mxu0 %v2607
    %v2664 = vpop.f32.mrb[0].mxu0
    %v2665 = vadd.f32 0.0, %v2664
    %v2666 = vpop.f32.mrb[0].mxu0
    %v2667 = vpop.f32.mrb[0].mxu0
    %v2668 = vadd.f32 0.0, %v2667
    %v2669 = vpop.f32.mrb[0].mxu0
    %2670 = vmatprep.mubr.bf16.mxu0 0
    %2671 = vmatmul.mubr.bf16.gmra.mrb[0].mxu0 %v2608
    %v2672 = vpop.f32.mrb[0].mxu0
    %v2673 = vadd.f32 0.0, %v2672
    %v2674 = vpop.f32.mrb[0].mxu0
    %v2675 = vpop.f32.mrb[0].mxu0
    %v2676 = vadd.f32 0.0, %v2675
    %v2677 = vpop.f32.mrb[0].mxu0
    %2678 = vmatprep.mubr.bf16.mxu0 0
    %2679 = vmatmul.mubr.bf16.gmra.mrb[0].mxu0 %v2609
    %v2680 = vpop.f32.mrb[0].mxu0
    %v2681 = vadd.f32 0.0, %v2680
    %v2682 = vpop.f32.mrb[0].mxu0
    %v2683 = vpop.f32.mrb[0].mxu0
    %v2684 = vadd.f32 0.0, %v2683
    %v2685 = vpop.f32.mrb[0].mxu0
    %2686 = vmatprep.mubr.bf16.mxu0 0
    %2687 = vmatmul.mubr.bf16.gmra.mrb[0].mxu0 %v2610
    %v2688 = vpop.f32.mrb[0].mxu0
    %v2689 = vadd.f32 0.0, %v2688
    %v2690 = vpop.f32.mrb[0].mxu0
    %v2691 = vpop.f32.mrb[0].mxu0
    %v2692 = vadd.f32 0.0, %v2691
    %v2693 = vpop.f32.mrb[0].mxu0
    %2694 = vmatprep.mubr.bf16.mxu0 0
    %2695 = vmatmul.mubr.bf16.gmra.mrb[0].mxu0 %v2611
    %v2696 = vpop.f32.mrb[0].mxu0
    %v2697 = vadd.f32 0.0, %v2696
    %v2698 = vpop.f32.mrb[0].mxu0
    %v2699 = vpop.f32.mrb[0].mxu0
    %v2700 = vadd.f32 0.0, %v2699
    %v2701 = vpop.f32.mrb[0].mxu0
    %2702 = vmatprep.mubr.bf16.mxu0 0
    %2703 = vmatmul.mubr.bf16.gmra.mrb[0].mxu0 %v2612
    %v2704 = vpop.f32.mrb[0].mxu0
    %v2705 = vadd.f32 0.0, %v2704
    %v2706 = vpop.f32.mrb[0].mxu0
    %v2707 = vpop.f32.mrb[0].mxu0
    %v2708 = vadd.f32 0.0, %v2707
    %v2709 = vpop.f32.mrb[0].mxu0
    %2710 = vmatprep.mubr.bf16.mxu0 0
    %2711 = vmatmul.mubr.bf16.gmra.mrb[0].mxu0 %v2613
    %v2712 = vpop.f32.mrb[0].mxu0
    %v2713 = vadd.f32 0.0, %v2712
    %v2714 = vpop.f32.mrb[0].mxu0
    %v2715 = vpop.f32.mrb[0].mxu0
    %v2716 = vadd.f32 0.0, %v2715
    %v2717 = vpop.f32.mrb[0].mxu0
    %2718 = vdwg.mxu0
    %v2719 = vpack.c.bf16 %v2660, %v2657
    %v2720 = vpack.c.bf16 %v2668, %v2665
    %v2721 = vpack.c.bf16 %v2676, %v2673
    %v2722 = vpack.c.bf16 %v2684, %v2681
    %v2723 = vpack.c.bf16 %v2692, %v2689
    %v2724 = vpack.c.bf16 %v2700, %v2697
    %v2725 = vpack.c.bf16 %v2708, %v2705
    %v2726 = vpack.c.bf16 %v2716, %v2713
    %s2727 = scalar_lea.vmem [#allocation4], 56
    %v2728 = vld [vmem:[%s2727] sm:$0xf]
    %v2729 = vld [vmem:[%s2727 + $0x4] sm:$0xf]
    %v2732 = vunpack.c.l.b16 %v2728
    %v2733 = vunpack.c.l.b16 %v2729
    %v2734 = vpack.c.b16 %v2733, %v2732
    %v2737 = vsel %vm728, %v2719, 0
    %v2740 = vsel %vm728, %v2720, 0
    %v2743 = vsel %vm728, %v2721, 0
    %v2746 = vsel %vm728, %v2722, 0
    %v2749 = vsel %vm728, %v2723, 0
    %v2752 = vsel %vm728, %v2724, 0
    %v2755 = vsel %vm728, %v2725, 0
    %v2758 = vsel %vm728, %v2726, 0
    %2760 = vmatprep.subr.bf16.mxu0 0
    %2761 = vmatpush1.bf16.msra.mxu0 %v2734
    %2762 = vmatprep.subr.bf16.mxu0 0
    %2763 = vmatpush1.bf16.msra.mxu0 0
    %2764 = vmatprep.subr.bf16.mxu0 0
    %2765 = vmatpush1.bf16.msra.mxu0 0
    %2766 = vmatprep.subr.bf16.mxu0 0
    %2767 = vmatpush1.bf16.msra.mxu0 0
    %2768 = vmatprep.subr.bf16.mxu0 0
    %2769 = vmatpush1.bf16.msra.mxu0 0
    %2770 = vmatprep.subr.bf16.mxu0 0
    %2771 = vmatpush1.bf16.msra.mxu0 0
    %2772 = vmatprep.subr.bf16.mxu0 0
    %2773 = vmatpush1.bf16.msra.mxu0 0
    %2774 = vmatprep.subr.bf16.mxu0 0
    %2775 = vmatpush1.bf16.msra.mxu0 0
    %2776 = vmatprep.subr.bf16.mxu0 0
    %2777 = vmatpush1.bf16.msra.mxu0 0
    %2778 = vmatprep.subr.bf16.mxu0 0
    %2779 = vmatpush1.bf16.msra.mxu0 0
    %2780 = vmatprep.subr.bf16.mxu0 0
    %2781 = vmatpush1.bf16.msra.mxu0 0
    %2782 = vmatprep.subr.bf16.mxu0 0
    %2783 = vmatpush1.bf16.msra.mxu0 0
    %2784 = vmatprep.subr.bf16.mxu0 0
    %2785 = vmatpush1.bf16.msra.mxu0 0
    %2786 = vmatprep.subr.bf16.mxu0 0
    %2787 = vmatpush1.bf16.msra.mxu0 0
    %2788 = vmatprep.subr.bf16.mxu0 0
    %2789 = vmatpush1.bf16.msra.mxu0 0
    %2790 = vmatprep.subr.bf16.mxu0 0
    %2791 = vmatpush1.bf16.msra.mxu0 0
    %2792 = vmatprep.mubr.bf16.mxu0 0
    %2793 = vmatmul.mubr.bf16.gmra.mrb[0].mxu0 %v2737
    %v2794 = vpop.f32.mrb[0].mxu0
    %v2795 = vadd.f32 0.0, %v2794
    %v2796 = vpop.f32.mrb[0].mxu0
    %v2797 = vpop.f32.mrb[0].mxu0
    %v2798 = vadd.f32 0.0, %v2797
    %v2799 = vpop.f32.mrb[0].mxu0
    %2800 = vmatprep.mubr.bf16.mxu0 0
    %2801 = vmatmul.mubr.bf16.gmra.mrb[0].mxu0 %v2740
    %v2802 = vpop.f32.mrb[0].mxu0
    %v2803 = vadd.f32 0.0, %v2802
    %v2804 = vpop.f32.mrb[0].mxu0
    %v2805 = vpop.f32.mrb[0].mxu0
    %v2806 = vadd.f32 0.0, %v2805
    %v2807 = vpop.f32.mrb[0].mxu0
    %2808 = vmatprep.mubr.bf16.mxu0 0
    %2809 = vmatmul.mubr.bf16.gmra.mrb[0].mxu0 %v2743
    %v2810 = vpop.f32.mrb[0].mxu0
    %v2811 = vadd.f32 0.0, %v2810
    %v2812 = vpop.f32.mrb[0].mxu0
    %v2813 = vpop.f32.mrb[0].mxu0
    %v2814 = vadd.f32 0.0, %v2813
    %v2815 = vpop.f32.mrb[0].mxu0
    %2816 = vmatprep.mubr.bf16.mxu0 0
    %2817 = vmatmul.mubr.bf16.gmra.mrb[0].mxu0 %v2746
    %v2818 = vpop.f32.mrb[0].mxu0
    %v2819 = vadd.f32 0.0, %v2818
    %v2820 = vpop.f32.mrb[0].mxu0
    %v2821 = vpop.f32.mrb[0].mxu0
    %v2822 = vadd.f32 0.0, %v2821
    %v2823 = vpop.f32.mrb[0].mxu0
    %2824 = vmatprep.mubr.bf16.mxu0 0
    %2825 = vmatmul.mubr.bf16.gmra.mrb[0].mxu0 %v2749
    %v2826 = vpop.f32.mrb[0].mxu0
    %v2827 = vadd.f32 0.0, %v2826
    %v2828 = vpop.f32.mrb[0].mxu0
    %v2829 = vpop.f32.mrb[0].mxu0
    %v2830 = vadd.f32 0.0, %v2829
    %v2831 = vpop.f32.mrb[0].mxu0
    %2832 = vmatprep.mubr.bf16.mxu0 0
    %2833 = vmatmul.mubr.bf16.gmra.mrb[0].mxu0 %v2752
    %v2834 = vpop.f32.mrb[0].mxu0
    %v2835 = vadd.f32 0.0, %v2834
    %v2836 = vpop.f32.mrb[0].mxu0
    %v2837 = vpop.f32.mrb[0].mxu0
    %v2838 = vadd.f32 0.0, %v2837
    %v2839 = vpop.f32.mrb[0].mxu0
    %2840 = vmatprep.mubr.bf16.mxu0 0
    %2841 = vmatmul.mubr.bf16.gmra.mrb[0].mxu0 %v2755
    %v2842 = vpop.f32.mrb[0].mxu0
    %v2843 = vadd.f32 0.0, %v2842
    %v2844 = vpop.f32.mrb[0].mxu0
    %v2845 = vpop.f32.mrb[0].mxu0
    %v2846 = vadd.f32 0.0, %v2845
    %v2847 = vpop.f32.mrb[0].mxu0
    %2848 = vmatprep.mubr.bf16.mxu0 0
    %2849 = vmatmul.mubr.bf16.gmra.mrb[0].mxu0 %v2758
    %v2850 = vpop.f32.mrb[0].mxu0
    %v2851 = vadd.f32 0.0, %v2850
    %v2852 = vpop.f32.mrb[0].mxu0
    %v2853 = vpop.f32.mrb[0].mxu0
    %v2854 = vadd.f32 0.0, %v2853
    %v2855 = vpop.f32.mrb[0].mxu0
    %2856 = vdwg.mxu0
    %v2857 = vadd.f32 %v2541, %v2795
    %v2858 = vadd.f32 %v2542, %v2798
    %v2859 = vadd.f32 %v2543, %v2803
    %v2860 = vadd.f32 %v2544, %v2806
    %v2861 = vadd.f32 %v2545, %v2811
    %v2862 = vadd.f32 %v2546, %v2814
    %v2863 = vadd.f32 %v2547, %v2819
    %v2864 = vadd.f32 %v2548, %v2822
    %v2865 = vadd.f32 %v2549, %v2827
    %v2866 = vadd.f32 %v2550, %v2830
    %v2867 = vadd.f32 %v2551, %v2835
    %v2868 = vadd.f32 %v2552, %v2838
    %v2869 = vadd.f32 %v2553, %v2843
    %v2870 = vadd.f32 %v2554, %v2846
    %v2871 = vadd.f32 %v2555, %v2851
    %v2872 = vadd.f32 %v2556, %v2854
    %s2873 = scalar_lea.vmem [#allocation2], 512
    %v2874 = vld [vmem:[%s2873] sm:$0xf]
    %v2875 = vld [vmem:[%s2873 + $0x4] sm:$0xf]
    %v2876 = vld [vmem:[%s2873 + $0x8] sm:$0xf]
    %v2877 = vld [vmem:[%s2873 + $0xc] sm:$0xf]
    %v2878 = vld [vmem:[%s2873 + $0x10] sm:$0xf]
    %v2879 = vld [vmem:[%s2873 + $0x14] sm:$0xf]
    %v2880 = vld [vmem:[%s2873 + $0x18] sm:$0xf]
    %v2881 = vld [vmem:[%s2873 + $0x1c] sm:$0xf]
    %v2882 = vld [vmem:[%s2873 + $0x20] sm:$0xf]
    %v2883 = vld [vmem:[%s2873 + $0x24] sm:$0xf]
    %v2884 = vld [vmem:[%s2873 + $0x28] sm:$0xf]
    %v2885 = vld [vmem:[%s2873 + $0x2c] sm:$0xf]
    %v2886 = vld [vmem:[%s2873 + $0x30] sm:$0xf]
    %v2887 = vld [vmem:[%s2873 + $0x34] sm:$0xf]
    %v2888 = vld [vmem:[%s2873 + $0x38] sm:$0xf]
    %v2889 = vld [vmem:[%s2873 + $0x3c] sm:$0xf]
    %v2906 = vunpack.c.l.b16 %v2874
    %v2907 = vunpack.c.l.b16 %v2875
    %v2908 = vunpack.c.l.b16 %v2876
    %v2909 = vunpack.c.l.b16 %v2877
    %v2910 = vunpack.c.l.b16 %v2878
    %v2911 = vunpack.c.l.b16 %v2879
    %v2912 = vunpack.c.l.b16 %v2880
    %v2913 = vunpack.c.l.b16 %v2881
    %v2914 = vunpack.c.l.b16 %v2882
    %v2915 = vunpack.c.l.b16 %v2883
    %v2916 = vunpack.c.l.b16 %v2884
    %v2917 = vunpack.c.l.b16 %v2885
    %v2918 = vunpack.c.l.b16 %v2886
    %v2919 = vunpack.c.l.b16 %v2887
    %v2920 = vunpack.c.l.b16 %v2888
    %v2921 = vunpack.c.l.b16 %v2889
    %v2922 = vpack.c.b16 %v2907, %v2906
    %v2923 = vpack.c.b16 %v2909, %v2908
    %v2924 = vpack.c.b16 %v2911, %v2910
    %v2925 = vpack.c.b16 %v2913, %v2912
    %v2926 = vpack.c.b16 %v2915, %v2914
    %v2927 = vpack.c.b16 %v2917, %v2916
    %v2928 = vpack.c.b16 %v2919, %v2918
    %v2929 = vpack.c.b16 %v2921, %v2920
    %2938 = vmatprep.subr.bf16.mxu0 0
    %2939 = vmatpush1.bf16.msra.mxu0 %v370
    %2940 = vmatprep.subr.bf16.mxu0 0
    %2941 = vmatpush1.bf16.msra.mxu0 %v371
    %2942 = vmatprep.subr.bf16.mxu0 0
    %2943 = vmatpush1.bf16.msra.mxu0 %v372
    %2944 = vmatprep.subr.bf16.mxu0 0
    %2945 = vmatpush1.bf16.msra.mxu0 %v373
    %2946 = vmatprep.subr.bf16.mxu0 0
    %2947 = vmatpush1.bf16.msra.mxu0 %v374
    %2948 = vmatprep.subr.bf16.mxu0 0
    %2949 = vmatpush1.bf16.msra.mxu0 %v375
    %2950 = vmatprep.subr.bf16.mxu0 0
    %2951 = vmatpush1.bf16.msra.mxu0 %v376
    %2952 = vmatprep.subr.bf16.mxu0 0
    %2953 = vmatpush1.bf16.msra.mxu0 %v377
    %2954 = vmatprep.subr.bf16.mxu0 0
    %2955 = vmatpush1.bf16.msra.mxu0 0
    %2956 = vmatprep.subr.bf16.mxu0 0
    %2957 = vmatpush1.bf16.msra.mxu0 0
    %2958 = vmatprep.subr.bf16.mxu0 0
    %2959 = vmatpush1.bf16.msra.mxu0 0
    %2960 = vmatprep.subr.bf16.mxu0 0
    %2961 = vmatpush1.bf16.msra.mxu0 0
    %2962 = vmatprep.subr.bf16.mxu0 0
    %2963 = vmatpush1.bf16.msra.mxu0 0
    %2964 = vmatprep.subr.bf16.mxu0 0
    %2965 = vmatpush1.bf16.msra.mxu0 0
    %2966 = vmatprep.subr.bf16.mxu0 0
    %2967 = vmatpush1.bf16.msra.mxu0 0
    %2968 = vmatprep.subr.bf16.mxu0 0
    %2969 = vmatpush1.bf16.msra.mxu0 0
    %2970 = vmatprep.mubr.bf16.mxu0 0
    %2971 = vmatmul.mubr.bf16.gmra.mrb[0].mxu0 %v2922
    %v2972 = vpop.f32.mrb[0].mxu0
    %v2973 = vadd.f32 0.0, %v2972
    %v2974 = vpop.f32.mrb[0].mxu0
    %v2975 = vpop.f32.mrb[0].mxu0
    %v2976 = vadd.f32 0.0, %v2975
    %v2977 = vpop.f32.mrb[0].mxu0
    %2978 = vmatprep.mubr.bf16.mxu0 0
    %2979 = vmatmul.mubr.bf16.gmra.mrb[0].mxu0 %v2923
    %v2980 = vpop.f32.mrb[0].mxu0
    %v2981 = vadd.f32 0.0, %v2980
    %v2982 = vpop.f32.mrb[0].mxu0
    %v2983 = vpop.f32.mrb[0].mxu0
    %v2984 = vadd.f32 0.0, %v2983
    %v2985 = vpop.f32.mrb[0].mxu0
    %2986 = vmatprep.mubr.bf16.mxu0 0
    %2987 = vmatmul.mubr.bf16.gmra.mrb[0].mxu0 %v2924
    %v2988 = vpop.f32.mrb[0].mxu0
    %v2989 = vadd.f32 0.0, %v2988
    %v2990 = vpop.f32.mrb[0].mxu0
    %v2991 = vpop.f32.mrb[0].mxu0
    %v2992 = vadd.f32 0.0, %v2991
    %v2993 = vpop.f32.mrb[0].mxu0
    %2994 = vmatprep.mubr.bf16.mxu0 0
    %2995 = vmatmul.mubr.bf16.gmra.mrb[0].mxu0 %v2925
    %v2996 = vpop.f32.mrb[0].mxu0
    %v2997 = vadd.f32 0.0, %v2996
    %v2998 = vpop.f32.mrb[0].mxu0
    %v2999 = vpop.f32.mrb[0].mxu0
    %v3000 = vadd.f32 0.0, %v2999
    %v3001 = vpop.f32.mrb[0].mxu0
    %3002 = vmatprep.mubr.bf16.mxu0 0
    %3003 = vmatmul.mubr.bf16.gmra.mrb[0].mxu0 %v2926
    %v3004 = vpop.f32.mrb[0].mxu0
    %v3005 = vadd.f32 0.0, %v3004
    %v3006 = vpop.f32.mrb[0].mxu0
    %v3007 = vpop.f32.mrb[0].mxu0
    %v3008 = vadd.f32 0.0, %v3007
    %v3009 = vpop.f32.mrb[0].mxu0
    %3010 = vmatprep.mubr.bf16.mxu0 0
    %3011 = vmatmul.mubr.bf16.gmra.mrb[0].mxu0 %v2927
    %v3012 = vpop.f32.mrb[0].mxu0
    %v3013 = vadd.f32 0.0, %v3012
    %v3014 = vpop.f32.mrb[0].mxu0
    %v3015 = vpop.f32.mrb[0].mxu0
    %v3016 = vadd.f32 0.0, %v3015
    %v3017 = vpop.f32.mrb[0].mxu0
    %3018 = vmatprep.mubr.bf16.mxu0 0
    %3019 = vmatmul.mubr.bf16.gmra.mrb[0].mxu0 %v2928
    %v3020 = vpop.f32.mrb[0].mxu0
    %v3021 = vadd.f32 0.0, %v3020
    %v3022 = vpop.f32.mrb[0].mxu0
    %v3023 = vpop.f32.mrb[0].mxu0
    %v3024 = vadd.f32 0.0, %v3023
    %v3025 = vpop.f32.mrb[0].mxu0
    %3026 = vmatprep.mubr.bf16.mxu0 0
    %3027 = vmatmul.mubr.bf16.gmra.mrb[0].mxu0 %v2929
    %v3028 = vpop.f32.mrb[0].mxu0
    %v3029 = vadd.f32 0.0, %v3028
    %v3030 = vpop.f32.mrb[0].mxu0
    %v3031 = vpop.f32.mrb[0].mxu0
    %v3032 = vadd.f32 0.0, %v3031
    %v3033 = vpop.f32.mrb[0].mxu0
    %3034 = vdwg.mxu0
    %v3035 = vpack.c.bf16 %v2976, %v2973
    %v3036 = vpack.c.bf16 %v2984, %v2981
    %v3037 = vpack.c.bf16 %v2992, %v2989
    %v3038 = vpack.c.bf16 %v3000, %v2997
    %v3039 = vpack.c.bf16 %v3008, %v3005
    %v3040 = vpack.c.bf16 %v3016, %v3013
    %v3041 = vpack.c.bf16 %v3024, %v3021
    %v3042 = vpack.c.bf16 %v3032, %v3029
    %s3043 = scalar_lea.vmem [#allocation4], 64
    %v3044 = vld [vmem:[%s3043] sm:$0xf]
    %v3045 = vld [vmem:[%s3043 + $0x4] sm:$0xf]
    %v3048 = vunpack.c.l.b16 %v3044
    %v3049 = vunpack.c.l.b16 %v3045
    %v3050 = vpack.c.b16 %v3049, %v3048
    %v3053 = vsel %vm728, %v3035, 0
    %v3056 = vsel %vm728, %v3036, 0
    %v3059 = vsel %vm728, %v3037, 0
    %v3062 = vsel %vm728, %v3038, 0
    %v3065 = vsel %vm728, %v3039, 0
    %v3068 = vsel %vm728, %v3040, 0
    %v3071 = vsel %vm728, %v3041, 0
    %v3074 = vsel %vm728, %v3042, 0
    %3076 = vmatprep.subr.bf16.mxu0 0
    %3077 = vmatpush1.bf16.msra.mxu0 %v3050
    %3078 = vmatprep.subr.bf16.mxu0 0
    %3079 = vmatpush1.bf16.msra.mxu0 0
    %3080 = vmatprep.subr.bf16.mxu0 0
    %3081 = vmatpush1.bf16.msra.mxu0 0
    %3082 = vmatprep.subr.bf16.mxu0 0
    %3083 = vmatpush1.bf16.msra.mxu0 0
    %3084 = vmatprep.subr.bf16.mxu0 0
    %3085 = vmatpush1.bf16.msra.mxu0 0
    %3086 = vmatprep.subr.bf16.mxu0 0
    %3087 = vmatpush1.bf16.msra.mxu0 0
    %3088 = vmatprep.subr.bf16.mxu0 0
    %3089 = vmatpush1.bf16.msra.mxu0 0
    %3090 = vmatprep.subr.bf16.mxu0 0
    %3091 = vmatpush1.bf16.msra.mxu0 0
    %3092 = vmatprep.subr.bf16.mxu0 0
    %3093 = vmatpush1.bf16.msra.mxu0 0
    %3094 = vmatprep.subr.bf16.mxu0 0
    %3095 = vmatpush1.bf16.msra.mxu0 0
    %3096 = vmatprep.subr.bf16.mxu0 0
    %3097 = vmatpush1.bf16.msra.mxu0 0
    %3098 = vmatprep.subr.bf16.mxu0 0
    %3099 = vmatpush1.bf16.msra.mxu0 0
    %3100 = vmatprep.subr.bf16.mxu0 0
    %3101 = vmatpush1.bf16.msra.mxu0 0
    %3102 = vmatprep.subr.bf16.mxu0 0
    %3103 = vmatpush1.bf16.msra.mxu0 0
    %3104 = vmatprep.subr.bf16.mxu0 0
    %3105 = vmatpush1.bf16.msra.mxu0 0
    %3106 = vmatprep.subr.bf16.mxu0 0
    %3107 = vmatpush1.bf16.msra.mxu0 0
    %3108 = vmatprep.mubr.bf16.mxu0 0
    %3109 = vmatmul.mubr.bf16.gmra.mrb[0].mxu0 %v3053
    %v3110 = vpop.f32.mrb[0].mxu0
    %v3111 = vadd.f32 0.0, %v3110
    %v3112 = vpop.f32.mrb[0].mxu0
    %v3113 = vpop.f32.mrb[0].mxu0
    %v3114 = vadd.f32 0.0, %v3113
    %v3115 = vpop.f32.mrb[0].mxu0
    %3116 = vmatprep.mubr.bf16.mxu0 0
    %3117 = vmatmul.mubr.bf16.gmra.mrb[0].mxu0 %v3056
    %v3118 = vpop.f32.mrb[0].mxu0
    %v3119 = vadd.f32 0.0, %v3118
    %v3120 = vpop.f32.mrb[0].mxu0
    %v3121 = vpop.f32.mrb[0].mxu0
    %v3122 = vadd.f32 0.0, %v3121
    %v3123 = vpop.f32.mrb[0].mxu0
    %3124 = vmatprep.mubr.bf16.mxu0 0
    %3125 = vmatmul.mubr.bf16.gmra.mrb[0].mxu0 %v3059
    %v3126 = vpop.f32.mrb[0].mxu0
    %v3127 = vadd.f32 0.0, %v3126
    %v3128 = vpop.f32.mrb[0].mxu0
    %v3129 = vpop.f32.mrb[0].mxu0
    %v3130 = vadd.f32 0.0, %v3129
    %v3131 = vpop.f32.mrb[0].mxu0
    %3132 = vmatprep.mubr.bf16.mxu0 0
    %3133 = vmatmul.mubr.bf16.gmra.mrb[0].mxu0 %v3062
    %v3134 = vpop.f32.mrb[0].mxu0
    %v3135 = vadd.f32 0.0, %v3134
    %v3136 = vpop.f32.mrb[0].mxu0
    %v3137 = vpop.f32.mrb[0].mxu0
    %v3138 = vadd.f32 0.0, %v3137
    %v3139 = vpop.f32.mrb[0].mxu0
    %3140 = vmatprep.mubr.bf16.mxu0 0
    %3141 = vmatmul.mubr.bf16.gmra.mrb[0].mxu0 %v3065
    %v3142 = vpop.f32.mrb[0].mxu0
    %v3143 = vadd.f32 0.0, %v3142
    %v3144 = vpop.f32.mrb[0].mxu0
    %v3145 = vpop.f32.mrb[0].mxu0
    %v3146 = vadd.f32 0.0, %v3145
    %v3147 = vpop.f32.mrb[0].mxu0
    %3148 = vmatprep.mubr.bf16.mxu0 0
    %3149 = vmatmul.mubr.bf16.gmra.mrb[0].mxu0 %v3068
    %v3150 = vpop.f32.mrb[0].mxu0
    %v3151 = vadd.f32 0.0, %v3150
    %v3152 = vpop.f32.mrb[0].mxu0
    %v3153 = vpop.f32.mrb[0].mxu0
    %v3154 = vadd.f32 0.0, %v3153
    %v3155 = vpop.f32.mrb[0].mxu0
    %3156 = vmatprep.mubr.bf16.mxu0 0
    %3157 = vmatmul.mubr.bf16.gmra.mrb[0].mxu0 %v3071
    %v3158 = vpop.f32.mrb[0].mxu0
    %v3159 = vadd.f32 0.0, %v3158
    %v3160 = vpop.f32.mrb[0].mxu0
    %v3161 = vpop.f32.mrb[0].mxu0
    %v3162 = vadd.f32 0.0, %v3161
    %v3163 = vpop.f32.mrb[0].mxu0
    %3164 = vmatprep.mubr.bf16.mxu0 0
    %3165 = vmatmul.mubr.bf16.gmra.mrb[0].mxu0 %v3074
    %v3166 = vpop.f32.mrb[0].mxu0
    %v3167 = vadd.f32 0.0, %v3166
    %v3168 = vpop.f32.mrb[0].mxu0
    %v3169 = vpop.f32.mrb[0].mxu0
    %v3170 = vadd.f32 0.0, %v3169
    %v3171 = vpop.f32.mrb[0].mxu0
    %3172 = vdwg.mxu0
    %v3173 = vadd.f32 %v2857, %v3111
    %v3174 = vadd.f32 %v2858, %v3114
    %v3175 = vadd.f32 %v2859, %v3119
    %v3176 = vadd.f32 %v2860, %v3122
    %v3177 = vadd.f32 %v2861, %v3127
    %v3178 = vadd.f32 %v2862, %v3130
    %v3179 = vadd.f32 %v2863, %v3135
    %v3180 = vadd.f32 %v2864, %v3138
    %v3181 = vadd.f32 %v2865, %v3143
    %v3182 = vadd.f32 %v2866, %v3146
    %v3183 = vadd.f32 %v2867, %v3151
    %v3184 = vadd.f32 %v2868, %v3154
    %v3185 = vadd.f32 %v2869, %v3159
    %v3186 = vadd.f32 %v2870, %v3162
    %v3187 = vadd.f32 %v2871, %v3167
    %v3188 = vadd.f32 %v2872, %v3170
    %v3189 = vld [vmem:[%s6] sm:$0x1]
    %v3191 = vlaneseq
    %v3192 = vshrl.u32 %v3191, 7
    %v3193 = vsub.s32 0, %v3192
    %v3194 = vrot.slane %v3189, %v3193
    %v3196 = vadd.f32 %v3173, %v3194
    %v3197 = vadd.f32 %v3174, %v3194
    %v3198 = vadd.f32 %v3175, %v3194
    %v3199 = vadd.f32 %v3176, %v3194
    %v3200 = vadd.f32 %v3177, %v3194
    %v3201 = vadd.f32 %v3178, %v3194
    %v3202 = vadd.f32 %v3179, %v3194
    %v3203 = vadd.f32 %v3180, %v3194
    %v3204 = vadd.f32 %v3181, %v3194
    %v3205 = vadd.f32 %v3182, %v3194
    %v3206 = vadd.f32 %v3183, %v3194
    %v3207 = vadd.f32 %v3184, %v3194
    %v3208 = vadd.f32 %v3185, %v3194
    %v3209 = vadd.f32 %v3186, %v3194
    %v3210 = vadd.f32 %v3187, %v3194
    %v3211 = vadd.f32 %v3188, %v3194
    %v3212 = vsub.f32 0.0, %v3196
    %v3213 = vsub.f32 0.0, %v3197
    %v3214 = vsub.f32 0.0, %v3198
    %v3215 = vsub.f32 0.0, %v3199
    %v3216 = vsub.f32 0.0, %v3200
    %v3217 = vsub.f32 0.0, %v3201
    %v3218 = vsub.f32 0.0, %v3202
    %v3219 = vsub.f32 0.0, %v3203
    %v3220 = vsub.f32 0.0, %v3204
    %v3221 = vsub.f32 0.0, %v3205
    %v3222 = vsub.f32 0.0, %v3206
    %v3223 = vsub.f32 0.0, %v3207
    %v3224 = vsub.f32 0.0, %v3208
    %v3225 = vsub.f32 0.0, %v3209
    %v3226 = vsub.f32 0.0, %v3210
    %v3227 = vsub.f32 0.0, %v3211
    %v3228 = vmul.f32 %v3212, 1.442695
    %v3229 = vpow.pop %v3228
    %v3230 = vmul.f32 %v3213, 1.442695
    %v3231 = vpow.pop %v3230
    %v3232 = vmul.f32 %v3214, 1.442695
    %v3233 = vpow.pop %v3232
    %v3234 = vmul.f32 %v3215, 1.442695
    %v3235 = vpow.pop %v3234
    %v3236 = vmul.f32 %v3216, 1.442695
    %v3237 = vpow.pop %v3236
    %v3238 = vmul.f32 %v3217, 1.442695
    %v3239 = vpow.pop %v3238
    %v3240 = vmul.f32 %v3218, 1.442695
    %v3241 = vpow.pop %v3240
    %v3242 = vmul.f32 %v3219, 1.442695
    %v3243 = vpow.pop %v3242
    %v3244 = vmul.f32 %v3220, 1.442695
    %v3245 = vpow.pop %v3244
    %v3246 = vmul.f32 %v3221, 1.442695
    %v3247 = vpow.pop %v3246
    %v3248 = vmul.f32 %v3222, 1.442695
    %v3249 = vpow.pop %v3248
    %v3250 = vmul.f32 %v3223, 1.442695
    %v3251 = vpow.pop %v3250
    %v3252 = vmul.f32 %v3224, 1.442695
    %v3253 = vpow.pop %v3252
    %v3254 = vmul.f32 %v3225, 1.442695
    %v3255 = vpow.pop %v3254
    %v3256 = vmul.f32 %v3226, 1.442695
    %v3257 = vpow.pop %v3256
    %v3258 = vmul.f32 %v3227, 1.442695
    %v3259 = vpow.pop %v3258
    %v3260 = vadd.f32 %v3229, 1.0
    %v3261 = vadd.f32 %v3231, 1.0
    %v3262 = vadd.f32 %v3233, 1.0
    %v3263 = vadd.f32 %v3235, 1.0
    %v3264 = vadd.f32 %v3237, 1.0
    %v3265 = vadd.f32 %v3239, 1.0
    %v3266 = vadd.f32 %v3241, 1.0
    %v3267 = vadd.f32 %v3243, 1.0
    %v3268 = vadd.f32 %v3245, 1.0
    %v3269 = vadd.f32 %v3247, 1.0
    %v3270 = vadd.f32 %v3249, 1.0
    %v3271 = vadd.f32 %v3251, 1.0
    %v3272 = vadd.f32 %v3253, 1.0
    %v3273 = vadd.f32 %v3255, 1.0
    %v3274 = vadd.f32 %v3257, 1.0
    %v3275 = vadd.f32 %v3259, 1.0
    %v3276 = vrcp.pop %v3260
    %v3277 = vrcp.pop %v3261
    %v3278 = vrcp.pop %v3262
    %v3279 = vrcp.pop %v3263
    %v3280 = vrcp.pop %v3264
    %v3281 = vrcp.pop %v3265
    %v3282 = vrcp.pop %v3266
    %v3283 = vrcp.pop %v3267
    %v3284 = vrcp.pop %v3268
    %v3285 = vrcp.pop %v3269
    %v3286 = vrcp.pop %v3270
    %v3287 = vrcp.pop %v3271
    %v3288 = vrcp.pop %v3272
    %v3289 = vrcp.pop %v3273
    %v3290 = vrcp.pop %v3274
    %v3291 = vrcp.pop %v3275
    %v3292 = vmul.f32 %v3196, %v3276
    %v3293 = vmul.f32 %v3197, %v3277
    %v3294 = vmul.f32 %v3198, %v3278
    %v3295 = vmul.f32 %v3199, %v3279
    %v3296 = vmul.f32 %v3200, %v3280
    %v3297 = vmul.f32 %v3201, %v3281
    %v3298 = vmul.f32 %v3202, %v3282
    %v3299 = vmul.f32 %v3203, %v3283
    %v3300 = vmul.f32 %v3204, %v3284
    %v3301 = vmul.f32 %v3205, %v3285
    %v3302 = vmul.f32 %v3206, %v3286
    %v3303 = vmul.f32 %v3207, %v3287
    %v3304 = vmul.f32 %v3208, %v3288
    %v3305 = vmul.f32 %v3209, %v3289
    %v3306 = vmul.f32 %v3210, %v3290
    %v3307 = vmul.f32 %v3211, %v3291
    %v3308 = vpack.c.bf16 %v3293, %v3292
    %v3309 = vpack.c.bf16 %v3295, %v3294
    %v3310 = vpack.c.bf16 %v3297, %v3296
    %v3311 = vpack.c.bf16 %v3299, %v3298
    %v3312 = vpack.c.bf16 %v3301, %v3300
    %v3313 = vpack.c.bf16 %v3303, %v3302
    %v3314 = vpack.c.bf16 %v3305, %v3304
    %v3315 = vpack.c.bf16 %v3307, %v3306
    %v3316 = vld [vmem:[%s7] sm:$0xff]
    %v3317 = vld [vmem:[%s7 + $0x8] sm:$0xff]
    %v3318 = vld [vmem:[%s7 + $0x10] sm:$0xff]
    %v3319 = vld [vmem:[%s7 + $0x18] sm:$0xff]
    %v3320 = vld [vmem:[%s7 + $0x20] sm:$0xff]
    %v3321 = vld [vmem:[%s7 + $0x28] sm:$0xff]
    %v3322 = vld [vmem:[%s7 + $0x30] sm:$0xff]
    %v3323 = vld [vmem:[%s7 + $0x38] sm:$0xff]
    %v3324 = vld [vmem:[%s7 + $0x40] sm:$0xff]
    %v3325 = vld [vmem:[%s7 + $0x48] sm:$0xff]
    %v3326 = vld [vmem:[%s7 + $0x50] sm:$0xff]
    %v3327 = vld [vmem:[%s7 + $0x58] sm:$0xff]
    %v3328 = vld [vmem:[%s7 + $0x60] sm:$0xff]
    %v3329 = vld [vmem:[%s7 + $0x68] sm:$0xff]
    %v3330 = vld [vmem:[%s7 + $0x70] sm:$0xff]
    %v3331 = vld [vmem:[%s7 + $0x78] sm:$0xff]
    %v3332 = vld [vmem:[%s7 + $0x80] sm:$0xff]
    %v3333 = vld [vmem:[%s7 + $0x88] sm:$0xff]
    %v3334 = vld [vmem:[%s7 + $0x90] sm:$0xff]
    %v3335 = vld [vmem:[%s7 + $0x98] sm:$0xff]
    %v3336 = vld [vmem:[%s7 + $0xa0] sm:$0xff]
    %v3337 = vld [vmem:[%s7 + $0xa8] sm:$0xff]
    %v3338 = vld [vmem:[%s7 + $0xb0] sm:$0xff]
    %v3339 = vld [vmem:[%s7 + $0xb8] sm:$0xff]
    %v3340 = vld [vmem:[%s8] sm:$0xff]
    %v3341 = vld [vmem:[%s8 + $0x8] sm:$0xf]
    %v3344 = vlaneseq
    %v3345 = vshrl.u32 %v3344, 7
    %v3346 = vsub.s32 0, %v3345
    %v3347 = vrot.slane %v3340, %v3346
    %v3348 = vlaneseq
    %v3349 = vshrl.u32 %v3348, 7
    %v3350 = vsub.s32 1, %v3349
    %v3351 = vrot.slane %v3340, %v3350
    %v3352 = vlaneseq
    %v3353 = vshrl.u32 %v3352, 7
    %v3354 = vsub.s32 2, %v3353
    %v3355 = vrot.slane %v3340, %v3354
    %v3356 = vlaneseq
    %v3357 = vshrl.u32 %v3356, 7
    %v3358 = vsub.s32 3, %v3357
    %v3359 = vrot.slane %v3340, %v3358
    %v3360 = vlaneseq
    %v3361 = vshrl.u32 %v3360, 7
    %v3362 = vsub.s32 4, %v3361
    %v3363 = vrot.slane %v3340, %v3362
    %v3364 = vlaneseq
    %v3365 = vshrl.u32 %v3364, 7
    %v3366 = vsub.s32 5, %v3365
    %v3367 = vrot.slane %v3340, %v3366
    %v3368 = vlaneseq
    %v3369 = vshrl.u32 %v3368, 7
    %v3370 = vsub.s32 6, %v3369
    %v3371 = vrot.slane %v3340, %v3370
    %v3372 = vlaneseq
    %v3373 = vshrl.u32 %v3372, 7
    %v3374 = vsub.s32 7, %v3373
    %v3375 = vrot.slane %v3340, %v3374
    %v3376 = vlaneseq
    %v3377 = vshrl.u32 %v3376, 7
    %v3378 = vsub.s32 0, %v3377
    %v3379 = vrot.slane %v3341, %v3378
    %v3380 = vlaneseq
    %v3381 = vshrl.u32 %v3380, 7
    %v3382 = vsub.s32 1, %v3381
    %v3383 = vrot.slane %v3341, %v3382
    %v3384 = vlaneseq
    %v3385 = vshrl.u32 %v3384, 7
    %v3386 = vsub.s32 2, %v3385
    %v3387 = vrot.slane %v3341, %v3386
    %v3388 = vlaneseq
    %v3389 = vshrl.u32 %v3388, 7
    %v3390 = vsub.s32 3, %v3389
    %v3391 = vrot.slane %v3341, %v3390
    %v3428 = vunpack.c.l.b16 %v3316
    %v3429 = vunpack.c.h.b16 %v3316
    %v3430 = vunpack.c.l.b16 %v3317
    %v3431 = vunpack.c.h.b16 %v3317
    %v3432 = vunpack.c.l.b16 %v3318
    %v3433 = vunpack.c.h.b16 %v3318
    %v3434 = vunpack.c.l.b16 %v3319
    %v3435 = vunpack.c.h.b16 %v3319
    %v3436 = vunpack.c.l.b16 %v3320
    %v3437 = vunpack.c.h.b16 %v3320
    %v3438 = vunpack.c.l.b16 %v3321
    %v3439 = vunpack.c.h.b16 %v3321
    %v3440 = vunpack.c.l.b16 %v3322
    %v3441 = vunpack.c.h.b16 %v3322
    %v3442 = vunpack.c.l.b16 %v3323
    %v3443 = vunpack.c.h.b16 %v3323
    %v3444 = vunpack.c.l.b16 %v3324
    %v3445 = vunpack.c.h.b16 %v3324
    %v3446 = vunpack.c.l.b16 %v3325
    %v3447 = vunpack.c.h.b16 %v3325
    %v3448 = vunpack.c.l.b16 %v3326
    %v3449 = vunpack.c.h.b16 %v3326
    %v3450 = vunpack.c.l.b16 %v3327
    %v3451 = vunpack.c.h.b16 %v3327
    %v3452 = vunpack.c.l.b16 %v3328
    %v3453 = vunpack.c.h.b16 %v3328
    %v3454 = vunpack.c.l.b16 %v3329
    %v3455 = vunpack.c.h.b16 %v3329
    %v3456 = vunpack.c.l.b16 %v3330
    %v3457 = vunpack.c.h.b16 %v3330
    %v3458 = vunpack.c.l.b16 %v3331
    %v3459 = vunpack.c.h.b16 %v3331
    %v3460 = vunpack.c.l.b16 %v3332
    %v3461 = vunpack.c.h.b16 %v3332
    %v3462 = vunpack.c.l.b16 %v3333
    %v3463 = vunpack.c.h.b16 %v3333
    %v3464 = vunpack.c.l.b16 %v3334
    %v3465 = vunpack.c.h.b16 %v3334
    %v3466 = vunpack.c.l.b16 %v3335
    %v3467 = vunpack.c.h.b16 %v3335
    %v3468 = vunpack.c.l.b16 %v3336
    %v3469 = vunpack.c.h.b16 %v3336
    %v3470 = vunpack.c.l.b16 %v3337
    %v3471 = vunpack.c.h.b16 %v3337
    %v3472 = vunpack.c.l.b16 %v3338
    %v3473 = vunpack.c.h.b16 %v3338
    %v3474 = vunpack.c.l.b16 %v3339
    %v3475 = vunpack.c.h.b16 %v3339
    %v3476 = vpack.c.b16 %v3440, %v3428
    %v3477 = vpack.c.b16 %v3441, %v3429
    %v3478 = vpack.c.b16 %v3442, %v3430
    %v3479 = vpack.c.b16 %v3443, %v3431
    %v3480 = vpack.c.b16 %v3444, %v3432
    %v3481 = vpack.c.b16 %v3445, %v3433
    %v3482 = vpack.c.b16 %v3446, %v3434
    %v3483 = vpack.c.b16 %v3447, %v3435
    %v3484 = vpack.c.b16 %v3448, %v3436
    %v3485 = vpack.c.b16 %v3449, %v3437
    %v3486 = vpack.c.b16 %v3450, %v3438
    %v3487 = vpack.c.b16 %v3451, %v3439
    %v3488 = vpack.c.b16 %v3464, %v3452
    %v3489 = vpack.c.b16 %v3465, %v3453
    %v3490 = vpack.c.b16 %v3466, %v3454
    %v3491 = vpack.c.b16 %v3467, %v3455
    %v3492 = vpack.c.b16 %v3468, %v3456
    %v3493 = vpack.c.b16 %v3469, %v3457
    %v3494 = vpack.c.b16 %v3470, %v3458
    %v3495 = vpack.c.b16 %v3471, %v3459
    %v3496 = vpack.c.b16 %v3472, %v3460
    %v3497 = vpack.c.b16 %v3473, %v3461
    %v3498 = vpack.c.b16 %v3474, %v3462
    %v3499 = vpack.c.b16 %v3475, %v3463
    %v3525 = vsel %vm152, %v3308, 0
    %v3528 = vsel %vm152, %v3309, 0
    %v3531 = vsel %vm152, %v3310, 0
    %v3534 = vsel %vm152, %v3311, 0
    %v3537 = vsel %vm152, %v3312, 0
    %v3540 = vsel %vm152, %v3313, 0
    %v3543 = vsel %vm152, %v3314, 0
    %v3546 = vsel %vm152, %v3315, 0
    %3548 = vmatprep.subr.bf16.mxu0 %v3477
    %3549 = vmatpush1.bf16.msra.mxu0 %v3476
    %3550 = vmatprep.subr.bf16.mxu0 %v3489
    %3551 = vmatpush1.bf16.msra.mxu0 %v3488
    %3552 = vmatprep.subr.bf16.mxu0 0
    %3553 = vmatpush1.bf16.msra.mxu0 0
    %3554 = vmatprep.subr.bf16.mxu0 0
    %3555 = vmatpush1.bf16.msra.mxu0 0
    %3556 = vmatprep.subr.bf16.mxu0 0
    %3557 = vmatpush1.bf16.msra.mxu0 0
    %3558 = vmatprep.subr.bf16.mxu0 0
    %3559 = vmatpush1.bf16.msra.mxu0 0
    %3560 = vmatprep.subr.bf16.mxu0 0
    %3561 = vmatpush1.bf16.msra.mxu0 0
    %3562 = vmatprep.subr.bf16.mxu0 0
    %3563 = vmatpush1.bf16.msra.mxu0 0
    %3564 = vmatprep.subr.bf16.mxu0 0
    %3565 = vmatpush1.bf16.msra.mxu0 0
    %3566 = vmatprep.subr.bf16.mxu0 0
    %3567 = vmatpush1.bf16.msra.mxu0 0
    %3568 = vmatprep.subr.bf16.mxu0 0
    %3569 = vmatpush1.bf16.msra.mxu0 0
    %3570 = vmatprep.subr.bf16.mxu0 0
    %3571 = vmatpush1.bf16.msra.mxu0 0
    %3572 = vmatprep.subr.bf16.mxu0 0
    %3573 = vmatpush1.bf16.msra.mxu0 0
    %3574 = vmatprep.subr.bf16.mxu0 0
    %3575 = vmatpush1.bf16.msra.mxu0 0
    %3576 = vmatprep.subr.bf16.mxu0 0
    %3577 = vmatpush1.bf16.msra.mxu0 0
    %3578 = vmatprep.subr.bf16.mxu0 0
    %3579 = vmatpush1.bf16.msra.mxu0 0
    %3580 = vmatprep.mubr.bf16.mxu0 0
    %3581 = vmatmul.mubr.bf16.gmra.mrb[0].mxu0 %v3525
    %v3582 = vpop.f32.mrb[0].mxu0
    %v3583 = vadd.f32 %v3347, %v3582
    %v3584 = vpop.f32.mrb[0].mxu0
    %v3585 = vadd.f32 %v3351, %v3584
    %v3586 = vpop.f32.mrb[0].mxu0
    %v3587 = vadd.f32 %v3347, %v3586
    %v3588 = vpop.f32.mrb[0].mxu0
    %v3589 = vadd.f32 %v3351, %v3588
    %3590 = vmatprep.mubr.bf16.mxu0 0
    %3591 = vmatmul.mubr.bf16.gmra.mrb[0].mxu0 %v3528
    %v3592 = vpop.f32.mrb[0].mxu0
    %v3593 = vadd.f32 %v3347, %v3592
    %v3594 = vpop.f32.mrb[0].mxu0
    %v3595 = vadd.f32 %v3351, %v3594
    %v3596 = vpop.f32.mrb[0].mxu0
    %v3597 = vadd.f32 %v3347, %v3596
    %v3598 = vpop.f32.mrb[0].mxu0
    %v3599 = vadd.f32 %v3351, %v3598
    %3600 = vmatprep.mubr.bf16.mxu0 0
    %3601 = vmatmul.mubr.bf16.gmra.mrb[0].mxu0 %v3531
    %v3602 = vpop.f32.mrb[0].mxu0
    %v3603 = vadd.f32 %v3347, %v3602
    %v3604 = vpop.f32.mrb[0].mxu0
    %v3605 = vadd.f32 %v3351, %v3604
    %v3606 = vpop.f32.mrb[0].mxu0
    %v3607 = vadd.f32 %v3347, %v3606
    %v3608 = vpop.f32.mrb[0].mxu0
    %v3609 = vadd.f32 %v3351, %v3608
    %3610 = vmatprep.mubr.bf16.mxu0 0
    %3611 = vmatmul.mubr.bf16.gmra.mrb[0].mxu0 %v3534
    %v3612 = vpop.f32.mrb[0].mxu0
    %v3613 = vadd.f32 %v3347, %v3612
    %v3614 = vpop.f32.mrb[0].mxu0
    %v3615 = vadd.f32 %v3351, %v3614
    %v3616 = vpop.f32.mrb[0].mxu0
    %v3617 = vadd.f32 %v3347, %v3616
    %v3618 = vpop.f32.mrb[0].mxu0
    %v3619 = vadd.f32 %v3351, %v3618
    %3620 = vmatprep.mubr.bf16.mxu0 0
    %3621 = vmatmul.mubr.bf16.gmra.mrb[0].mxu0 %v3537
    %v3622 = vpop.f32.mrb[0].mxu0
    %v3623 = vadd.f32 %v3347, %v3622
    %v3624 = vpop.f32.mrb[0].mxu0
    %v3625 = vadd.f32 %v3351, %v3624
    %v3626 = vpop.f32.mrb[0].mxu0
    %v3627 = vadd.f32 %v3347, %v3626
    %v3628 = vpop.f32.mrb[0].mxu0
    %v3629 = vadd.f32 %v3351, %v3628
    %3630 = vmatprep.mubr.bf16.mxu0 0
    %3631 = vmatmul.mubr.bf16.gmra.mrb[0].mxu0 %v3540
    %v3632 = vpop.f32.mrb[0].mxu0
    %v3633 = vadd.f32 %v3347, %v3632
    %v3634 = vpop.f32.mrb[0].mxu0
    %v3635 = vadd.f32 %v3351, %v3634
    %v3636 = vpop.f32.mrb[0].mxu0
    %v3637 = vadd.f32 %v3347, %v3636
    %v3638 = vpop.f32.mrb[0].mxu0
    %v3639 = vadd.f32 %v3351, %v3638
    %3640 = vmatprep.mubr.bf16.mxu0 0
    %3641 = vmatmul.mubr.bf16.gmra.mrb[0].mxu0 %v3543
    %v3642 = vpop.f32.mrb[0].mxu0
    %v3643 = vadd.f32 %v3347, %v3642
    %v3644 = vpop.f32.mrb[0].mxu0
    %v3645 = vadd.f32 %v3351, %v3644
    %v3646 = vpop.f32.mrb[0].mxu0
    %v3647 = vadd.f32 %v3347, %v3646
    %v3648 = vpop.f32.mrb[0].mxu0
    %v3649 = vadd.f32 %v3351, %v3648
    %3650 = vmatprep.mubr.bf16.mxu0 0
    %3651 = vmatmul.mubr.bf16.gmra.mrb[0].mxu0 %v3546
    %v3652 = vpop.f32.mrb[0].mxu0
    %v3653 = vadd.f32 %v3347, %v3652
    %v3654 = vpop.f32.mrb[0].mxu0
    %v3655 = vadd.f32 %v3351, %v3654
    %v3656 = vpop.f32.mrb[0].mxu0
    %v3657 = vadd.f32 %v3347, %v3656
    %v3658 = vpop.f32.mrb[0].mxu0
    %v3659 = vadd.f32 %v3351, %v3658
    %3660 = vdwg.mxu0
    %3661 = vmatprep.subr.bf16.mxu0 %v3479
    %3662 = vmatpush1.bf16.msra.mxu0 %v3478
    %3663 = vmatprep.subr.bf16.mxu0 %v3491
    %3664 = vmatpush1.bf16.msra.mxu0 %v3490
    %3665 = vmatprep.subr.bf16.mxu0 0
    %3666 = vmatpush1.bf16.msra.mxu0 0
    %3667 = vmatprep.subr.bf16.mxu0 0
    %3668 = vmatpush1.bf16.msra.mxu0 0
    %3669 = vmatprep.subr.bf16.mxu0 0
    %3670 = vmatpush1.bf16.msra.mxu0 0
    %3671 = vmatprep.subr.bf16.mxu0 0
    %3672 = vmatpush1.bf16.msra.mxu0 0
    %3673 = vmatprep.subr.bf16.mxu0 0
    %3674 = vmatpush1.bf16.msra.mxu0 0
    %3675 = vmatprep.subr.bf16.mxu0 0
    %3676 = vmatpush1.bf16.msra.mxu0 0
    %3677 = vmatprep.subr.bf16.mxu0 0
    %3678 = vmatpush1.bf16.msra.mxu0 0
    %3679 = vmatprep.subr.bf16.mxu0 0
    %3680 = vmatpush1.bf16.msra.mxu0 0
    %3681 = vmatprep.subr.bf16.mxu0 0
    %3682 = vmatpush1.bf16.msra.mxu0 0
    %3683 = vmatprep.subr.bf16.mxu0 0
    %3684 = vmatpush1.bf16.msra.mxu0 0
    %3685 = vmatprep.subr.bf16.mxu0 0
    %3686 = vmatpush1.bf16.msra.mxu0 0
    %3687 = vmatprep.subr.bf16.mxu0 0
    %3688 = vmatpush1.bf16.msra.mxu0 0
    %3689 = vmatprep.subr.bf16.mxu0 0
    %3690 = vmatpush1.bf16.msra.mxu0 0
    %3691 = vmatprep.subr.bf16.mxu0 0
    %3692 = vmatpush1.bf16.msra.mxu0 0
    %3693 = vmatprep.mubr.bf16.mxu0 0
    %3694 = vmatmul.mubr.bf16.gmra.mrb[0].mxu0 %v3525
    %v3695 = vpop.f32.mrb[0].mxu0
    %v3696 = vadd.f32 %v3355, %v3695
    %v3697 = vpop.f32.mrb[0].mxu0
    %v3698 = vadd.f32 %v3359, %v3697
    %v3699 = vpop.f32.mrb[0].mxu0
    %v3700 = vadd.f32 %v3355, %v3699
    %v3701 = vpop.f32.mrb[0].mxu0
    %v3702 = vadd.f32 %v3359, %v3701
    %3703 = vmatprep.mubr.bf16.mxu0 0
    %3704 = vmatmul.mubr.bf16.gmra.mrb[0].mxu0 %v3528
    %v3705 = vpop.f32.mrb[0].mxu0
    %v3706 = vadd.f32 %v3355, %v3705
    %v3707 = vpop.f32.mrb[0].mxu0
    %v3708 = vadd.f32 %v3359, %v3707
    %v3709 = vpop.f32.mrb[0].mxu0
    %v3710 = vadd.f32 %v3355, %v3709
    %v3711 = vpop.f32.mrb[0].mxu0
    %v3712 = vadd.f32 %v3359, %v3711
    %3713 = vmatprep.mubr.bf16.mxu0 0
    %3714 = vmatmul.mubr.bf16.gmra.mrb[0].mxu0 %v3531
    %v3715 = vpop.f32.mrb[0].mxu0
    %v3716 = vadd.f32 %v3355, %v3715
    %v3717 = vpop.f32.mrb[0].mxu0
    %v3718 = vadd.f32 %v3359, %v3717
    %v3719 = vpop.f32.mrb[0].mxu0
    %v3720 = vadd.f32 %v3355, %v3719
    %v3721 = vpop.f32.mrb[0].mxu0
    %v3722 = vadd.f32 %v3359, %v3721
    %3723 = vmatprep.mubr.bf16.mxu0 0
    %3724 = vmatmul.mubr.bf16.gmra.mrb[0].mxu0 %v3534
    %v3725 = vpop.f32.mrb[0].mxu0
    %v3726 = vadd.f32 %v3355, %v3725
    %v3727 = vpop.f32.mrb[0].mxu0
    %v3728 = vadd.f32 %v3359, %v3727
    %v3729 = vpop.f32.mrb[0].mxu0
    %v3730 = vadd.f32 %v3355, %v3729
    %v3731 = vpop.f32.mrb[0].mxu0
    %v3732 = vadd.f32 %v3359, %v3731
    %3733 = vmatprep.mubr.bf16.mxu0 0
    %3734 = vmatmul.mubr.bf16.gmra.mrb[0].mxu0 %v3537
    %v3735 = vpop.f32.mrb[0].mxu0
    %v3736 = vadd.f32 %v3355, %v3735
    %v3737 = vpop.f32.mrb[0].mxu0
    %v3738 = vadd.f32 %v3359, %v3737
    %v3739 = vpop.f32.mrb[0].mxu0
    %v3740 = vadd.f32 %v3355, %v3739
    %v3741 = vpop.f32.mrb[0].mxu0
    %v3742 = vadd.f32 %v3359, %v3741
    %3743 = vmatprep.mubr.bf16.mxu0 0
    %3744 = vmatmul.mubr.bf16.gmra.mrb[0].mxu0 %v3540
    %v3745 = vpop.f32.mrb[0].mxu0
    %v3746 = vadd.f32 %v3355, %v3745
    %v3747 = vpop.f32.mrb[0].mxu0
    %v3748 = vadd.f32 %v3359, %v3747
    %v3749 = vpop.f32.mrb[0].mxu0
    %v3750 = vadd.f32 %v3355, %v3749
    %v3751 = vpop.f32.mrb[0].mxu0
    %v3752 = vadd.f32 %v3359, %v3751
    %3753 = vmatprep.mubr.bf16.mxu0 0
    %3754 = vmatmul.mubr.bf16.gmra.mrb[0].mxu0 %v3543
    %v3755 = vpop.f32.mrb[0].mxu0
    %v3756 = vadd.f32 %v3355, %v3755
    %v3757 = vpop.f32.mrb[0].mxu0
    %v3758 = vadd.f32 %v3359, %v3757
    %v3759 = vpop.f32.mrb[0].mxu0
    %v3760 = vadd.f32 %v3355, %v3759
    %v3761 = vpop.f32.mrb[0].mxu0
    %v3762 = vadd.f32 %v3359, %v3761
    %3763 = vmatprep.mubr.bf16.mxu0 0
    %3764 = vmatmul.mubr.bf16.gmra.mrb[0].mxu0 %v3546
    %v3765 = vpop.f32.mrb[0].mxu0
    %v3766 = vadd.f32 %v3355, %v3765
    %v3767 = vpop.f32.mrb[0].mxu0
    %v3768 = vadd.f32 %v3359, %v3767
    %v3769 = vpop.f32.mrb[0].mxu0
    %v3770 = vadd.f32 %v3355, %v3769
    %v3771 = vpop.f32.mrb[0].mxu0
    %v3772 = vadd.f32 %v3359, %v3771
    %3773 = vdwg.mxu0
    %3774 = vmatprep.subr.bf16.mxu0 %v3481
    %3775 = vmatpush1.bf16.msra.mxu0 %v3480
    %3776 = vmatprep.subr.bf16.mxu0 %v3493
    %3777 = vmatpush1.bf16.msra.mxu0 %v3492
    %3778 = vmatprep.subr.bf16.mxu0 0
    %3779 = vmatpush1.bf16.msra.mxu0 0
    %3780 = vmatprep.subr.bf16.mxu0 0
    %3781 = vmatpush1.bf16.msra.mxu0 0
    %3782 = vmatprep.subr.bf16.mxu0 0
    %3783 = vmatpush1.bf16.msra.mxu0 0
    %3784 = vmatprep.subr.bf16.mxu0 0
    %3785 = vmatpush1.bf16.msra.mxu0 0
    %3786 = vmatprep.subr.bf16.mxu0 0
    %3787 = vmatpush1.bf16.msra.mxu0 0
    %3788 = vmatprep.subr.bf16.mxu0 0
    %3789 = vmatpush1.bf16.msra.mxu0 0
    %3790 = vmatprep.subr.bf16.mxu0 0
    %3791 = vmatpush1.bf16.msra.mxu0 0
    %3792 = vmatprep.subr.bf16.mxu0 0
    %3793 = vmatpush1.bf16.msra.mxu0 0
    %3794 = vmatprep.subr.bf16.mxu0 0
    %3795 = vmatpush1.bf16.msra.mxu0 0
    %3796 = vmatprep.subr.bf16.mxu0 0
    %3797 = vmatpush1.bf16.msra.mxu0 0
    %3798 = vmatprep.subr.bf16.mxu0 0
    %3799 = vmatpush1.bf16.msra.mxu0 0
    %3800 = vmatprep.subr.bf16.mxu0 0
    %3801 = vmatpush1.bf16.msra.mxu0 0
    %3802 = vmatprep.subr.bf16.mxu0 0
    %3803 = vmatpush1.bf16.msra.mxu0 0
    %3804 = vmatprep.subr.bf16.mxu0 0
    %3805 = vmatpush1.bf16.msra.mxu0 0
    %3806 = vmatprep.mubr.bf16.mxu0 0
    %3807 = vmatmul.mubr.bf16.gmra.mrb[0].mxu0 %v3525
    %v3808 = vpop.f32.mrb[0].mxu0
    %v3809 = vadd.f32 %v3363, %v3808
    %v3810 = vpop.f32.mrb[0].mxu0
    %v3811 = vadd.f32 %v3367, %v3810
    %v3812 = vpop.f32.mrb[0].mxu0
    %v3813 = vadd.f32 %v3363, %v3812
    %v3814 = vpop.f32.mrb[0].mxu0
    %v3815 = vadd.f32 %v3367, %v3814
    %3816 = vmatprep.mubr.bf16.mxu0 0
    %3817 = vmatmul.mubr.bf16.gmra.mrb[0].mxu0 %v3528
    %v3818 = vpop.f32.mrb[0].mxu0
    %v3819 = vadd.f32 %v3363, %v3818
    %v3820 = vpop.f32.mrb[0].mxu0
    %v3821 = vadd.f32 %v3367, %v3820
    %v3822 = vpop.f32.mrb[0].mxu0
    %v3823 = vadd.f32 %v3363, %v3822
    %v3824 = vpop.f32.mrb[0].mxu0
    %v3825 = vadd.f32 %v3367, %v3824
    %3826 = vmatprep.mubr.bf16.mxu0 0
    %3827 = vmatmul.mubr.bf16.gmra.mrb[0].mxu0 %v3531
    %v3828 = vpop.f32.mrb[0].mxu0
    %v3829 = vadd.f32 %v3363, %v3828
    %v3830 = vpop.f32.mrb[0].mxu0
    %v3831 = vadd.f32 %v3367, %v3830
    %v3832 = vpop.f32.mrb[0].mxu0
    %v3833 = vadd.f32 %v3363, %v3832
    %v3834 = vpop.f32.mrb[0].mxu0
    %v3835 = vadd.f32 %v3367, %v3834
    %3836 = vmatprep.mubr.bf16.mxu0 0
    %3837 = vmatmul.mubr.bf16.gmra.mrb[0].mxu0 %v3534
    %v3838 = vpop.f32.mrb[0].mxu0
    %v3839 = vadd.f32 %v3363, %v3838
    %v3840 = vpop.f32.mrb[0].mxu0
    %v3841 = vadd.f32 %v3367, %v3840
    %v3842 = vpop.f32.mrb[0].mxu0
    %v3843 = vadd.f32 %v3363, %v3842
    %v3844 = vpop.f32.mrb[0].mxu0
    %v3845 = vadd.f32 %v3367, %v3844
    %3846 = vmatprep.mubr.bf16.mxu0 0
    %3847 = vmatmul.mubr.bf16.gmra.mrb[0].mxu0 %v3537
    %v3848 = vpop.f32.mrb[0].mxu0
    %v3849 = vadd.f32 %v3363, %v3848
    %v3850 = vpop.f32.mrb[0].mxu0
    %v3851 = vadd.f32 %v3367, %v3850
    %v3852 = vpop.f32.mrb[0].mxu0
    %v3853 = vadd.f32 %v3363, %v3852
    %v3854 = vpop.f32.mrb[0].mxu0
    %v3855 = vadd.f32 %v3367, %v3854
    %3856 = vmatprep.mubr.bf16.mxu0 0
    %3857 = vmatmul.mubr.bf16.gmra.mrb[0].mxu0 %v3540
    %v3858 = vpop.f32.mrb[0].mxu0
    %v3859 = vadd.f32 %v3363, %v3858
    %v3860 = vpop.f32.mrb[0].mxu0
    %v3861 = vadd.f32 %v3367, %v3860
    %v3862 = vpop.f32.mrb[0].mxu0
    %v3863 = vadd.f32 %v3363, %v3862
    %v3864 = vpop.f32.mrb[0].mxu0
    %v3865 = vadd.f32 %v3367, %v3864
    %3866 = vmatprep.mubr.bf16.mxu0 0
    %3867 = vmatmul.mubr.bf16.gmra.mrb[0].mxu0 %v3543
    %v3868 = vpop.f32.mrb[0].mxu0
    %v3869 = vadd.f32 %v3363, %v3868
    %v3870 = vpop.f32.mrb[0].mxu0
    %v3871 = vadd.f32 %v3367, %v3870
    %v3872 = vpop.f32.mrb[0].mxu0
    %v3873 = vadd.f32 %v3363, %v3872
    %v3874 = vpop.f32.mrb[0].mxu0
    %v3875 = vadd.f32 %v3367, %v3874
    %3876 = vmatprep.mubr.bf16.mxu0 0
    %3877 = vmatmul.mubr.bf16.gmra.mrb[0].mxu0 %v3546
    %v3878 = vpop.f32.mrb[0].mxu0
    %v3879 = vadd.f32 %v3363, %v3878
    %v3880 = vpop.f32.mrb[0].mxu0
    %v3881 = vadd.f32 %v3367, %v3880
    %v3882 = vpop.f32.mrb[0].mxu0
    %v3883 = vadd.f32 %v3363, %v3882
    %v3884 = vpop.f32.mrb[0].mxu0
    %v3885 = vadd.f32 %v3367, %v3884
    %3886 = vdwg.mxu0
    %3887 = vmatprep.subr.bf16.mxu0 %v3483
    %3888 = vmatpush1.bf16.msra.mxu0 %v3482
    %3889 = vmatprep.subr.bf16.mxu0 %v3495
    %3890 = vmatpush1.bf16.msra.mxu0 %v3494
    %3891 = vmatprep.subr.bf16.mxu0 0
    %3892 = vmatpush1.bf16.msra.mxu0 0
    %3893 = vmatprep.subr.bf16.mxu0 0
    %3894 = vmatpush1.bf16.msra.mxu0 0
    %3895 = vmatprep.subr.bf16.mxu0 0
    %3896 = vmatpush1.bf16.msra.mxu0 0
    %3897 = vmatprep.subr.bf16.mxu0 0
    %3898 = vmatpush1.bf16.msra.mxu0 0
    %3899 = vmatprep.subr.bf16.mxu0 0
    %3900 = vmatpush1.bf16.msra.mxu0 0
    %3901 = vmatprep.subr.bf16.mxu0 0
    %3902 = vmatpush1.bf16.msra.mxu0 0
    %3903 = vmatprep.subr.bf16.mxu0 0
    %3904 = vmatpush1.bf16.msra.mxu0 0
    %3905 = vmatprep.subr.bf16.mxu0 0
    %3906 = vmatpush1.bf16.msra.mxu0 0
    %3907 = vmatprep.subr.bf16.mxu0 0
    %3908 = vmatpush1.bf16.msra.mxu0 0
    %3909 = vmatprep.subr.bf16.mxu0 0
    %3910 = vmatpush1.bf16.msra.mxu0 0
    %3911 = vmatprep.subr.bf16.mxu0 0
    %3912 = vmatpush1.bf16.msra.mxu0 0
    %3913 = vmatprep.subr.bf16.mxu0 0
    %3914 = vmatpush1.bf16.msra.mxu0 0
    %3915 = vmatprep.subr.bf16.mxu0 0
    %3916 = vmatpush1.bf16.msra.mxu0 0
    %3917 = vmatprep.subr.bf16.mxu0 0
    %3918 = vmatpush1.bf16.msra.mxu0 0
    %3919 = vmatprep.mubr.bf16.mxu0 0
    %3920 = vmatmul.mubr.bf16.gmra.mrb[0].mxu0 %v3525
    %v3921 = vpop.f32.mrb[0].mxu0
    %v3922 = vadd.f32 %v3371, %v3921
    %v3923 = vpop.f32.mrb[0].mxu0
    %v3924 = vadd.f32 %v3375, %v3923
    %v3925 = vpop.f32.mrb[0].mxu0
    %v3926 = vadd.f32 %v3371, %v3925
    %v3927 = vpop.f32.mrb[0].mxu0
    %v3928 = vadd.f32 %v3375, %v3927
    %3929 = vmatprep.mubr.bf16.mxu0 0
    %3930 = vmatmul.mubr.bf16.gmra.mrb[0].mxu0 %v3528
    %v3931 = vpop.f32.mrb[0].mxu0
    %v3932 = vadd.f32 %v3371, %v3931
    %v3933 = vpop.f32.mrb[0].mxu0
    %v3934 = vadd.f32 %v3375, %v3933
    %v3935 = vpop.f32.mrb[0].mxu0
    %v3936 = vadd.f32 %v3371, %v3935
    %v3937 = vpop.f32.mrb[0].mxu0
    %v3938 = vadd.f32 %v3375, %v3937
    %3939 = vmatprep.mubr.bf16.mxu0 0
    %3940 = vmatmul.mubr.bf16.gmra.mrb[0].mxu0 %v3531
    %v3941 = vpop.f32.mrb[0].mxu0
    %v3942 = vadd.f32 %v3371, %v3941
    %v3943 = vpop.f32.mrb[0].mxu0
    %v3944 = vadd.f32 %v3375, %v3943
    %v3945 = vpop.f32.mrb[0].mxu0
    %v3946 = vadd.f32 %v3371, %v3945
    %v3947 = vpop.f32.mrb[0].mxu0
    %v3948 = vadd.f32 %v3375, %v3947
    %3949 = vmatprep.mubr.bf16.mxu0 0
    %3950 = vmatmul.mubr.bf16.gmra.mrb[0].mxu0 %v3534
    %v3951 = vpop.f32.mrb[0].mxu0
    %v3952 = vadd.f32 %v3371, %v3951
    %v3953 = vpop.f32.mrb[0].mxu0
    %v3954 = vadd.f32 %v3375, %v3953
    %v3955 = vpop.f32.mrb[0].mxu0
    %v3956 = vadd.f32 %v3371, %v3955
    %v3957 = vpop.f32.mrb[0].mxu0
    %v3958 = vadd.f32 %v3375, %v3957
    %3959 = vmatprep.mubr.bf16.mxu0 0
    %3960 = vmatmul.mubr.bf16.gmra.mrb[0].mxu0 %v3537
    %v3961 = vpop.f32.mrb[0].mxu0
    %v3962 = vadd.f32 %v3371, %v3961
    %v3963 = vpop.f32.mrb[0].mxu0
    %v3964 = vadd.f32 %v3375, %v3963
    %v3965 = vpop.f32.mrb[0].mxu0
    %v3966 = vadd.f32 %v3371, %v3965
    %v3967 = vpop.f32.mrb[0].mxu0
    %v3968 = vadd.f32 %v3375, %v3967
    %3969 = vmatprep.mubr.bf16.mxu0 0
    %3970 = vmatmul.mubr.bf16.gmra.mrb[0].mxu0 %v3540
    %v3971 = vpop.f32.mrb[0].mxu0
    %v3972 = vadd.f32 %v3371, %v3971
    %v3973 = vpop.f32.mrb[0].mxu0
    %v3974 = vadd.f32 %v3375, %v3973
    %v3975 = vpop.f32.mrb[0].mxu0
    %v3976 = vadd.f32 %v3371, %v3975
    %v3977 = vpop.f32.mrb[0].mxu0
    %v3978 = vadd.f32 %v3375, %v3977
    %3979 = vmatprep.mubr.bf16.mxu0 0
    %3980 = vmatmul.mubr.bf16.gmra.mrb[0].mxu0 %v3543
    %v3981 = vpop.f32.mrb[0].mxu0
    %v3982 = vadd.f32 %v3371, %v3981
    %v3983 = vpop.f32.mrb[0].mxu0
    %v3984 = vadd.f32 %v3375, %v3983
    %v3985 = vpop.f32.mrb[0].mxu0
    %v3986 = vadd.f32 %v3371, %v3985
    %v3987 = vpop.f32.mrb[0].mxu0
    %v3988 = vadd.f32 %v3375, %v3987
    %3989 = vmatprep.mubr.bf16.mxu0 0
    %3990 = vmatmul.mubr.bf16.gmra.mrb[0].mxu0 %v3546
    %v3991 = vpop.f32.mrb[0].mxu0
    %v3992 = vadd.f32 %v3371, %v3991
    %v3993 = vpop.f32.mrb[0].mxu0
    %v3994 = vadd.f32 %v3375, %v3993
    %v3995 = vpop.f32.mrb[0].mxu0
    %v3996 = vadd.f32 %v3371, %v3995
    %v3997 = vpop.f32.mrb[0].mxu0
    %v3998 = vadd.f32 %v3375, %v3997
    %3999 = vdwg.mxu0
    %4000 = vmatprep.subr.bf16.mxu0 %v3485
    %4001 = vmatpush1.bf16.msra.mxu0 %v3484
    %4002 = vmatprep.subr.bf16.mxu0 %v3497
    %4003 = vmatpush1.bf16.msra.mxu0 %v3496
    %4004 = vmatprep.subr.bf16.mxu0 0
    %4005 = vmatpush1.bf16.msra.mxu0 0
    %4006 = vmatprep.subr.bf16.mxu0 0
    %4007 = vmatpush1.bf16.msra.mxu0 0
    %4008 = vmatprep.subr.bf16.mxu0 0
    %4009 = vmatpush1.bf16.msra.mxu0 0
    %4010 = vmatprep.subr.bf16.mxu0 0
    %4011 = vmatpush1.bf16.msra.mxu0 0
    %4012 = vmatprep.subr.bf16.mxu0 0
    %4013 = vmatpush1.bf16.msra.mxu0 0
    %4014 = vmatprep.subr.bf16.mxu0 0
    %4015 = vmatpush1.bf16.msra.mxu0 0
    %4016 = vmatprep.subr.bf16.mxu0 0
    %4017 = vmatpush1.bf16.msra.mxu0 0
    %4018 = vmatprep.subr.bf16.mxu0 0
    %4019 = vmatpush1.bf16.msra.mxu0 0
    %4020 = vmatprep.subr.bf16.mxu0 0
    %4021 = vmatpush1.bf16.msra.mxu0 0
    %4022 = vmatprep.subr.bf16.mxu0 0
    %4023 = vmatpush1.bf16.msra.mxu0 0
    %4024 = vmatprep.subr.bf16.mxu0 0
    %4025 = vmatpush1.bf16.msra.mxu0 0
    %4026 = vmatprep.subr.bf16.mxu0 0
    %4027 = vmatpush1.bf16.msra.mxu0 0
    %4028 = vmatprep.subr.bf16.mxu0 0
    %4029 = vmatpush1.bf16.msra.mxu0 0
    %4030 = vmatprep.subr.bf16.mxu0 0
    %4031 = vmatpush1.bf16.msra.mxu0 0
    %4032 = vmatprep.mubr.bf16.mxu0 0
    %4033 = vmatmul.mubr.bf16.gmra.mrb[0].mxu0 %v3525
    %v4034 = vpop.f32.mrb[0].mxu0
    %v4035 = vadd.f32 %v3379, %v4034
    %v4036 = vpop.f32.mrb[0].mxu0
    %v4037 = vadd.f32 %v3383, %v4036
    %v4038 = vpop.f32.mrb[0].mxu0
    %v4039 = vadd.f32 %v3379, %v4038
    %v4040 = vpop.f32.mrb[0].mxu0
    %v4041 = vadd.f32 %v3383, %v4040
    %4042 = vmatprep.mubr.bf16.mxu0 0
    %4043 = vmatmul.mubr.bf16.gmra.mrb[0].mxu0 %v3528
    %v4044 = vpop.f32.mrb[0].mxu0
    %v4045 = vadd.f32 %v3379, %v4044
    %v4046 = vpop.f32.mrb[0].mxu0
    %v4047 = vadd.f32 %v3383, %v4046
    %v4048 = vpop.f32.mrb[0].mxu0
    %v4049 = vadd.f32 %v3379, %v4048
    %v4050 = vpop.f32.mrb[0].mxu0
    %v4051 = vadd.f32 %v3383, %v4050
    %4052 = vmatprep.mubr.bf16.mxu0 0
    %4053 = vmatmul.mubr.bf16.gmra.mrb[0].mxu0 %v3531
    %v4054 = vpop.f32.mrb[0].mxu0
    %v4055 = vadd.f32 %v3379, %v4054
    %v4056 = vpop.f32.mrb[0].mxu0
    %v4057 = vadd.f32 %v3383, %v4056
    %v4058 = vpop.f32.mrb[0].mxu0
    %v4059 = vadd.f32 %v3379, %v4058
    %v4060 = vpop.f32.mrb[0].mxu0
    %v4061 = vadd.f32 %v3383, %v4060
    %4062 = vmatprep.mubr.bf16.mxu0 0
    %4063 = vmatmul.mubr.bf16.gmra.mrb[0].mxu0 %v3534
    %v4064 = vpop.f32.mrb[0].mxu0
    %v4065 = vadd.f32 %v3379, %v4064
    %v4066 = vpop.f32.mrb[0].mxu0
    %v4067 = vadd.f32 %v3383, %v4066
    %v4068 = vpop.f32.mrb[0].mxu0
    %v4069 = vadd.f32 %v3379, %v4068
    %v4070 = vpop.f32.mrb[0].mxu0
    %v4071 = vadd.f32 %v3383, %v4070
    %4072 = vmatprep.mubr.bf16.mxu0 0
    %4073 = vmatmul.mubr.bf16.gmra.mrb[0].mxu0 %v3537
    %v4074 = vpop.f32.mrb[0].mxu0
    %v4075 = vadd.f32 %v3379, %v4074
    %v4076 = vpop.f32.mrb[0].mxu0
    %v4077 = vadd.f32 %v3383, %v4076
    %v4078 = vpop.f32.mrb[0].mxu0
    %v4079 = vadd.f32 %v3379, %v4078
    %v4080 = vpop.f32.mrb[0].mxu0
    %v4081 = vadd.f32 %v3383, %v4080
    %4082 = vmatprep.mubr.bf16.mxu0 0
    %4083 = vmatmul.mubr.bf16.gmra.mrb[0].mxu0 %v3540
    %v4084 = vpop.f32.mrb[0].mxu0
    %v4085 = vadd.f32 %v3379, %v4084
    %v4086 = vpop.f32.mrb[0].mxu0
    %v4087 = vadd.f32 %v3383, %v4086
    %v4088 = vpop.f32.mrb[0].mxu0
    %v4089 = vadd.f32 %v3379, %v4088
    %v4090 = vpop.f32.mrb[0].mxu0
    %v4091 = vadd.f32 %v3383, %v4090
    %4092 = vmatprep.mubr.bf16.mxu0 0
    %4093 = vmatmul.mubr.bf16.gmra.mrb[0].mxu0 %v3543
    %v4094 = vpop.f32.mrb[0].mxu0
    %v4095 = vadd.f32 %v3379, %v4094
    %v4096 = vpop.f32.mrb[0].mxu0
    %v4097 = vadd.f32 %v3383, %v4096
    %v4098 = vpop.f32.mrb[0].mxu0
    %v4099 = vadd.f32 %v3379, %v4098
    %v4100 = vpop.f32.mrb[0].mxu0
    %v4101 = vadd.f32 %v3383, %v4100
    %4102 = vmatprep.mubr.bf16.mxu0 0
    %4103 = vmatmul.mubr.bf16.gmra.mrb[0].mxu0 %v3546
    %v4104 = vpop.f32.mrb[0].mxu0
    %v4105 = vadd.f32 %v3379, %v4104
    %v4106 = vpop.f32.mrb[0].mxu0
    %v4107 = vadd.f32 %v3383, %v4106
    %v4108 = vpop.f32.mrb[0].mxu0
    %v4109 = vadd.f32 %v3379, %v4108
    %v4110 = vpop.f32.mrb[0].mxu0
    %v4111 = vadd.f32 %v3383, %v4110
    %4112 = vdwg.mxu0
    %4113 = vmatprep.subr.bf16.mxu0 %v3487
    %4114 = vmatpush1.bf16.msra.mxu0 %v3486
    %4115 = vmatprep.subr.bf16.mxu0 %v3499
    %4116 = vmatpush1.bf16.msra.mxu0 %v3498
    %4117 = vmatprep.subr.bf16.mxu0 0
    %4118 = vmatpush1.bf16.msra.mxu0 0
    %4119 = vmatprep.subr.bf16.mxu0 0
    %4120 = vmatpush1.bf16.msra.mxu0 0
    %4121 = vmatprep.subr.bf16.mxu0 0
    %4122 = vmatpush1.bf16.msra.mxu0 0
    %4123 = vmatprep.subr.bf16.mxu0 0
    %4124 = vmatpush1.bf16.msra.mxu0 0
    %4125 = vmatprep.subr.bf16.mxu0 0
    %4126 = vmatpush1.bf16.msra.mxu0 0
    %4127 = vmatprep.subr.bf16.mxu0 0
    %4128 = vmatpush1.bf16.msra.mxu0 0
    %4129 = vmatprep.subr.bf16.mxu0 0
    %4130 = vmatpush1.bf16.msra.mxu0 0
    %4131 = vmatprep.subr.bf16.mxu0 0
    %4132 = vmatpush1.bf16.msra.mxu0 0
    %4133 = vmatprep.subr.bf16.mxu0 0
    %4134 = vmatpush1.bf16.msra.mxu0 0
    %4135 = vmatprep.subr.bf16.mxu0 0
    %4136 = vmatpush1.bf16.msra.mxu0 0
    %4137 = vmatprep.subr.bf16.mxu0 0
    %4138 = vmatpush1.bf16.msra.mxu0 0
    %4139 = vmatprep.subr.bf16.mxu0 0
    %4140 = vmatpush1.bf16.msra.mxu0 0
    %4141 = vmatprep.subr.bf16.mxu0 0
    %4142 = vmatpush1.bf16.msra.mxu0 0
    %4143 = vmatprep.subr.bf16.mxu0 0
    %4144 = vmatpush1.bf16.msra.mxu0 0
    %4145 = vmatprep.mubr.bf16.mxu0 0
    %4146 = vmatmul.mubr.bf16.gmra.mrb[0].mxu0 %v3525
    %v4147 = vpop.f32.mrb[0].mxu0
    %v4148 = vadd.f32 %v3387, %v4147
    %v4149 = vpop.f32.mrb[0].mxu0
    %v4150 = vadd.f32 %v3391, %v4149
    %v4151 = vpop.f32.mrb[0].mxu0
    %v4152 = vadd.f32 %v3387, %v4151
    %v4153 = vpop.f32.mrb[0].mxu0
    %v4154 = vadd.f32 %v3391, %v4153
    %4155 = vmatprep.mubr.bf16.mxu0 0
    %4156 = vmatmul.mubr.bf16.gmra.mrb[0].mxu0 %v3528
    %v4157 = vpop.f32.mrb[0].mxu0
    %v4158 = vadd.f32 %v3387, %v4157
    %v4159 = vpop.f32.mrb[0].mxu0
    %v4160 = vadd.f32 %v3391, %v4159
    %v4161 = vpop.f32.mrb[0].mxu0
    %v4162 = vadd.f32 %v3387, %v4161
    %v4163 = vpop.f32.mrb[0].mxu0
    %v4164 = vadd.f32 %v3391, %v4163
    %4165 = vmatprep.mubr.bf16.mxu0 0
    %4166 = vmatmul.mubr.bf16.gmra.mrb[0].mxu0 %v3531
    %v4167 = vpop.f32.mrb[0].mxu0
    %v4168 = vadd.f32 %v3387, %v4167
    %v4169 = vpop.f32.mrb[0].mxu0
    %v4170 = vadd.f32 %v3391, %v4169
    %v4171 = vpop.f32.mrb[0].mxu0
    %v4172 = vadd.f32 %v3387, %v4171
    %v4173 = vpop.f32.mrb[0].mxu0
    %v4174 = vadd.f32 %v3391, %v4173
    %4175 = vmatprep.mubr.bf16.mxu0 0
    %4176 = vmatmul.mubr.bf16.gmra.mrb[0].mxu0 %v3534
    %v4177 = vpop.f32.mrb[0].mxu0
    %v4178 = vadd.f32 %v3387, %v4177
    %v4179 = vpop.f32.mrb[0].mxu0
    %v4180 = vadd.f32 %v3391, %v4179
    %v4181 = vpop.f32.mrb[0].mxu0
    %v4182 = vadd.f32 %v3387, %v4181
    %v4183 = vpop.f32.mrb[0].mxu0
    %v4184 = vadd.f32 %v3391, %v4183
    %4185 = vmatprep.mubr.bf16.mxu0 0
    %4186 = vmatmul.mubr.bf16.gmra.mrb[0].mxu0 %v3537
    %v4187 = vpop.f32.mrb[0].mxu0
    %v4188 = vadd.f32 %v3387, %v4187
    %v4189 = vpop.f32.mrb[0].mxu0
    %v4190 = vadd.f32 %v3391, %v4189
    %v4191 = vpop.f32.mrb[0].mxu0
    %v4192 = vadd.f32 %v3387, %v4191
    %v4193 = vpop.f32.mrb[0].mxu0
    %v4194 = vadd.f32 %v3391, %v4193
    %4195 = vmatprep.mubr.bf16.mxu0 0
    %4196 = vmatmul.mubr.bf16.gmra.mrb[0].mxu0 %v3540
    %v4197 = vpop.f32.mrb[0].mxu0
    %v4198 = vadd.f32 %v3387, %v4197
    %v4199 = vpop.f32.mrb[0].mxu0
    %v4200 = vadd.f32 %v3391, %v4199
    %v4201 = vpop.f32.mrb[0].mxu0
    %v4202 = vadd.f32 %v3387, %v4201
    %v4203 = vpop.f32.mrb[0].mxu0
    %v4204 = vadd.f32 %v3391, %v4203
    %4205 = vmatprep.mubr.bf16.mxu0 0
    %4206 = vmatmul.mubr.bf16.gmra.mrb[0].mxu0 %v3543
    %v4207 = vpop.f32.mrb[0].mxu0
    %v4208 = vadd.f32 %v3387, %v4207
    %v4209 = vpop.f32.mrb[0].mxu0
    %v4210 = vadd.f32 %v3391, %v4209
    %v4211 = vpop.f32.mrb[0].mxu0
    %v4212 = vadd.f32 %v3387, %v4211
    %v4213 = vpop.f32.mrb[0].mxu0
    %v4214 = vadd.f32 %v3391, %v4213
    %4215 = vmatprep.mubr.bf16.mxu0 0
    %4216 = vmatmul.mubr.bf16.gmra.mrb[0].mxu0 %v3546
    %v4217 = vpop.f32.mrb[0].mxu0
    %v4218 = vadd.f32 %v3387, %v4217
    %v4219 = vpop.f32.mrb[0].mxu0
    %v4220 = vadd.f32 %v3391, %v4219
    %v4221 = vpop.f32.mrb[0].mxu0
    %v4222 = vadd.f32 %v3387, %v4221
    %v4223 = vpop.f32.mrb[0].mxu0
    %v4224 = vadd.f32 %v3391, %v4223
    %4225 = vdwg.mxu0
    %v4226 = vsub.f32 0.0, %v3583
    %v4227 = vsub.f32 0.0, %v3585
    %v4228 = vsub.f32 0.0, %v3696
    %v4229 = vsub.f32 0.0, %v3698
    %v4230 = vsub.f32 0.0, %v3809
    %v4231 = vsub.f32 0.0, %v3811
    %v4232 = vsub.f32 0.0, %v3922
    %v4233 = vsub.f32 0.0, %v3924
    %v4234 = vsub.f32 0.0, %v4035
    %v4235 = vsub.f32 0.0, %v4037
    %v4236 = vsub.f32 0.0, %v4148
    %v4237 = vsub.f32 0.0, %v4150
    %v4238 = vsub.f32 0.0, %v3587
    %v4239 = vsub.f32 0.0, %v3589
    %v4240 = vsub.f32 0.0, %v3700
    %v4241 = vsub.f32 0.0, %v3702
    %v4242 = vsub.f32 0.0, %v3813
    %v4243 = vsub.f32 0.0, %v3815
    %v4244 = vsub.f32 0.0, %v3926
    %v4245 = vsub.f32 0.0, %v3928
    %v4246 = vsub.f32 0.0, %v4039
    %v4247 = vsub.f32 0.0, %v4041
    %v4248 = vsub.f32 0.0, %v4152
    %v4249 = vsub.f32 0.0, %v4154
    %v4250 = vsub.f32 0.0, %v3593
    %v4251 = vsub.f32 0.0, %v3595
    %v4252 = vsub.f32 0.0, %v3706
    %v4253 = vsub.f32 0.0, %v3708
    %v4254 = vsub.f32 0.0, %v3819
    %v4255 = vsub.f32 0.0, %v3821
    %v4256 = vsub.f32 0.0, %v3932
    %v4257 = vsub.f32 0.0, %v3934
    %v4258 = vsub.f32 0.0, %v4045
    %v4259 = vsub.f32 0.0, %v4047
    %v4260 = vsub.f32 0.0, %v4158
    %v4261 = vsub.f32 0.0, %v4160
    %v4262 = vsub.f32 0.0, %v3597
    %v4263 = vsub.f32 0.0, %v3599
    %v4264 = vsub.f32 0.0, %v3710
    %v4265 = vsub.f32 0.0, %v3712
    %v4266 = vsub.f32 0.0, %v3823
    %v4267 = vsub.f32 0.0, %v3825
    %v4268 = vsub.f32 0.0, %v3936
    %v4269 = vsub.f32 0.0, %v3938
    %v4270 = vsub.f32 0.0, %v4049
    %v4271 = vsub.f32 0.0, %v4051
    %v4272 = vsub.f32 0.0, %v4162
    %v4273 = vsub.f32 0.0, %v4164
    %v4274 = vsub.f32 0.0, %v3603
    %v4275 = vsub.f32 0.0, %v3605
    %v4276 = vsub.f32 0.0, %v3716
    %v4277 = vsub.f32 0.0, %v3718
    %v4278 = vsub.f32 0.0, %v3829
    %v4279 = vsub.f32 0.0, %v3831
    %v4280 = vsub.f32 0.0, %v3942
    %v4281 = vsub.f32 0.0, %v3944
    %v4282 = vsub.f32 0.0, %v4055
    %v4283 = vsub.f32 0.0, %v4057
    %v4284 = vsub.f32 0.0, %v4168
    %v4285 = vsub.f32 0.0, %v4170
    %v4286 = vsub.f32 0.0, %v3607
    %v4287 = vsub.f32 0.0, %v3609
    %v4288 = vsub.f32 0.0, %v3720
    %v4289 = vsub.f32 0.0, %v3722
    %v4290 = vsub.f32 0.0, %v3833
    %v4291 = vsub.f32 0.0, %v3835
    %v4292 = vsub.f32 0.0, %v3946
    %v4293 = vsub.f32 0.0, %v3948
    %v4294 = vsub.f32 0.0, %v4059
    %v4295 = vsub.f32 0.0, %v4061
    %v4296 = vsub.f32 0.0, %v4172
    %v4297 = vsub.f32 0.0, %v4174
    %v4298 = vsub.f32 0.0, %v3613
    %v4299 = vsub.f32 0.0, %v3615
    %v4300 = vsub.f32 0.0, %v3726
    %v4301 = vsub.f32 0.0, %v3728
    %v4302 = vsub.f32 0.0, %v3839
    %v4303 = vsub.f32 0.0, %v3841
    %v4304 = vsub.f32 0.0, %v3952
    %v4305 = vsub.f32 0.0, %v3954
    %v4306 = vsub.f32 0.0, %v4065
    %v4307 = vsub.f32 0.0, %v4067
    %v4308 = vsub.f32 0.0, %v4178
    %v4309 = vsub.f32 0.0, %v4180
    %v4310 = vsub.f32 0.0, %v3617
    %v4311 = vsub.f32 0.0, %v3619
    %v4312 = vsub.f32 0.0, %v3730
    %v4313 = vsub.f32 0.0, %v3732
    %v4314 = vsub.f32 0.0, %v3843
    %v4315 = vsub.f32 0.0, %v3845
    %v4316 = vsub.f32 0.0, %v3956
    %v4317 = vsub.f32 0.0, %v3958
    %v4318 = vsub.f32 0.0, %v4069
    %v4319 = vsub.f32 0.0, %v4071
    %v4320 = vsub.f32 0.0, %v4182
    %v4321 = vsub.f32 0.0, %v4184
    %v4322 = vsub.f32 0.0, %v3623
    %v4323 = vsub.f32 0.0, %v3625
    %v4324 = vsub.f32 0.0, %v3736
    %v4325 = vsub.f32 0.0, %v3738
    %v4326 = vsub.f32 0.0, %v3849
    %v4327 = vsub.f32 0.0, %v3851
    %v4328 = vsub.f32 0.0, %v3962
    %v4329 = vsub.f32 0.0, %v3964
    %v4330 = vsub.f32 0.0, %v4075
    %v4331 = vsub.f32 0.0, %v4077
    %v4332 = vsub.f32 0.0, %v4188
    %v4333 = vsub.f32 0.0, %v4190
    %v4334 = vsub.f32 0.0, %v3627
    %v4335 = vsub.f32 0.0, %v3629
    %v4336 = vsub.f32 0.0, %v3740
    %v4337 = vsub.f32 0.0, %v3742
    %v4338 = vsub.f32 0.0, %v3853
    %v4339 = vsub.f32 0.0, %v3855
    %v4340 = vsub.f32 0.0, %v3966
    %v4341 = vsub.f32 0.0, %v3968
    %v4342 = vsub.f32 0.0, %v4079
    %v4343 = vsub.f32 0.0, %v4081
    %v4344 = vsub.f32 0.0, %v4192
    %v4345 = vsub.f32 0.0, %v4194
    %v4346 = vsub.f32 0.0, %v3633
    %v4347 = vsub.f32 0.0, %v3635
    %v4348 = vsub.f32 0.0, %v3746
    %v4349 = vsub.f32 0.0, %v3748
    %v4350 = vsub.f32 0.0, %v3859
    %v4351 = vsub.f32 0.0, %v3861
    %v4352 = vsub.f32 0.0, %v3972
    %v4353 = vsub.f32 0.0, %v3974
    %v4354 = vsub.f32 0.0, %v4085
    %v4355 = vsub.f32 0.0, %v4087
    %v4356 = vsub.f32 0.0, %v4198
    %v4357 = vsub.f32 0.0, %v4200
    %v4358 = vsub.f32 0.0, %v3637
    %v4359 = vsub.f32 0.0, %v3639
    %v4360 = vsub.f32 0.0, %v3750
    %v4361 = vsub.f32 0.0, %v3752
    %v4362 = vsub.f32 0.0, %v3863
    %v4363 = vsub.f32 0.0, %v3865
    %v4364 = vsub.f32 0.0, %v3976
    %v4365 = vsub.f32 0.0, %v3978
    %v4366 = vsub.f32 0.0, %v4089
    %v4367 = vsub.f32 0.0, %v4091
    %v4368 = vsub.f32 0.0, %v4202
    %v4369 = vsub.f32 0.0, %v4204
    %v4370 = vsub.f32 0.0, %v3643
    %v4371 = vsub.f32 0.0, %v3645
    %v4372 = vsub.f32 0.0, %v3756
    %v4373 = vsub.f32 0.0, %v3758
    %v4374 = vsub.f32 0.0, %v3869
    %v4375 = vsub.f32 0.0, %v3871
    %v4376 = vsub.f32 0.0, %v3982
    %v4377 = vsub.f32 0.0, %v3984
    %v4378 = vsub.f32 0.0, %v4095
    %v4379 = vsub.f32 0.0, %v4097
    %v4380 = vsub.f32 0.0, %v4208
    %v4381 = vsub.f32 0.0, %v4210
    %v4382 = vsub.f32 0.0, %v3647
    %v4383 = vsub.f32 0.0, %v3649
    %v4384 = vsub.f32 0.0, %v3760
    %v4385 = vsub.f32 0.0, %v3762
    %v4386 = vsub.f32 0.0, %v3873
    %v4387 = vsub.f32 0.0, %v3875
    %v4388 = vsub.f32 0.0, %v3986
    %v4389 = vsub.f32 0.0, %v3988
    %v4390 = vsub.f32 0.0, %v4099
    %v4391 = vsub.f32 0.0, %v4101
    %v4392 = vsub.f32 0.0, %v4212
    %v4393 = vsub.f32 0.0, %v4214
    %v4394 = vsub.f32 0.0, %v3653
    %v4395 = vsub.f32 0.0, %v3655
    %v4396 = vsub.f32 0.0, %v3766
    %v4397 = vsub.f32 0.0, %v3768
    %v4398 = vsub.f32 0.0, %v3879
    %v4399 = vsub.f32 0.0, %v3881
    %v4400 = vsub.f32 0.0, %v3992
    %v4401 = vsub.f32 0.0, %v3994
    %v4402 = vsub.f32 0.0, %v4105
    %v4403 = vsub.f32 0.0, %v4107
    %v4404 = vsub.f32 0.0, %v4218
    %v4405 = vsub.f32 0.0, %v4220
    %v4406 = vsub.f32 0.0, %v3657
    %v4407 = vsub.f32 0.0, %v3659
    %v4408 = vsub.f32 0.0, %v3770
    %v4409 = vsub.f32 0.0, %v3772
    %v4410 = vsub.f32 0.0, %v3883
    %v4411 = vsub.f32 0.0, %v3885
    %v4412 = vsub.f32 0.0, %v3996
    %v4413 = vsub.f32 0.0, %v3998
    %v4414 = vsub.f32 0.0, %v4109
    %v4415 = vsub.f32 0.0, %v4111
    %v4416 = vsub.f32 0.0, %v4222
    %v4417 = vsub.f32 0.0, %v4224
    %v4418 = vmul.f32 %v4226, 1.442695
    %v4419 = vpow.pop %v4418
    %v4420 = vmul.f32 %v4227, 1.442695
    %v4421 = vpow.pop %v4420
    %v4422 = vmul.f32 %v4228, 1.442695
    %v4423 = vpow.pop %v4422
    %v4424 = vmul.f32 %v4229, 1.442695
    %v4425 = vpow.pop %v4424
    %v4426 = vmul.f32 %v4230, 1.442695
    %v4427 = vpow.pop %v4426
    %v4428 = vmul.f32 %v4231, 1.442695
    %v4429 = vpow.pop %v4428
    %v4430 = vmul.f32 %v4232, 1.442695
    %v4431 = vpow.pop %v4430
    %v4432 = vmul.f32 %v4233, 1.442695
    %v4433 = vpow.pop %v4432
    %v4434 = vmul.f32 %v4234, 1.442695
    %v4435 = vpow.pop %v4434
    %v4436 = vmul.f32 %v4235, 1.442695
    %v4437 = vpow.pop %v4436
    %v4438 = vmul.f32 %v4236, 1.442695
    %v4439 = vpow.pop %v4438
    %v4440 = vmul.f32 %v4237, 1.442695
    %v4441 = vpow.pop %v4440
    %v4442 = vmul.f32 %v4238, 1.442695
    %v4443 = vpow.pop %v4442
    %v4444 = vmul.f32 %v4239, 1.442695
    %v4445 = vpow.pop %v4444
    %v4446 = vmul.f32 %v4240, 1.442695
    %v4447 = vpow.pop %v4446
    %v4448 = vmul.f32 %v4241, 1.442695
    %v4449 = vpow.pop %v4448
    %v4450 = vmul.f32 %v4242, 1.442695
    %v4451 = vpow.pop %v4450
    %v4452 = vmul.f32 %v4243, 1.442695
    %v4453 = vpow.pop %v4452
    %v4454 = vmul.f32 %v4244, 1.442695
    %v4455 = vpow.pop %v4454
    %v4456 = vmul.f32 %v4245, 1.442695
    %v4457 = vpow.pop %v4456
    %v4458 = vmul.f32 %v4246, 1.442695
    %v4459 = vpow.pop %v4458
    %v4460 = vmul.f32 %v4247, 1.442695
    %v4461 = vpow.pop %v4460
    %v4462 = vmul.f32 %v4248, 1.442695
    %v4463 = vpow.pop %v4462
    %v4464 = vmul.f32 %v4249, 1.442695
    %v4465 = vpow.pop %v4464
    %v4466 = vmul.f32 %v4250, 1.442695
    %v4467 = vpow.pop %v4466
    %v4468 = vmul.f32 %v4251, 1.442695
    %v4469 = vpow.pop %v4468
    %v4470 = vmul.f32 %v4252, 1.442695
    %v4471 = vpow.pop %v4470
    %v4472 = vmul.f32 %v4253, 1.442695
    %v4473 = vpow.pop %v4472
    %v4474 = vmul.f32 %v4254, 1.442695
    %v4475 = vpow.pop %v4474
    %v4476 = vmul.f32 %v4255, 1.442695
    %v4477 = vpow.pop %v4476
    %v4478 = vmul.f32 %v4256, 1.442695
    %v4479 = vpow.pop %v4478
    %v4480 = vmul.f32 %v4257, 1.442695
    %v4481 = vpow.pop %v4480
    %v4482 = vmul.f32 %v4258, 1.442695
    %v4483 = vpow.pop %v4482
    %v4484 = vmul.f32 %v4259, 1.442695
    %v4485 = vpow.pop %v4484
    %v4486 = vmul.f32 %v4260, 1.442695
    %v4487 = vpow.pop %v4486
    %v4488 = vmul.f32 %v4261, 1.442695
    %v4489 = vpow.pop %v4488
    %v4490 = vmul.f32 %v4262, 1.442695
    %v4491 = vpow.pop %v4490
    %v4492 = vmul.f32 %v4263, 1.442695
    %v4493 = vpow.pop %v4492
    %v4494 = vmul.f32 %v4264, 1.442695
    %v4495 = vpow.pop %v4494
    %v4496 = vmul.f32 %v4265, 1.442695
    %v4497 = vpow.pop %v4496
    %v4498 = vmul.f32 %v4266, 1.442695
    %v4499 = vpow.pop %v4498
    %v4500 = vmul.f32 %v4267, 1.442695
    %v4501 = vpow.pop %v4500
    %v4502 = vmul.f32 %v4268, 1.442695
    %v4503 = vpow.pop %v4502
    %v4504 = vmul.f32 %v4269, 1.442695
    %v4505 = vpow.pop %v4504
    %v4506 = vmul.f32 %v4270, 1.442695
    %v4507 = vpow.pop %v4506
    %v4508 = vmul.f32 %v4271, 1.442695
    %v4509 = vpow.pop %v4508
    %v4510 = vmul.f32 %v4272, 1.442695
    %v4511 = vpow.pop %v4510
    %v4512 = vmul.f32 %v4273, 1.442695
    %v4513 = vpow.pop %v4512
    %v4514 = vmul.f32 %v4274, 1.442695
    %v4515 = vpow.pop %v4514
    %v4516 = vmul.f32 %v4275, 1.442695
    %v4517 = vpow.pop %v4516
    %v4518 = vmul.f32 %v4276, 1.442695
    %v4519 = vpow.pop %v4518
    %v4520 = vmul.f32 %v4277, 1.442695
    %v4521 = vpow.pop %v4520
    %v4522 = vmul.f32 %v4278, 1.442695
    %v4523 = vpow.pop %v4522
    %v4524 = vmul.f32 %v4279, 1.442695
    %v4525 = vpow.pop %v4524
    %v4526 = vmul.f32 %v4280, 1.442695
    %v4527 = vpow.pop %v4526
    %v4528 = vmul.f32 %v4281, 1.442695
    %v4529 = vpow.pop %v4528
    %v4530 = vmul.f32 %v4282, 1.442695
    %v4531 = vpow.pop %v4530
    %v4532 = vmul.f32 %v4283, 1.442695
    %v4533 = vpow.pop %v4532
    %v4534 = vmul.f32 %v4284, 1.442695
    %v4535 = vpow.pop %v4534
    %v4536 = vmul.f32 %v4285, 1.442695
    %v4537 = vpow.pop %v4536
    %v4538 = vmul.f32 %v4286, 1.442695
    %v4539 = vpow.pop %v4538
    %v4540 = vmul.f32 %v4287, 1.442695
    %v4541 = vpow.pop %v4540
    %v4542 = vmul.f32 %v4288, 1.442695
    %v4543 = vpow.pop %v4542
    %v4544 = vmul.f32 %v4289, 1.442695
    %v4545 = vpow.pop %v4544
    %v4546 = vmul.f32 %v4290, 1.442695
    %v4547 = vpow.pop %v4546
    %v4548 = vmul.f32 %v4291, 1.442695
    %v4549 = vpow.pop %v4548
    %v4550 = vmul.f32 %v4292, 1.442695
    %v4551 = vpow.pop %v4550
    %v4552 = vmul.f32 %v4293, 1.442695
    %v4553 = vpow.pop %v4552
    %v4554 = vmul.f32 %v4294, 1.442695
    %v4555 = vpow.pop %v4554
    %v4556 = vmul.f32 %v4295, 1.442695
    %v4557 = vpow.pop %v4556
    %v4558 = vmul.f32 %v4296, 1.442695
    %v4559 = vpow.pop %v4558
    %v4560 = vmul.f32 %v4297, 1.442695
    %v4561 = vpow.pop %v4560
    %v4562 = vmul.f32 %v4298, 1.442695
    %v4563 = vpow.pop %v4562
    %v4564 = vmul.f32 %v4299, 1.442695
    %v4565 = vpow.pop %v4564
    %v4566 = vmul.f32 %v4300, 1.442695
    %v4567 = vpow.pop %v4566
    %v4568 = vmul.f32 %v4301, 1.442695
    %v4569 = vpow.pop %v4568
    %v4570 = vmul.f32 %v4302, 1.442695
    %v4571 = vpow.pop %v4570
    %v4572 = vmul.f32 %v4303, 1.442695
    %v4573 = vpow.pop %v4572
    %v4574 = vmul.f32 %v4304, 1.442695
    %v4575 = vpow.pop %v4574
    %v4576 = vmul.f32 %v4305, 1.442695
    %v4577 = vpow.pop %v4576
    %v4578 = vmul.f32 %v4306, 1.442695
    %v4579 = vpow.pop %v4578
    %v4580 = vmul.f32 %v4307, 1.442695
    %v4581 = vpow.pop %v4580
    %v4582 = vmul.f32 %v4308, 1.442695
    %v4583 = vpow.pop %v4582
    %v4584 = vmul.f32 %v4309, 1.442695
    %v4585 = vpow.pop %v4584
    %v4586 = vmul.f32 %v4310, 1.442695
    %v4587 = vpow.pop %v4586
    %v4588 = vmul.f32 %v4311, 1.442695
    %v4589 = vpow.pop %v4588
    %v4590 = vmul.f32 %v4312, 1.442695
    %v4591 = vpow.pop %v4590
    %v4592 = vmul.f32 %v4313, 1.442695
    %v4593 = vpow.pop %v4592
    %v4594 = vmul.f32 %v4314, 1.442695
    %v4595 = vpow.pop %v4594
    %v4596 = vmul.f32 %v4315, 1.442695
    %v4597 = vpow.pop %v4596
    %v4598 = vmul.f32 %v4316, 1.442695
    %v4599 = vpow.pop %v4598
    %v4600 = vmul.f32 %v4317, 1.442695
    %v4601 = vpow.pop %v4600
    %v4602 = vmul.f32 %v4318, 1.442695
    %v4603 = vpow.pop %v4602
    %v4604 = vmul.f32 %v4319, 1.442695
    %v4605 = vpow.pop %v4604
    %v4606 = vmul.f32 %v4320, 1.442695
    %v4607 = vpow.pop %v4606
    %v4608 = vmul.f32 %v4321, 1.442695
    %v4609 = vpow.pop %v4608
    %v4610 = vmul.f32 %v4322, 1.442695
    %v4611 = vpow.pop %v4610
    %v4612 = vmul.f32 %v4323, 1.442695
    %v4613 = vpow.pop %v4612
    %v4614 = vmul.f32 %v4324, 1.442695
    %v4615 = vpow.pop %v4614
    %v4616 = vmul.f32 %v4325, 1.442695
    %v4617 = vpow.pop %v4616
    %v4618 = vmul.f32 %v4326, 1.442695
    %v4619 = vpow.pop %v4618
    %v4620 = vmul.f32 %v4327, 1.442695
    %v4621 = vpow.pop %v4620
    %v4622 = vmul.f32 %v4328, 1.442695
    %v4623 = vpow.pop %v4622
    %v4624 = vmul.f32 %v4329, 1.442695
    %v4625 = vpow.pop %v4624
    %v4626 = vmul.f32 %v4330, 1.442695
    %v4627 = vpow.pop %v4626
    %v4628 = vmul.f32 %v4331, 1.442695
    %v4629 = vpow.pop %v4628
    %v4630 = vmul.f32 %v4332, 1.442695
    %v4631 = vpow.pop %v4630
    %v4632 = vmul.f32 %v4333, 1.442695
    %v4633 = vpow.pop %v4632
    %v4634 = vmul.f32 %v4334, 1.442695
    %v4635 = vpow.pop %v4634
    %v4636 = vmul.f32 %v4335, 1.442695
    %v4637 = vpow.pop %v4636
    %v4638 = vmul.f32 %v4336, 1.442695
    %v4639 = vpow.pop %v4638
    %v4640 = vmul.f32 %v4337, 1.442695
    %v4641 = vpow.pop %v4640
    %v4642 = vmul.f32 %v4338, 1.442695
    %v4643 = vpow.pop %v4642
    %v4644 = vmul.f32 %v4339, 1.442695
    %v4645 = vpow.pop %v4644
    %v4646 = vmul.f32 %v4340, 1.442695
    %v4647 = vpow.pop %v4646
    %v4648 = vmul.f32 %v4341, 1.442695
    %v4649 = vpow.pop %v4648
    %v4650 = vmul.f32 %v4342, 1.442695
    %v4651 = vpow.pop %v4650
    %v4652 = vmul.f32 %v4343, 1.442695
    %v4653 = vpow.pop %v4652
    %v4654 = vmul.f32 %v4344, 1.442695
    %v4655 = vpow.pop %v4654
    %v4656 = vmul.f32 %v4345, 1.442695
    %v4657 = vpow.pop %v4656
    %v4658 = vmul.f32 %v4346, 1.442695
    %v4659 = vpow.pop %v4658
    %v4660 = vmul.f32 %v4347, 1.442695
    %v4661 = vpow.pop %v4660
    %v4662 = vmul.f32 %v4348, 1.442695
    %v4663 = vpow.pop %v4662
    %v4664 = vmul.f32 %v4349, 1.442695
    %v4665 = vpow.pop %v4664
    %v4666 = vmul.f32 %v4350, 1.442695
    %v4667 = vpow.pop %v4666
    %v4668 = vmul.f32 %v4351, 1.442695
    %v4669 = vpow.pop %v4668
    %v4670 = vmul.f32 %v4352, 1.442695
    %v4671 = vpow.pop %v4670
    %v4672 = vmul.f32 %v4353, 1.442695
    %v4673 = vpow.pop %v4672
    %v4674 = vmul.f32 %v4354, 1.442695
    %v4675 = vpow.pop %v4674
    %v4676 = vmul.f32 %v4355, 1.442695
    %v4677 = vpow.pop %v4676
    %v4678 = vmul.f32 %v4356, 1.442695
    %v4679 = vpow.pop %v4678
    %v4680 = vmul.f32 %v4357, 1.442695
    %v4681 = vpow.pop %v4680
    %v4682 = vmul.f32 %v4358, 1.442695
    %v4683 = vpow.pop %v4682
    %v4684 = vmul.f32 %v4359, 1.442695
    %v4685 = vpow.pop %v4684
    %v4686 = vmul.f32 %v4360, 1.442695
    %v4687 = vpow.pop %v4686
    %v4688 = vmul.f32 %v4361, 1.442695
    %v4689 = vpow.pop %v4688
    %v4690 = vmul.f32 %v4362, 1.442695
    %v4691 = vpow.pop %v4690
    %v4692 = vmul.f32 %v4363, 1.442695
    %v4693 = vpow.pop %v4692
    %v4694 = vmul.f32 %v4364, 1.442695
    %v4695 = vpow.pop %v4694
    %v4696 = vmul.f32 %v4365, 1.442695
    %v4697 = vpow.pop %v4696
    %v4698 = vmul.f32 %v4366, 1.442695
    %v4699 = vpow.pop %v4698
    %v4700 = vmul.f32 %v4367, 1.442695
    %v4701 = vpow.pop %v4700
    %v4702 = vmul.f32 %v4368, 1.442695
    %v4703 = vpow.pop %v4702
    %v4704 = vmul.f32 %v4369, 1.442695
    %v4705 = vpow.pop %v4704
    %v4706 = vmul.f32 %v4370, 1.442695
    %v4707 = vpow.pop %v4706
    %v4708 = vmul.f32 %v4371, 1.442695
    %v4709 = vpow.pop %v4708
    %v4710 = vmul.f32 %v4372, 1.442695
    %v4711 = vpow.pop %v4710
    %v4712 = vmul.f32 %v4373, 1.442695
    %v4713 = vpow.pop %v4712
    %v4714 = vmul.f32 %v4374, 1.442695
    %v4715 = vpow.pop %v4714
    %v4716 = vmul.f32 %v4375, 1.442695
    %v4717 = vpow.pop %v4716
    %v4718 = vmul.f32 %v4376, 1.442695
    %v4719 = vpow.pop %v4718
    %v4720 = vmul.f32 %v4377, 1.442695
    %v4721 = vpow.pop %v4720
    %v4722 = vmul.f32 %v4378, 1.442695
    %v4723 = vpow.pop %v4722
    %v4724 = vmul.f32 %v4379, 1.442695
    %v4725 = vpow.pop %v4724
    %v4726 = vmul.f32 %v4380, 1.442695
    %v4727 = vpow.pop %v4726
    %v4728 = vmul.f32 %v4381, 1.442695
    %v4729 = vpow.pop %v4728
    %v4730 = vmul.f32 %v4382, 1.442695
    %v4731 = vpow.pop %v4730
    %v4732 = vmul.f32 %v4383, 1.442695
    %v4733 = vpow.pop %v4732
    %v4734 = vmul.f32 %v4384, 1.442695
    %v4735 = vpow.pop %v4734
    %v4736 = vmul.f32 %v4385, 1.442695
    %v4737 = vpow.pop %v4736
    %v4738 = vmul.f32 %v4386, 1.442695
    %v4739 = vpow.pop %v4738
    %v4740 = vmul.f32 %v4387, 1.442695
    %v4741 = vpow.pop %v4740
    %v4742 = vmul.f32 %v4388, 1.442695
    %v4743 = vpow.pop %v4742
    %v4744 = vmul.f32 %v4389, 1.442695
    %v4745 = vpow.pop %v4744
    %v4746 = vmul.f32 %v4390, 1.442695
    %v4747 = vpow.pop %v4746
    %v4748 = vmul.f32 %v4391, 1.442695
    %v4749 = vpow.pop %v4748
    %v4750 = vmul.f32 %v4392, 1.442695
    %v4751 = vpow.pop %v4750
    %v4752 = vmul.f32 %v4393, 1.442695
    %v4753 = vpow.pop %v4752
    %v4754 = vmul.f32 %v4394, 1.442695
    %v4755 = vpow.pop %v4754
    %v4756 = vmul.f32 %v4395, 1.442695
    %v4757 = vpow.pop %v4756
    %v4758 = vmul.f32 %v4396, 1.442695
    %v4759 = vpow.pop %v4758
    %v4760 = vmul.f32 %v4397, 1.442695
    %v4761 = vpow.pop %v4760
    %v4762 = vmul.f32 %v4398, 1.442695
    %v4763 = vpow.pop %v4762
    %v4764 = vmul.f32 %v4399, 1.442695
    %v4765 = vpow.pop %v4764
    %v4766 = vmul.f32 %v4400, 1.442695
    %v4767 = vpow.pop %v4766
    %v4768 = vmul.f32 %v4401, 1.442695
    %v4769 = vpow.pop %v4768
    %v4770 = vmul.f32 %v4402, 1.442695
    %v4771 = vpow.pop %v4770
    %v4772 = vmul.f32 %v4403, 1.442695
    %v4773 = vpow.pop %v4772
    %v4774 = vmul.f32 %v4404, 1.442695
    %v4775 = vpow.pop %v4774
    %v4776 = vmul.f32 %v4405, 1.442695
    %v4777 = vpow.pop %v4776
    %v4778 = vmul.f32 %v4406, 1.442695
    %v4779 = vpow.pop %v4778
    %v4780 = vmul.f32 %v4407, 1.442695
    %v4781 = vpow.pop %v4780
    %v4782 = vmul.f32 %v4408, 1.442695
    %v4783 = vpow.pop %v4782
    %v4784 = vmul.f32 %v4409, 1.442695
    %v4785 = vpow.pop %v4784
    %v4786 = vmul.f32 %v4410, 1.442695
    %v4787 = vpow.pop %v4786
    %v4788 = vmul.f32 %v4411, 1.442695
    %v4789 = vpow.pop %v4788
    %v4790 = vmul.f32 %v4412, 1.442695
    %v4791 = vpow.pop %v4790
    %v4792 = vmul.f32 %v4413, 1.442695
    %v4793 = vpow.pop %v4792
    %v4794 = vmul.f32 %v4414, 1.442695
    %v4795 = vpow.pop %v4794
    %v4796 = vmul.f32 %v4415, 1.442695
    %v4797 = vpow.pop %v4796
    %v4798 = vmul.f32 %v4416, 1.442695
    %v4799 = vpow.pop %v4798
    %v4800 = vmul.f32 %v4417, 1.442695
    %v4801 = vpow.pop %v4800
    %v4802 = vadd.f32 %v4419, 1.0
    %v4803 = vadd.f32 %v4421, 1.0
    %v4804 = vadd.f32 %v4423, 1.0
    %v4805 = vadd.f32 %v4425, 1.0
    %v4806 = vadd.f32 %v4427, 1.0
    %v4807 = vadd.f32 %v4429, 1.0
    %v4808 = vadd.f32 %v4431, 1.0
    %v4809 = vadd.f32 %v4433, 1.0
    %v4810 = vadd.f32 %v4435, 1.0
    %v4811 = vadd.f32 %v4437, 1.0
    %v4812 = vadd.f32 %v4439, 1.0
    %v4813 = vadd.f32 %v4441, 1.0
    %v4814 = vadd.f32 %v4443, 1.0
    %v4815 = vadd.f32 %v4445, 1.0
    %v4816 = vadd.f32 %v4447, 1.0
    %v4817 = vadd.f32 %v4449, 1.0
    %v4818 = vadd.f32 %v4451, 1.0
    %v4819 = vadd.f32 %v4453, 1.0
    %v4820 = vadd.f32 %v4455, 1.0
    %v4821 = vadd.f32 %v4457, 1.0
    %v4822 = vadd.f32 %v4459, 1.0
    %v4823 = vadd.f32 %v4461, 1.0
    %v4824 = vadd.f32 %v4463, 1.0
    %v4825 = vadd.f32 %v4465, 1.0
    %v4826 = vadd.f32 %v4467, 1.0
    %v4827 = vadd.f32 %v4469, 1.0
    %v4828 = vadd.f32 %v4471, 1.0
    %v4829 = vadd.f32 %v4473, 1.0
    %v4830 = vadd.f32 %v4475, 1.0
    %v4831 = vadd.f32 %v4477, 1.0
    %v4832 = vadd.f32 %v4479, 1.0
    %v4833 = vadd.f32 %v4481, 1.0
    %v4834 = vadd.f32 %v4483, 1.0
    %v4835 = vadd.f32 %v4485, 1.0
    %v4836 = vadd.f32 %v4487, 1.0
    %v4837 = vadd.f32 %v4489, 1.0
    %v4838 = vadd.f32 %v4491, 1.0
    %v4839 = vadd.f32 %v4493, 1.0
    %v4840 = vadd.f32 %v4495, 1.0
    %v4841 = vadd.f32 %v4497, 1.0
    %v4842 = vadd.f32 %v4499, 1.0
    %v4843 = vadd.f32 %v4501, 1.0
    %v4844 = vadd.f32 %v4503, 1.0
    %v4845 = vadd.f32 %v4505, 1.0
    %v4846 = vadd.f32 %v4507, 1.0
    %v4847 = vadd.f32 %v4509, 1.0
    %v4848 = vadd.f32 %v4511, 1.0
    %v4849 = vadd.f32 %v4513, 1.0
    %v4850 = vadd.f32 %v4515, 1.0
    %v4851 = vadd.f32 %v4517, 1.0
    %v4852 = vadd.f32 %v4519, 1.0
    %v4853 = vadd.f32 %v4521, 1.0
    %v4854 = vadd.f32 %v4523, 1.0
    %v4855 = vadd.f32 %v4525, 1.0
    %v4856 = vadd.f32 %v4527, 1.0
    %v4857 = vadd.f32 %v4529, 1.0
    %v4858 = vadd.f32 %v4531, 1.0
    %v4859 = vadd.f32 %v4533, 1.0
    %v4860 = vadd.f32 %v4535, 1.0
    %v4861 = vadd.f32 %v4537, 1.0
    %v4862 = vadd.f32 %v4539, 1.0
    %v4863 = vadd.f32 %v4541, 1.0
    %v4864 = vadd.f32 %v4543, 1.0
    %v4865 = vadd.f32 %v4545, 1.0
    %v4866 = vadd.f32 %v4547, 1.0
    %v4867 = vadd.f32 %v4549, 1.0
    %v4868 = vadd.f32 %v4551, 1.0
    %v4869 = vadd.f32 %v4553, 1.0
    %v4870 = vadd.f32 %v4555, 1.0
    %v4871 = vadd.f32 %v4557, 1.0
    %v4872 = vadd.f32 %v4559, 1.0
    %v4873 = vadd.f32 %v4561, 1.0
    %v4874 = vadd.f32 %v4563, 1.0
    %v4875 = vadd.f32 %v4565, 1.0
    %v4876 = vadd.f32 %v4567, 1.0
    %v4877 = vadd.f32 %v4569, 1.0
    %v4878 = vadd.f32 %v4571, 1.0
    %v4879 = vadd.f32 %v4573, 1.0
    %v4880 = vadd.f32 %v4575, 1.0
    %v4881 = vadd.f32 %v4577, 1.0
    %v4882 = vadd.f32 %v4579, 1.0
    %v4883 = vadd.f32 %v4581, 1.0
    %v4884 = vadd.f32 %v4583, 1.0
    %v4885 = vadd.f32 %v4585, 1.0
    %v4886 = vadd.f32 %v4587, 1.0
    %v4887 = vadd.f32 %v4589, 1.0
    %v4888 = vadd.f32 %v4591, 1.0
    %v4889 = vadd.f32 %v4593, 1.0
    %v4890 = vadd.f32 %v4595, 1.0
    %v4891 = vadd.f32 %v4597, 1.0
    %v4892 = vadd.f32 %v4599, 1.0
    %v4893 = vadd.f32 %v4601, 1.0
    %v4894 = vadd.f32 %v4603, 1.0
    %v4895 = vadd.f32 %v4605, 1.0
    %v4896 = vadd.f32 %v4607, 1.0
    %v4897 = vadd.f32 %v4609, 1.0
    %v4898 = vadd.f32 %v4611, 1.0
    %v4899 = vadd.f32 %v4613, 1.0
    %v4900 = vadd.f32 %v4615, 1.0
    %v4901 = vadd.f32 %v4617, 1.0
    %v4902 = vadd.f32 %v4619, 1.0
    %v4903 = vadd.f32 %v4621, 1.0
    %v4904 = vadd.f32 %v4623, 1.0
    %v4905 = vadd.f32 %v4625, 1.0
    %v4906 = vadd.f32 %v4627, 1.0
    %v4907 = vadd.f32 %v4629, 1.0
    %v4908 = vadd.f32 %v4631, 1.0
    %v4909 = vadd.f32 %v4633, 1.0
    %v4910 = vadd.f32 %v4635, 1.0
    %v4911 = vadd.f32 %v4637, 1.0
    %v4912 = vadd.f32 %v4639, 1.0
    %v4913 = vadd.f32 %v4641, 1.0
    %v4914 = vadd.f32 %v4643, 1.0
    %v4915 = vadd.f32 %v4645, 1.0
    %v4916 = vadd.f32 %v4647, 1.0
    %v4917 = vadd.f32 %v4649, 1.0
    %v4918 = vadd.f32 %v4651, 1.0
    %v4919 = vadd.f32 %v4653, 1.0
    %v4920 = vadd.f32 %v4655, 1.0
    %v4921 = vadd.f32 %v4657, 1.0
    %v4922 = vadd.f32 %v4659, 1.0
    %v4923 = vadd.f32 %v4661, 1.0
    %v4924 = vadd.f32 %v4663, 1.0
    %v4925 = vadd.f32 %v4665, 1.0
    %v4926 = vadd.f32 %v4667, 1.0
    %v4927 = vadd.f32 %v4669, 1.0
    %v4928 = vadd.f32 %v4671, 1.0
    %v4929 = vadd.f32 %v4673, 1.0
    %v4930 = vadd.f32 %v4675, 1.0
    %v4931 = vadd.f32 %v4677, 1.0
    %v4932 = vadd.f32 %v4679, 1.0
    %v4933 = vadd.f32 %v4681, 1.0
    %v4934 = vadd.f32 %v4683, 1.0
    %v4935 = vadd.f32 %v4685, 1.0
    %v4936 = vadd.f32 %v4687, 1.0
    %v4937 = vadd.f32 %v4689, 1.0
    %v4938 = vadd.f32 %v4691, 1.0
    %v4939 = vadd.f32 %v4693, 1.0
    %v4940 = vadd.f32 %v4695, 1.0
    %v4941 = vadd.f32 %v4697, 1.0
    %v4942 = vadd.f32 %v4699, 1.0
    %v4943 = vadd.f32 %v4701, 1.0
    %v4944 = vadd.f32 %v4703, 1.0
    %v4945 = vadd.f32 %v4705, 1.0
    %v4946 = vadd.f32 %v4707, 1.0
    %v4947 = vadd.f32 %v4709, 1.0
    %v4948 = vadd.f32 %v4711, 1.0
    %v4949 = vadd.f32 %v4713, 1.0
    %v4950 = vadd.f32 %v4715, 1.0
    %v4951 = vadd.f32 %v4717, 1.0
    %v4952 = vadd.f32 %v4719, 1.0
    %v4953 = vadd.f32 %v4721, 1.0
    %v4954 = vadd.f32 %v4723, 1.0
    %v4955 = vadd.f32 %v4725, 1.0
    %v4956 = vadd.f32 %v4727, 1.0
    %v4957 = vadd.f32 %v4729, 1.0
    %v4958 = vadd.f32 %v4731, 1.0
    %v4959 = vadd.f32 %v4733, 1.0
    %v4960 = vadd.f32 %v4735, 1.0
    %v4961 = vadd.f32 %v4737, 1.0
    %v4962 = vadd.f32 %v4739, 1.0
    %v4963 = vadd.f32 %v4741, 1.0
    %v4964 = vadd.f32 %v4743, 1.0
    %v4965 = vadd.f32 %v4745, 1.0
    %v4966 = vadd.f32 %v4747, 1.0
    %v4967 = vadd.f32 %v4749, 1.0
    %v4968 = vadd.f32 %v4751, 1.0
    %v4969 = vadd.f32 %v4753, 1.0
    %v4970 = vadd.f32 %v4755, 1.0
    %v4971 = vadd.f32 %v4757, 1.0
    %v4972 = vadd.f32 %v4759, 1.0
    %v4973 = vadd.f32 %v4761, 1.0
    %v4974 = vadd.f32 %v4763, 1.0
    %v4975 = vadd.f32 %v4765, 1.0
    %v4976 = vadd.f32 %v4767, 1.0
    %v4977 = vadd.f32 %v4769, 1.0
    %v4978 = vadd.f32 %v4771, 1.0
    %v4979 = vadd.f32 %v4773, 1.0
    %v4980 = vadd.f32 %v4775, 1.0
    %v4981 = vadd.f32 %v4777, 1.0
    %v4982 = vadd.f32 %v4779, 1.0
    %v4983 = vadd.f32 %v4781, 1.0
    %v4984 = vadd.f32 %v4783, 1.0
    %v4985 = vadd.f32 %v4785, 1.0
    %v4986 = vadd.f32 %v4787, 1.0
    %v4987 = vadd.f32 %v4789, 1.0
    %v4988 = vadd.f32 %v4791, 1.0
    %v4989 = vadd.f32 %v4793, 1.0
    %v4990 = vadd.f32 %v4795, 1.0
    %v4991 = vadd.f32 %v4797, 1.0
    %v4992 = vadd.f32 %v4799, 1.0
    %v4993 = vadd.f32 %v4801, 1.0
    %v4994 = vrcp.pop %v4802
    %v4995 = vrcp.pop %v4803
    %v4996 = vrcp.pop %v4804
    %v4997 = vrcp.pop %v4805
    %v4998 = vrcp.pop %v4806
    %v4999 = vrcp.pop %v4807
    %v5000 = vrcp.pop %v4808
    %v5001 = vrcp.pop %v4809
    %v5002 = vrcp.pop %v4810
    %v5003 = vrcp.pop %v4811
    %v5004 = vrcp.pop %v4812
    %v5005 = vrcp.pop %v4813
    %v5006 = vrcp.pop %v4814
    %v5007 = vrcp.pop %v4815
    %v5008 = vrcp.pop %v4816
    %v5009 = vrcp.pop %v4817
    %v5010 = vrcp.pop %v4818
    %v5011 = vrcp.pop %v4819
    %v5012 = vrcp.pop %v4820
    %v5013 = vrcp.pop %v4821
    %v5014 = vrcp.pop %v4822
    %v5015 = vrcp.pop %v4823
    %v5016 = vrcp.pop %v4824
    %v5017 = vrcp.pop %v4825
    %v5018 = vrcp.pop %v4826
    %v5019 = vrcp.pop %v4827
    %v5020 = vrcp.pop %v4828
    %v5021 = vrcp.pop %v4829
    %v5022 = vrcp.pop %v4830
    %v5023 = vrcp.pop %v4831
    %v5024 = vrcp.pop %v4832
    %v5025 = vrcp.pop %v4833
    %v5026 = vrcp.pop %v4834
    %v5027 = vrcp.pop %v4835
    %v5028 = vrcp.pop %v4836
    %v5029 = vrcp.pop %v4837
    %v5030 = vrcp.pop %v4838
    %v5031 = vrcp.pop %v4839
    %v5032 = vrcp.pop %v4840
    %v5033 = vrcp.pop %v4841
    %v5034 = vrcp.pop %v4842
    %v5035 = vrcp.pop %v4843
    %v5036 = vrcp.pop %v4844
    %v5037 = vrcp.pop %v4845
    %v5038 = vrcp.pop %v4846
    %v5039 = vrcp.pop %v4847
    %v5040 = vrcp.pop %v4848
    %v5041 = vrcp.pop %v4849
    %v5042 = vrcp.pop %v4850
    %v5043 = vrcp.pop %v4851
    %v5044 = vrcp.pop %v4852
    %v5045 = vrcp.pop %v4853
    %v5046 = vrcp.pop %v4854
    %v5047 = vrcp.pop %v4855
    %v5048 = vrcp.pop %v4856
    %v5049 = vrcp.pop %v4857
    %v5050 = vrcp.pop %v4858
    %v5051 = vrcp.pop %v4859
    %v5052 = vrcp.pop %v4860
    %v5053 = vrcp.pop %v4861
    %v5054 = vrcp.pop %v4862
    %v5055 = vrcp.pop %v4863
    %v5056 = vrcp.pop %v4864
    %v5057 = vrcp.pop %v4865
    %v5058 = vrcp.pop %v4866
    %v5059 = vrcp.pop %v4867
    %v5060 = vrcp.pop %v4868
    %v5061 = vrcp.pop %v4869
    %v5062 = vrcp.pop %v4870
    %v5063 = vrcp.pop %v4871
    %v5064 = vrcp.pop %v4872
    %v5065 = vrcp.pop %v4873
    %v5066 = vrcp.pop %v4874
    %v5067 = vrcp.pop %v4875
    %v5068 = vrcp.pop %v4876
    %v5069 = vrcp.pop %v4877
    %v5070 = vrcp.pop %v4878
    %v5071 = vrcp.pop %v4879
    %v5072 = vrcp.pop %v4880
    %v5073 = vrcp.pop %v4881
    %v5074 = vrcp.pop %v4882
    %v5075 = vrcp.pop %v4883
    %v5076 = vrcp.pop %v4884
    %v5077 = vrcp.pop %v4885
    %v5078 = vrcp.pop %v4886
    %v5079 = vrcp.pop %v4887
    %v5080 = vrcp.pop %v4888
    %v5081 = vrcp.pop %v4889
    %v5082 = vrcp.pop %v4890
    %v5083 = vrcp.pop %v4891
    %v5084 = vrcp.pop %v4892
    %v5085 = vrcp.pop %v4893
    %v5086 = vrcp.pop %v4894
    %v5087 = vrcp.pop %v4895
    %v5088 = vrcp.pop %v4896
    %v5089 = vrcp.pop %v4897
    %v5090 = vrcp.pop %v4898
    %v5091 = vrcp.pop %v4899
    %v5092 = vrcp.pop %v4900
    %v5093 = vrcp.pop %v4901
    %v5094 = vrcp.pop %v4902
    %v5095 = vrcp.pop %v4903
    %v5096 = vrcp.pop %v4904
    %v5097 = vrcp.pop %v4905
    %v5098 = vrcp.pop %v4906
    %v5099 = vrcp.pop %v4907
    %v5100 = vrcp.pop %v4908
    %v5101 = vrcp.pop %v4909
    %v5102 = vrcp.pop %v4910
    %v5103 = vrcp.pop %v4911
    %v5104 = vrcp.pop %v4912
    %v5105 = vrcp.pop %v4913
    %v5106 = vrcp.pop %v4914
    %v5107 = vrcp.pop %v4915
    %v5108 = vrcp.pop %v4916
    %v5109 = vrcp.pop %v4917
    %v5110 = vrcp.pop %v4918
    %v5111 = vrcp.pop %v4919
    %v5112 = vrcp.pop %v4920
    %v5113 = vrcp.pop %v4921
    %v5114 = vrcp.pop %v4922
    %v5115 = vrcp.pop %v4923
    %v5116 = vrcp.pop %v4924
    %v5117 = vrcp.pop %v4925
    %v5118 = vrcp.pop %v4926
    %v5119 = vrcp.pop %v4927
    %v5120 = vrcp.pop %v4928
    %v5121 = vrcp.pop %v4929
    %v5122 = vrcp.pop %v4930
    %v5123 = vrcp.pop %v4931
    %v5124 = vrcp.pop %v4932
    %v5125 = vrcp.pop %v4933
    %v5126 = vrcp.pop %v4934
    %v5127 = vrcp.pop %v4935
    %v5128 = vrcp.pop %v4936
    %v5129 = vrcp.pop %v4937
    %v5130 = vrcp.pop %v4938
    %v5131 = vrcp.pop %v4939
    %v5132 = vrcp.pop %v4940
    %v5133 = vrcp.pop %v4941
    %v5134 = vrcp.pop %v4942
    %v5135 = vrcp.pop %v4943
    %v5136 = vrcp.pop %v4944
    %v5137 = vrcp.pop %v4945
    %v5138 = vrcp.pop %v4946
    %v5139 = vrcp.pop %v4947
    %v5140 = vrcp.pop %v4948
    %v5141 = vrcp.pop %v4949
    %v5142 = vrcp.pop %v4950
    %v5143 = vrcp.pop %v4951
    %v5144 = vrcp.pop %v4952
    %v5145 = vrcp.pop %v4953
    %v5146 = vrcp.pop %v4954
    %v5147 = vrcp.pop %v4955
    %v5148 = vrcp.pop %v4956
    %v5149 = vrcp.pop %v4957
    %v5150 = vrcp.pop %v4958
    %v5151 = vrcp.pop %v4959
    %v5152 = vrcp.pop %v4960
    %v5153 = vrcp.pop %v4961
    %v5154 = vrcp.pop %v4962
    %v5155 = vrcp.pop %v4963
    %v5156 = vrcp.pop %v4964
    %v5157 = vrcp.pop %v4965
    %v5158 = vrcp.pop %v4966
    %v5159 = vrcp.pop %v4967
    %v5160 = vrcp.pop %v4968
    %v5161 = vrcp.pop %v4969
    %v5162 = vrcp.pop %v4970
    %v5163 = vrcp.pop %v4971
    %v5164 = vrcp.pop %v4972
    %v5165 = vrcp.pop %v4973
    %v5166 = vrcp.pop %v4974
    %v5167 = vrcp.pop %v4975
    %v5168 = vrcp.pop %v4976
    %v5169 = vrcp.pop %v4977
    %v5170 = vrcp.pop %v4978
    %v5171 = vrcp.pop %v4979
    %v5172 = vrcp.pop %v4980
    %v5173 = vrcp.pop %v4981
    %v5174 = vrcp.pop %v4982
    %v5175 = vrcp.pop %v4983
    %v5176 = vrcp.pop %v4984
    %v5177 = vrcp.pop %v4985
    %v5178 = vrcp.pop %v4986
    %v5179 = vrcp.pop %v4987
    %v5180 = vrcp.pop %v4988
    %v5181 = vrcp.pop %v4989
    %v5182 = vrcp.pop %v4990
    %v5183 = vrcp.pop %v4991
    %v5184 = vrcp.pop %v4992
    %v5185 = vrcp.pop %v4993
    %v5186 = vmul.f32 %v3583, %v4994
    %v5187 = vmul.f32 %v3585, %v4995
    %v5188 = vmul.f32 %v3696, %v4996
    %v5189 = vmul.f32 %v3698, %v4997
    %v5190 = vmul.f32 %v3809, %v4998
    %v5191 = vmul.f32 %v3811, %v4999
    %v5192 = vmul.f32 %v3922, %v5000
    %v5193 = vmul.f32 %v3924, %v5001
    %v5194 = vmul.f32 %v4035, %v5002
    %v5195 = vmul.f32 %v4037, %v5003
    %v5196 = vmul.f32 %v4148, %v5004
    %v5197 = vmul.f32 %v4150, %v5005
    %v5198 = vmul.f32 %v3587, %v5006
    %v5199 = vmul.f32 %v3589, %v5007
    %v5200 = vmul.f32 %v3700, %v5008
    %v5201 = vmul.f32 %v3702, %v5009
    %v5202 = vmul.f32 %v3813, %v5010
    %v5203 = vmul.f32 %v3815, %v5011
    %v5204 = vmul.f32 %v3926, %v5012
    %v5205 = vmul.f32 %v3928, %v5013
    %v5206 = vmul.f32 %v4039, %v5014
    %v5207 = vmul.f32 %v4041, %v5015
    %v5208 = vmul.f32 %v4152, %v5016
    %v5209 = vmul.f32 %v4154, %v5017
    %v5210 = vmul.f32 %v3593, %v5018
    %v5211 = vmul.f32 %v3595, %v5019
    %v5212 = vmul.f32 %v3706, %v5020
    %v5213 = vmul.f32 %v3708, %v5021
    %v5214 = vmul.f32 %v3819, %v5022
    %v5215 = vmul.f32 %v3821, %v5023
    %v5216 = vmul.f32 %v3932, %v5024
    %v5217 = vmul.f32 %v3934, %v5025
    %v5218 = vmul.f32 %v4045, %v5026
    %v5219 = vmul.f32 %v4047, %v5027
    %v5220 = vmul.f32 %v4158, %v5028
    %v5221 = vmul.f32 %v4160, %v5029
    %v5222 = vmul.f32 %v3597, %v5030
    %v5223 = vmul.f32 %v3599, %v5031
    %v5224 = vmul.f32 %v3710, %v5032
    %v5225 = vmul.f32 %v3712, %v5033
    %v5226 = vmul.f32 %v3823, %v5034
    %v5227 = vmul.f32 %v3825, %v5035
    %v5228 = vmul.f32 %v3936, %v5036
    %v5229 = vmul.f32 %v3938, %v5037
    %v5230 = vmul.f32 %v4049, %v5038
    %v5231 = vmul.f32 %v4051, %v5039
    %v5232 = vmul.f32 %v4162, %v5040
    %v5233 = vmul.f32 %v4164, %v5041
    %v5234 = vmul.f32 %v3603, %v5042
    %v5235 = vmul.f32 %v3605, %v5043
    %v5236 = vmul.f32 %v3716, %v5044
    %v5237 = vmul.f32 %v3718, %v5045
    %v5238 = vmul.f32 %v3829, %v5046
    %v5239 = vmul.f32 %v3831, %v5047
    %v5240 = vmul.f32 %v3942, %v5048
    %v5241 = vmul.f32 %v3944, %v5049
    %v5242 = vmul.f32 %v4055, %v5050
    %v5243 = vmul.f32 %v4057, %v5051
    %v5244 = vmul.f32 %v4168, %v5052
    %v5245 = vmul.f32 %v4170, %v5053
    %v5246 = vmul.f32 %v3607, %v5054
    %v5247 = vmul.f32 %v3609, %v5055
    %v5248 = vmul.f32 %v3720, %v5056
    %v5249 = vmul.f32 %v3722, %v5057
    %v5250 = vmul.f32 %v3833, %v5058
    %v5251 = vmul.f32 %v3835, %v5059
    %v5252 = vmul.f32 %v3946, %v5060
    %v5253 = vmul.f32 %v3948, %v5061
    %v5254 = vmul.f32 %v4059, %v5062
    %v5255 = vmul.f32 %v4061, %v5063
    %v5256 = vmul.f32 %v4172, %v5064
    %v5257 = vmul.f32 %v4174, %v5065
    %v5258 = vmul.f32 %v3613, %v5066
    %v5259 = vmul.f32 %v3615, %v5067
    %v5260 = vmul.f32 %v3726, %v5068
    %v5261 = vmul.f32 %v3728, %v5069
    %v5262 = vmul.f32 %v3839, %v5070
    %v5263 = vmul.f32 %v3841, %v5071
    %v5264 = vmul.f32 %v3952, %v5072
    %v5265 = vmul.f32 %v3954, %v5073
    %v5266 = vmul.f32 %v4065, %v5074
    %v5267 = vmul.f32 %v4067, %v5075
    %v5268 = vmul.f32 %v4178, %v5076
    %v5269 = vmul.f32 %v4180, %v5077
    %v5270 = vmul.f32 %v3617, %v5078
    %v5271 = vmul.f32 %v3619, %v5079
    %v5272 = vmul.f32 %v3730, %v5080
    %v5273 = vmul.f32 %v3732, %v5081
    %v5274 = vmul.f32 %v3843, %v5082
    %v5275 = vmul.f32 %v3845, %v5083
    %v5276 = vmul.f32 %v3956, %v5084
    %v5277 = vmul.f32 %v3958, %v5085
    %v5278 = vmul.f32 %v4069, %v5086
    %v5279 = vmul.f32 %v4071, %v5087
    %v5280 = vmul.f32 %v4182, %v5088
    %v5281 = vmul.f32 %v4184, %v5089
    %v5282 = vmul.f32 %v3623, %v5090
    %v5283 = vmul.f32 %v3625, %v5091
    %v5284 = vmul.f32 %v3736, %v5092
    %v5285 = vmul.f32 %v3738, %v5093
    %v5286 = vmul.f32 %v3849, %v5094
    %v5287 = vmul.f32 %v3851, %v5095
    %v5288 = vmul.f32 %v3962, %v5096
    %v5289 = vmul.f32 %v3964, %v5097
    %v5290 = vmul.f32 %v4075, %v5098
    %v5291 = vmul.f32 %v4077, %v5099
    %v5292 = vmul.f32 %v4188, %v5100
    %v5293 = vmul.f32 %v4190, %v5101
    %v5294 = vmul.f32 %v3627, %v5102
    %v5295 = vmul.f32 %v3629, %v5103
    %v5296 = vmul.f32 %v3740, %v5104
    %v5297 = vmul.f32 %v3742, %v5105
    %v5298 = vmul.f32 %v3853, %v5106
    %v5299 = vmul.f32 %v3855, %v5107
    %v5300 = vmul.f32 %v3966, %v5108
    %v5301 = vmul.f32 %v3968, %v5109
    %v5302 = vmul.f32 %v4079, %v5110
    %v5303 = vmul.f32 %v4081, %v5111
    %v5304 = vmul.f32 %v4192, %v5112
    %v5305 = vmul.f32 %v4194, %v5113
    %v5306 = vmul.f32 %v3633, %v5114
    %v5307 = vmul.f32 %v3635, %v5115
    %v5308 = vmul.f32 %v3746, %v5116
    %v5309 = vmul.f32 %v3748, %v5117
    %v5310 = vmul.f32 %v3859, %v5118
    %v5311 = vmul.f32 %v3861, %v5119
    %v5312 = vmul.f32 %v3972, %v5120
    %v5313 = vmul.f32 %v3974, %v5121
    %v5314 = vmul.f32 %v4085, %v5122
    %v5315 = vmul.f32 %v4087, %v5123
    %v5316 = vmul.f32 %v4198, %v5124
    %v5317 = vmul.f32 %v4200, %v5125
    %v5318 = vmul.f32 %v3637, %v5126
    %v5319 = vmul.f32 %v3639, %v5127
    %v5320 = vmul.f32 %v3750, %v5128
    %v5321 = vmul.f32 %v3752, %v5129
    %v5322 = vmul.f32 %v3863, %v5130
    %v5323 = vmul.f32 %v3865, %v5131
    %v5324 = vmul.f32 %v3976, %v5132
    %v5325 = vmul.f32 %v3978, %v5133
    %v5326 = vmul.f32 %v4089, %v5134
    %v5327 = vmul.f32 %v4091, %v5135
    %v5328 = vmul.f32 %v4202, %v5136
    %v5329 = vmul.f32 %v4204, %v5137
    %v5330 = vmul.f32 %v3643, %v5138
    %v5331 = vmul.f32 %v3645, %v5139
    %v5332 = vmul.f32 %v3756, %v5140
    %v5333 = vmul.f32 %v3758, %v5141
    %v5334 = vmul.f32 %v3869, %v5142
    %v5335 = vmul.f32 %v3871, %v5143
    %v5336 = vmul.f32 %v3982, %v5144
    %v5337 = vmul.f32 %v3984, %v5145
    %v5338 = vmul.f32 %v4095, %v5146
    %v5339 = vmul.f32 %v4097, %v5147
    %v5340 = vmul.f32 %v4208, %v5148
    %v5341 = vmul.f32 %v4210, %v5149
    %v5342 = vmul.f32 %v3647, %v5150
    %v5343 = vmul.f32 %v3649, %v5151
    %v5344 = vmul.f32 %v3760, %v5152
    %v5345 = vmul.f32 %v3762, %v5153
    %v5346 = vmul.f32 %v3873, %v5154
    %v5347 = vmul.f32 %v3875, %v5155
    %v5348 = vmul.f32 %v3986, %v5156
    %v5349 = vmul.f32 %v3988, %v5157
    %v5350 = vmul.f32 %v4099, %v5158
    %v5351 = vmul.f32 %v4101, %v5159
    %v5352 = vmul.f32 %v4212, %v5160
    %v5353 = vmul.f32 %v4214, %v5161
    %v5354 = vmul.f32 %v3653, %v5162
    %v5355 = vmul.f32 %v3655, %v5163
    %v5356 = vmul.f32 %v3766, %v5164
    %v5357 = vmul.f32 %v3768, %v5165
    %v5358 = vmul.f32 %v3879, %v5166
    %v5359 = vmul.f32 %v3881, %v5167
    %v5360 = vmul.f32 %v3992, %v5168
    %v5361 = vmul.f32 %v3994, %v5169
    %v5362 = vmul.f32 %v4105, %v5170
    %v5363 = vmul.f32 %v4107, %v5171
    %v5364 = vmul.f32 %v4218, %v5172
    %v5365 = vmul.f32 %v4220, %v5173
    %v5366 = vmul.f32 %v3657, %v5174
    %v5367 = vmul.f32 %v3659, %v5175
    %v5368 = vmul.f32 %v3770, %v5176
    %v5369 = vmul.f32 %v3772, %v5177
    %v5370 = vmul.f32 %v3883, %v5178
    %v5371 = vmul.f32 %v3885, %v5179
    %v5372 = vmul.f32 %v3996, %v5180
    %v5373 = vmul.f32 %v3998, %v5181
    %v5374 = vmul.f32 %v4109, %v5182
    %v5375 = vmul.f32 %v4111, %v5183
    %v5376 = vmul.f32 %v4222, %v5184
    %v5377 = vmul.f32 %v4224, %v5185
    %v5378 = vld [vmem:[%s2] sm:$0x3]
    %5379 = vmatprep.subr.mxu0 %v5187
    %5380 = vmatpush1.msra.mxu0 %v5186
    %5381 = vmatprep.subr.mxu0 %v5199
    %5382 = vmatpush1.msra.mxu0 %v5198
    %5383 = vmatprep.subr.mxu0 %v5211
    %5384 = vmatpush1.msra.mxu0 %v5210
    %5385 = vmatprep.subr.mxu0 %v5223
    %5386 = vmatpush1.msra.mxu0 %v5222
    %5387 = vmatprep.subr.mxu0 %v5235
    %5388 = vmatpush1.msra.mxu0 %v5234
    %5389 = vmatprep.subr.mxu0 %v5247
    %5390 = vmatpush1.msra.mxu0 %v5246
    %5391 = vmatprep.subr.mxu0 %v5259
    %5392 = vmatpush1.msra.mxu0 %v5258
    %5393 = vmatprep.subr.mxu0 %v5271
    %5394 = vmatpush1.msra.mxu0 %v5270
    %5395 = vmatprep.subr.mxu0 %v5283
    %5396 = vmatpush1.msra.mxu0 %v5282
    %5397 = vmatprep.subr.mxu0 %v5295
    %5398 = vmatpush1.msra.mxu0 %v5294
    %5399 = vmatprep.subr.mxu0 %v5307
    %5400 = vmatpush1.msra.mxu0 %v5306
    %5401 = vmatprep.subr.mxu0 %v5319
    %5402 = vmatpush1.msra.mxu0 %v5318
    %5403 = vmatprep.subr.mxu0 %v5331
    %5404 = vmatpush1.msra.mxu0 %v5330
    %5405 = vmatprep.subr.mxu0 %v5343
    %5406 = vmatpush1.msra.mxu0 %v5342
    %5407 = vmatprep.subr.mxu0 %v5355
    %5408 = vmatpush1.msra.mxu0 %v5354
    %5409 = vmatprep.subr.mxu0 %v5367
    %5410 = vmatpush1.msra.mxu0 %v5366
    %5411 = vmatprep.subr.mxu0 0.0
    %5412 = vmatpush1.msra.mxu0 0.0
    %5413 = vmatprep.subr.mxu0 0.0
    %5414 = vmatpush1.msra.mxu0 0.0
    %5415 = vmatprep.subr.mxu0 0.0
    %5416 = vmatpush1.msra.mxu0 0.0
    %5417 = vmatprep.subr.mxu0 0.0
    %5418 = vmatpush1.msra.mxu0 0.0
    %5419 = vmatprep.subr.mxu0 0.0
    %5420 = vmatpush1.msra.mxu0 0.0
    %5421 = vmatprep.subr.mxu0 0.0
    %5422 = vmatpush1.msra.mxu0 0.0
    %5423 = vmatprep.subr.mxu0 0.0
    %5424 = vmatpush1.msra.mxu0 0.0
    %5425 = vmatprep.subr.mxu0 0.0
    %5426 = vmatpush1.msra.mxu0 0.0
    %5427 = vmatprep.subr.mxu0 0.0
    %5428 = vmatpush1.msra.mxu0 0.0
    %5429 = vmatprep.subr.mxu0 0.0
    %5430 = vmatpush1.msra.mxu0 0.0
    %5431 = vmatprep.subr.mxu0 0.0
    %5432 = vmatpush1.msra.mxu0 0.0
    %5433 = vmatprep.subr.mxu0 0.0
    %5434 = vmatpush1.msra.mxu0 0.0
    %5435 = vmatprep.subr.mxu0 0.0
    %5436 = vmatpush1.msra.mxu0 0.0
    %5437 = vmatprep.subr.mxu0 0.0
    %5438 = vmatpush1.msra.mxu0 0.0
    %5439 = vmatprep.subr.mxu0 0.0
    %5440 = vmatpush1.msra.mxu0 0.0
    %5441 = vmatprep.subr.mxu0 0.0
    %5442 = vmatpush1.msra.mxu0 0.0
    %5443 = vmatprep.mubr.f32.mxu0 0.0
    %5444 = vmatmul.mubr.f32.gmra.mrb[0].mxu0 %v5378
    %v5445 = vpop.f32.mrb[0].mxu0
    %v5446 = vadd.f32 0.0, %v5445
    %v5447 = vpop.f32.mrb[0].mxu0
    %v5448 = vadd.f32 0.0, %v5447
    %5449 = vdwg.mxu0
    %5450 = vmatprep.subr.mxu0 %v5189
    %5451 = vmatpush1.msra.mxu0 %v5188
    %5452 = vmatprep.subr.mxu0 %v5201
    %5453 = vmatpush1.msra.mxu0 %v5200
    %5454 = vmatprep.subr.mxu0 %v5213
    %5455 = vmatpush1.msra.mxu0 %v5212
    %5456 = vmatprep.subr.mxu0 %v5225
    %5457 = vmatpush1.msra.mxu0 %v5224
    %5458 = vmatprep.subr.mxu0 %v5237
    %5459 = vmatpush1.msra.mxu0 %v5236
    %5460 = vmatprep.subr.mxu0 %v5249
    %5461 = vmatpush1.msra.mxu0 %v5248
    %5462 = vmatprep.subr.mxu0 %v5261
    %5463 = vmatpush1.msra.mxu0 %v5260
    %5464 = vmatprep.subr.mxu0 %v5273
    %5465 = vmatpush1.msra.mxu0 %v5272
    %5466 = vmatprep.subr.mxu0 %v5285
    %5467 = vmatpush1.msra.mxu0 %v5284
    %5468 = vmatprep.subr.mxu0 %v5297
    %5469 = vmatpush1.msra.mxu0 %v5296
    %5470 = vmatprep.subr.mxu0 %v5309
    %5471 = vmatpush1.msra.mxu0 %v5308
    %5472 = vmatprep.subr.mxu0 %v5321
    %5473 = vmatpush1.msra.mxu0 %v5320
    %5474 = vmatprep.subr.mxu0 %v5333
    %5475 = vmatpush1.msra.mxu0 %v5332
    %5476 = vmatprep.subr.mxu0 %v5345
    %5477 = vmatpush1.msra.mxu0 %v5344
    %5478 = vmatprep.subr.mxu0 %v5357
    %5479 = vmatpush1.msra.mxu0 %v5356
    %5480 = vmatprep.subr.mxu0 %v5369
    %5481 = vmatpush1.msra.mxu0 %v5368
    %5482 = vmatprep.subr.mxu0 0.0
    %5483 = vmatpush1.msra.mxu0 0.0
    %5484 = vmatprep.subr.mxu0 0.0
    %5485 = vmatpush1.msra.mxu0 0.0
    %5486 = vmatprep.subr.mxu0 0.0
    %5487 = vmatpush1.msra.mxu0 0.0
    %5488 = vmatprep.subr.mxu0 0.0
    %5489 = vmatpush1.msra.mxu0 0.0
    %5490 = vmatprep.subr.mxu0 0.0
    %5491 = vmatpush1.msra.mxu0 0.0
    %5492 = vmatprep.subr.mxu0 0.0
    %5493 = vmatpush1.msra.mxu0 0.0
    %5494 = vmatprep.subr.mxu0 0.0
    %5495 = vmatpush1.msra.mxu0 0.0
    %5496 = vmatprep.subr.mxu0 0.0
    %5497 = vmatpush1.msra.mxu0 0.0
    %5498 = vmatprep.subr.mxu0 0.0
    %5499 = vmatpush1.msra.mxu0 0.0
    %5500 = vmatprep.subr.mxu0 0.0
    %5501 = vmatpush1.msra.mxu0 0.0
    %5502 = vmatprep.subr.mxu0 0.0
    %5503 = vmatpush1.msra.mxu0 0.0
    %5504 = vmatprep.subr.mxu0 0.0
    %5505 = vmatpush1.msra.mxu0 0.0
    %5506 = vmatprep.subr.mxu0 0.0
    %5507 = vmatpush1.msra.mxu0 0.0
    %5508 = vmatprep.subr.mxu0 0.0
    %5509 = vmatpush1.msra.mxu0 0.0
    %5510 = vmatprep.subr.mxu0 0.0
    %5511 = vmatpush1.msra.mxu0 0.0
    %5512 = vmatprep.subr.mxu0 0.0
    %5513 = vmatpush1.msra.mxu0 0.0
    %5514 = vmatprep.mubr.f32.mxu0 0.0
    %5515 = vmatmul.mubr.f32.gmra.mrb[0].mxu0 %v5378
    %v5516 = vpop.f32.mrb[0].mxu0
    %v5517 = vadd.f32 0.0, %v5516
    %v5518 = vpop.f32.mrb[0].mxu0
    %v5519 = vadd.f32 0.0, %v5518
    %5520 = vdwg.mxu0
    %5521 = vmatprep.subr.mxu0 %v5191
    %5522 = vmatpush1.msra.mxu0 %v5190
    %5523 = vmatprep.subr.mxu0 %v5203
    %5524 = vmatpush1.msra.mxu0 %v5202
    %5525 = vmatprep.subr.mxu0 %v5215
    %5526 = vmatpush1.msra.mxu0 %v5214
    %5527 = vmatprep.subr.mxu0 %v5227
    %5528 = vmatpush1.msra.mxu0 %v5226
    %5529 = vmatprep.subr.mxu0 %v5239
    %5530 = vmatpush1.msra.mxu0 %v5238
    %5531 = vmatprep.subr.mxu0 %v5251
    %5532 = vmatpush1.msra.mxu0 %v5250
    %5533 = vmatprep.subr.mxu0 %v5263
    %5534 = vmatpush1.msra.mxu0 %v5262
    %5535 = vmatprep.subr.mxu0 %v5275
    %5536 = vmatpush1.msra.mxu0 %v5274
    %5537 = vmatprep.subr.mxu0 %v5287
    %5538 = vmatpush1.msra.mxu0 %v5286
    %5539 = vmatprep.subr.mxu0 %v5299
    %5540 = vmatpush1.msra.mxu0 %v5298
    %5541 = vmatprep.subr.mxu0 %v5311
    %5542 = vmatpush1.msra.mxu0 %v5310
    %5543 = vmatprep.subr.mxu0 %v5323
    %5544 = vmatpush1.msra.mxu0 %v5322
    %5545 = vmatprep.subr.mxu0 %v5335
    %5546 = vmatpush1.msra.mxu0 %v5334
    %5547 = vmatprep.subr.mxu0 %v5347
    %5548 = vmatpush1.msra.mxu0 %v5346
    %5549 = vmatprep.subr.mxu0 %v5359
    %5550 = vmatpush1.msra.mxu0 %v5358
    %5551 = vmatprep.subr.mxu0 %v5371
    %5552 = vmatpush1.msra.mxu0 %v5370
    %5553 = vmatprep.subr.mxu0 0.0
    %5554 = vmatpush1.msra.mxu0 0.0
    %5555 = vmatprep.subr.mxu0 0.0
    %5556 = vmatpush1.msra.mxu0 0.0
    %5557 = vmatprep.subr.mxu0 0.0
    %5558 = vmatpush1.msra.mxu0 0.0
    %5559 = vmatprep.subr.mxu0 0.0
    %5560 = vmatpush1.msra.mxu0 0.0
    %5561 = vmatprep.subr.mxu0 0.0
    %5562 = vmatpush1.msra.mxu0 0.0
    %5563 = vmatprep.subr.mxu0 0.0
    %5564 = vmatpush1.msra.mxu0 0.0
    %5565 = vmatprep.subr.mxu0 0.0
    %5566 = vmatpush1.msra.mxu0 0.0
    %5567 = vmatprep.subr.mxu0 0.0
    %5568 = vmatpush1.msra.mxu0 0.0
    %5569 = vmatprep.subr.mxu0 0.0
    %5570 = vmatpush1.msra.mxu0 0.0
    %5571 = vmatprep.subr.mxu0 0.0
    %5572 = vmatpush1.msra.mxu0 0.0
    %5573 = vmatprep.subr.mxu0 0.0
    %5574 = vmatpush1.msra.mxu0 0.0
    %5575 = vmatprep.subr.mxu0 0.0
    %5576 = vmatpush1.msra.mxu0 0.0
    %5577 = vmatprep.subr.mxu0 0.0
    %5578 = vmatpush1.msra.mxu0 0.0
    %5579 = vmatprep.subr.mxu0 0.0
    %5580 = vmatpush1.msra.mxu0 0.0
    %5581 = vmatprep.subr.mxu0 0.0
    %5582 = vmatpush1.msra.mxu0 0.0
    %5583 = vmatprep.subr.mxu0 0.0
    %5584 = vmatpush1.msra.mxu0 0.0
    %5585 = vmatprep.mubr.f32.mxu0 0.0
    %5586 = vmatmul.mubr.f32.gmra.mrb[0].mxu0 %v5378
    %v5587 = vpop.f32.mrb[0].mxu0
    %v5588 = vadd.f32 0.0, %v5587
    %v5589 = vpop.f32.mrb[0].mxu0
    %v5590 = vadd.f32 0.0, %v5589
    %5591 = vdwg.mxu0
    %5592 = vmatprep.subr.mxu0 %v5193
    %5593 = vmatpush1.msra.mxu0 %v5192
    %5594 = vmatprep.subr.mxu0 %v5205
    %5595 = vmatpush1.msra.mxu0 %v5204
    %5596 = vmatprep.subr.mxu0 %v5217
    %5597 = vmatpush1.msra.mxu0 %v5216
    %5598 = vmatprep.subr.mxu0 %v5229
    %5599 = vmatpush1.msra.mxu0 %v5228
    %5600 = vmatprep.subr.mxu0 %v5241
    %5601 = vmatpush1.msra.mxu0 %v5240
    %5602 = vmatprep.subr.mxu0 %v5253
    %5603 = vmatpush1.msra.mxu0 %v5252
    %5604 = vmatprep.subr.mxu0 %v5265
    %5605 = vmatpush1.msra.mxu0 %v5264
    %5606 = vmatprep.subr.mxu0 %v5277
    %5607 = vmatpush1.msra.mxu0 %v5276
    %5608 = vmatprep.subr.mxu0 %v5289
    %5609 = vmatpush1.msra.mxu0 %v5288
    %5610 = vmatprep.subr.mxu0 %v5301
    %5611 = vmatpush1.msra.mxu0 %v5300
    %5612 = vmatprep.subr.mxu0 %v5313
    %5613 = vmatpush1.msra.mxu0 %v5312
    %5614 = vmatprep.subr.mxu0 %v5325
    %5615 = vmatpush1.msra.mxu0 %v5324
    %5616 = vmatprep.subr.mxu0 %v5337
    %5617 = vmatpush1.msra.mxu0 %v5336
    %5618 = vmatprep.subr.mxu0 %v5349
    %5619 = vmatpush1.msra.mxu0 %v5348
    %5620 = vmatprep.subr.mxu0 %v5361
    %5621 = vmatpush1.msra.mxu0 %v5360
    %5622 = vmatprep.subr.mxu0 %v5373
    %5623 = vmatpush1.msra.mxu0 %v5372
    %5624 = vmatprep.subr.mxu0 0.0
    %5625 = vmatpush1.msra.mxu0 0.0
    %5626 = vmatprep.subr.mxu0 0.0
    %5627 = vmatpush1.msra.mxu0 0.0
    %5628 = vmatprep.subr.mxu0 0.0
    %5629 = vmatpush1.msra.mxu0 0.0
    %5630 = vmatprep.subr.mxu0 0.0
    %5631 = vmatpush1.msra.mxu0 0.0
    %5632 = vmatprep.subr.mxu0 0.0
    %5633 = vmatpush1.msra.mxu0 0.0
    %5634 = vmatprep.subr.mxu0 0.0
    %5635 = vmatpush1.msra.mxu0 0.0
    %5636 = vmatprep.subr.mxu0 0.0
    %5637 = vmatpush1.msra.mxu0 0.0
    %5638 = vmatprep.subr.mxu0 0.0
    %5639 = vmatpush1.msra.mxu0 0.0
    %5640 = vmatprep.subr.mxu0 0.0
    %5641 = vmatpush1.msra.mxu0 0.0
    %5642 = vmatprep.subr.mxu0 0.0
    %5643 = vmatpush1.msra.mxu0 0.0
    %5644 = vmatprep.subr.mxu0 0.0
    %5645 = vmatpush1.msra.mxu0 0.0
    %5646 = vmatprep.subr.mxu0 0.0
    %5647 = vmatpush1.msra.mxu0 0.0
    %5648 = vmatprep.subr.mxu0 0.0
    %5649 = vmatpush1.msra.mxu0 0.0
    %5650 = vmatprep.subr.mxu0 0.0
    %5651 = vmatpush1.msra.mxu0 0.0
    %5652 = vmatprep.subr.mxu0 0.0
    %5653 = vmatpush1.msra.mxu0 0.0
    %5654 = vmatprep.subr.mxu0 0.0
    %5655 = vmatpush1.msra.mxu0 0.0
    %5656 = vmatprep.mubr.f32.mxu0 0.0
    %5657 = vmatmul.mubr.f32.gmra.mrb[0].mxu0 %v5378
    %v5658 = vpop.f32.mrb[0].mxu0
    %v5659 = vadd.f32 0.0, %v5658
    %v5660 = vpop.f32.mrb[0].mxu0
    %v5661 = vadd.f32 0.0, %v5660
    %5662 = vdwg.mxu0
    %5663 = vmatprep.subr.mxu0 %v5195
    %5664 = vmatpush1.msra.mxu0 %v5194
    %5665 = vmatprep.subr.mxu0 %v5207
    %5666 = vmatpush1.msra.mxu0 %v5206
    %5667 = vmatprep.subr.mxu0 %v5219
    %5668 = vmatpush1.msra.mxu0 %v5218
    %5669 = vmatprep.subr.mxu0 %v5231
    %5670 = vmatpush1.msra.mxu0 %v5230
    %5671 = vmatprep.subr.mxu0 %v5243
    %5672 = vmatpush1.msra.mxu0 %v5242
    %5673 = vmatprep.subr.mxu0 %v5255
    %5674 = vmatpush1.msra.mxu0 %v5254
    %5675 = vmatprep.subr.mxu0 %v5267
    %5676 = vmatpush1.msra.mxu0 %v5266
    %5677 = vmatprep.subr.mxu0 %v5279
    %5678 = vmatpush1.msra.mxu0 %v5278
    %5679 = vmatprep.subr.mxu0 %v5291
    %5680 = vmatpush1.msra.mxu0 %v5290
    %5681 = vmatprep.subr.mxu0 %v5303
    %5682 = vmatpush1.msra.mxu0 %v5302
    %5683 = vmatprep.subr.mxu0 %v5315
    %5684 = vmatpush1.msra.mxu0 %v5314
    %5685 = vmatprep.subr.mxu0 %v5327
    %5686 = vmatpush1.msra.mxu0 %v5326
    %5687 = vmatprep.subr.mxu0 %v5339
    %5688 = vmatpush1.msra.mxu0 %v5338
    %5689 = vmatprep.subr.mxu0 %v5351
    %5690 = vmatpush1.msra.mxu0 %v5350
    %5691 = vmatprep.subr.mxu0 %v5363
    %5692 = vmatpush1.msra.mxu0 %v5362
    %5693 = vmatprep.subr.mxu0 %v5375
    %5694 = vmatpush1.msra.mxu0 %v5374
    %5695 = vmatprep.subr.mxu0 0.0
    %5696 = vmatpush1.msra.mxu0 0.0
    %5697 = vmatprep.subr.mxu0 0.0
    %5698 = vmatpush1.msra.mxu0 0.0
    %5699 = vmatprep.subr.mxu0 0.0
    %5700 = vmatpush1.msra.mxu0 0.0
    %5701 = vmatprep.subr.mxu0 0.0
    %5702 = vmatpush1.msra.mxu0 0.0
    %5703 = vmatprep.subr.mxu0 0.0
    %5704 = vmatpush1.msra.mxu0 0.0
    %5705 = vmatprep.subr.mxu0 0.0
    %5706 = vmatpush1.msra.mxu0 0.0
    %5707 = vmatprep.subr.mxu0 0.0
    %5708 = vmatpush1.msra.mxu0 0.0
    %5709 = vmatprep.subr.mxu0 0.0
    %5710 = vmatpush1.msra.mxu0 0.0
    %5711 = vmatprep.subr.mxu0 0.0
    %5712 = vmatpush1.msra.mxu0 0.0
    %5713 = vmatprep.subr.mxu0 0.0
    %5714 = vmatpush1.msra.mxu0 0.0
    %5715 = vmatprep.subr.mxu0 0.0
    %5716 = vmatpush1.msra.mxu0 0.0
    %5717 = vmatprep.subr.mxu0 0.0
    %5718 = vmatpush1.msra.mxu0 0.0
    %5719 = vmatprep.subr.mxu0 0.0
    %5720 = vmatpush1.msra.mxu0 0.0
    %5721 = vmatprep.subr.mxu0 0.0
    %5722 = vmatpush1.msra.mxu0 0.0
    %5723 = vmatprep.subr.mxu0 0.0
    %5724 = vmatpush1.msra.mxu0 0.0
    %5725 = vmatprep.subr.mxu0 0.0
    %5726 = vmatpush1.msra.mxu0 0.0
    %5727 = vmatprep.mubr.f32.mxu0 0.0
    %5728 = vmatmul.mubr.f32.gmra.mrb[0].mxu0 %v5378
    %v5729 = vpop.f32.mrb[0].mxu0
    %v5730 = vadd.f32 0.0, %v5729
    %v5731 = vpop.f32.mrb[0].mxu0
    %v5732 = vadd.f32 0.0, %v5731
    %5733 = vdwg.mxu0
    %5734 = vmatprep.subr.mxu0 %v5197
    %5735 = vmatpush1.msra.mxu0 %v5196
    %5736 = vmatprep.subr.mxu0 %v5209
    %5737 = vmatpush1.msra.mxu0 %v5208
    %5738 = vmatprep.subr.mxu0 %v5221
    %5739 = vmatpush1.msra.mxu0 %v5220
    %5740 = vmatprep.subr.mxu0 %v5233
    %5741 = vmatpush1.msra.mxu0 %v5232
    %5742 = vmatprep.subr.mxu0 %v5245
    %5743 = vmatpush1.msra.mxu0 %v5244
    %5744 = vmatprep.subr.mxu0 %v5257
    %5745 = vmatpush1.msra.mxu0 %v5256
    %5746 = vmatprep.subr.mxu0 %v5269
    %5747 = vmatpush1.msra.mxu0 %v5268
    %5748 = vmatprep.subr.mxu0 %v5281
    %5749 = vmatpush1.msra.mxu0 %v5280
    %5750 = vmatprep.subr.mxu0 %v5293
    %5751 = vmatpush1.msra.mxu0 %v5292
    %5752 = vmatprep.subr.mxu0 %v5305
    %5753 = vmatpush1.msra.mxu0 %v5304
    %5754 = vmatprep.subr.mxu0 %v5317
    %5755 = vmatpush1.msra.mxu0 %v5316
    %5756 = vmatprep.subr.mxu0 %v5329
    %5757 = vmatpush1.msra.mxu0 %v5328
    %5758 = vmatprep.subr.mxu0 %v5341
    %5759 = vmatpush1.msra.mxu0 %v5340
    %5760 = vmatprep.subr.mxu0 %v5353
    %5761 = vmatpush1.msra.mxu0 %v5352
    %5762 = vmatprep.subr.mxu0 %v5365
    %5763 = vmatpush1.msra.mxu0 %v5364
    %5764 = vmatprep.subr.mxu0 %v5377
    %5765 = vmatpush1.msra.mxu0 %v5376
    %5766 = vmatprep.subr.mxu0 0.0
    %5767 = vmatpush1.msra.mxu0 0.0
    %5768 = vmatprep.subr.mxu0 0.0
    %5769 = vmatpush1.msra.mxu0 0.0
    %5770 = vmatprep.subr.mxu0 0.0
    %5771 = vmatpush1.msra.mxu0 0.0
    %5772 = vmatprep.subr.mxu0 0.0
    %5773 = vmatpush1.msra.mxu0 0.0
    %5774 = vmatprep.subr.mxu0 0.0
    %5775 = vmatpush1.msra.mxu0 0.0
    %5776 = vmatprep.subr.mxu0 0.0
    %5777 = vmatpush1.msra.mxu0 0.0
    %5778 = vmatprep.subr.mxu0 0.0
    %5779 = vmatpush1.msra.mxu0 0.0
    %5780 = vmatprep.subr.mxu0 0.0
    %5781 = vmatpush1.msra.mxu0 0.0
    %5782 = vmatprep.subr.mxu0 0.0
    %5783 = vmatpush1.msra.mxu0 0.0
    %5784 = vmatprep.subr.mxu0 0.0
    %5785 = vmatpush1.msra.mxu0 0.0
    %5786 = vmatprep.subr.mxu0 0.0
    %5787 = vmatpush1.msra.mxu0 0.0
    %5788 = vmatprep.subr.mxu0 0.0
    %5789 = vmatpush1.msra.mxu0 0.0
    %5790 = vmatprep.subr.mxu0 0.0
    %5791 = vmatpush1.msra.mxu0 0.0
    %5792 = vmatprep.subr.mxu0 0.0
    %5793 = vmatpush1.msra.mxu0 0.0
    %5794 = vmatprep.subr.mxu0 0.0
    %5795 = vmatpush1.msra.mxu0 0.0
    %5796 = vmatprep.subr.mxu0 0.0
    %5797 = vmatpush1.msra.mxu0 0.0
    %5798 = vmatprep.mubr.f32.mxu0 0.0
    %5799 = vmatmul.mubr.f32.gmra.mrb[0].mxu0 %v5378
    %v5800 = vpop.f32.mrb[0].mxu0
    %v5801 = vadd.f32 0.0, %v5800
    %v5802 = vpop.f32.mrb[0].mxu0
    %v5803 = vadd.f32 0.0, %v5802
    %5804 = vdwg.mxu0
    %v5805 = vpack.c.bf16 %v5446, %v5446
    %v5806 = vpack.c.bf16 %v5448, %v5448
    %v5807 = vpack.c.bf16 %v5517, %v5517
    %v5808 = vpack.c.bf16 %v5519, %v5519
    %v5809 = vpack.c.bf16 %v5588, %v5588
    %v5810 = vpack.c.bf16 %v5590, %v5590
    %v5811 = vpack.c.bf16 %v5659, %v5659
    %v5812 = vpack.c.bf16 %v5661, %v5661
    %v5813 = vpack.c.bf16 %v5730, %v5730
    %v5814 = vpack.c.bf16 %v5732, %v5732
    %v5815 = vpack.c.bf16 %v5801, %v5801
    %v5816 = vpack.c.bf16 %v5803, %v5803
    %v5817 = vld [vmem:[%s9] sm:$0xff]
    %v5818 = vld [vmem:[%s9 + $0x8] sm:$0xff]
    %v5819 = vld [vmem:[%s9 + $0x10] sm:$0xff]
    %v5820 = vld [vmem:[%s9 + $0x18] sm:$0xff]
    %v5821 = vld [vmem:[%s9 + $0x20] sm:$0xff]
    %v5822 = vld [vmem:[%s9 + $0x28] sm:$0xff]
    %v5823 = vld [vmem:[%s9 + $0x30] sm:$0xff]
    %v5824 = vld [vmem:[%s9 + $0x38] sm:$0xff]
    %v5825 = vld [vmem:[%s9 + $0x40] sm:$0xff]
    %v5826 = vld [vmem:[%s9 + $0x48] sm:$0xff]
    %v5827 = vld [vmem:[%s9 + $0x50] sm:$0xff]
    %v5828 = vld [vmem:[%s9 + $0x58] sm:$0xff]
    %v5829 = vld [vmem:[%s9 + $0x60] sm:$0xff]
    %v5830 = vld [vmem:[%s9 + $0x68] sm:$0xff]
    %v5831 = vld [vmem:[%s9 + $0x70] sm:$0xff]
    %v5832 = vld [vmem:[%s9 + $0x78] sm:$0xff]
    %v5833 = vld [vmem:[%s9 + $0x80] sm:$0xff]
    %v5834 = vld [vmem:[%s9 + $0x88] sm:$0xff]
    %v5835 = vld [vmem:[%s9 + $0x90] sm:$0xff]
    %v5836 = vld [vmem:[%s9 + $0x98] sm:$0xff]
    %v5837 = vld [vmem:[%s9 + $0xa0] sm:$0xff]
    %v5838 = vld [vmem:[%s9 + $0xa8] sm:$0xff]
    %v5839 = vld [vmem:[%s9 + $0xb0] sm:$0xff]
    %v5840 = vld [vmem:[%s9 + $0xb8] sm:$0xff]
    %v5841 = vld [vmem:[%s9 + $0xc0] sm:$0xff]
    %v5842 = vld [vmem:[%s9 + $0xc8] sm:$0xff]
    %v5843 = vld [vmem:[%s9 + $0xd0] sm:$0xff]
    %v5844 = vld [vmem:[%s9 + $0xd8] sm:$0xff]
    %v5845 = vld [vmem:[%s9 + $0xe0] sm:$0xff]
    %v5846 = vld [vmem:[%s9 + $0xe8] sm:$0xff]
    %v5847 = vld [vmem:[%s9 + $0xf0] sm:$0xff]
    %v5848 = vld [vmem:[%s9 + $0xf8] sm:$0xff]
    %v5849 = vld [vmem:[%s9 + $0x100] sm:$0xff]
    %v5850 = vld [vmem:[%s9 + $0x108] sm:$0xff]
    %v5851 = vld [vmem:[%s9 + $0x110] sm:$0xff]
    %v5852 = vld [vmem:[%s9 + $0x118] sm:$0xff]
    %v5853 = vld [vmem:[%s9 + $0x120] sm:$0xff]
    %v5854 = vld [vmem:[%s9 + $0x128] sm:$0xff]
    %v5855 = vld [vmem:[%s9 + $0x130] sm:$0xff]
    %v5856 = vld [vmem:[%s9 + $0x138] sm:$0xff]
    %v5857 = vld [vmem:[%s9 + $0x140] sm:$0xff]
    %v5858 = vld [vmem:[%s9 + $0x148] sm:$0xff]
    %v5859 = vld [vmem:[%s9 + $0x150] sm:$0xff]
    %v5860 = vld [vmem:[%s9 + $0x158] sm:$0xff]
    %v5861 = vld [vmem:[%s9 + $0x160] sm:$0xff]
    %v5862 = vld [vmem:[%s9 + $0x168] sm:$0xff]
    %v5863 = vld [vmem:[%s9 + $0x170] sm:$0xff]
    %v5864 = vld [vmem:[%s9 + $0x178] sm:$0xff]
    %v5865 = vld [vmem:[%s9 + $0x180] sm:$0xff]
    %v5866 = vld [vmem:[%s9 + $0x188] sm:$0xff]
    %v5867 = vld [vmem:[%s9 + $0x190] sm:$0xff]
    %v5868 = vld [vmem:[%s9 + $0x198] sm:$0xff]
    %v5869 = vld [vmem:[%s9 + $0x1a0] sm:$0xff]
    %v5870 = vld [vmem:[%s9 + $0x1a8] sm:$0xff]
    %v5871 = vld [vmem:[%s9 + $0x1b0] sm:$0xff]
    %v5872 = vld [vmem:[%s9 + $0x1b8] sm:$0xff]
    %v5873 = vld [vmem:[%s9 + $0x1c0] sm:$0xff]
    %v5874 = vld [vmem:[%s9 + $0x1c8] sm:$0xff]
    %v5875 = vld [vmem:[%s9 + $0x1d0] sm:$0xff]
    %v5876 = vld [vmem:[%s9 + $0x1d8] sm:$0xff]
    %v5877 = vld [vmem:[%s9 + $0x1e0] sm:$0xff]
    %v5878 = vld [vmem:[%s9 + $0x1e8] sm:$0xff]
    %v5879 = vld [vmem:[%s9 + $0x1f0] sm:$0xff]
    %v5880 = vld [vmem:[%s9 + $0x1f8] sm:$0xff]
    %v5881 = vld [vmem:[%s9 + $0x200] sm:$0xff]
    %v5882 = vld [vmem:[%s9 + $0x208] sm:$0xff]
    %v5883 = vld [vmem:[%s9 + $0x210] sm:$0xff]
    %v5884 = vld [vmem:[%s9 + $0x218] sm:$0xff]
    %v5885 = vld [vmem:[%s9 + $0x220] sm:$0xff]
    %v5886 = vld [vmem:[%s9 + $0x228] sm:$0xff]
    %v5887 = vld [vmem:[%s9 + $0x230] sm:$0xff]
    %v5888 = vld [vmem:[%s9 + $0x238] sm:$0xff]
    %v5889 = vld [vmem:[%s9 + $0x240] sm:$0xff]
    %v5890 = vld [vmem:[%s9 + $0x248] sm:$0xff]
    %v5891 = vld [vmem:[%s9 + $0x250] sm:$0xff]
    %v5892 = vld [vmem:[%s9 + $0x258] sm:$0xff]
    %v5893 = vld [vmem:[%s9 + $0x260] sm:$0xff]
    %v5894 = vld [vmem:[%s9 + $0x268] sm:$0xff]
    %v5895 = vld [vmem:[%s9 + $0x270] sm:$0xff]
    %v5896 = vld [vmem:[%s9 + $0x278] sm:$0xff]
    %v5897 = vld [vmem:[%s9 + $0x280] sm:$0xff]
    %v5898 = vld [vmem:[%s9 + $0x288] sm:$0xff]
    %v5899 = vld [vmem:[%s9 + $0x290] sm:$0xff]
    %v5900 = vld [vmem:[%s9 + $0x298] sm:$0xff]
    %v5901 = vld [vmem:[%s9 + $0x2a0] sm:$0xff]
    %v5902 = vld [vmem:[%s9 + $0x2a8] sm:$0xff]
    %v5903 = vld [vmem:[%s9 + $0x2b0] sm:$0xff]
    %v5904 = vld [vmem:[%s9 + $0x2b8] sm:$0xff]
    %v5905 = vld [vmem:[%s9 + $0x2c0] sm:$0xff]
    %v5906 = vld [vmem:[%s9 + $0x2c8] sm:$0xff]
    %v5907 = vld [vmem:[%s9 + $0x2d0] sm:$0xff]
    %v5908 = vld [vmem:[%s9 + $0x2d8] sm:$0xff]
    %v5909 = vld [vmem:[%s9 + $0x2e0] sm:$0xff]
    %v5910 = vld [vmem:[%s9 + $0x2e8] sm:$0xff]
    %v5911 = vld [vmem:[%s9 + $0x2f0] sm:$0xff]
    %v5912 = vld [vmem:[%s9 + $0x2f8] sm:$0xff]
    %v5913 = vld [vmem:[%s9 + $0x300] sm:$0xff]
    %v5914 = vld [vmem:[%s9 + $0x308] sm:$0xff]
    %v5915 = vld [vmem:[%s9 + $0x310] sm:$0xff]
    %v5916 = vld [vmem:[%s9 + $0x318] sm:$0xff]
    %v5917 = vld [vmem:[%s9 + $0x320] sm:$0xff]
    %v5918 = vld [vmem:[%s9 + $0x328] sm:$0xff]
    %v5919 = vld [vmem:[%s9 + $0x330] sm:$0xff]
    %v5920 = vld [vmem:[%s9 + $0x338] sm:$0xff]
    %v5921 = vld [vmem:[%s9 + $0x340] sm:$0xff]
    %v5922 = vld [vmem:[%s9 + $0x348] sm:$0xff]
    %v5923 = vld [vmem:[%s9 + $0x350] sm:$0xff]
    %v5924 = vld [vmem:[%s9 + $0x358] sm:$0xff]
    %v5925 = vld [vmem:[%s9 + $0x360] sm:$0xff]
    %v5926 = vld [vmem:[%s9 + $0x368] sm:$0xff]
    %v5927 = vld [vmem:[%s9 + $0x370] sm:$0xff]
    %v5928 = vld [vmem:[%s9 + $0x378] sm:$0xff]
    %v5929 = vld [vmem:[%s9 + $0x380] sm:$0xff]
    %v5930 = vld [vmem:[%s9 + $0x388] sm:$0xff]
    %v5931 = vld [vmem:[%s9 + $0x390] sm:$0xff]
    %v5932 = vld [vmem:[%s9 + $0x398] sm:$0xff]
    %v5933 = vld [vmem:[%s9 + $0x3a0] sm:$0xff]
    %v5934 = vld [vmem:[%s9 + $0x3a8] sm:$0xff]
    %v5935 = vld [vmem:[%s9 + $0x3b0] sm:$0xff]
    %v5936 = vld [vmem:[%s9 + $0x3b8] sm:$0xff]
    %v5937 = vld [vmem:[%s9 + $0x3c0] sm:$0xff]
    %v5938 = vld [vmem:[%s9 + $0x3c8] sm:$0xff]
    %v5939 = vld [vmem:[%s9 + $0x3d0] sm:$0xff]
    %v5940 = vld [vmem:[%s9 + $0x3d8] sm:$0xff]
    %v5941 = vld [vmem:[%s9 + $0x3e0] sm:$0xff]
    %v5942 = vld [vmem:[%s9 + $0x3e8] sm:$0xff]
    %v5943 = vld [vmem:[%s9 + $0x3f0] sm:$0xff]
    %v5944 = vld [vmem:[%s9 + $0x3f8] sm:$0xff]
    %v5945 = vld [vmem:[%s9 + $0x400] sm:$0xff]
    %v5946 = vld [vmem:[%s9 + $0x408] sm:$0xff]
    %v5947 = vld [vmem:[%s9 + $0x410] sm:$0xff]
    %v5948 = vld [vmem:[%s9 + $0x418] sm:$0xff]
    %v5949 = vld [vmem:[%s9 + $0x420] sm:$0xff]
    %v5950 = vld [vmem:[%s9 + $0x428] sm:$0xff]
    %v5951 = vld [vmem:[%s9 + $0x430] sm:$0xff]
    %v5952 = vld [vmem:[%s9 + $0x438] sm:$0xff]
    %v5953 = vld [vmem:[%s9 + $0x440] sm:$0xff]
    %v5954 = vld [vmem:[%s9 + $0x448] sm:$0xff]
    %v5955 = vld [vmem:[%s9 + $0x450] sm:$0xff]
    %v5956 = vld [vmem:[%s9 + $0x458] sm:$0xff]
    %v5957 = vld [vmem:[%s9 + $0x460] sm:$0xff]
    %v5958 = vld [vmem:[%s9 + $0x468] sm:$0xff]
    %v5959 = vld [vmem:[%s9 + $0x470] sm:$0xff]
    %v5960 = vld [vmem:[%s9 + $0x478] sm:$0xff]
    %v5961 = vld [vmem:[%s9 + $0x480] sm:$0xff]
    %v5962 = vld [vmem:[%s9 + $0x488] sm:$0xff]
    %v5963 = vld [vmem:[%s9 + $0x490] sm:$0xff]
    %v5964 = vld [vmem:[%s9 + $0x498] sm:$0xff]
    %v5965 = vld [vmem:[%s9 + $0x4a0] sm:$0xff]
    %v5966 = vld [vmem:[%s9 + $0x4a8] sm:$0xff]
    %v5967 = vld [vmem:[%s9 + $0x4b0] sm:$0xff]
    %v5968 = vld [vmem:[%s9 + $0x4b8] sm:$0xff]
    %v5969 = vld [vmem:[%s9 + $0x4c0] sm:$0xff]
    %v5970 = vld [vmem:[%s9 + $0x4c8] sm:$0xff]
    %v5971 = vld [vmem:[%s9 + $0x4d0] sm:$0xff]
    %v5972 = vld [vmem:[%s9 + $0x4d8] sm:$0xff]
    %v5973 = vld [vmem:[%s9 + $0x4e0] sm:$0xff]
    %v5974 = vld [vmem:[%s9 + $0x4e8] sm:$0xff]
    %v5975 = vld [vmem:[%s9 + $0x4f0] sm:$0xff]
    %v5976 = vld [vmem:[%s9 + $0x4f8] sm:$0xff]
    %v5977 = vld [vmem:[%s9 + $0x500] sm:$0xff]
    %v5978 = vld [vmem:[%s9 + $0x508] sm:$0xff]
    %v5979 = vld [vmem:[%s9 + $0x510] sm:$0xff]
    %v5980 = vld [vmem:[%s9 + $0x518] sm:$0xff]
    %v5981 = vld [vmem:[%s9 + $0x520] sm:$0xff]
    %v5982 = vld [vmem:[%s9 + $0x528] sm:$0xff]
    %v5983 = vld [vmem:[%s9 + $0x530] sm:$0xff]
    %v5984 = vld [vmem:[%s9 + $0x538] sm:$0xff]
    %v5985 = vld [vmem:[%s9 + $0x540] sm:$0xff]
    %v5986 = vld [vmem:[%s9 + $0x548] sm:$0xff]
    %v5987 = vld [vmem:[%s9 + $0x550] sm:$0xff]
    %v5988 = vld [vmem:[%s9 + $0x558] sm:$0xff]
    %v5989 = vld [vmem:[%s9 + $0x560] sm:$0xff]
    %v5990 = vld [vmem:[%s9 + $0x568] sm:$0xff]
    %v5991 = vld [vmem:[%s9 + $0x570] sm:$0xff]
    %v5992 = vld [vmem:[%s9 + $0x578] sm:$0xff]
    %v5993 = vld [vmem:[%s9 + $0x580] sm:$0xff]
    %v5994 = vld [vmem:[%s9 + $0x588] sm:$0xff]
    %v5995 = vld [vmem:[%s9 + $0x590] sm:$0xff]
    %v5996 = vld [vmem:[%s9 + $0x598] sm:$0xff]
    %v5997 = vld [vmem:[%s9 + $0x5a0] sm:$0xff]
    %v5998 = vld [vmem:[%s9 + $0x5a8] sm:$0xff]
    %v5999 = vld [vmem:[%s9 + $0x5b0] sm:$0xff]
    %v6000 = vld [vmem:[%s9 + $0x5b8] sm:$0xff]
    %v6001 = vld [vmem:[%s9 + $0x5c0] sm:$0xff]
    %v6002 = vld [vmem:[%s9 + $0x5c8] sm:$0xff]
    %v6003 = vld [vmem:[%s9 + $0x5d0] sm:$0xff]
    %v6004 = vld [vmem:[%s9 + $0x5d8] sm:$0xff]
    %v6005 = vld [vmem:[%s9 + $0x5e0] sm:$0xff]
    %v6006 = vld [vmem:[%s9 + $0x5e8] sm:$0xff]
    %v6007 = vld [vmem:[%s9 + $0x5f0] sm:$0xff]
    %v6008 = vld [vmem:[%s9 + $0x5f8] sm:$0xff]
    %v6009 = vld [vmem:[%s9 + $0x600] sm:$0xff]
    %v6010 = vld [vmem:[%s9 + $0x608] sm:$0xff]
    %v6011 = vld [vmem:[%s9 + $0x610] sm:$0xff]
    %v6012 = vld [vmem:[%s9 + $0x618] sm:$0xff]
    %v6013 = vld [vmem:[%s9 + $0x620] sm:$0xff]
    %v6014 = vld [vmem:[%s9 + $0x628] sm:$0xff]
    %v6015 = vld [vmem:[%s9 + $0x630] sm:$0xff]
    %v6016 = vld [vmem:[%s9 + $0x638] sm:$0xff]
    %v6017 = vld [vmem:[%s9 + $0x640] sm:$0xff]
    %v6018 = vld [vmem:[%s9 + $0x648] sm:$0xff]
    %v6019 = vld [vmem:[%s9 + $0x650] sm:$0xff]
    %v6020 = vld [vmem:[%s9 + $0x658] sm:$0xff]
    %v6021 = vld [vmem:[%s9 + $0x660] sm:$0xff]
    %v6022 = vld [vmem:[%s9 + $0x668] sm:$0xff]
    %v6023 = vld [vmem:[%s9 + $0x670] sm:$0xff]
    %v6024 = vld [vmem:[%s9 + $0x678] sm:$0xff]
    %v6025 = vld [vmem:[%s9 + $0x680] sm:$0xff]
    %v6026 = vld [vmem:[%s9 + $0x688] sm:$0xff]
    %v6027 = vld [vmem:[%s9 + $0x690] sm:$0xff]
    %v6028 = vld [vmem:[%s9 + $0x698] sm:$0xff]
    %v6029 = vld [vmem:[%s9 + $0x6a0] sm:$0xff]
    %v6030 = vld [vmem:[%s9 + $0x6a8] sm:$0xff]
    %v6031 = vld [vmem:[%s9 + $0x6b0] sm:$0xff]
    %v6032 = vld [vmem:[%s9 + $0x6b8] sm:$0xff]
    %v6033 = vld [vmem:[%s9 + $0x6c0] sm:$0xff]
    %v6034 = vld [vmem:[%s9 + $0x6c8] sm:$0xff]
    %v6035 = vld [vmem:[%s9 + $0x6d0] sm:$0xff]
    %v6036 = vld [vmem:[%s9 + $0x6d8] sm:$0xff]
    %v6037 = vld [vmem:[%s9 + $0x6e0] sm:$0xff]
    %v6038 = vld [vmem:[%s9 + $0x6e8] sm:$0xff]
    %v6039 = vld [vmem:[%s9 + $0x6f0] sm:$0xff]
    %v6040 = vld [vmem:[%s9 + $0x6f8] sm:$0xff]
    %v6041 = vld [vmem:[%s9 + $0x700] sm:$0xff]
    %v6042 = vld [vmem:[%s9 + $0x708] sm:$0xff]
    %v6043 = vld [vmem:[%s9 + $0x710] sm:$0xff]
    %v6044 = vld [vmem:[%s9 + $0x718] sm:$0xff]
    %v6045 = vld [vmem:[%s9 + $0x720] sm:$0xff]
    %v6046 = vld [vmem:[%s9 + $0x728] sm:$0xff]
    %v6047 = vld [vmem:[%s9 + $0x730] sm:$0xff]
    %v6048 = vld [vmem:[%s9 + $0x738] sm:$0xff]
    %v6049 = vld [vmem:[%s9 + $0x740] sm:$0xff]
    %v6050 = vld [vmem:[%s9 + $0x748] sm:$0xff]
    %v6051 = vld [vmem:[%s9 + $0x750] sm:$0xff]
    %v6052 = vld [vmem:[%s9 + $0x758] sm:$0xff]
    %v6053 = vld [vmem:[%s9 + $0x760] sm:$0xff]
    %v6054 = vld [vmem:[%s9 + $0x768] sm:$0xff]
    %v6055 = vld [vmem:[%s9 + $0x770] sm:$0xff]
    %v6056 = vld [vmem:[%s9 + $0x778] sm:$0xff]
    %v6057 = vld [vmem:[%s9 + $0x780] sm:$0xff]
    %v6058 = vld [vmem:[%s9 + $0x788] sm:$0xff]
    %v6059 = vld [vmem:[%s9 + $0x790] sm:$0xff]
    %v6060 = vld [vmem:[%s9 + $0x798] sm:$0xff]
    %v6061 = vld [vmem:[%s9 + $0x7a0] sm:$0xff]
    %v6062 = vld [vmem:[%s9 + $0x7a8] sm:$0xff]
    %v6063 = vld [vmem:[%s9 + $0x7b0] sm:$0xff]
    %v6064 = vld [vmem:[%s9 + $0x7b8] sm:$0xff]
    %v6065 = vld [vmem:[%s9 + $0x7c0] sm:$0xff]
    %v6066 = vld [vmem:[%s9 + $0x7c8] sm:$0xff]
    %v6067 = vld [vmem:[%s9 + $0x7d0] sm:$0xff]
    %v6068 = vld [vmem:[%s9 + $0x7d8] sm:$0xff]
    %v6069 = vld [vmem:[%s9 + $0x7e0] sm:$0xff]
    %v6070 = vld [vmem:[%s9 + $0x7e8] sm:$0xff]
    %v6071 = vld [vmem:[%s9 + $0x7f0] sm:$0xff]
    %v6072 = vld [vmem:[%s9 + $0x7f8] sm:$0xff]
    %v6073 = vld [vmem:[%s9 + $0x800] sm:$0xff]
    %v6074 = vld [vmem:[%s9 + $0x808] sm:$0xff]
    %v6075 = vld [vmem:[%s9 + $0x810] sm:$0xff]
    %v6076 = vld [vmem:[%s9 + $0x818] sm:$0xff]
    %v6077 = vld [vmem:[%s9 + $0x820] sm:$0xff]
    %v6078 = vld [vmem:[%s9 + $0x828] sm:$0xff]
    %v6079 = vld [vmem:[%s9 + $0x830] sm:$0xff]
    %v6080 = vld [vmem:[%s9 + $0x838] sm:$0xff]
    %v6081 = vld [vmem:[%s9 + $0x840] sm:$0xff]
    %v6082 = vld [vmem:[%s9 + $0x848] sm:$0xff]
    %v6083 = vld [vmem:[%s9 + $0x850] sm:$0xff]
    %v6084 = vld [vmem:[%s9 + $0x858] sm:$0xff]
    %v6085 = vld [vmem:[%s9 + $0x860] sm:$0xff]
    %v6086 = vld [vmem:[%s9 + $0x868] sm:$0xff]
    %v6087 = vld [vmem:[%s9 + $0x870] sm:$0xff]
    %v6088 = vld [vmem:[%s9 + $0x878] sm:$0xff]
    %v6089 = vld [vmem:[%s9 + $0x880] sm:$0xff]
    %v6090 = vld [vmem:[%s9 + $0x888] sm:$0xff]
    %v6091 = vld [vmem:[%s9 + $0x890] sm:$0xff]
    %v6092 = vld [vmem:[%s9 + $0x898] sm:$0xff]
    %v6093 = vld [vmem:[%s9 + $0x8a0] sm:$0xff]
    %v6094 = vld [vmem:[%s9 + $0x8a8] sm:$0xff]
    %v6095 = vld [vmem:[%s9 + $0x8b0] sm:$0xff]
    %v6096 = vld [vmem:[%s9 + $0x8b8] sm:$0xff]
    %v6097 = vld [vmem:[%s9 + $0x8c0] sm:$0xff]
    %v6098 = vld [vmem:[%s9 + $0x8c8] sm:$0xff]
    %v6099 = vld [vmem:[%s9 + $0x8d0] sm:$0xff]
    %v6100 = vld [vmem:[%s9 + $0x8d8] sm:$0xff]
    %v6101 = vld [vmem:[%s9 + $0x8e0] sm:$0xff]
    %v6102 = vld [vmem:[%s9 + $0x8e8] sm:$0xff]
    %v6103 = vld [vmem:[%s9 + $0x8f0] sm:$0xff]
    %v6104 = vld [vmem:[%s9 + $0x8f8] sm:$0xff]
    %v6105 = vld [vmem:[%s9 + $0x900] sm:$0xff]
    %v6106 = vld [vmem:[%s9 + $0x908] sm:$0xff]
    %v6107 = vld [vmem:[%s9 + $0x910] sm:$0xff]
    %v6108 = vld [vmem:[%s9 + $0x918] sm:$0xff]
    %v6109 = vld [vmem:[%s9 + $0x920] sm:$0xff]
    %v6110 = vld [vmem:[%s9 + $0x928] sm:$0xff]
    %v6111 = vld [vmem:[%s9 + $0x930] sm:$0xff]
    %v6112 = vld [vmem:[%s9 + $0x938] sm:$0xff]
    %v6113 = vld [vmem:[%s9 + $0x940] sm:$0xff]
    %v6114 = vld [vmem:[%s9 + $0x948] sm:$0xff]
    %v6115 = vld [vmem:[%s9 + $0x950] sm:$0xff]
    %v6116 = vld [vmem:[%s9 + $0x958] sm:$0xff]
    %v6117 = vld [vmem:[%s9 + $0x960] sm:$0xff]
    %v6118 = vld [vmem:[%s9 + $0x968] sm:$0xff]
    %v6119 = vld [vmem:[%s9 + $0x970] sm:$0xff]
    %v6120 = vld [vmem:[%s9 + $0x978] sm:$0xff]
    %v6121 = vld [vmem:[%s9 + $0x980] sm:$0xff]
    %v6122 = vld [vmem:[%s9 + $0x988] sm:$0xff]
    %v6123 = vld [vmem:[%s9 + $0x990] sm:$0xff]
    %v6124 = vld [vmem:[%s9 + $0x998] sm:$0xff]
    %v6125 = vld [vmem:[%s9 + $0x9a0] sm:$0xff]
    %v6126 = vld [vmem:[%s9 + $0x9a8] sm:$0xff]
    %v6127 = vld [vmem:[%s9 + $0x9b0] sm:$0xff]
    %v6128 = vld [vmem:[%s9 + $0x9b8] sm:$0xff]
    %v6129 = vld [vmem:[%s9 + $0x9c0] sm:$0xff]
    %v6130 = vld [vmem:[%s9 + $0x9c8] sm:$0xff]
    %v6131 = vld [vmem:[%s9 + $0x9d0] sm:$0xff]
    %v6132 = vld [vmem:[%s9 + $0x9d8] sm:$0xff]
    %v6133 = vld [vmem:[%s9 + $0x9e0] sm:$0xff]
    %v6134 = vld [vmem:[%s9 + $0x9e8] sm:$0xff]
    %v6135 = vld [vmem:[%s9 + $0x9f0] sm:$0xff]
    %v6136 = vld [vmem:[%s9 + $0x9f8] sm:$0xff]
    %v6137 = vld [vmem:[%s9 + $0xa00] sm:$0xff]
    %v6138 = vld [vmem:[%s9 + $0xa08] sm:$0xff]
    %v6139 = vld [vmem:[%s9 + $0xa10] sm:$0xff]
    %v6140 = vld [vmem:[%s9 + $0xa18] sm:$0xff]
    %v6141 = vld [vmem:[%s9 + $0xa20] sm:$0xff]
    %v6142 = vld [vmem:[%s9 + $0xa28] sm:$0xff]
    %v6143 = vld [vmem:[%s9 + $0xa30] sm:$0xff]
    %v6144 = vld [vmem:[%s9 + $0xa38] sm:$0xff]
    %v6145 = vld [vmem:[%s9 + $0xa40] sm:$0xff]
    %v6146 = vld [vmem:[%s9 + $0xa48] sm:$0xff]
    %v6147 = vld [vmem:[%s9 + $0xa50] sm:$0xff]
    %v6148 = vld [vmem:[%s9 + $0xa58] sm:$0xff]
    %v6149 = vld [vmem:[%s9 + $0xa60] sm:$0xff]
    %v6150 = vld [vmem:[%s9 + $0xa68] sm:$0xff]
    %v6151 = vld [vmem:[%s9 + $0xa70] sm:$0xff]
    %v6152 = vld [vmem:[%s9 + $0xa78] sm:$0xff]
    %v6153 = vld [vmem:[%s9 + $0xa80] sm:$0xff]
    %v6154 = vld [vmem:[%s9 + $0xa88] sm:$0xff]
    %v6155 = vld [vmem:[%s9 + $0xa90] sm:$0xff]
    %v6156 = vld [vmem:[%s9 + $0xa98] sm:$0xff]
    %v6157 = vld [vmem:[%s9 + $0xaa0] sm:$0xff]
    %v6158 = vld [vmem:[%s9 + $0xaa8] sm:$0xff]
    %v6159 = vld [vmem:[%s9 + $0xab0] sm:$0xff]
    %v6160 = vld [vmem:[%s9 + $0xab8] sm:$0xff]
    %v6161 = vld [vmem:[%s9 + $0xac0] sm:$0xff]
    %v6162 = vld [vmem:[%s9 + $0xac8] sm:$0xff]
    %v6163 = vld [vmem:[%s9 + $0xad0] sm:$0xff]
    %v6164 = vld [vmem:[%s9 + $0xad8] sm:$0xff]
    %v6165 = vld [vmem:[%s9 + $0xae0] sm:$0xff]
    %v6166 = vld [vmem:[%s9 + $0xae8] sm:$0xff]
    %v6167 = vld [vmem:[%s9 + $0xaf0] sm:$0xff]
    %v6168 = vld [vmem:[%s9 + $0xaf8] sm:$0xff]
    %v6169 = vld [vmem:[%s9 + $0xb00] sm:$0xff]
    %v6170 = vld [vmem:[%s9 + $0xb08] sm:$0xff]
    %v6171 = vld [vmem:[%s9 + $0xb10] sm:$0xff]
    %v6172 = vld [vmem:[%s9 + $0xb18] sm:$0xff]
    %v6173 = vld [vmem:[%s9 + $0xb20] sm:$0xff]
    %v6174 = vld [vmem:[%s9 + $0xb28] sm:$0xff]
    %v6175 = vld [vmem:[%s9 + $0xb30] sm:$0xff]
    %v6176 = vld [vmem:[%s9 + $0xb38] sm:$0xff]
    %v6177 = vld [vmem:[%s9 + $0xb40] sm:$0xff]
    %v6178 = vld [vmem:[%s9 + $0xb48] sm:$0xff]
    %v6179 = vld [vmem:[%s9 + $0xb50] sm:$0xff]
    %v6180 = vld [vmem:[%s9 + $0xb58] sm:$0xff]
    %v6181 = vld [vmem:[%s9 + $0xb60] sm:$0xff]
    %v6182 = vld [vmem:[%s9 + $0xb68] sm:$0xff]
    %v6183 = vld [vmem:[%s9 + $0xb70] sm:$0xff]
    %v6184 = vld [vmem:[%s9 + $0xb78] sm:$0xff]
    %v6185 = vld [vmem:[%s9 + $0xb80] sm:$0xff]
    %v6186 = vld [vmem:[%s9 + $0xb88] sm:$0xff]
    %v6187 = vld [vmem:[%s9 + $0xb90] sm:$0xff]
    %v6188 = vld [vmem:[%s9 + $0xb98] sm:$0xff]
    %v6189 = vld [vmem:[%s9 + $0xba0] sm:$0xff]
    %v6190 = vld [vmem:[%s9 + $0xba8] sm:$0xff]
    %v6191 = vld [vmem:[%s9 + $0xbb0] sm:$0xff]
    %v6192 = vld [vmem:[%s9 + $0xbb8] sm:$0xff]
    %v6193 = vld [vmem:[%s9 + $0xbc0] sm:$0xff]
    %v6194 = vld [vmem:[%s9 + $0xbc8] sm:$0xff]
    %v6195 = vld [vmem:[%s9 + $0xbd0] sm:$0xff]
    %v6196 = vld [vmem:[%s9 + $0xbd8] sm:$0xff]
    %v6197 = vld [vmem:[%s9 + $0xbe0] sm:$0xff]
    %v6198 = vld [vmem:[%s9 + $0xbe8] sm:$0xff]
    %v6199 = vld [vmem:[%s9 + $0xbf0] sm:$0xff]
    %v6200 = vld [vmem:[%s9 + $0xbf8] sm:$0xff]
    %v6201 = vld [vmem:[%s10] sm:$0xf]
    %v6203 = vlaneseq
    %v6204 = vshrl.u32 %v6203, 7
    %v6205 = vsub.s32 0, %v6204
    %v6206 = vrot.slane %v6201, %v6205
    %v6207 = vlaneseq
    %v6208 = vshrl.u32 %v6207, 7
    %v6209 = vsub.s32 1, %v6208
    %v6210 = vrot.slane %v6201, %v6209
    %v6211 = vlaneseq
    %v6212 = vshrl.u32 %v6211, 7
    %v6213 = vsub.s32 2, %v6212
    %v6214 = vrot.slane %v6201, %v6213
    %v6215 = vlaneseq
    %v6216 = vshrl.u32 %v6215, 7
    %v6217 = vsub.s32 3, %v6216
    %v6218 = vrot.slane %v6201, %v6217
    %v6607 = vunpack.c.l.b16 %v5817
    %v6608 = vunpack.c.h.b16 %v5817
    %v6609 = vunpack.c.l.b16 %v5818
    %v6610 = vunpack.c.h.b16 %v5818
    %v6611 = vunpack.c.l.b16 %v5819
    %v6612 = vunpack.c.h.b16 %v5819
    %v6613 = vunpack.c.l.b16 %v5820
    %v6614 = vunpack.c.h.b16 %v5820
    %v6615 = vunpack.c.l.b16 %v5821
    %v6616 = vunpack.c.h.b16 %v5821
    %v6617 = vunpack.c.l.b16 %v5822
    %v6618 = vunpack.c.h.b16 %v5822
    %v6619 = vunpack.c.l.b16 %v5823
    %v6620 = vunpack.c.h.b16 %v5823
    %v6621 = vunpack.c.l.b16 %v5824
    %v6622 = vunpack.c.h.b16 %v5824
    %v6623 = vunpack.c.l.b16 %v5825
    %v6624 = vunpack.c.h.b16 %v5825
    %v6625 = vunpack.c.l.b16 %v5826
    %v6626 = vunpack.c.h.b16 %v5826
    %v6627 = vunpack.c.l.b16 %v5827
    %v6628 = vunpack.c.h.b16 %v5827
    %v6629 = vunpack.c.l.b16 %v5828
    %v6630 = vunpack.c.h.b16 %v5828
    %v6631 = vunpack.c.l.b16 %v5829
    %v6632 = vunpack.c.h.b16 %v5829
    %v6633 = vunpack.c.l.b16 %v5830
    %v6634 = vunpack.c.h.b16 %v5830
    %v6635 = vunpack.c.l.b16 %v5831
    %v6636 = vunpack.c.h.b16 %v5831
    %v6637 = vunpack.c.l.b16 %v5832
    %v6638 = vunpack.c.h.b16 %v5832
    %v6639 = vunpack.c.l.b16 %v5833
    %v6640 = vunpack.c.h.b16 %v5833
    %v6641 = vunpack.c.l.b16 %v5834
    %v6642 = vunpack.c.h.b16 %v5834
    %v6643 = vunpack.c.l.b16 %v5835
    %v6644 = vunpack.c.h.b16 %v5835
    %v6645 = vunpack.c.l.b16 %v5836
    %v6646 = vunpack.c.h.b16 %v5836
    %v6647 = vunpack.c.l.b16 %v5837
    %v6648 = vunpack.c.h.b16 %v5837
    %v6649 = vunpack.c.l.b16 %v5838
    %v6650 = vunpack.c.h.b16 %v5838
    %v6651 = vunpack.c.l.b16 %v5839
    %v6652 = vunpack.c.h.b16 %v5839
    %v6653 = vunpack.c.l.b16 %v5840
    %v6654 = vunpack.c.h.b16 %v5840
    %v6655 = vunpack.c.l.b16 %v5841
    %v6656 = vunpack.c.h.b16 %v5841
    %v6657 = vunpack.c.l.b16 %v5842
    %v6658 = vunpack.c.h.b16 %v5842
    %v6659 = vunpack.c.l.b16 %v5843
    %v6660 = vunpack.c.h.b16 %v5843
    %v6661 = vunpack.c.l.b16 %v5844
    %v6662 = vunpack.c.h.b16 %v5844
    %v6663 = vunpack.c.l.b16 %v5845
    %v6664 = vunpack.c.h.b16 %v5845
    %v6665 = vunpack.c.l.b16 %v5846
    %v6666 = vunpack.c.h.b16 %v5846
    %v6667 = vunpack.c.l.b16 %v5847
    %v6668 = vunpack.c.h.b16 %v5847
    %v6669 = vunpack.c.l.b16 %v5848
    %v6670 = vunpack.c.h.b16 %v5848
    %v6671 = vunpack.c.l.b16 %v5849
    %v6672 = vunpack.c.h.b16 %v5849
    %v6673 = vunpack.c.l.b16 %v5850
    %v6674 = vunpack.c.h.b16 %v5850
    %v6675 = vunpack.c.l.b16 %v5851
    %v6676 = vunpack.c.h.b16 %v5851
    %v6677 = vunpack.c.l.b16 %v5852
    %v6678 = vunpack.c.h.b16 %v5852
    %v6679 = vunpack.c.l.b16 %v5853
    %v6680 = vunpack.c.h.b16 %v5853
    %v6681 = vunpack.c.l.b16 %v5854
    %v6682 = vunpack.c.h.b16 %v5854
    %v6683 = vunpack.c.l.b16 %v5855
    %v6684 = vunpack.c.h.b16 %v5855
    %v6685 = vunpack.c.l.b16 %v5856
    %v6686 = vunpack.c.h.b16 %v5856
    %v6687 = vunpack.c.l.b16 %v5857
    %v6688 = vunpack.c.h.b16 %v5857
    %v6689 = vunpack.c.l.b16 %v5858
    %v6690 = vunpack.c.h.b16 %v5858
    %v6691 = vunpack.c.l.b16 %v5859
    %v6692 = vunpack.c.h.b16 %v5859
    %v6693 = vunpack.c.l.b16 %v5860
    %v6694 = vunpack.c.h.b16 %v5860
    %v6695 = vunpack.c.l.b16 %v5861
    %v6696 = vunpack.c.h.b16 %v5861
    %v6697 = vunpack.c.l.b16 %v5862
    %v6698 = vunpack.c.h.b16 %v5862
    %v6699 = vunpack.c.l.b16 %v5863
    %v6700 = vunpack.c.h.b16 %v5863
    %v6701 = vunpack.c.l.b16 %v5864
    %v6702 = vunpack.c.h.b16 %v5864
    %v6703 = vunpack.c.l.b16 %v5865
    %v6704 = vunpack.c.h.b16 %v5865
    %v6705 = vunpack.c.l.b16 %v5866
    %v6706 = vunpack.c.h.b16 %v5866
    %v6707 = vunpack.c.l.b16 %v5867
    %v6708 = vunpack.c.h.b16 %v5867
    %v6709 = vunpack.c.l.b16 %v5868
    %v6710 = vunpack.c.h.b16 %v5868
    %v6711 = vunpack.c.l.b16 %v5869
    %v6712 = vunpack.c.h.b16 %v5869
    %v6713 = vunpack.c.l.b16 %v5870
    %v6714 = vunpack.c.h.b16 %v5870
    %v6715 = vunpack.c.l.b16 %v5871
    %v6716 = vunpack.c.h.b16 %v5871
    %v6717 = vunpack.c.l.b16 %v5872
    %v6718 = vunpack.c.h.b16 %v5872
    %v6719 = vunpack.c.l.b16 %v5873
    %v6720 = vunpack.c.h.b16 %v5873
    %v6721 = vunpack.c.l.b16 %v5874
    %v6722 = vunpack.c.h.b16 %v5874
    %v6723 = vunpack.c.l.b16 %v5875
    %v6724 = vunpack.c.h.b16 %v5875
    %v6725 = vunpack.c.l.b16 %v5876
    %v6726 = vunpack.c.h.b16 %v5876
    %v6727 = vunpack.c.l.b16 %v5877
    %v6728 = vunpack.c.h.b16 %v5877
    %v6729 = vunpack.c.l.b16 %v5878
    %v6730 = vunpack.c.h.b16 %v5878
    %v6731 = vunpack.c.l.b16 %v5879
    %v6732 = vunpack.c.h.b16 %v5879
    %v6733 = vunpack.c.l.b16 %v5880
    %v6734 = vunpack.c.h.b16 %v5880
    %v6735 = vunpack.c.l.b16 %v5881
    %v6736 = vunpack.c.h.b16 %v5881
    %v6737 = vunpack.c.l.b16 %v5882
    %v6738 = vunpack.c.h.b16 %v5882
    %v6739 = vunpack.c.l.b16 %v5883
    %v6740 = vunpack.c.h.b16 %v5883
    %v6741 = vunpack.c.l.b16 %v5884
    %v6742 = vunpack.c.h.b16 %v5884
    %v6743 = vunpack.c.l.b16 %v5885
    %v6744 = vunpack.c.h.b16 %v5885
    %v6745 = vunpack.c.l.b16 %v5886
    %v6746 = vunpack.c.h.b16 %v5886
    %v6747 = vunpack.c.l.b16 %v5887
    %v6748 = vunpack.c.h.b16 %v5887
    %v6749 = vunpack.c.l.b16 %v5888
    %v6750 = vunpack.c.h.b16 %v5888
    %v6751 = vunpack.c.l.b16 %v5889
    %v6752 = vunpack.c.h.b16 %v5889
    %v6753 = vunpack.c.l.b16 %v5890
    %v6754 = vunpack.c.h.b16 %v5890
    %v6755 = vunpack.c.l.b16 %v5891
    %v6756 = vunpack.c.h.b16 %v5891
    %v6757 = vunpack.c.l.b16 %v5892
    %v6758 = vunpack.c.h.b16 %v5892
    %v6759 = vunpack.c.l.b16 %v5893
    %v6760 = vunpack.c.h.b16 %v5893
    %v6761 = vunpack.c.l.b16 %v5894
    %v6762 = vunpack.c.h.b16 %v5894
    %v6763 = vunpack.c.l.b16 %v5895
    %v6764 = vunpack.c.h.b16 %v5895
    %v6765 = vunpack.c.l.b16 %v5896
    %v6766 = vunpack.c.h.b16 %v5896
    %v6767 = vunpack.c.l.b16 %v5897
    %v6768 = vunpack.c.h.b16 %v5897
    %v6769 = vunpack.c.l.b16 %v5898
    %v6770 = vunpack.c.h.b16 %v5898
    %v6771 = vunpack.c.l.b16 %v5899
    %v6772 = vunpack.c.h.b16 %v5899
    %v6773 = vunpack.c.l.b16 %v5900
    %v6774 = vunpack.c.h.b16 %v5900
    %v6775 = vunpack.c.l.b16 %v5901
    %v6776 = vunpack.c.h.b16 %v5901
    %v6777 = vunpack.c.l.b16 %v5902
    %v6778 = vunpack.c.h.b16 %v5902
    %v6779 = vunpack.c.l.b16 %v5903
    %v6780 = vunpack.c.h.b16 %v5903
    %v6781 = vunpack.c.l.b16 %v5904
    %v6782 = vunpack.c.h.b16 %v5904
    %v6783 = vunpack.c.l.b16 %v5905
    %v6784 = vunpack.c.h.b16 %v5905
    %v6785 = vunpack.c.l.b16 %v5906
    %v6786 = vunpack.c.h.b16 %v5906
    %v6787 = vunpack.c.l.b16 %v5907
    %v6788 = vunpack.c.h.b16 %v5907
    %v6789 = vunpack.c.l.b16 %v5908
    %v6790 = vunpack.c.h.b16 %v5908
    %v6791 = vunpack.c.l.b16 %v5909
    %v6792 = vunpack.c.h.b16 %v5909
    %v6793 = vunpack.c.l.b16 %v5910
    %v6794 = vunpack.c.h.b16 %v5910
    %v6795 = vunpack.c.l.b16 %v5911
    %v6796 = vunpack.c.h.b16 %v5911
    %v6797 = vunpack.c.l.b16 %v5912
    %v6798 = vunpack.c.h.b16 %v5912
    %v6799 = vunpack.c.l.b16 %v5913
    %v6800 = vunpack.c.h.b16 %v5913
    %v6801 = vunpack.c.l.b16 %v5914
    %v6802 = vunpack.c.h.b16 %v5914
    %v6803 = vunpack.c.l.b16 %v5915
    %v6804 = vunpack.c.h.b16 %v5915
    %v6805 = vunpack.c.l.b16 %v5916
    %v6806 = vunpack.c.h.b16 %v5916
    %v6807 = vunpack.c.l.b16 %v5917
    %v6808 = vunpack.c.h.b16 %v5917
    %v6809 = vunpack.c.l.b16 %v5918
    %v6810 = vunpack.c.h.b16 %v5918
    %v6811 = vunpack.c.l.b16 %v5919
    %v6812 = vunpack.c.h.b16 %v5919
    %v6813 = vunpack.c.l.b16 %v5920
    %v6814 = vunpack.c.h.b16 %v5920
    %v6815 = vunpack.c.l.b16 %v5921
    %v6816 = vunpack.c.h.b16 %v5921
    %v6817 = vunpack.c.l.b16 %v5922
    %v6818 = vunpack.c.h.b16 %v5922
    %v6819 = vunpack.c.l.b16 %v5923
    %v6820 = vunpack.c.h.b16 %v5923
    %v6821 = vunpack.c.l.b16 %v5924
    %v6822 = vunpack.c.h.b16 %v5924
    %v6823 = vunpack.c.l.b16 %v5925
    %v6824 = vunpack.c.h.b16 %v5925
    %v6825 = vunpack.c.l.b16 %v5926
    %v6826 = vunpack.c.h.b16 %v5926
    %v6827 = vunpack.c.l.b16 %v5927
    %v6828 = vunpack.c.h.b16 %v5927
    %v6829 = vunpack.c.l.b16 %v5928
    %v6830 = vunpack.c.h.b16 %v5928
    %v6831 = vunpack.c.l.b16 %v5929
    %v6832 = vunpack.c.h.b16 %v5929
    %v6833 = vunpack.c.l.b16 %v5930
    %v6834 = vunpack.c.h.b16 %v5930
    %v6835 = vunpack.c.l.b16 %v5931
    %v6836 = vunpack.c.h.b16 %v5931
    %v6837 = vunpack.c.l.b16 %v5932
    %v6838 = vunpack.c.h.b16 %v5932
    %v6839 = vunpack.c.l.b16 %v5933
    %v6840 = vunpack.c.h.b16 %v5933
    %v6841 = vunpack.c.l.b16 %v5934
    %v6842 = vunpack.c.h.b16 %v5934
    %v6843 = vunpack.c.l.b16 %v5935
    %v6844 = vunpack.c.h.b16 %v5935
    %v6845 = vunpack.c.l.b16 %v5936
    %v6846 = vunpack.c.h.b16 %v5936
    %v6847 = vunpack.c.l.b16 %v5937
    %v6848 = vunpack.c.h.b16 %v5937
    %v6849 = vunpack.c.l.b16 %v5938
    %v6850 = vunpack.c.h.b16 %v5938
    %v6851 = vunpack.c.l.b16 %v5939
    %v6852 = vunpack.c.h.b16 %v5939
    %v6853 = vunpack.c.l.b16 %v5940
    %v6854 = vunpack.c.h.b16 %v5940
    %v6855 = vunpack.c.l.b16 %v5941
    %v6856 = vunpack.c.h.b16 %v5941
    %v6857 = vunpack.c.l.b16 %v5942
    %v6858 = vunpack.c.h.b16 %v5942
    %v6859 = vunpack.c.l.b16 %v5943
    %v6860 = vunpack.c.h.b16 %v5943
    %v6861 = vunpack.c.l.b16 %v5944
    %v6862 = vunpack.c.h.b16 %v5944
    %v6863 = vunpack.c.l.b16 %v5945
    %v6864 = vunpack.c.h.b16 %v5945
    %v6865 = vunpack.c.l.b16 %v5946
    %v6866 = vunpack.c.h.b16 %v5946
    %v6867 = vunpack.c.l.b16 %v5947
    %v6868 = vunpack.c.h.b16 %v5947
    %v6869 = vunpack.c.l.b16 %v5948
    %v6870 = vunpack.c.h.b16 %v5948
    %v6871 = vunpack.c.l.b16 %v5949
    %v6872 = vunpack.c.h.b16 %v5949
    %v6873 = vunpack.c.l.b16 %v5950
    %v6874 = vunpack.c.h.b16 %v5950
    %v6875 = vunpack.c.l.b16 %v5951
    %v6876 = vunpack.c.h.b16 %v5951
    %v6877 = vunpack.c.l.b16 %v5952
    %v6878 = vunpack.c.h.b16 %v5952
    %v6879 = vunpack.c.l.b16 %v5953
    %v6880 = vunpack.c.h.b16 %v5953
    %v6881 = vunpack.c.l.b16 %v5954
    %v6882 = vunpack.c.h.b16 %v5954
    %v6883 = vunpack.c.l.b16 %v5955
    %v6884 = vunpack.c.h.b16 %v5955
    %v6885 = vunpack.c.l.b16 %v5956
    %v6886 = vunpack.c.h.b16 %v5956
    %v6887 = vunpack.c.l.b16 %v5957
    %v6888 = vunpack.c.h.b16 %v5957
    %v6889 = vunpack.c.l.b16 %v5958
    %v6890 = vunpack.c.h.b16 %v5958
    %v6891 = vunpack.c.l.b16 %v5959
    %v6892 = vunpack.c.h.b16 %v5959
    %v6893 = vunpack.c.l.b16 %v5960
    %v6894 = vunpack.c.h.b16 %v5960
    %v6895 = vunpack.c.l.b16 %v5961
    %v6896 = vunpack.c.h.b16 %v5961
    %v6897 = vunpack.c.l.b16 %v5962
    %v6898 = vunpack.c.h.b16 %v5962
    %v6899 = vunpack.c.l.b16 %v5963
    %v6900 = vunpack.c.h.b16 %v5963
    %v6901 = vunpack.c.l.b16 %v5964
    %v6902 = vunpack.c.h.b16 %v5964
    %v6903 = vunpack.c.l.b16 %v5965
    %v6904 = vunpack.c.h.b16 %v5965
    %v6905 = vunpack.c.l.b16 %v5966
    %v6906 = vunpack.c.h.b16 %v5966
    %v6907 = vunpack.c.l.b16 %v5967
    %v6908 = vunpack.c.h.b16 %v5967
    %v6909 = vunpack.c.l.b16 %v5968
    %v6910 = vunpack.c.h.b16 %v5968
    %v6911 = vunpack.c.l.b16 %v5969
    %v6912 = vunpack.c.h.b16 %v5969
    %v6913 = vunpack.c.l.b16 %v5970
    %v6914 = vunpack.c.h.b16 %v5970
    %v6915 = vunpack.c.l.b16 %v5971
    %v6916 = vunpack.c.h.b16 %v5971
    %v6917 = vunpack.c.l.b16 %v5972
    %v6918 = vunpack.c.h.b16 %v5972
    %v6919 = vunpack.c.l.b16 %v5973
    %v6920 = vunpack.c.h.b16 %v5973
    %v6921 = vunpack.c.l.b16 %v5974
    %v6922 = vunpack.c.h.b16 %v5974
    %v6923 = vunpack.c.l.b16 %v5975
    %v6924 = vunpack.c.h.b16 %v5975
    %v6925 = vunpack.c.l.b16 %v5976
    %v6926 = vunpack.c.h.b16 %v5976
    %v6927 = vunpack.c.l.b16 %v5977
    %v6928 = vunpack.c.h.b16 %v5977
    %v6929 = vunpack.c.l.b16 %v5978
    %v6930 = vunpack.c.h.b16 %v5978
    %v6931 = vunpack.c.l.b16 %v5979
    %v6932 = vunpack.c.h.b16 %v5979
    %v6933 = vunpack.c.l.b16 %v5980
    %v6934 = vunpack.c.h.b16 %v5980
    %v6935 = vunpack.c.l.b16 %v5981
    %v6936 = vunpack.c.h.b16 %v5981
    %v6937 = vunpack.c.l.b16 %v5982
    %v6938 = vunpack.c.h.b16 %v5982
    %v6939 = vunpack.c.l.b16 %v5983
    %v6940 = vunpack.c.h.b16 %v5983
    %v6941 = vunpack.c.l.b16 %v5984
    %v6942 = vunpack.c.h.b16 %v5984
    %v6943 = vunpack.c.l.b16 %v5985
    %v6944 = vunpack.c.h.b16 %v5985
    %v6945 = vunpack.c.l.b16 %v5986
    %v6946 = vunpack.c.h.b16 %v5986
    %v6947 = vunpack.c.l.b16 %v5987
    %v6948 = vunpack.c.h.b16 %v5987
    %v6949 = vunpack.c.l.b16 %v5988
    %v6950 = vunpack.c.h.b16 %v5988
    %v6951 = vunpack.c.l.b16 %v5989
    %v6952 = vunpack.c.h.b16 %v5989
    %v6953 = vunpack.c.l.b16 %v5990
    %v6954 = vunpack.c.h.b16 %v5990
    %v6955 = vunpack.c.l.b16 %v5991
    %v6956 = vunpack.c.h.b16 %v5991
    %v6957 = vunpack.c.l.b16 %v5992
    %v6958 = vunpack.c.h.b16 %v5992
    %v6959 = vunpack.c.l.b16 %v5993
    %v6960 = vunpack.c.h.b16 %v5993
    %v6961 = vunpack.c.l.b16 %v5994
    %v6962 = vunpack.c.h.b16 %v5994
    %v6963 = vunpack.c.l.b16 %v5995
    %v6964 = vunpack.c.h.b16 %v5995
    %v6965 = vunpack.c.l.b16 %v5996
    %v6966 = vunpack.c.h.b16 %v5996
    %v6967 = vunpack.c.l.b16 %v5997
    %v6968 = vunpack.c.h.b16 %v5997
    %v6969 = vunpack.c.l.b16 %v5998
    %v6970 = vunpack.c.h.b16 %v5998
    %v6971 = vunpack.c.l.b16 %v5999
    %v6972 = vunpack.c.h.b16 %v5999
    %v6973 = vunpack.c.l.b16 %v6000
    %v6974 = vunpack.c.h.b16 %v6000
    %v6975 = vunpack.c.l.b16 %v6001
    %v6976 = vunpack.c.h.b16 %v6001
    %v6977 = vunpack.c.l.b16 %v6002
    %v6978 = vunpack.c.h.b16 %v6002
    %v6979 = vunpack.c.l.b16 %v6003
    %v6980 = vunpack.c.h.b16 %v6003
    %v6981 = vunpack.c.l.b16 %v6004
    %v6982 = vunpack.c.h.b16 %v6004
    %v6983 = vunpack.c.l.b16 %v6005
    %v6984 = vunpack.c.h.b16 %v6005
    %v6985 = vunpack.c.l.b16 %v6006
    %v6986 = vunpack.c.h.b16 %v6006
    %v6987 = vunpack.c.l.b16 %v6007
    %v6988 = vunpack.c.h.b16 %v6007
    %v6989 = vunpack.c.l.b16 %v6008
    %v6990 = vunpack.c.h.b16 %v6008
    %v6991 = vunpack.c.l.b16 %v6009
    %v6992 = vunpack.c.h.b16 %v6009
    %v6993 = vunpack.c.l.b16 %v6010
    %v6994 = vunpack.c.h.b16 %v6010
    %v6995 = vunpack.c.l.b16 %v6011
    %v6996 = vunpack.c.h.b16 %v6011
    %v6997 = vunpack.c.l.b16 %v6012
    %v6998 = vunpack.c.h.b16 %v6012
    %v6999 = vunpack.c.l.b16 %v6013
    %v7000 = vunpack.c.h.b16 %v6013
    %v7001 = vunpack.c.l.b16 %v6014
    %v7002 = vunpack.c.h.b16 %v6014
    %v7003 = vunpack.c.l.b16 %v6015
    %v7004 = vunpack.c.h.b16 %v6015
    %v7005 = vunpack.c.l.b16 %v6016
    %v7006 = vunpack.c.h.b16 %v6016
    %v7007 = vunpack.c.l.b16 %v6017
    %v7008 = vunpack.c.h.b16 %v6017
    %v7009 = vunpack.c.l.b16 %v6018
    %v7010 = vunpack.c.h.b16 %v6018
    %v7011 = vunpack.c.l.b16 %v6019
    %v7012 = vunpack.c.h.b16 %v6019
    %v7013 = vunpack.c.l.b16 %v6020
    %v7014 = vunpack.c.h.b16 %v6020
    %v7015 = vunpack.c.l.b16 %v6021
    %v7016 = vunpack.c.h.b16 %v6021
    %v7017 = vunpack.c.l.b16 %v6022
    %v7018 = vunpack.c.h.b16 %v6022
    %v7019 = vunpack.c.l.b16 %v6023
    %v7020 = vunpack.c.h.b16 %v6023
    %v7021 = vunpack.c.l.b16 %v6024
    %v7022 = vunpack.c.h.b16 %v6024
    %v7023 = vunpack.c.l.b16 %v6025
    %v7024 = vunpack.c.h.b16 %v6025
    %v7025 = vunpack.c.l.b16 %v6026
    %v7026 = vunpack.c.h.b16 %v6026
    %v7027 = vunpack.c.l.b16 %v6027
    %v7028 = vunpack.c.h.b16 %v6027
    %v7029 = vunpack.c.l.b16 %v6028
    %v7030 = vunpack.c.h.b16 %v6028
    %v7031 = vunpack.c.l.b16 %v6029
    %v7032 = vunpack.c.h.b16 %v6029
    %v7033 = vunpack.c.l.b16 %v6030
    %v7034 = vunpack.c.h.b16 %v6030
    %v7035 = vunpack.c.l.b16 %v6031
    %v7036 = vunpack.c.h.b16 %v6031
    %v7037 = vunpack.c.l.b16 %v6032
    %v7038 = vunpack.c.h.b16 %v6032
    %v7039 = vunpack.c.l.b16 %v6033
    %v7040 = vunpack.c.h.b16 %v6033
    %v7041 = vunpack.c.l.b16 %v6034
    %v7042 = vunpack.c.h.b16 %v6034
    %v7043 = vunpack.c.l.b16 %v6035
    %v7044 = vunpack.c.h.b16 %v6035
    %v7045 = vunpack.c.l.b16 %v6036
    %v7046 = vunpack.c.h.b16 %v6036
    %v7047 = vunpack.c.l.b16 %v6037
    %v7048 = vunpack.c.h.b16 %v6037
    %v7049 = vunpack.c.l.b16 %v6038
    %v7050 = vunpack.c.h.b16 %v6038
    %v7051 = vunpack.c.l.b16 %v6039
    %v7052 = vunpack.c.h.b16 %v6039
    %v7053 = vunpack.c.l.b16 %v6040
    %v7054 = vunpack.c.h.b16 %v6040
    %v7055 = vunpack.c.l.b16 %v6041
    %v7056 = vunpack.c.h.b16 %v6041
    %v7057 = vunpack.c.l.b16 %v6042
    %v7058 = vunpack.c.h.b16 %v6042
    %v7059 = vunpack.c.l.b16 %v6043
    %v7060 = vunpack.c.h.b16 %v6043
    %v7061 = vunpack.c.l.b16 %v6044
    %v7062 = vunpack.c.h.b16 %v6044
    %v7063 = vunpack.c.l.b16 %v6045
    %v7064 = vunpack.c.h.b16 %v6045
    %v7065 = vunpack.c.l.b16 %v6046
    %v7066 = vunpack.c.h.b16 %v6046
    %v7067 = vunpack.c.l.b16 %v6047
    %v7068 = vunpack.c.h.b16 %v6047
    %v7069 = vunpack.c.l.b16 %v6048
    %v7070 = vunpack.c.h.b16 %v6048
    %v7071 = vunpack.c.l.b16 %v6049
    %v7072 = vunpack.c.h.b16 %v6049
    %v7073 = vunpack.c.l.b16 %v6050
    %v7074 = vunpack.c.h.b16 %v6050
    %v7075 = vunpack.c.l.b16 %v6051
    %v7076 = vunpack.c.h.b16 %v6051
    %v7077 = vunpack.c.l.b16 %v6052
    %v7078 = vunpack.c.h.b16 %v6052
    %v7079 = vunpack.c.l.b16 %v6053
    %v7080 = vunpack.c.h.b16 %v6053
    %v7081 = vunpack.c.l.b16 %v6054
    %v7082 = vunpack.c.h.b16 %v6054
    %v7083 = vunpack.c.l.b16 %v6055
    %v7084 = vunpack.c.h.b16 %v6055
    %v7085 = vunpack.c.l.b16 %v6056
    %v7086 = vunpack.c.h.b16 %v6056
    %v7087 = vunpack.c.l.b16 %v6057
    %v7088 = vunpack.c.h.b16 %v6057
    %v7089 = vunpack.c.l.b16 %v6058
    %v7090 = vunpack.c.h.b16 %v6058
    %v7091 = vunpack.c.l.b16 %v6059
    %v7092 = vunpack.c.h.b16 %v6059
    %v7093 = vunpack.c.l.b16 %v6060
    %v7094 = vunpack.c.h.b16 %v6060
    %v7095 = vunpack.c.l.b16 %v6061
    %v7096 = vunpack.c.h.b16 %v6061
    %v7097 = vunpack.c.l.b16 %v6062
    %v7098 = vunpack.c.h.b16 %v6062
    %v7099 = vunpack.c.l.b16 %v6063
    %v7100 = vunpack.c.h.b16 %v6063
    %v7101 = vunpack.c.l.b16 %v6064
    %v7102 = vunpack.c.h.b16 %v6064
    %v7103 = vunpack.c.l.b16 %v6065
    %v7104 = vunpack.c.h.b16 %v6065
    %v7105 = vunpack.c.l.b16 %v6066
    %v7106 = vunpack.c.h.b16 %v6066
    %v7107 = vunpack.c.l.b16 %v6067
    %v7108 = vunpack.c.h.b16 %v6067
    %v7109 = vunpack.c.l.b16 %v6068
    %v7110 = vunpack.c.h.b16 %v6068
    %v7111 = vunpack.c.l.b16 %v6069
    %v7112 = vunpack.c.h.b16 %v6069
    %v7113 = vunpack.c.l.b16 %v6070
    %v7114 = vunpack.c.h.b16 %v6070
    %v7115 = vunpack.c.l.b16 %v6071
    %v7116 = vunpack.c.h.b16 %v6071
    %v7117 = vunpack.c.l.b16 %v6072
    %v7118 = vunpack.c.h.b16 %v6072
    %v7119 = vunpack.c.l.b16 %v6073
    %v7120 = vunpack.c.h.b16 %v6073
    %v7121 = vunpack.c.l.b16 %v6074
    %v7122 = vunpack.c.h.b16 %v6074
    %v7123 = vunpack.c.l.b16 %v6075
    %v7124 = vunpack.c.h.b16 %v6075
    %v7125 = vunpack.c.l.b16 %v6076
    %v7126 = vunpack.c.h.b16 %v6076
    %v7127 = vunpack.c.l.b16 %v6077
    %v7128 = vunpack.c.h.b16 %v6077
    %v7129 = vunpack.c.l.b16 %v6078
    %v7130 = vunpack.c.h.b16 %v6078
    %v7131 = vunpack.c.l.b16 %v6079
    %v7132 = vunpack.c.h.b16 %v6079
    %v7133 = vunpack.c.l.b16 %v6080
    %v7134 = vunpack.c.h.b16 %v6080
    %v7135 = vunpack.c.l.b16 %v6081
    %v7136 = vunpack.c.h.b16 %v6081
    %v7137 = vunpack.c.l.b16 %v6082
    %v7138 = vunpack.c.h.b16 %v6082
    %v7139 = vunpack.c.l.b16 %v6083
    %v7140 = vunpack.c.h.b16 %v6083
    %v7141 = vunpack.c.l.b16 %v6084
    %v7142 = vunpack.c.h.b16 %v6084
    %v7143 = vunpack.c.l.b16 %v6085
    %v7144 = vunpack.c.h.b16 %v6085
    %v7145 = vunpack.c.l.b16 %v6086
    %v7146 = vunpack.c.h.b16 %v6086
    %v7147 = vunpack.c.l.b16 %v6087
    %v7148 = vunpack.c.h.b16 %v6087
    %v7149 = vunpack.c.l.b16 %v6088
    %v7150 = vunpack.c.h.b16 %v6088
    %v7151 = vunpack.c.l.b16 %v6089
    %v7152 = vunpack.c.h.b16 %v6089
    %v7153 = vunpack.c.l.b16 %v6090
    %v7154 = vunpack.c.h.b16 %v6090
    %v7155 = vunpack.c.l.b16 %v6091
    %v7156 = vunpack.c.h.b16 %v6091
    %v7157 = vunpack.c.l.b16 %v6092
    %v7158 = vunpack.c.h.b16 %v6092
    %v7159 = vunpack.c.l.b16 %v6093
    %v7160 = vunpack.c.h.b16 %v6093
    %v7161 = vunpack.c.l.b16 %v6094
    %v7162 = vunpack.c.h.b16 %v6094
    %v7163 = vunpack.c.l.b16 %v6095
    %v7164 = vunpack.c.h.b16 %v6095
    %v7165 = vunpack.c.l.b16 %v6096
    %v7166 = vunpack.c.h.b16 %v6096
    %v7167 = vunpack.c.l.b16 %v6097
    %v7168 = vunpack.c.h.b16 %v6097
    %v7169 = vunpack.c.l.b16 %v6098
    %v7170 = vunpack.c.h.b16 %v6098
    %v7171 = vunpack.c.l.b16 %v6099
    %v7172 = vunpack.c.h.b16 %v6099
    %v7173 = vunpack.c.l.b16 %v6100
    %v7174 = vunpack.c.h.b16 %v6100
    %v7175 = vunpack.c.l.b16 %v6101
    %v7176 = vunpack.c.h.b16 %v6101
    %v7177 = vunpack.c.l.b16 %v6102
    %v7178 = vunpack.c.h.b16 %v6102
    %v7179 = vunpack.c.l.b16 %v6103
    %v7180 = vunpack.c.h.b16 %v6103
    %v7181 = vunpack.c.l.b16 %v6104
    %v7182 = vunpack.c.h.b16 %v6104
    %v7183 = vunpack.c.l.b16 %v6105
    %v7184 = vunpack.c.h.b16 %v6105
    %v7185 = vunpack.c.l.b16 %v6106
    %v7186 = vunpack.c.h.b16 %v6106
    %v7187 = vunpack.c.l.b16 %v6107
    %v7188 = vunpack.c.h.b16 %v6107
    %v7189 = vunpack.c.l.b16 %v6108
    %v7190 = vunpack.c.h.b16 %v6108
    %v7191 = vunpack.c.l.b16 %v6109
    %v7192 = vunpack.c.h.b16 %v6109
    %v7193 = vunpack.c.l.b16 %v6110
    %v7194 = vunpack.c.h.b16 %v6110
    %v7195 = vunpack.c.l.b16 %v6111
    %v7196 = vunpack.c.h.b16 %v6111
    %v7197 = vunpack.c.l.b16 %v6112
    %v7198 = vunpack.c.h.b16 %v6112
    %v7199 = vunpack.c.l.b16 %v6113
    %v7200 = vunpack.c.h.b16 %v6113
    %v7201 = vunpack.c.l.b16 %v6114
    %v7202 = vunpack.c.h.b16 %v6114
    %v7203 = vunpack.c.l.b16 %v6115
    %v7204 = vunpack.c.h.b16 %v6115
    %v7205 = vunpack.c.l.b16 %v6116
    %v7206 = vunpack.c.h.b16 %v6116
    %v7207 = vunpack.c.l.b16 %v6117
    %v7208 = vunpack.c.h.b16 %v6117
    %v7209 = vunpack.c.l.b16 %v6118
    %v7210 = vunpack.c.h.b16 %v6118
    %v7211 = vunpack.c.l.b16 %v6119
    %v7212 = vunpack.c.h.b16 %v6119
    %v7213 = vunpack.c.l.b16 %v6120
    %v7214 = vunpack.c.h.b16 %v6120
    %v7215 = vunpack.c.l.b16 %v6121
    %v7216 = vunpack.c.h.b16 %v6121
    %v7217 = vunpack.c.l.b16 %v6122
    %v7218 = vunpack.c.h.b16 %v6122
    %v7219 = vunpack.c.l.b16 %v6123
    %v7220 = vunpack.c.h.b16 %v6123
    %v7221 = vunpack.c.l.b16 %v6124
    %v7222 = vunpack.c.h.b16 %v6124
    %v7223 = vunpack.c.l.b16 %v6125
    %v7224 = vunpack.c.h.b16 %v6125
    %v7225 = vunpack.c.l.b16 %v6126
    %v7226 = vunpack.c.h.b16 %v6126
    %v7227 = vunpack.c.l.b16 %v6127
    %v7228 = vunpack.c.h.b16 %v6127
    %v7229 = vunpack.c.l.b16 %v6128
    %v7230 = vunpack.c.h.b16 %v6128
    %v7231 = vunpack.c.l.b16 %v6129
    %v7232 = vunpack.c.h.b16 %v6129
    %v7233 = vunpack.c.l.b16 %v6130
    %v7234 = vunpack.c.h.b16 %v6130
    %v7235 = vunpack.c.l.b16 %v6131
    %v7236 = vunpack.c.h.b16 %v6131
    %v7237 = vunpack.c.l.b16 %v6132
    %v7238 = vunpack.c.h.b16 %v6132
    %v7239 = vunpack.c.l.b16 %v6133
    %v7240 = vunpack.c.h.b16 %v6133
    %v7241 = vunpack.c.l.b16 %v6134
    %v7242 = vunpack.c.h.b16 %v6134
    %v7243 = vunpack.c.l.b16 %v6135
    %v7244 = vunpack.c.h.b16 %v6135
    %v7245 = vunpack.c.l.b16 %v6136
    %v7246 = vunpack.c.h.b16 %v6136
    %v7247 = vunpack.c.l.b16 %v6137
    %v7248 = vunpack.c.h.b16 %v6137
    %v7249 = vunpack.c.l.b16 %v6138
    %v7250 = vunpack.c.h.b16 %v6138
    %v7251 = vunpack.c.l.b16 %v6139
    %v7252 = vunpack.c.h.b16 %v6139
    %v7253 = vunpack.c.l.b16 %v6140
    %v7254 = vunpack.c.h.b16 %v6140
    %v7255 = vunpack.c.l.b16 %v6141
    %v7256 = vunpack.c.h.b16 %v6141
    %v7257 = vunpack.c.l.b16 %v6142
    %v7258 = vunpack.c.h.b16 %v6142
    %v7259 = vunpack.c.l.b16 %v6143
    %v7260 = vunpack.c.h.b16 %v6143
    %v7261 = vunpack.c.l.b16 %v6144
    %v7262 = vunpack.c.h.b16 %v6144
    %v7263 = vunpack.c.l.b16 %v6145
    %v7264 = vunpack.c.h.b16 %v6145
    %v7265 = vunpack.c.l.b16 %v6146
    %v7266 = vunpack.c.h.b16 %v6146
    %v7267 = vunpack.c.l.b16 %v6147
    %v7268 = vunpack.c.h.b16 %v6147
    %v7269 = vunpack.c.l.b16 %v6148
    %v7270 = vunpack.c.h.b16 %v6148
    %v7271 = vunpack.c.l.b16 %v6149
    %v7272 = vunpack.c.h.b16 %v6149
    %v7273 = vunpack.c.l.b16 %v6150
    %v7274 = vunpack.c.h.b16 %v6150
    %v7275 = vunpack.c.l.b16 %v6151
    %v7276 = vunpack.c.h.b16 %v6151
    %v7277 = vunpack.c.l.b16 %v6152
    %v7278 = vunpack.c.h.b16 %v6152
    %v7279 = vunpack.c.l.b16 %v6153
    %v7280 = vunpack.c.h.b16 %v6153
    %v7281 = vunpack.c.l.b16 %v6154
    %v7282 = vunpack.c.h.b16 %v6154
    %v7283 = vunpack.c.l.b16 %v6155
    %v7284 = vunpack.c.h.b16 %v6155
    %v7285 = vunpack.c.l.b16 %v6156
    %v7286 = vunpack.c.h.b16 %v6156
    %v7287 = vunpack.c.l.b16 %v6157
    %v7288 = vunpack.c.h.b16 %v6157
    %v7289 = vunpack.c.l.b16 %v6158
    %v7290 = vunpack.c.h.b16 %v6158
    %v7291 = vunpack.c.l.b16 %v6159
    %v7292 = vunpack.c.h.b16 %v6159
    %v7293 = vunpack.c.l.b16 %v6160
    %v7294 = vunpack.c.h.b16 %v6160
    %v7295 = vunpack.c.l.b16 %v6161
    %v7296 = vunpack.c.h.b16 %v6161
    %v7297 = vunpack.c.l.b16 %v6162
    %v7298 = vunpack.c.h.b16 %v6162
    %v7299 = vunpack.c.l.b16 %v6163
    %v7300 = vunpack.c.h.b16 %v6163
    %v7301 = vunpack.c.l.b16 %v6164
    %v7302 = vunpack.c.h.b16 %v6164
    %v7303 = vunpack.c.l.b16 %v6165
    %v7304 = vunpack.c.h.b16 %v6165
    %v7305 = vunpack.c.l.b16 %v6166
    %v7306 = vunpack.c.h.b16 %v6166
    %v7307 = vunpack.c.l.b16 %v6167
    %v7308 = vunpack.c.h.b16 %v6167
    %v7309 = vunpack.c.l.b16 %v6168
    %v7310 = vunpack.c.h.b16 %v6168
    %v7311 = vunpack.c.l.b16 %v6169
    %v7312 = vunpack.c.h.b16 %v6169
    %v7313 = vunpack.c.l.b16 %v6170
    %v7314 = vunpack.c.h.b16 %v6170
    %v7315 = vunpack.c.l.b16 %v6171
    %v7316 = vunpack.c.h.b16 %v6171
    %v7317 = vunpack.c.l.b16 %v6172
    %v7318 = vunpack.c.h.b16 %v6172
    %v7319 = vunpack.c.l.b16 %v6173
    %v7320 = vunpack.c.h.b16 %v6173
    %v7321 = vunpack.c.l.b16 %v6174
    %v7322 = vunpack.c.h.b16 %v6174
    %v7323 = vunpack.c.l.b16 %v6175
    %v7324 = vunpack.c.h.b16 %v6175
    %v7325 = vunpack.c.l.b16 %v6176
    %v7326 = vunpack.c.h.b16 %v6176
    %v7327 = vunpack.c.l.b16 %v6177
    %v7328 = vunpack.c.h.b16 %v6177
    %v7329 = vunpack.c.l.b16 %v6178
    %v7330 = vunpack.c.h.b16 %v6178
    %v7331 = vunpack.c.l.b16 %v6179
    %v7332 = vunpack.c.h.b16 %v6179
    %v7333 = vunpack.c.l.b16 %v6180
    %v7334 = vunpack.c.h.b16 %v6180
    %v7335 = vunpack.c.l.b16 %v6181
    %v7336 = vunpack.c.h.b16 %v6181
    %v7337 = vunpack.c.l.b16 %v6182
    %v7338 = vunpack.c.h.b16 %v6182
    %v7339 = vunpack.c.l.b16 %v6183
    %v7340 = vunpack.c.h.b16 %v6183
    %v7341 = vunpack.c.l.b16 %v6184
    %v7342 = vunpack.c.h.b16 %v6184
    %v7343 = vunpack.c.l.b16 %v6185
    %v7344 = vunpack.c.h.b16 %v6185
    %v7345 = vunpack.c.l.b16 %v6186
    %v7346 = vunpack.c.h.b16 %v6186
    %v7347 = vunpack.c.l.b16 %v6187
    %v7348 = vunpack.c.h.b16 %v6187
    %v7349 = vunpack.c.l.b16 %v6188
    %v7350 = vunpack.c.h.b16 %v6188
    %v7351 = vunpack.c.l.b16 %v6189
    %v7352 = vunpack.c.h.b16 %v6189
    %v7353 = vunpack.c.l.b16 %v6190
    %v7354 = vunpack.c.h.b16 %v6190
    %v7355 = vunpack.c.l.b16 %v6191
    %v7356 = vunpack.c.h.b16 %v6191
    %v7357 = vunpack.c.l.b16 %v6192
    %v7358 = vunpack.c.h.b16 %v6192
    %v7359 = vunpack.c.l.b16 %v6193
    %v7360 = vunpack.c.h.b16 %v6193
    %v7361 = vunpack.c.l.b16 %v6194
    %v7362 = vunpack.c.h.b16 %v6194
    %v7363 = vunpack.c.l.b16 %v6195
    %v7364 = vunpack.c.h.b16 %v6195
    %v7365 = vunpack.c.l.b16 %v6196
    %v7366 = vunpack.c.h.b16 %v6196
    %v7367 = vunpack.c.l.b16 %v6197
    %v7368 = vunpack.c.h.b16 %v6197
    %v7369 = vunpack.c.l.b16 %v6198
    %v7370 = vunpack.c.h.b16 %v6198
    %v7371 = vunpack.c.l.b16 %v6199
    %v7372 = vunpack.c.h.b16 %v6199
    %v7373 = vunpack.c.l.b16 %v6200
    %v7374 = vunpack.c.h.b16 %v6200
    %v7375 = vpack.c.b16 %v6611, %v6607
    %v7376 = vpack.c.b16 %v6612, %v6608
    %v7377 = vpack.c.b16 %v6613, %v6609
    %v7378 = vpack.c.b16 %v6614, %v6610
    %v7379 = vpack.c.b16 %v6619, %v6615
    %v7380 = vpack.c.b16 %v6620, %v6616
    %v7381 = vpack.c.b16 %v6621, %v6617
    %v7382 = vpack.c.b16 %v6622, %v6618
    %v7383 = vpack.c.b16 %v6627, %v6623
    %v7384 = vpack.c.b16 %v6628, %v6624
    %v7385 = vpack.c.b16 %v6629, %v6625
    %v7386 = vpack.c.b16 %v6630, %v6626
    %v7387 = vpack.c.b16 %v6635, %v6631
    %v7388 = vpack.c.b16 %v6636, %v6632
    %v7389 = vpack.c.b16 %v6637, %v6633
    %v7390 = vpack.c.b16 %v6638, %v6634
    %v7391 = vpack.c.b16 %v6643, %v6639
    %v7392 = vpack.c.b16 %v6644, %v6640
    %v7393 = vpack.c.b16 %v6645, %v6641
    %v7394 = vpack.c.b16 %v6646, %v6642
    %v7395 = vpack.c.b16 %v6651, %v6647
    %v7396 = vpack.c.b16 %v6652, %v6648
    %v7397 = vpack.c.b16 %v6653, %v6649
    %v7398 = vpack.c.b16 %v6654, %v6650
    %v7399 = vpack.c.b16 %v6659, %v6655
    %v7400 = vpack.c.b16 %v6660, %v6656
    %v7401 = vpack.c.b16 %v6661, %v6657
    %v7402 = vpack.c.b16 %v6662, %v6658
    %v7403 = vpack.c.b16 %v6667, %v6663
    %v7404 = vpack.c.b16 %v6668, %v6664
    %v7405 = vpack.c.b16 %v6669, %v6665
    %v7406 = vpack.c.b16 %v6670, %v6666
    %v7407 = vpack.c.b16 %v6675, %v6671
    %v7408 = vpack.c.b16 %v6676, %v6672
    %v7409 = vpack.c.b16 %v6677, %v6673
    %v7410 = vpack.c.b16 %v6678, %v6674
    %v7411 = vpack.c.b16 %v6683, %v6679
    %v7412 = vpack.c.b16 %v6684, %v6680
    %v7413 = vpack.c.b16 %v6685, %v6681
    %v7414 = vpack.c.b16 %v6686, %v6682
    %v7415 = vpack.c.b16 %v6691, %v6687
    %v7416 = vpack.c.b16 %v6692, %v6688
    %v7417 = vpack.c.b16 %v6693, %v6689
    %v7418 = vpack.c.b16 %v6694, %v6690
    %v7419 = vpack.c.b16 %v6699, %v6695
    %v7420 = vpack.c.b16 %v6700, %v6696
    %v7421 = vpack.c.b16 %v6701, %v6697
    %v7422 = vpack.c.b16 %v6702, %v6698
    %v7423 = vpack.c.b16 %v6707, %v6703
    %v7424 = vpack.c.b16 %v6708, %v6704
    %v7425 = vpack.c.b16 %v6709, %v6705
    %v7426 = vpack.c.b16 %v6710, %v6706
    %v7427 = vpack.c.b16 %v6715, %v6711
    %v7428 = vpack.c.b16 %v6716, %v6712
    %v7429 = vpack.c.b16 %v6717, %v6713
    %v7430 = vpack.c.b16 %v6718, %v6714
    %v7431 = vpack.c.b16 %v6723, %v6719
    %v7432 = vpack.c.b16 %v6724, %v6720
    %v7433 = vpack.c.b16 %v6725, %v6721
    %v7434 = vpack.c.b16 %v6726, %v6722
    %v7435 = vpack.c.b16 %v6731, %v6727
    %v7436 = vpack.c.b16 %v6732, %v6728
    %v7437 = vpack.c.b16 %v6733, %v6729
    %v7438 = vpack.c.b16 %v6734, %v6730
    %v7439 = vpack.c.b16 %v6739, %v6735
    %v7440 = vpack.c.b16 %v6740, %v6736
    %v7441 = vpack.c.b16 %v6741, %v6737
    %v7442 = vpack.c.b16 %v6742, %v6738
    %v7443 = vpack.c.b16 %v6747, %v6743
    %v7444 = vpack.c.b16 %v6748, %v6744
    %v7445 = vpack.c.b16 %v6749, %v6745
    %v7446 = vpack.c.b16 %v6750, %v6746
    %v7447 = vpack.c.b16 %v6755, %v6751
    %v7448 = vpack.c.b16 %v6756, %v6752
    %v7449 = vpack.c.b16 %v6757, %v6753
    %v7450 = vpack.c.b16 %v6758, %v6754
    %v7451 = vpack.c.b16 %v6763, %v6759
    %v7452 = vpack.c.b16 %v6764, %v6760
    %v7453 = vpack.c.b16 %v6765, %v6761
    %v7454 = vpack.c.b16 %v6766, %v6762
    %v7455 = vpack.c.b16 %v6771, %v6767
    %v7456 = vpack.c.b16 %v6772, %v6768
    %v7457 = vpack.c.b16 %v6773, %v6769
    %v7458 = vpack.c.b16 %v6774, %v6770
    %v7459 = vpack.c.b16 %v6779, %v6775
    %v7460 = vpack.c.b16 %v6780, %v6776
    %v7461 = vpack.c.b16 %v6781, %v6777
    %v7462 = vpack.c.b16 %v6782, %v6778
    %v7463 = vpack.c.b16 %v6787, %v6783
    %v7464 = vpack.c.b16 %v6788, %v6784
    %v7465 = vpack.c.b16 %v6789, %v6785
    %v7466 = vpack.c.b16 %v6790, %v6786
    %v7467 = vpack.c.b16 %v6795, %v6791
    %v7468 = vpack.c.b16 %v6796, %v6792
    %v7469 = vpack.c.b16 %v6797, %v6793
    %v7470 = vpack.c.b16 %v6798, %v6794
    %v7471 = vpack.c.b16 %v6803, %v6799
    %v7472 = vpack.c.b16 %v6804, %v6800
    %v7473 = vpack.c.b16 %v6805, %v6801
    %v7474 = vpack.c.b16 %v6806, %v6802
    %v7475 = vpack.c.b16 %v6811, %v6807
    %v7476 = vpack.c.b16 %v6812, %v6808
    %v7477 = vpack.c.b16 %v6813, %v6809
    %v7478 = vpack.c.b16 %v6814, %v6810
    %v7479 = vpack.c.b16 %v6819, %v6815
    %v7480 = vpack.c.b16 %v6820, %v6816
    %v7481 = vpack.c.b16 %v6821, %v6817
    %v7482 = vpack.c.b16 %v6822, %v6818
    %v7483 = vpack.c.b16 %v6827, %v6823
    %v7484 = vpack.c.b16 %v6828, %v6824
    %v7485 = vpack.c.b16 %v6829, %v6825
    %v7486 = vpack.c.b16 %v6830, %v6826
    %v7487 = vpack.c.b16 %v6835, %v6831
    %v7488 = vpack.c.b16 %v6836, %v6832
    %v7489 = vpack.c.b16 %v6837, %v6833
    %v7490 = vpack.c.b16 %v6838, %v6834
    %v7491 = vpack.c.b16 %v6843, %v6839
    %v7492 = vpack.c.b16 %v6844, %v6840
    %v7493 = vpack.c.b16 %v6845, %v6841
    %v7494 = vpack.c.b16 %v6846, %v6842
    %v7495 = vpack.c.b16 %v6851, %v6847
    %v7496 = vpack.c.b16 %v6852, %v6848
    %v7497 = vpack.c.b16 %v6853, %v6849
    %v7498 = vpack.c.b16 %v6854, %v6850
    %v7499 = vpack.c.b16 %v6859, %v6855
    %v7500 = vpack.c.b16 %v6860, %v6856
    %v7501 = vpack.c.b16 %v6861, %v6857
    %v7502 = vpack.c.b16 %v6862, %v6858
    %v7503 = vpack.c.b16 %v6867, %v6863
    %v7504 = vpack.c.b16 %v6868, %v6864
    %v7505 = vpack.c.b16 %v6869, %v6865
    %v7506 = vpack.c.b16 %v6870, %v6866
    %v7507 = vpack.c.b16 %v6875, %v6871
    %v7508 = vpack.c.b16 %v6876, %v6872
    %v7509 = vpack.c.b16 %v6877, %v6873
    %v7510 = vpack.c.b16 %v6878, %v6874
    %v7511 = vpack.c.b16 %v6883, %v6879
    %v7512 = vpack.c.b16 %v6884, %v6880
    %v7513 = vpack.c.b16 %v6885, %v6881
    %v7514 = vpack.c.b16 %v6886, %v6882
    %v7515 = vpack.c.b16 %v6891, %v6887
    %v7516 = vpack.c.b16 %v6892, %v6888
    %v7517 = vpack.c.b16 %v6893, %v6889
    %v7518 = vpack.c.b16 %v6894, %v6890
    %v7519 = vpack.c.b16 %v6899, %v6895
    %v7520 = vpack.c.b16 %v6900, %v6896
    %v7521 = vpack.c.b16 %v6901, %v6897
    %v7522 = vpack.c.b16 %v6902, %v6898
    %v7523 = vpack.c.b16 %v6907, %v6903
    %v7524 = vpack.c.b16 %v6908, %v6904
    %v7525 = vpack.c.b16 %v6909, %v6905
    %v7526 = vpack.c.b16 %v6910, %v6906
    %v7527 = vpack.c.b16 %v6915, %v6911
    %v7528 = vpack.c.b16 %v6916, %v6912
    %v7529 = vpack.c.b16 %v6917, %v6913
    %v7530 = vpack.c.b16 %v6918, %v6914
    %v7531 = vpack.c.b16 %v6923, %v6919
    %v7532 = vpack.c.b16 %v6924, %v6920
    %v7533 = vpack.c.b16 %v6925, %v6921
    %v7534 = vpack.c.b16 %v6926, %v6922
    %v7535 = vpack.c.b16 %v6931, %v6927
    %v7536 = vpack.c.b16 %v6932, %v6928
    %v7537 = vpack.c.b16 %v6933, %v6929
    %v7538 = vpack.c.b16 %v6934, %v6930
    %v7539 = vpack.c.b16 %v6939, %v6935
    %v7540 = vpack.c.b16 %v6940, %v6936
    %v7541 = vpack.c.b16 %v6941, %v6937
    %v7542 = vpack.c.b16 %v6942, %v6938
    %v7543 = vpack.c.b16 %v6947, %v6943
    %v7544 = vpack.c.b16 %v6948, %v6944
    %v7545 = vpack.c.b16 %v6949, %v6945
    %v7546 = vpack.c.b16 %v6950, %v6946
    %v7547 = vpack.c.b16 %v6955, %v6951
    %v7548 = vpack.c.b16 %v6956, %v6952
    %v7549 = vpack.c.b16 %v6957, %v6953
    %v7550 = vpack.c.b16 %v6958, %v6954
    %v7551 = vpack.c.b16 %v6963, %v6959
    %v7552 = vpack.c.b16 %v6964, %v6960
    %v7553 = vpack.c.b16 %v6965, %v6961
    %v7554 = vpack.c.b16 %v6966, %v6962
    %v7555 = vpack.c.b16 %v6971, %v6967
    %v7556 = vpack.c.b16 %v6972, %v6968
    %v7557 = vpack.c.b16 %v6973, %v6969
    %v7558 = vpack.c.b16 %v6974, %v6970
    %v7559 = vpack.c.b16 %v6979, %v6975
    %v7560 = vpack.c.b16 %v6980, %v6976
    %v7561 = vpack.c.b16 %v6981, %v6977
    %v7562 = vpack.c.b16 %v6982, %v6978
    %v7563 = vpack.c.b16 %v6987, %v6983
    %v7564 = vpack.c.b16 %v6988, %v6984
    %v7565 = vpack.c.b16 %v6989, %v6985
    %v7566 = vpack.c.b16 %v6990, %v6986
    %v7567 = vpack.c.b16 %v6995, %v6991
    %v7568 = vpack.c.b16 %v6996, %v6992
    %v7569 = vpack.c.b16 %v6997, %v6993
    %v7570 = vpack.c.b16 %v6998, %v6994
    %v7571 = vpack.c.b16 %v7003, %v6999
    %v7572 = vpack.c.b16 %v7004, %v7000
    %v7573 = vpack.c.b16 %v7005, %v7001
    %v7574 = vpack.c.b16 %v7006, %v7002
    %v7575 = vpack.c.b16 %v7011, %v7007
    %v7576 = vpack.c.b16 %v7012, %v7008
    %v7577 = vpack.c.b16 %v7013, %v7009
    %v7578 = vpack.c.b16 %v7014, %v7010
    %v7579 = vpack.c.b16 %v7019, %v7015
    %v7580 = vpack.c.b16 %v7020, %v7016
    %v7581 = vpack.c.b16 %v7021, %v7017
    %v7582 = vpack.c.b16 %v7022, %v7018
    %v7583 = vpack.c.b16 %v7027, %v7023
    %v7584 = vpack.c.b16 %v7028, %v7024
    %v7585 = vpack.c.b16 %v7029, %v7025
    %v7586 = vpack.c.b16 %v7030, %v7026
    %v7587 = vpack.c.b16 %v7035, %v7031
    %v7588 = vpack.c.b16 %v7036, %v7032
    %v7589 = vpack.c.b16 %v7037, %v7033
    %v7590 = vpack.c.b16 %v7038, %v7034
    %v7591 = vpack.c.b16 %v7043, %v7039
    %v7592 = vpack.c.b16 %v7044, %v7040
    %v7593 = vpack.c.b16 %v7045, %v7041
    %v7594 = vpack.c.b16 %v7046, %v7042
    %v7595 = vpack.c.b16 %v7051, %v7047
    %v7596 = vpack.c.b16 %v7052, %v7048
    %v7597 = vpack.c.b16 %v7053, %v7049
    %v7598 = vpack.c.b16 %v7054, %v7050
    %v7599 = vpack.c.b16 %v7059, %v7055
    %v7600 = vpack.c.b16 %v7060, %v7056
    %v7601 = vpack.c.b16 %v7061, %v7057
    %v7602 = vpack.c.b16 %v7062, %v7058
    %v7603 = vpack.c.b16 %v7067, %v7063
    %v7604 = vpack.c.b16 %v7068, %v7064
    %v7605 = vpack.c.b16 %v7069, %v7065
    %v7606 = vpack.c.b16 %v7070, %v7066
    %v7607 = vpack.c.b16 %v7075, %v7071
    %v7608 = vpack.c.b16 %v7076, %v7072
    %v7609 = vpack.c.b16 %v7077, %v7073
    %v7610 = vpack.c.b16 %v7078, %v7074
    %v7611 = vpack.c.b16 %v7083, %v7079
    %v7612 = vpack.c.b16 %v7084, %v7080
    %v7613 = vpack.c.b16 %v7085, %v7081
    %v7614 = vpack.c.b16 %v7086, %v7082
    %v7615 = vpack.c.b16 %v7091, %v7087
    %v7616 = vpack.c.b16 %v7092, %v7088
    %v7617 = vpack.c.b16 %v7093, %v7089
    %v7618 = vpack.c.b16 %v7094, %v7090
    %v7619 = vpack.c.b16 %v7099, %v7095
    %v7620 = vpack.c.b16 %v7100, %v7096
    %v7621 = vpack.c.b16 %v7101, %v7097
    %v7622 = vpack.c.b16 %v7102, %v7098
    %v7623 = vpack.c.b16 %v7107, %v7103
    %v7624 = vpack.c.b16 %v7108, %v7104
    %v7625 = vpack.c.b16 %v7109, %v7105
    %v7626 = vpack.c.b16 %v7110, %v7106
    %v7627 = vpack.c.b16 %v7115, %v7111
    %v7628 = vpack.c.b16 %v7116, %v7112
    %v7629 = vpack.c.b16 %v7117, %v7113
    %v7630 = vpack.c.b16 %v7118, %v7114
    %v7631 = vpack.c.b16 %v7123, %v7119
    %v7632 = vpack.c.b16 %v7124, %v7120
    %v7633 = vpack.c.b16 %v7125, %v7121
    %v7634 = vpack.c.b16 %v7126, %v7122
    %v7635 = vpack.c.b16 %v7131, %v7127
    %v7636 = vpack.c.b16 %v7132, %v7128
    %v7637 = vpack.c.b16 %v7133, %v7129
    %v7638 = vpack.c.b16 %v7134, %v7130
    %v7639 = vpack.c.b16 %v7139, %v7135
    %v7640 = vpack.c.b16 %v7140, %v7136
    %v7641 = vpack.c.b16 %v7141, %v7137
    %v7642 = vpack.c.b16 %v7142, %v7138
    %v7643 = vpack.c.b16 %v7147, %v7143
    %v7644 = vpack.c.b16 %v7148, %v7144
    %v7645 = vpack.c.b16 %v7149, %v7145
    %v7646 = vpack.c.b16 %v7150, %v7146
    %v7647 = vpack.c.b16 %v7155, %v7151
    %v7648 = vpack.c.b16 %v7156, %v7152
    %v7649 = vpack.c.b16 %v7157, %v7153
    %v7650 = vpack.c.b16 %v7158, %v7154
    %v7651 = vpack.c.b16 %v7163, %v7159
    %v7652 = vpack.c.b16 %v7164, %v7160
    %v7653 = vpack.c.b16 %v7165, %v7161
    %v7654 = vpack.c.b16 %v7166, %v7162
    %v7655 = vpack.c.b16 %v7171, %v7167
    %v7656 = vpack.c.b16 %v7172, %v7168
    %v7657 = vpack.c.b16 %v7173, %v7169
    %v7658 = vpack.c.b16 %v7174, %v7170
    %v7659 = vpack.c.b16 %v7179, %v7175
    %v7660 = vpack.c.b16 %v7180, %v7176
    %v7661 = vpack.c.b16 %v7181, %v7177
    %v7662 = vpack.c.b16 %v7182, %v7178
    %v7663 = vpack.c.b16 %v7187, %v7183
    %v7664 = vpack.c.b16 %v7188, %v7184
    %v7665 = vpack.c.b16 %v7189, %v7185
    %v7666 = vpack.c.b16 %v7190, %v7186
    %v7667 = vpack.c.b16 %v7195, %v7191
    %v7668 = vpack.c.b16 %v7196, %v7192
    %v7669 = vpack.c.b16 %v7197, %v7193
    %v7670 = vpack.c.b16 %v7198, %v7194
    %v7671 = vpack.c.b16 %v7203, %v7199
    %v7672 = vpack.c.b16 %v7204, %v7200
    %v7673 = vpack.c.b16 %v7205, %v7201
    %v7674 = vpack.c.b16 %v7206, %v7202
    %v7675 = vpack.c.b16 %v7211, %v7207
    %v7676 = vpack.c.b16 %v7212, %v7208
    %v7677 = vpack.c.b16 %v7213, %v7209
    %v7678 = vpack.c.b16 %v7214, %v7210
    %v7679 = vpack.c.b16 %v7219, %v7215
    %v7680 = vpack.c.b16 %v7220, %v7216
    %v7681 = vpack.c.b16 %v7221, %v7217
    %v7682 = vpack.c.b16 %v7222, %v7218
    %v7683 = vpack.c.b16 %v7227, %v7223
    %v7684 = vpack.c.b16 %v7228, %v7224
    %v7685 = vpack.c.b16 %v7229, %v7225
    %v7686 = vpack.c.b16 %v7230, %v7226
    %v7687 = vpack.c.b16 %v7235, %v7231
    %v7688 = vpack.c.b16 %v7236, %v7232
    %v7689 = vpack.c.b16 %v7237, %v7233
    %v7690 = vpack.c.b16 %v7238, %v7234
    %v7691 = vpack.c.b16 %v7243, %v7239
    %v7692 = vpack.c.b16 %v7244, %v7240
    %v7693 = vpack.c.b16 %v7245, %v7241
    %v7694 = vpack.c.b16 %v7246, %v7242
    %v7695 = vpack.c.b16 %v7251, %v7247
    %v7696 = vpack.c.b16 %v7252, %v7248
    %v7697 = vpack.c.b16 %v7253, %v7249
    %v7698 = vpack.c.b16 %v7254, %v7250
    %v7699 = vpack.c.b16 %v7259, %v7255
    %v7700 = vpack.c.b16 %v7260, %v7256
    %v7701 = vpack.c.b16 %v7261, %v7257
    %v7702 = vpack.c.b16 %v7262, %v7258
    %v7703 = vpack.c.b16 %v7267, %v7263
    %v7704 = vpack.c.b16 %v7268, %v7264
    %v7705 = vpack.c.b16 %v7269, %v7265
    %v7706 = vpack.c.b16 %v7270, %v7266
    %v7707 = vpack.c.b16 %v7275, %v7271
    %v7708 = vpack.c.b16 %v7276, %v7272
    %v7709 = vpack.c.b16 %v7277, %v7273
    %v7710 = vpack.c.b16 %v7278, %v7274
    %v7711 = vpack.c.b16 %v7283, %v7279
    %v7712 = vpack.c.b16 %v7284, %v7280
    %v7713 = vpack.c.b16 %v7285, %v7281
    %v7714 = vpack.c.b16 %v7286, %v7282
    %v7715 = vpack.c.b16 %v7291, %v7287
    %v7716 = vpack.c.b16 %v7292, %v7288
    %v7717 = vpack.c.b16 %v7293, %v7289
    %v7718 = vpack.c.b16 %v7294, %v7290
    %v7719 = vpack.c.b16 %v7299, %v7295
    %v7720 = vpack.c.b16 %v7300, %v7296
    %v7721 = vpack.c.b16 %v7301, %v7297
    %v7722 = vpack.c.b16 %v7302, %v7298
    %v7723 = vpack.c.b16 %v7307, %v7303
    %v7724 = vpack.c.b16 %v7308, %v7304
    %v7725 = vpack.c.b16 %v7309, %v7305
    %v7726 = vpack.c.b16 %v7310, %v7306
    %v7727 = vpack.c.b16 %v7315, %v7311
    %v7728 = vpack.c.b16 %v7316, %v7312
    %v7729 = vpack.c.b16 %v7317, %v7313
    %v7730 = vpack.c.b16 %v7318, %v7314
    %v7731 = vpack.c.b16 %v7323, %v7319
    %v7732 = vpack.c.b16 %v7324, %v7320
    %v7733 = vpack.c.b16 %v7325, %v7321
    %v7734 = vpack.c.b16 %v7326, %v7322
    %v7735 = vpack.c.b16 %v7331, %v7327
    %v7736 = vpack.c.b16 %v7332, %v7328
    %v7737 = vpack.c.b16 %v7333, %v7329
    %v7738 = vpack.c.b16 %v7334, %v7330
    %v7739 = vpack.c.b16 %v7339, %v7335
    %v7740 = vpack.c.b16 %v7340, %v7336
    %v7741 = vpack.c.b16 %v7341, %v7337
    %v7742 = vpack.c.b16 %v7342, %v7338
    %v7743 = vpack.c.b16 %v7347, %v7343
    %v7744 = vpack.c.b16 %v7348, %v7344
    %v7745 = vpack.c.b16 %v7349, %v7345
    %v7746 = vpack.c.b16 %v7350, %v7346
    %v7747 = vpack.c.b16 %v7355, %v7351
    %v7748 = vpack.c.b16 %v7356, %v7352
    %v7749 = vpack.c.b16 %v7357, %v7353
    %v7750 = vpack.c.b16 %v7358, %v7354
    %v7751 = vpack.c.b16 %v7363, %v7359
    %v7752 = vpack.c.b16 %v7364, %v7360
    %v7753 = vpack.c.b16 %v7365, %v7361
    %v7754 = vpack.c.b16 %v7366, %v7362
    %v7755 = vpack.c.b16 %v7371, %v7367
    %v7756 = vpack.c.b16 %v7372, %v7368
    %v7757 = vpack.c.b16 %v7373, %v7369
    %v7758 = vpack.c.b16 %v7374, %v7370
    %8143 = vmatprep.subr.bf16.mxu0 %v7376
    %8144 = vmatpush1.bf16.msra.mxu0 %v7375
    %8145 = vmatprep.subr.bf16.mxu0 %v7380
    %8146 = vmatpush1.bf16.msra.mxu0 %v7379
    %8147 = vmatprep.subr.bf16.mxu0 %v7384
    %8148 = vmatpush1.bf16.msra.mxu0 %v7383
    %8149 = vmatprep.subr.bf16.mxu0 %v7388
    %8150 = vmatpush1.bf16.msra.mxu0 %v7387
    %8151 = vmatprep.subr.bf16.mxu0 %v7392
    %8152 = vmatpush1.bf16.msra.mxu0 %v7391
    %8153 = vmatprep.subr.bf16.mxu0 %v7396
    %8154 = vmatpush1.bf16.msra.mxu0 %v7395
    %8155 = vmatprep.subr.bf16.mxu0 %v7400
    %8156 = vmatpush1.bf16.msra.mxu0 %v7399
    %8157 = vmatprep.subr.bf16.mxu0 %v7404
    %8158 = vmatpush1.bf16.msra.mxu0 %v7403
    %8159 = vmatprep.subr.bf16.mxu0 %v7408
    %8160 = vmatpush1.bf16.msra.mxu0 %v7407
    %8161 = vmatprep.subr.bf16.mxu0 %v7412
    %8162 = vmatpush1.bf16.msra.mxu0 %v7411
    %8163 = vmatprep.subr.bf16.mxu0 %v7416
    %8164 = vmatpush1.bf16.msra.mxu0 %v7415
    %8165 = vmatprep.subr.bf16.mxu0 %v7420
    %8166 = vmatpush1.bf16.msra.mxu0 %v7419
    %8167 = vmatprep.subr.bf16.mxu0 %v7424
    %8168 = vmatpush1.bf16.msra.mxu0 %v7423
    %8169 = vmatprep.subr.bf16.mxu0 %v7428
    %8170 = vmatpush1.bf16.msra.mxu0 %v7427
    %8171 = vmatprep.subr.bf16.mxu0 %v7432
    %8172 = vmatpush1.bf16.msra.mxu0 %v7431
    %8173 = vmatprep.subr.bf16.mxu0 %v7436
    %8174 = vmatpush1.bf16.msra.mxu0 %v7435
    %8175 = vmatprep.mubr.bf16.mxu0 %v5806
    %8176 = vmatmul.mubr.bf16.gmra.mrb[0].mxu0 %v5805
    %v8177 = vpop.f32.mrb[0].mxu0
    %v8178 = vadd.f32 %v6206, %v8177
    %v8179 = vpop.f32.mrb[0].mxu0
    %v8180 = vadd.f32 %v6210, %v8179
    %v8181 = vpop.f32.mrb[0].mxu0
    %v8182 = vpop.f32.mrb[0].mxu0
    %8183 = vdwg.mxu0
    %8184 = vmatprep.subr.bf16.mxu0 %v7440
    %8185 = vmatpush1.bf16.msra.mxu0 %v7439
    %8186 = vmatprep.subr.bf16.mxu0 %v7444
    %8187 = vmatpush1.bf16.msra.mxu0 %v7443
    %8188 = vmatprep.subr.bf16.mxu0 %v7448
    %8189 = vmatpush1.bf16.msra.mxu0 %v7447
    %8190 = vmatprep.subr.bf16.mxu0 %v7452
    %8191 = vmatpush1.bf16.msra.mxu0 %v7451
    %8192 = vmatprep.subr.bf16.mxu0 %v7456
    %8193 = vmatpush1.bf16.msra.mxu0 %v7455
    %8194 = vmatprep.subr.bf16.mxu0 %v7460
    %8195 = vmatpush1.bf16.msra.mxu0 %v7459
    %8196 = vmatprep.subr.bf16.mxu0 %v7464
    %8197 = vmatpush1.bf16.msra.mxu0 %v7463
    %8198 = vmatprep.subr.bf16.mxu0 %v7468
    %8199 = vmatpush1.bf16.msra.mxu0 %v7467
    %8200 = vmatprep.subr.bf16.mxu0 %v7472
    %8201 = vmatpush1.bf16.msra.mxu0 %v7471
    %8202 = vmatprep.subr.bf16.mxu0 %v7476
    %8203 = vmatpush1.bf16.msra.mxu0 %v7475
    %8204 = vmatprep.subr.bf16.mxu0 %v7480
    %8205 = vmatpush1.bf16.msra.mxu0 %v7479
    %8206 = vmatprep.subr.bf16.mxu0 %v7484
    %8207 = vmatpush1.bf16.msra.mxu0 %v7483
    %8208 = vmatprep.subr.bf16.mxu0 %v7488
    %8209 = vmatpush1.bf16.msra.mxu0 %v7487
    %8210 = vmatprep.subr.bf16.mxu0 %v7492
    %8211 = vmatpush1.bf16.msra.mxu0 %v7491
    %8212 = vmatprep.subr.bf16.mxu0 %v7496
    %8213 = vmatpush1.bf16.msra.mxu0 %v7495
    %8214 = vmatprep.subr.bf16.mxu0 %v7500
    %8215 = vmatpush1.bf16.msra.mxu0 %v7499
    %8216 = vmatprep.mubr.bf16.mxu0 %v5808
    %8217 = vmatmul.mubr.bf16.gmra.mrb[0].mxu0 %v5807
    %v8218 = vpop.f32.mrb[0].mxu0
    %v8219 = vadd.f32 %v8178, %v8218
    %v8220 = vpop.f32.mrb[0].mxu0
    %v8221 = vadd.f32 %v8180, %v8220
    %v8222 = vpop.f32.mrb[0].mxu0
    %v8223 = vpop.f32.mrb[0].mxu0
    %8224 = vdwg.mxu0
    %8225 = vmatprep.subr.bf16.mxu0 %v7504
    %8226 = vmatpush1.bf16.msra.mxu0 %v7503
    %8227 = vmatprep.subr.bf16.mxu0 %v7508
    %8228 = vmatpush1.bf16.msra.mxu0 %v7507
    %8229 = vmatprep.subr.bf16.mxu0 %v7512
    %8230 = vmatpush1.bf16.msra.mxu0 %v7511
    %8231 = vmatprep.subr.bf16.mxu0 %v7516
    %8232 = vmatpush1.bf16.msra.mxu0 %v7515
    %8233 = vmatprep.subr.bf16.mxu0 %v7520
    %8234 = vmatpush1.bf16.msra.mxu0 %v7519
    %8235 = vmatprep.subr.bf16.mxu0 %v7524
    %8236 = vmatpush1.bf16.msra.mxu0 %v7523
    %8237 = vmatprep.subr.bf16.mxu0 %v7528
    %8238 = vmatpush1.bf16.msra.mxu0 %v7527
    %8239 = vmatprep.subr.bf16.mxu0 %v7532
    %8240 = vmatpush1.bf16.msra.mxu0 %v7531
    %8241 = vmatprep.subr.bf16.mxu0 %v7536
    %8242 = vmatpush1.bf16.msra.mxu0 %v7535
    %8243 = vmatprep.subr.bf16.mxu0 %v7540
    %8244 = vmatpush1.bf16.msra.mxu0 %v7539
    %8245 = vmatprep.subr.bf16.mxu0 %v7544
    %8246 = vmatpush1.bf16.msra.mxu0 %v7543
    %8247 = vmatprep.subr.bf16.mxu0 %v7548
    %8248 = vmatpush1.bf16.msra.mxu0 %v7547
    %8249 = vmatprep.subr.bf16.mxu0 %v7552
    %8250 = vmatpush1.bf16.msra.mxu0 %v7551
    %8251 = vmatprep.subr.bf16.mxu0 %v7556
    %8252 = vmatpush1.bf16.msra.mxu0 %v7555
    %8253 = vmatprep.subr.bf16.mxu0 %v7560
    %8254 = vmatpush1.bf16.msra.mxu0 %v7559
    %8255 = vmatprep.subr.bf16.mxu0 %v7564
    %8256 = vmatpush1.bf16.msra.mxu0 %v7563
    %8257 = vmatprep.mubr.bf16.mxu0 %v5810
    %8258 = vmatmul.mubr.bf16.gmra.mrb[0].mxu0 %v5809
    %v8259 = vpop.f32.mrb[0].mxu0
    %v8260 = vadd.f32 %v8219, %v8259
    %v8261 = vpop.f32.mrb[0].mxu0
    %v8262 = vadd.f32 %v8221, %v8261
    %v8263 = vpop.f32.mrb[0].mxu0
    %v8264 = vpop.f32.mrb[0].mxu0
    %8265 = vdwg.mxu0
    %8266 = vmatprep.subr.bf16.mxu0 %v7568
    %8267 = vmatpush1.bf16.msra.mxu0 %v7567
    %8268 = vmatprep.subr.bf16.mxu0 %v7572
    %8269 = vmatpush1.bf16.msra.mxu0 %v7571
    %8270 = vmatprep.subr.bf16.mxu0 %v7576
    %8271 = vmatpush1.bf16.msra.mxu0 %v7575
    %8272 = vmatprep.subr.bf16.mxu0 %v7580
    %8273 = vmatpush1.bf16.msra.mxu0 %v7579
    %8274 = vmatprep.subr.bf16.mxu0 %v7584
    %8275 = vmatpush1.bf16.msra.mxu0 %v7583
    %8276 = vmatprep.subr.bf16.mxu0 %v7588
    %8277 = vmatpush1.bf16.msra.mxu0 %v7587
    %8278 = vmatprep.subr.bf16.mxu0 %v7592
    %8279 = vmatpush1.bf16.msra.mxu0 %v7591
    %8280 = vmatprep.subr.bf16.mxu0 %v7596
    %8281 = vmatpush1.bf16.msra.mxu0 %v7595
    %8282 = vmatprep.subr.bf16.mxu0 %v7600
    %8283 = vmatpush1.bf16.msra.mxu0 %v7599
    %8284 = vmatprep.subr.bf16.mxu0 %v7604
    %8285 = vmatpush1.bf16.msra.mxu0 %v7603
    %8286 = vmatprep.subr.bf16.mxu0 %v7608
    %8287 = vmatpush1.bf16.msra.mxu0 %v7607
    %8288 = vmatprep.subr.bf16.mxu0 %v7612
    %8289 = vmatpush1.bf16.msra.mxu0 %v7611
    %8290 = vmatprep.subr.bf16.mxu0 %v7616
    %8291 = vmatpush1.bf16.msra.mxu0 %v7615
    %8292 = vmatprep.subr.bf16.mxu0 %v7620
    %8293 = vmatpush1.bf16.msra.mxu0 %v7619
    %8294 = vmatprep.subr.bf16.mxu0 %v7624
    %8295 = vmatpush1.bf16.msra.mxu0 %v7623
    %8296 = vmatprep.subr.bf16.mxu0 %v7628
    %8297 = vmatpush1.bf16.msra.mxu0 %v7627
    %8298 = vmatprep.mubr.bf16.mxu0 %v5812
    %8299 = vmatmul.mubr.bf16.gmra.mrb[0].mxu0 %v5811
    %v8300 = vpop.f32.mrb[0].mxu0
    %v8301 = vadd.f32 %v8260, %v8300
    %v8302 = vpop.f32.mrb[0].mxu0
    %v8303 = vadd.f32 %v8262, %v8302
    %v8304 = vpop.f32.mrb[0].mxu0
    %v8305 = vpop.f32.mrb[0].mxu0
    %8306 = vdwg.mxu0
    %8307 = vmatprep.subr.bf16.mxu0 %v7632
    %8308 = vmatpush1.bf16.msra.mxu0 %v7631
    %8309 = vmatprep.subr.bf16.mxu0 %v7636
    %8310 = vmatpush1.bf16.msra.mxu0 %v7635
    %8311 = vmatprep.subr.bf16.mxu0 %v7640
    %8312 = vmatpush1.bf16.msra.mxu0 %v7639
    %8313 = vmatprep.subr.bf16.mxu0 %v7644
    %8314 = vmatpush1.bf16.msra.mxu0 %v7643
    %8315 = vmatprep.subr.bf16.mxu0 %v7648
    %8316 = vmatpush1.bf16.msra.mxu0 %v7647
    %8317 = vmatprep.subr.bf16.mxu0 %v7652
    %8318 = vmatpush1.bf16.msra.mxu0 %v7651
    %8319 = vmatprep.subr.bf16.mxu0 %v7656
    %8320 = vmatpush1.bf16.msra.mxu0 %v7655
    %8321 = vmatprep.subr.bf16.mxu0 %v7660
    %8322 = vmatpush1.bf16.msra.mxu0 %v7659
    %8323 = vmatprep.subr.bf16.mxu0 %v7664
    %8324 = vmatpush1.bf16.msra.mxu0 %v7663
    %8325 = vmatprep.subr.bf16.mxu0 %v7668
    %8326 = vmatpush1.bf16.msra.mxu0 %v7667
    %8327 = vmatprep.subr.bf16.mxu0 %v7672
    %8328 = vmatpush1.bf16.msra.mxu0 %v7671
    %8329 = vmatprep.subr.bf16.mxu0 %v7676
    %8330 = vmatpush1.bf16.msra.mxu0 %v7675
    %8331 = vmatprep.subr.bf16.mxu0 %v7680
    %8332 = vmatpush1.bf16.msra.mxu0 %v7679
    %8333 = vmatprep.subr.bf16.mxu0 %v7684
    %8334 = vmatpush1.bf16.msra.mxu0 %v7683
    %8335 = vmatprep.subr.bf16.mxu0 %v7688
    %8336 = vmatpush1.bf16.msra.mxu0 %v7687
    %8337 = vmatprep.subr.bf16.mxu0 %v7692
    %8338 = vmatpush1.bf16.msra.mxu0 %v7691
    %8339 = vmatprep.mubr.bf16.mxu0 %v5814
    %8340 = vmatmul.mubr.bf16.gmra.mrb[0].mxu0 %v5813
    %v8341 = vpop.f32.mrb[0].mxu0
    %v8342 = vadd.f32 %v8301, %v8341
    %v8343 = vpop.f32.mrb[0].mxu0
    %v8344 = vadd.f32 %v8303, %v8343
    %v8345 = vpop.f32.mrb[0].mxu0
    %v8346 = vpop.f32.mrb[0].mxu0
    %8347 = vdwg.mxu0
    %8348 = vmatprep.subr.bf16.mxu0 %v7696
    %8349 = vmatpush1.bf16.msra.mxu0 %v7695
    %8350 = vmatprep.subr.bf16.mxu0 %v7700
    %8351 = vmatpush1.bf16.msra.mxu0 %v7699
    %8352 = vmatprep.subr.bf16.mxu0 %v7704
    %8353 = vmatpush1.bf16.msra.mxu0 %v7703
    %8354 = vmatprep.subr.bf16.mxu0 %v7708
    %8355 = vmatpush1.bf16.msra.mxu0 %v7707
    %8356 = vmatprep.subr.bf16.mxu0 %v7712
    %8357 = vmatpush1.bf16.msra.mxu0 %v7711
    %8358 = vmatprep.subr.bf16.mxu0 %v7716
    %8359 = vmatpush1.bf16.msra.mxu0 %v7715
    %8360 = vmatprep.subr.bf16.mxu0 %v7720
    %8361 = vmatpush1.bf16.msra.mxu0 %v7719
    %8362 = vmatprep.subr.bf16.mxu0 %v7724
    %8363 = vmatpush1.bf16.msra.mxu0 %v7723
    %8364 = vmatprep.subr.bf16.mxu0 %v7728
    %8365 = vmatpush1.bf16.msra.mxu0 %v7727
    %8366 = vmatprep.subr.bf16.mxu0 %v7732
    %8367 = vmatpush1.bf16.msra.mxu0 %v7731
    %8368 = vmatprep.subr.bf16.mxu0 %v7736
    %8369 = vmatpush1.bf16.msra.mxu0 %v7735
    %8370 = vmatprep.subr.bf16.mxu0 %v7740
    %8371 = vmatpush1.bf16.msra.mxu0 %v7739
    %8372 = vmatprep.subr.bf16.mxu0 %v7744
    %8373 = vmatpush1.bf16.msra.mxu0 %v7743
    %8374 = vmatprep.subr.bf16.mxu0 %v7748
    %8375 = vmatpush1.bf16.msra.mxu0 %v7747
    %8376 = vmatprep.subr.bf16.mxu0 %v7752
    %8377 = vmatpush1.bf16.msra.mxu0 %v7751
    %8378 = vmatprep.subr.bf16.mxu0 %v7756
    %8379 = vmatpush1.bf16.msra.mxu0 %v7755
    %8380 = vmatprep.mubr.bf16.mxu0 %v5816
    %8381 = vmatmul.mubr.bf16.gmra.mrb[0].mxu0 %v5815
    %v8382 = vpop.f32.mrb[0].mxu0
    %v8383 = vadd.f32 %v8342, %v8382
    %v8384 = vpop.f32.mrb[0].mxu0
    %v8385 = vadd.f32 %v8344, %v8384
    %v8386 = vpop.f32.mrb[0].mxu0
    %v8387 = vpop.f32.mrb[0].mxu0
    %8388 = vdwg.mxu0
    %8389 = vmatprep.subr.bf16.mxu0 %v7378
    %8390 = vmatpush1.bf16.msra.mxu0 %v7377
    %8391 = vmatprep.subr.bf16.mxu0 %v7382
    %8392 = vmatpush1.bf16.msra.mxu0 %v7381
    %8393 = vmatprep.subr.bf16.mxu0 %v7386
    %8394 = vmatpush1.bf16.msra.mxu0 %v7385
    %8395 = vmatprep.subr.bf16.mxu0 %v7390
    %8396 = vmatpush1.bf16.msra.mxu0 %v7389
    %8397 = vmatprep.subr.bf16.mxu0 %v7394
    %8398 = vmatpush1.bf16.msra.mxu0 %v7393
    %8399 = vmatprep.subr.bf16.mxu0 %v7398
    %8400 = vmatpush1.bf16.msra.mxu0 %v7397
    %8401 = vmatprep.subr.bf16.mxu0 %v7402
    %8402 = vmatpush1.bf16.msra.mxu0 %v7401
    %8403 = vmatprep.subr.bf16.mxu0 %v7406
    %8404 = vmatpush1.bf16.msra.mxu0 %v7405
    %8405 = vmatprep.subr.bf16.mxu0 %v7410
    %8406 = vmatpush1.bf16.msra.mxu0 %v7409
    %8407 = vmatprep.subr.bf16.mxu0 %v7414
    %8408 = vmatpush1.bf16.msra.mxu0 %v7413
    %8409 = vmatprep.subr.bf16.mxu0 %v7418
    %8410 = vmatpush1.bf16.msra.mxu0 %v7417
    %8411 = vmatprep.subr.bf16.mxu0 %v7422
    %8412 = vmatpush1.bf16.msra.mxu0 %v7421
    %8413 = vmatprep.subr.bf16.mxu0 %v7426
    %8414 = vmatpush1.bf16.msra.mxu0 %v7425
    %8415 = vmatprep.subr.bf16.mxu0 %v7430
    %8416 = vmatpush1.bf16.msra.mxu0 %v7429
    %8417 = vmatprep.subr.bf16.mxu0 %v7434
    %8418 = vmatpush1.bf16.msra.mxu0 %v7433
    %8419 = vmatprep.subr.bf16.mxu0 %v7438
    %8420 = vmatpush1.bf16.msra.mxu0 %v7437
    %8421 = vmatprep.mubr.bf16.mxu0 %v5806
    %8422 = vmatmul.mubr.bf16.gmra.mrb[0].mxu0 %v5805
    %v8423 = vpop.f32.mrb[0].mxu0
    %v8424 = vadd.f32 %v6214, %v8423
    %v8425 = vpop.f32.mrb[0].mxu0
    %v8426 = vadd.f32 %v6218, %v8425
    %v8427 = vpop.f32.mrb[0].mxu0
    %v8428 = vpop.f32.mrb[0].mxu0
    %8429 = vdwg.mxu0
    %8430 = vmatprep.subr.bf16.mxu0 %v7442
    %8431 = vmatpush1.bf16.msra.mxu0 %v7441
    %8432 = vmatprep.subr.bf16.mxu0 %v7446
    %8433 = vmatpush1.bf16.msra.mxu0 %v7445
    %8434 = vmatprep.subr.bf16.mxu0 %v7450
    %8435 = vmatpush1.bf16.msra.mxu0 %v7449
    %8436 = vmatprep.subr.bf16.mxu0 %v7454
    %8437 = vmatpush1.bf16.msra.mxu0 %v7453
    %8438 = vmatprep.subr.bf16.mxu0 %v7458
    %8439 = vmatpush1.bf16.msra.mxu0 %v7457
    %8440 = vmatprep.subr.bf16.mxu0 %v7462
    %8441 = vmatpush1.bf16.msra.mxu0 %v7461
    %8442 = vmatprep.subr.bf16.mxu0 %v7466
    %8443 = vmatpush1.bf16.msra.mxu0 %v7465
    %8444 = vmatprep.subr.bf16.mxu0 %v7470
    %8445 = vmatpush1.bf16.msra.mxu0 %v7469
    %8446 = vmatprep.subr.bf16.mxu0 %v7474
    %8447 = vmatpush1.bf16.msra.mxu0 %v7473
    %8448 = vmatprep.subr.bf16.mxu0 %v7478
    %8449 = vmatpush1.bf16.msra.mxu0 %v7477
    %8450 = vmatprep.subr.bf16.mxu0 %v7482
    %8451 = vmatpush1.bf16.msra.mxu0 %v7481
    %8452 = vmatprep.subr.bf16.mxu0 %v7486
    %8453 = vmatpush1.bf16.msra.mxu0 %v7485
    %8454 = vmatprep.subr.bf16.mxu0 %v7490
    %8455 = vmatpush1.bf16.msra.mxu0 %v7489
    %8456 = vmatprep.subr.bf16.mxu0 %v7494
    %8457 = vmatpush1.bf16.msra.mxu0 %v7493
    %8458 = vmatprep.subr.bf16.mxu0 %v7498
    %8459 = vmatpush1.bf16.msra.mxu0 %v7497
    %8460 = vmatprep.subr.bf16.mxu0 %v7502
    %8461 = vmatpush1.bf16.msra.mxu0 %v7501
    %8462 = vmatprep.mubr.bf16.mxu0 %v5808
    %8463 = vmatmul.mubr.bf16.gmra.mrb[0].mxu0 %v5807
    %v8464 = vpop.f32.mrb[0].mxu0
    %v8465 = vadd.f32 %v8424, %v8464
    %v8466 = vpop.f32.mrb[0].mxu0
    %v8467 = vadd.f32 %v8426, %v8466
    %v8468 = vpop.f32.mrb[0].mxu0
    %v8469 = vpop.f32.mrb[0].mxu0
    %8470 = vdwg.mxu0
    %8471 = vmatprep.subr.bf16.mxu0 %v7506
    %8472 = vmatpush1.bf16.msra.mxu0 %v7505
    %8473 = vmatprep.subr.bf16.mxu0 %v7510
    %8474 = vmatpush1.bf16.msra.mxu0 %v7509
    %8475 = vmatprep.subr.bf16.mxu0 %v7514
    %8476 = vmatpush1.bf16.msra.mxu0 %v7513
    %8477 = vmatprep.subr.bf16.mxu0 %v7518
    %8478 = vmatpush1.bf16.msra.mxu0 %v7517
    %8479 = vmatprep.subr.bf16.mxu0 %v7522
    %8480 = vmatpush1.bf16.msra.mxu0 %v7521
    %8481 = vmatprep.subr.bf16.mxu0 %v7526
    %8482 = vmatpush1.bf16.msra.mxu0 %v7525
    %8483 = vmatprep.subr.bf16.mxu0 %v7530
    %8484 = vmatpush1.bf16.msra.mxu0 %v7529
    %8485 = vmatprep.subr.bf16.mxu0 %v7534
    %8486 = vmatpush1.bf16.msra.mxu0 %v7533
    %8487 = vmatprep.subr.bf16.mxu0 %v7538
    %8488 = vmatpush1.bf16.msra.mxu0 %v7537
    %8489 = vmatprep.subr.bf16.mxu0 %v7542
    %8490 = vmatpush1.bf16.msra.mxu0 %v7541
    %8491 = vmatprep.subr.bf16.mxu0 %v7546
    %8492 = vmatpush1.bf16.msra.mxu0 %v7545
    %8493 = vmatprep.subr.bf16.mxu0 %v7550
    %8494 = vmatpush1.bf16.msra.mxu0 %v7549
    %8495 = vmatprep.subr.bf16.mxu0 %v7554
    %8496 = vmatpush1.bf16.msra.mxu0 %v7553
    %8497 = vmatprep.subr.bf16.mxu0 %v7558
    %8498 = vmatpush1.bf16.msra.mxu0 %v7557
    %8499 = vmatprep.subr.bf16.mxu0 %v7562
    %8500 = vmatpush1.bf16.msra.mxu0 %v7561
    %8501 = vmatprep.subr.bf16.mxu0 %v7566
    %8502 = vmatpush1.bf16.msra.mxu0 %v7565
    %8503 = vmatprep.mubr.bf16.mxu0 %v5810
    %8504 = vmatmul.mubr.bf16.gmra.mrb[0].mxu0 %v5809
    %v8505 = vpop.f32.mrb[0].mxu0
    %v8506 = vadd.f32 %v8465, %v8505
    %v8507 = vpop.f32.mrb[0].mxu0
    %v8508 = vadd.f32 %v8467, %v8507
    %v8509 = vpop.f32.mrb[0].mxu0
    %v8510 = vpop.f32.mrb[0].mxu0
    %8511 = vdwg.mxu0
    %8512 = vmatprep.subr.bf16.mxu0 %v7570
    %8513 = vmatpush1.bf16.msra.mxu0 %v7569
    %8514 = vmatprep.subr.bf16.mxu0 %v7574
    %8515 = vmatpush1.bf16.msra.mxu0 %v7573
    %8516 = vmatprep.subr.bf16.mxu0 %v7578
    %8517 = vmatpush1.bf16.msra.mxu0 %v7577
    %8518 = vmatprep.subr.bf16.mxu0 %v7582
    %8519 = vmatpush1.bf16.msra.mxu0 %v7581
    %8520 = vmatprep.subr.bf16.mxu0 %v7586
    %8521 = vmatpush1.bf16.msra.mxu0 %v7585
    %8522 = vmatprep.subr.bf16.mxu0 %v7590
    %8523 = vmatpush1.bf16.msra.mxu0 %v7589
    %8524 = vmatprep.subr.bf16.mxu0 %v7594
    %8525 = vmatpush1.bf16.msra.mxu0 %v7593
    %8526 = vmatprep.subr.bf16.mxu0 %v7598
    %8527 = vmatpush1.bf16.msra.mxu0 %v7597
    %8528 = vmatprep.subr.bf16.mxu0 %v7602
    %8529 = vmatpush1.bf16.msra.mxu0 %v7601
    %8530 = vmatprep.subr.bf16.mxu0 %v7606
    %8531 = vmatpush1.bf16.msra.mxu0 %v7605
    %8532 = vmatprep.subr.bf16.mxu0 %v7610
    %8533 = vmatpush1.bf16.msra.mxu0 %v7609
    %8534 = vmatprep.subr.bf16.mxu0 %v7614
    %8535 = vmatpush1.bf16.msra.mxu0 %v7613
    %8536 = vmatprep.subr.bf16.mxu0 %v7618
    %8537 = vmatpush1.bf16.msra.mxu0 %v7617
    %8538 = vmatprep.subr.bf16.mxu0 %v7622
    %8539 = vmatpush1.bf16.msra.mxu0 %v7621
    %8540 = vmatprep.subr.bf16.mxu0 %v7626
    %8541 = vmatpush1.bf16.msra.mxu0 %v7625
    %8542 = vmatprep.subr.bf16.mxu0 %v7630
    %8543 = vmatpush1.bf16.msra.mxu0 %v7629
    %8544 = vmatprep.mubr.bf16.mxu0 %v5812
    %8545 = vmatmul.mubr.bf16.gmra.mrb[0].mxu0 %v5811
    %v8546 = vpop.f32.mrb[0].mxu0
    %v8547 = vadd.f32 %v8506, %v8546
    %v8548 = vpop.f32.mrb[0].mxu0
    %v8549 = vadd.f32 %v8508, %v8548
    %v8550 = vpop.f32.mrb[0].mxu0
    %v8551 = vpop.f32.mrb[0].mxu0
    %8552 = vdwg.mxu0
    %8553 = vmatprep.subr.bf16.mxu0 %v7634
    %8554 = vmatpush1.bf16.msra.mxu0 %v7633
    %8555 = vmatprep.subr.bf16.mxu0 %v7638
    %8556 = vmatpush1.bf16.msra.mxu0 %v7637
    %8557 = vmatprep.subr.bf16.mxu0 %v7642
    %8558 = vmatpush1.bf16.msra.mxu0 %v7641
    %8559 = vmatprep.subr.bf16.mxu0 %v7646
    %8560 = vmatpush1.bf16.msra.mxu0 %v7645
    %8561 = vmatprep.subr.bf16.mxu0 %v7650
    %8562 = vmatpush1.bf16.msra.mxu0 %v7649
    %8563 = vmatprep.subr.bf16.mxu0 %v7654
    %8564 = vmatpush1.bf16.msra.mxu0 %v7653
    %8565 = vmatprep.subr.bf16.mxu0 %v7658
    %8566 = vmatpush1.bf16.msra.mxu0 %v7657
    %8567 = vmatprep.subr.bf16.mxu0 %v7662
    %8568 = vmatpush1.bf16.msra.mxu0 %v7661
    %8569 = vmatprep.subr.bf16.mxu0 %v7666
    %8570 = vmatpush1.bf16.msra.mxu0 %v7665
    %8571 = vmatprep.subr.bf16.mxu0 %v7670
    %8572 = vmatpush1.bf16.msra.mxu0 %v7669
    %8573 = vmatprep.subr.bf16.mxu0 %v7674
    %8574 = vmatpush1.bf16.msra.mxu0 %v7673
    %8575 = vmatprep.subr.bf16.mxu0 %v7678
    %8576 = vmatpush1.bf16.msra.mxu0 %v7677
    %8577 = vmatprep.subr.bf16.mxu0 %v7682
    %8578 = vmatpush1.bf16.msra.mxu0 %v7681
    %8579 = vmatprep.subr.bf16.mxu0 %v7686
    %8580 = vmatpush1.bf16.msra.mxu0 %v7685
    %8581 = vmatprep.subr.bf16.mxu0 %v7690
    %8582 = vmatpush1.bf16.msra.mxu0 %v7689
    %8583 = vmatprep.subr.bf16.mxu0 %v7694
    %8584 = vmatpush1.bf16.msra.mxu0 %v7693
    %8585 = vmatprep.mubr.bf16.mxu0 %v5814
    %8586 = vmatmul.mubr.bf16.gmra.mrb[0].mxu0 %v5813
    %v8587 = vpop.f32.mrb[0].mxu0
    %v8588 = vadd.f32 %v8547, %v8587
    %v8589 = vpop.f32.mrb[0].mxu0
    %v8590 = vadd.f32 %v8549, %v8589
    %v8591 = vpop.f32.mrb[0].mxu0
    %v8592 = vpop.f32.mrb[0].mxu0
    %8593 = vdwg.mxu0
    %8594 = vmatprep.subr.bf16.mxu0 %v7698
    %8595 = vmatpush1.bf16.msra.mxu0 %v7697
    %8596 = vmatprep.subr.bf16.mxu0 %v7702
    %8597 = vmatpush1.bf16.msra.mxu0 %v7701
    %8598 = vmatprep.subr.bf16.mxu0 %v7706
    %8599 = vmatpush1.bf16.msra.mxu0 %v7705
    %8600 = vmatprep.subr.bf16.mxu0 %v7710
    %8601 = vmatpush1.bf16.msra.mxu0 %v7709
    %8602 = vmatprep.subr.bf16.mxu0 %v7714
    %8603 = vmatpush1.bf16.msra.mxu0 %v7713
    %8604 = vmatprep.subr.bf16.mxu0 %v7718
    %8605 = vmatpush1.bf16.msra.mxu0 %v7717
    %8606 = vmatprep.subr.bf16.mxu0 %v7722
    %8607 = vmatpush1.bf16.msra.mxu0 %v7721
    %8608 = vmatprep.subr.bf16.mxu0 %v7726
    %8609 = vmatpush1.bf16.msra.mxu0 %v7725
    %8610 = vmatprep.subr.bf16.mxu0 %v7730
    %8611 = vmatpush1.bf16.msra.mxu0 %v7729
    %8612 = vmatprep.subr.bf16.mxu0 %v7734
    %8613 = vmatpush1.bf16.msra.mxu0 %v7733
    %8614 = vmatprep.subr.bf16.mxu0 %v7738
    %8615 = vmatpush1.bf16.msra.mxu0 %v7737
    %8616 = vmatprep.subr.bf16.mxu0 %v7742
    %8617 = vmatpush1.bf16.msra.mxu0 %v7741
    %8618 = vmatprep.subr.bf16.mxu0 %v7746
    %8619 = vmatpush1.bf16.msra.mxu0 %v7745
    %8620 = vmatprep.subr.bf16.mxu0 %v7750
    %8621 = vmatpush1.bf16.msra.mxu0 %v7749
    %8622 = vmatprep.subr.bf16.mxu0 %v7754
    %8623 = vmatpush1.bf16.msra.mxu0 %v7753
    %8624 = vmatprep.subr.bf16.mxu0 %v7758
    %8625 = vmatpush1.bf16.msra.mxu0 %v7757
    %8626 = vmatprep.mubr.bf16.mxu0 %v5816
    %8627 = vmatmul.mubr.bf16.gmra.mrb[0].mxu0 %v5815
    %v8628 = vpop.f32.mrb[0].mxu0
    %v8629 = vadd.f32 %v8588, %v8628
    %v8630 = vpop.f32.mrb[0].mxu0
    %v8631 = vadd.f32 %v8590, %v8630
    %v8632 = vpop.f32.mrb[0].mxu0
    %v8633 = vpop.f32.mrb[0].mxu0
    %8634 = vdwg.mxu0
    %v8635 = vmax.f32 %v8383, 0.0
    %v8636 = vmax.f32 %v8385, 0.0
    %v8637 = vmax.f32 %v8629, 0.0
    %v8638 = vmax.f32 %v8631, 0.0
    %v8639 = vpack.c.bf16 %v8635, %v8635
    %v8640 = vpack.c.bf16 %v8636, %v8636
    %v8641 = vpack.c.bf16 %v8637, %v8637
    %v8642 = vpack.c.bf16 %v8638, %v8638
    %v8643 = vld [vmem:[%s11] sm:$0xf]
    %v8644 = vld [vmem:[%s11 + $0x4] sm:$0xf]
    %v8645 = vld [vmem:[%s11 + $0x8] sm:$0xf]
    %v8646 = vld [vmem:[%s11 + $0xc] sm:$0xf]
    %v8647 = vld [vmem:[%s11 + $0x10] sm:$0xf]
    %v8648 = vld [vmem:[%s11 + $0x14] sm:$0xf]
    %v8649 = vld [vmem:[%s11 + $0x18] sm:$0xf]
    %v8650 = vld [vmem:[%s11 + $0x1c] sm:$0xf]
    %v8651 = vld [vmem:[%s11 + $0x20] sm:$0xf]
    %v8652 = vld [vmem:[%s11 + $0x24] sm:$0xf]
    %v8653 = vld [vmem:[%s11 + $0x28] sm:$0xf]
    %v8654 = vld [vmem:[%s11 + $0x2c] sm:$0xf]
    %v8655 = vld [vmem:[%s11 + $0x30] sm:$0xf]
    %v8656 = vld [vmem:[%s11 + $0x34] sm:$0xf]
    %v8657 = vld [vmem:[%s11 + $0x38] sm:$0xf]
    %v8658 = vld [vmem:[%s11 + $0x3c] sm:$0xf]
    %v8659 = vld [vmem:[%s11 + $0x40] sm:$0xf]
    %v8660 = vld [vmem:[%s11 + $0x44] sm:$0xf]
    %v8661 = vld [vmem:[%s11 + $0x48] sm:$0xf]
    %v8662 = vld [vmem:[%s11 + $0x4c] sm:$0xf]
    %v8663 = vld [vmem:[%s11 + $0x50] sm:$0xf]
    %v8664 = vld [vmem:[%s11 + $0x54] sm:$0xf]
    %v8665 = vld [vmem:[%s11 + $0x58] sm:$0xf]
    %v8666 = vld [vmem:[%s11 + $0x5c] sm:$0xf]
    %v8667 = vld [vmem:[%s11 + $0x60] sm:$0xf]
    %v8668 = vld [vmem:[%s11 + $0x64] sm:$0xf]
    %v8669 = vld [vmem:[%s11 + $0x68] sm:$0xf]
    %v8670 = vld [vmem:[%s11 + $0x6c] sm:$0xf]
    %v8671 = vld [vmem:[%s11 + $0x70] sm:$0xf]
    %v8672 = vld [vmem:[%s11 + $0x74] sm:$0xf]
    %v8673 = vld [vmem:[%s11 + $0x78] sm:$0xf]
    %v8674 = vld [vmem:[%s11 + $0x7c] sm:$0xf]
    %v8675 = vld [vmem:[%s11 + $0x80] sm:$0xf]
    %v8676 = vld [vmem:[%s11 + $0x84] sm:$0xf]
    %v8677 = vld [vmem:[%s11 + $0x88] sm:$0xf]
    %v8678 = vld [vmem:[%s11 + $0x8c] sm:$0xf]
    %v8679 = vld [vmem:[%s11 + $0x90] sm:$0xf]
    %v8680 = vld [vmem:[%s11 + $0x94] sm:$0xf]
    %v8681 = vld [vmem:[%s11 + $0x98] sm:$0xf]
    %v8682 = vld [vmem:[%s11 + $0x9c] sm:$0xf]
    %v8683 = vld [vmem:[%s11 + $0xa0] sm:$0xf]
    %v8684 = vld [vmem:[%s11 + $0xa4] sm:$0xf]
    %v8685 = vld [vmem:[%s11 + $0xa8] sm:$0xf]
    %v8686 = vld [vmem:[%s11 + $0xac] sm:$0xf]
    %v8687 = vld [vmem:[%s11 + $0xb0] sm:$0xf]
    %v8688 = vld [vmem:[%s11 + $0xb4] sm:$0xf]
    %v8689 = vld [vmem:[%s11 + $0xb8] sm:$0xf]
    %v8690 = vld [vmem:[%s11 + $0xbc] sm:$0xf]
    %v8691 = vld [vmem:[%s11 + $0xc0] sm:$0xf]
    %v8692 = vld [vmem:[%s11 + $0xc4] sm:$0xf]
    %v8693 = vld [vmem:[%s11 + $0xc8] sm:$0xf]
    %v8694 = vld [vmem:[%s11 + $0xcc] sm:$0xf]
    %v8695 = vld [vmem:[%s11 + $0xd0] sm:$0xf]
    %v8696 = vld [vmem:[%s11 + $0xd4] sm:$0xf]
    %v8697 = vld [vmem:[%s11 + $0xd8] sm:$0xf]
    %v8698 = vld [vmem:[%s11 + $0xdc] sm:$0xf]
    %v8699 = vld [vmem:[%s11 + $0xe0] sm:$0xf]
    %v8700 = vld [vmem:[%s11 + $0xe4] sm:$0xf]
    %v8701 = vld [vmem:[%s11 + $0xe8] sm:$0xf]
    %v8702 = vld [vmem:[%s11 + $0xec] sm:$0xf]
    %v8703 = vld [vmem:[%s11 + $0xf0] sm:$0xf]
    %v8704 = vld [vmem:[%s11 + $0xf4] sm:$0xf]
    %v8705 = vld [vmem:[%s11 + $0xf8] sm:$0xf]
    %v8706 = vld [vmem:[%s11 + $0xfc] sm:$0xf]
    %v8707 = vld [vmem:[%s12] sm:$0x1]
    %v8709 = vlaneseq
    %v8710 = vshrl.u32 %v8709, 7
    %v8711 = vsub.s32 0, %v8710
    %v8712 = vrot.slane %v8707, %v8711
    %v8778 = vunpack.c.l.b16 %v8643
    %v8779 = vunpack.c.l.b16 %v8644
    %v8780 = vunpack.c.l.b16 %v8645
    %v8781 = vunpack.c.l.b16 %v8646
    %v8782 = vunpack.c.l.b16 %v8647
    %v8783 = vunpack.c.l.b16 %v8648
    %v8784 = vunpack.c.l.b16 %v8649
    %v8785 = vunpack.c.l.b16 %v8650
    %v8786 = vunpack.c.l.b16 %v8651
    %v8787 = vunpack.c.l.b16 %v8652
    %v8788 = vunpack.c.l.b16 %v8653
    %v8789 = vunpack.c.l.b16 %v8654
    %v8790 = vunpack.c.l.b16 %v8655
    %v8791 = vunpack.c.l.b16 %v8656
    %v8792 = vunpack.c.l.b16 %v8657
    %v8793 = vunpack.c.l.b16 %v8658
    %v8794 = vunpack.c.l.b16 %v8659
    %v8795 = vunpack.c.l.b16 %v8660
    %v8796 = vunpack.c.l.b16 %v8661
    %v8797 = vunpack.c.l.b16 %v8662
    %v8798 = vunpack.c.l.b16 %v8663
    %v8799 = vunpack.c.l.b16 %v8664
    %v8800 = vunpack.c.l.b16 %v8665
    %v8801 = vunpack.c.l.b16 %v8666
    %v8802 = vunpack.c.l.b16 %v8667
    %v8803 = vunpack.c.l.b16 %v8668
    %v8804 = vunpack.c.l.b16 %v8669
    %v8805 = vunpack.c.l.b16 %v8670
    %v8806 = vunpack.c.l.b16 %v8671
    %v8807 = vunpack.c.l.b16 %v8672
    %v8808 = vunpack.c.l.b16 %v8673
    %v8809 = vunpack.c.l.b16 %v8674
    %v8810 = vunpack.c.l.b16 %v8675
    %v8811 = vunpack.c.l.b16 %v8676
    %v8812 = vunpack.c.l.b16 %v8677
    %v8813 = vunpack.c.l.b16 %v8678
    %v8814 = vunpack.c.l.b16 %v8679
    %v8815 = vunpack.c.l.b16 %v8680
    %v8816 = vunpack.c.l.b16 %v8681
    %v8817 = vunpack.c.l.b16 %v8682
    %v8818 = vunpack.c.l.b16 %v8683
    %v8819 = vunpack.c.l.b16 %v8684
    %v8820 = vunpack.c.l.b16 %v8685
    %v8821 = vunpack.c.l.b16 %v8686
    %v8822 = vunpack.c.l.b16 %v8687
    %v8823 = vunpack.c.l.b16 %v8688
    %v8824 = vunpack.c.l.b16 %v8689
    %v8825 = vunpack.c.l.b16 %v8690
    %v8826 = vunpack.c.l.b16 %v8691
    %v8827 = vunpack.c.l.b16 %v8692
    %v8828 = vunpack.c.l.b16 %v8693
    %v8829 = vunpack.c.l.b16 %v8694
    %v8830 = vunpack.c.l.b16 %v8695
    %v8831 = vunpack.c.l.b16 %v8696
    %v8832 = vunpack.c.l.b16 %v8697
    %v8833 = vunpack.c.l.b16 %v8698
    %v8834 = vunpack.c.l.b16 %v8699
    %v8835 = vunpack.c.l.b16 %v8700
    %v8836 = vunpack.c.l.b16 %v8701
    %v8837 = vunpack.c.l.b16 %v8702
    %v8838 = vunpack.c.l.b16 %v8703
    %v8839 = vunpack.c.l.b16 %v8704
    %v8840 = vunpack.c.l.b16 %v8705
    %v8841 = vunpack.c.l.b16 %v8706
    %v8842 = vpack.c.b16 %v8779, %v8778
    %v8843 = vpack.c.b16 %v8781, %v8780
    %v8844 = vpack.c.b16 %v8783, %v8782
    %v8845 = vpack.c.b16 %v8785, %v8784
    %v8846 = vpack.c.b16 %v8787, %v8786
    %v8847 = vpack.c.b16 %v8789, %v8788
    %v8848 = vpack.c.b16 %v8791, %v8790
    %v8849 = vpack.c.b16 %v8793, %v8792
    %v8850 = vpack.c.b16 %v8795, %v8794
    %v8851 = vpack.c.b16 %v8797, %v8796
    %v8852 = vpack.c.b16 %v8799, %v8798
    %v8853 = vpack.c.b16 %v8801, %v8800
    %v8854 = vpack.c.b16 %v8803, %v8802
    %v8855 = vpack.c.b16 %v8805, %v8804
    %v8856 = vpack.c.b16 %v8807, %v8806
    %v8857 = vpack.c.b16 %v8809, %v8808
    %v8858 = vpack.c.b16 %v8811, %v8810
    %v8859 = vpack.c.b16 %v8813, %v8812
    %v8860 = vpack.c.b16 %v8815, %v8814
    %v8861 = vpack.c.b16 %v8817, %v8816
    %v8862 = vpack.c.b16 %v8819, %v8818
    %v8863 = vpack.c.b16 %v8821, %v8820
    %v8864 = vpack.c.b16 %v8823, %v8822
    %v8865 = vpack.c.b16 %v8825, %v8824
    %v8866 = vpack.c.b16 %v8827, %v8826
    %v8867 = vpack.c.b16 %v8829, %v8828
    %v8868 = vpack.c.b16 %v8831, %v8830
    %v8869 = vpack.c.b16 %v8833, %v8832
    %v8870 = vpack.c.b16 %v8835, %v8834
    %v8871 = vpack.c.b16 %v8837, %v8836
    %v8872 = vpack.c.b16 %v8839, %v8838
    %v8873 = vpack.c.b16 %v8841, %v8840
    %8906 = vmatprep.subr.bf16.mxu0 0
    %8907 = vmatpush1.bf16.msra.mxu0 %v8842
    %8908 = vmatprep.subr.bf16.mxu0 0
    %8909 = vmatpush1.bf16.msra.mxu0 %v8843
    %8910 = vmatprep.subr.bf16.mxu0 0
    %8911 = vmatpush1.bf16.msra.mxu0 %v8844
    %8912 = vmatprep.subr.bf16.mxu0 0
    %8913 = vmatpush1.bf16.msra.mxu0 %v8845
    %8914 = vmatprep.subr.bf16.mxu0 0
    %8915 = vmatpush1.bf16.msra.mxu0 %v8846
    %8916 = vmatprep.subr.bf16.mxu0 0
    %8917 = vmatpush1.bf16.msra.mxu0 %v8847
    %8918 = vmatprep.subr.bf16.mxu0 0
    %8919 = vmatpush1.bf16.msra.mxu0 %v8848
    %8920 = vmatprep.subr.bf16.mxu0 0
    %8921 = vmatpush1.bf16.msra.mxu0 %v8849
    %8922 = vmatprep.subr.bf16.mxu0 0
    %8923 = vmatpush1.bf16.msra.mxu0 %v8850
    %8924 = vmatprep.subr.bf16.mxu0 0
    %8925 = vmatpush1.bf16.msra.mxu0 %v8851
    %8926 = vmatprep.subr.bf16.mxu0 0
    %8927 = vmatpush1.bf16.msra.mxu0 %v8852
    %8928 = vmatprep.subr.bf16.mxu0 0
    %8929 = vmatpush1.bf16.msra.mxu0 %v8853
    %8930 = vmatprep.subr.bf16.mxu0 0
    %8931 = vmatpush1.bf16.msra.mxu0 %v8854
    %8932 = vmatprep.subr.bf16.mxu0 0
    %8933 = vmatpush1.bf16.msra.mxu0 %v8855
    %8934 = vmatprep.subr.bf16.mxu0 0
    %8935 = vmatpush1.bf16.msra.mxu0 %v8856
    %8936 = vmatprep.subr.bf16.mxu0 0
    %8937 = vmatpush1.bf16.msra.mxu0 %v8857
    %8938 = vmatprep.mubr.bf16.mxu0 %v8640
    %8939 = vmatmul.mubr.bf16.gmra.mrb[0].mxu0 %v8639
    %v8940 = vpop.f32.mrb[0].mxu0
    %v8941 = vadd.f32 %v8712, %v8940
    %v8942 = vpop.f32.mrb[0].mxu0
    %v8943 = vpop.f32.mrb[0].mxu0
    %v8944 = vpop.f32.mrb[0].mxu0
    %8945 = vdwg.mxu0
    %8946 = vmatprep.subr.bf16.mxu0 0
    %8947 = vmatpush1.bf16.msra.mxu0 %v8858
    %8948 = vmatprep.subr.bf16.mxu0 0
    %8949 = vmatpush1.bf16.msra.mxu0 %v8859
    %8950 = vmatprep.subr.bf16.mxu0 0
    %8951 = vmatpush1.bf16.msra.mxu0 %v8860
    %8952 = vmatprep.subr.bf16.mxu0 0
    %8953 = vmatpush1.bf16.msra.mxu0 %v8861
    %8954 = vmatprep.subr.bf16.mxu0 0
    %8955 = vmatpush1.bf16.msra.mxu0 %v8862
    %8956 = vmatprep.subr.bf16.mxu0 0
    %8957 = vmatpush1.bf16.msra.mxu0 %v8863
    %8958 = vmatprep.subr.bf16.mxu0 0
    %8959 = vmatpush1.bf16.msra.mxu0 %v8864
    %8960 = vmatprep.subr.bf16.mxu0 0
    %8961 = vmatpush1.bf16.msra.mxu0 %v8865
    %8962 = vmatprep.subr.bf16.mxu0 0
    %8963 = vmatpush1.bf16.msra.mxu0 %v8866
    %8964 = vmatprep.subr.bf16.mxu0 0
    %8965 = vmatpush1.bf16.msra.mxu0 %v8867
    %8966 = vmatprep.subr.bf16.mxu0 0
    %8967 = vmatpush1.bf16.msra.mxu0 %v8868
    %8968 = vmatprep.subr.bf16.mxu0 0
    %8969 = vmatpush1.bf16.msra.mxu0 %v8869
    %8970 = vmatprep.subr.bf16.mxu0 0
    %8971 = vmatpush1.bf16.msra.mxu0 %v8870
    %8972 = vmatprep.subr.bf16.mxu0 0
    %8973 = vmatpush1.bf16.msra.mxu0 %v8871
    %8974 = vmatprep.subr.bf16.mxu0 0
    %8975 = vmatpush1.bf16.msra.mxu0 %v8872
    %8976 = vmatprep.subr.bf16.mxu0 0
    %8977 = vmatpush1.bf16.msra.mxu0 %v8873
    %8978 = vmatprep.mubr.bf16.mxu0 %v8642
    %8979 = vmatmul.mubr.bf16.gmra.mrb[0].mxu0 %v8641
    %v8980 = vpop.f32.mrb[0].mxu0
    %v8981 = vadd.f32 %v8941, %v8980
    %v8982 = vpop.f32.mrb[0].mxu0
    %v8983 = vpop.f32.mrb[0].mxu0
    %v8984 = vpop.f32.mrb[0].mxu0
    %8985 = vdwg.mxu0
    %vm8986 = vcmask 25600
    %8987 = vst.msk [vmem:[%s13] sm:$0x3] %vm8986, %v8981
    // Predicated region
    $region62: #{multitask_efficientnet_forward.1} parent=1 // pred_check
      _
    $region63: #{multitask_efficientnet_forward.1} parent=1 // pred_check_branch
      %8989 = sbr.rel (0) target = $region65
    $region64: #{multitask_efficientnet_forward.1} parent=1 // pred_region
      _
    $region65: #{multitask_efficientnet_forward.1} parent=1 // pred_fallthru
      _
    // Predicated region
    $region66: #{multitask_efficientnet_forward.1} parent=1 // pred_check
      _
    $region67: #{multitask_efficientnet_forward.1} parent=1 // pred_check_branch
      %8991 = sbr.rel (0) target = $region69
    $region68: #{multitask_efficientnet_forward.1} parent=1 // pred_region
      _
    $region69: #{multitask_efficientnet_forward.1} parent=1 // pred_fallthru
      _
    %8992 = vsyncpa [#allocation3], 1
    %8993 = vsyncpa [#allocation5], 1

</llo_original>
